<compile_context>
chip_gen: v5e
topology: v5e:2x2
jax: 0.10.0
libtpu: 0.0.40
codegen_flags: <defaults>
</compile_context>

<pallas_src>
import functools

import jax
import jax.numpy as jnp
from jax.experimental import pallas as pl
from jax.experimental.pallas import tpu as pltpu

_EPS = 1e-5


def _round_up(x, m):
    return (x + m - 1) // m * m


def _coord(j, i, layers):
    assert j != i
    return j * (layers - 1) + i - 1


# -----------------------------------------------------------------------------
# Pallas kernels
# -----------------------------------------------------------------------------
def _conv_bn_fused_kernel(slab_ref, w_ref, nrm_ref, b_ref, mask_ref,
                          out_ref, stats_ref, acc_ref, *,
                          ksize, wp, hwp, inner_off):
    """One (sample, input-channel-block) grid step.

    Fuses: producer BN+ReLU applied on load (y = max(x*scale+shift, floor)),
           conv2d (stride 1, same padding) as K*K shifted-window MXU matmuls,
           conv bias, and per-sample BN statistics of THIS layer's output.

    slab_ref : (1, CB, S)       one input-channel block of the activation slab
    w_ref    : (1, K*K, F, CB)  fused layer weights for this channel block
    nrm_ref  : (3, CB, 1)       per-channel (scale, shift, relu-floor) for load
    b_ref    : (F, 1)           this layer's conv bias
    mask_ref : (1, S)           1.0 at valid (interior) spatial positions
    out_ref  : (1, F, S)        raw conv+bias output (this layer's slab block)
    stats_ref: (1, F, 2)        per-sample (sum, sum-of-squares) over valid px
    acc_ref  : (F, hwp)         f32 accumulator (VMEM scratch), resident across
                                the input-channel-block grid axis
    """
    cblk = pl.program_id(1)
    nblk = pl.num_programs(1)

    @pl.when(cblk == 0)
    def _init():
        acc_ref[...] = jnp.zeros_like(acc_ref)

    # Normalize-on-load: the producing layer's BN+ReLU, done on the VPU here.
    x = slab_ref[0].astype(jnp.float32)                          # (CB, S)
    xn = jnp.maximum(x * nrm_ref[0] + nrm_ref[1], nrm_ref[2]) * mask_ref[...]

    # K*K taps: contiguous lane slices of the padded-flat layout -> MXU matmuls.
    part = None
    for t in range(ksize * ksize):
        off = (t // ksize) * wp + (t % ksize)
        xs = xn[:, off:off + hwp]                                # (CB, hwp)
        d = jax.lax.dot_general(w_ref[0, t], xs, (((1,), (0,)), ((), ())),
                                preferred_element_type=jnp.float32)
        part = d if part is None else part + d
    acc_ref[...] += part

    @pl.when(cblk == nblk - 1)
    def _finalize():
        f = acc_ref.shape[0]
        s_total = out_ref.shape[-1]
        right = s_total - inner_off - hwp
        pieces = []
        if inner_off > 0:
            pieces.append(jnp.zeros((f, inner_off), jnp.float32))
        pieces.append(acc_ref[...])
        if right > 0:
            pieces.append(jnp.zeros((f, right), jnp.float32))
        full = pieces[0] if len(pieces) == 1 else jnp.concatenate(pieces, axis=-1)
        # add bias, then zero the spatial padding (also kills wrapped garbage
        # columns of the computed grid)
        full = (full + b_ref[...]) * mask_ref[...]               # (F, S)
        out_ref[0] = full.astype(out_ref.dtype)
        # per-sample BN statistics over the valid positions (pads are zero)
        stats_ref[0] = jnp.concatenate(
            [jnp.sum(full, axis=-1, keepdims=True),
             jnp.sum(full * full, axis=-1, keepdims=True)], axis=-1)


def _bn_relu_apply_kernel(x_ref, nrm_ref, o_ref):
    """Final BN+ReLU apply for the stage-2 channels: y = max(x*scale+shift, 0)."""
    y = jnp.maximum(x_ref[0].astype(jnp.float32) * nrm_ref[0] + nrm_ref[1], 0.0)
    o_ref[0] = y.astype(o_ref.dtype)


# -----------------------------------------------------------------------------
# Builder: geometry-specialized prepare / forward
# -----------------------------------------------------------------------------
def build_clique_block(nin, layers, filters, ksize, height, width):
    """Returns (prepare_params, forward).  forward(prep, x0) -> (feature, s2),
    both NCHW, matching the PyTorch CliqueBlock forward."""
    L, F, K, H, W = layers, filters, ksize, height, width
    assert F % 8 == 0, "filters must be a multiple of 8 (TPU sublane tile)"
    assert K % 2 == 1, "same-padding clique conv requires an odd kernel"
    pad = K // 2
    Hp, Wp = H + 2 * pad, W + 2 * pad
    HWP = H * Wp                                    # computed conv grid width
    S = _round_up(Hp * Wp + K - 1, 128)             # lane-padded spatial length
    nin_p = _round_up(nin, F)                       # x0 channels padded to a block
    C_total = nin_p + 2 * L * F
    inner_off = pad * Wp + pad                      # computed-grid -> slab shift
    s2_blk0 = (nin_p + L * F) // F

    # per-layer slab channel ranges: (input start, input width, output start)
    layer_ranges = [(0, nin_p + i * F, nin_p + i * F) for i in range(L)]
    layer_ranges += [(nin_p + (1 + i) * F, (L - 1) * F, nin_p + L * F + i * F)
                     for i in range(L)]

    # static interior mask over the padded-flat spatial layout
    idx = jnp.arange(S)
    row, col = idx // Wp, idx % Wp
    interior = ((row >= pad) & (row < pad + H) &
                (col >= pad) & (col < pad + W) & (idx < Hp * Wp))
    interior_mask = interior.astype(jnp.float32)[None, :]       # (1, S)

    conv_kernel = functools.partial(_conv_bn_fused_kernel,
                                    ksize=K, wp=Wp, hwp=HWP, inner_off=inner_off)

    def prepare_params(params):
        """Hoisted (once per model) weight fusion + layout transform."""
        W0, Wm, b = params["W0"], params["W"], params["b"]
        fused = []
        for i in range(L):                                      # stage 1
            w0i = jnp.pad(W0[i], ((0, 0), (0, nin_p - nin), (0, 0), (0, 0)))
            fused.append(jnp.concatenate(
                [w0i] + [Wm[_coord(j, i, L)] for j in range(i)], axis=1))
        from_layers = list(range(1, L))
        for i in range(L):                                      # stage 2
            fused.append(jnp.concatenate(
                [Wm[_coord(j, i, L)] for j in from_layers], axis=1))
            from_layers = from_layers[1:] + [(from_layers[-1] + 1) % L]
        w_prep, b_prep = [], []
        for wf in fused:                                        # (F, Cin, K, K)
            cin = wf.shape[1]
            w = jnp.transpose(wf, (1, 2, 3, 0))                 # (Cin, K, K, F)
            w = w.reshape(cin // F, F, K * K, F)                # (nblk, CB, KK, Co)
            w_prep.append(jnp.transpose(w, (0, 2, 3, 1)))       # (nblk, KK, Co, CB)
        for l in range(2 * L):
            b_prep.append(b[l].reshape(F, 1))
        return {"w": w_prep, "b": b_prep, "gamma": params["gamma"],
                "beta": params["beta"], "mask": interior_mask}

    def _conv_layer(slab, w_l, nrm, b_l, mask, in_blk0, n_in_blk, out_blk, n_b):
        return pl.pallas_call(
            conv_kernel,
            out_shape=(jax.ShapeDtypeStruct(slab.shape, slab.dtype),
                       jax.ShapeDtypeStruct((n_b, F, 2), jnp.float32)),
            grid=(n_b, n_in_blk),
            in_specs=[
                pl.BlockSpec((1, F, S), lambda n, c, _b=in_blk0: (n, _b + c, 0)),
                pl.BlockSpec((1, K * K, F, F), lambda n, c: (c, 0, 0, 0)),
                pl.BlockSpec((3, F, 1), lambda n, c, _b=in_blk0: (0, _b + c, 0)),
                pl.BlockSpec((F, 1), lambda n, c: (0, 0)),
                pl.BlockSpec((1, S), lambda n, c: (0, 0)),
            ],
            out_specs=(
                pl.BlockSpec((1, F, S), lambda n, c, _o=out_blk: (n, _o, 0)),
                pl.BlockSpec((1, F, 2), lambda n, c: (n, 0, 0)),
            ),
            scratch_shapes=[pltpu.VMEM((F, HWP), jnp.float32)],
            input_output_aliases={0: 0},     # write in place into the slab
            compiler_params=pltpu.CompilerParams(
                dimension_semantics=("parallel", "arbitrary")),
        )(slab, w_l, nrm, b_l, mask)

    def forward(prep, x0):
        n_b = x0.shape[0]
        inv_count = 1.0 / (n_b * H * W)
        gamma, beta, mask = prep["gamma"], prep["beta"], prep["mask"]

        # persistent channel-concatenated activation slab (N, C_total, S)
        xp = jnp.pad(x0, ((0, 0), (0, nin_p - nin), (pad, pad), (pad, pad)))
        xp = xp.reshape(n_b, nin_p, Hp * Wp)
        xp = jnp.pad(xp, ((0, 0), (0, 0), (0, S - Hp * Wp)))
        slab = jnp.pad(xp, ((0, 0), (0, C_total - nin_p), (0, 0)))

        # per-channel load-time (scale, shift, relu-floor); x0 channels: identity
        ch = jnp.arange(C_total)
        nrm = jnp.stack(
            [jnp.ones((C_total,), jnp.float32),
             jnp.zeros((C_total,), jnp.float32),
             jnp.where(ch < nin_p, -jnp.inf, 0.0).astype(jnp.float32)],
            axis=0)[:, :, None]                                  # (3, C_total, 1)

        for l in range(2 * L):
            in_ch0, in_nch, out_ch0 = layer_ranges[l]
            slab, stats = _conv_layer(slab, prep["w"][l], nrm, prep["b"][l], mask,
                                      in_ch0 // F, in_nch // F, out_ch0 // F, n_b)
            # batch statistics of the raw conv output -> fold BN+ReLU into a
            # per-channel affine+floor applied when the NEXT conv loads the slab.
            sums = jnp.sum(stats, axis=0)                        # (F, 2)
            mean = sums[:, 0] * inv_count
            var = jnp.maximum(sums[:, 1] * inv_count - mean * mean, 0.0)
            scale = gamma[l] * jax.lax.rsqrt(var + _EPS)
            shift = beta[l] - mean * scale
            upd = jnp.stack([scale, shift, jnp.zeros_like(scale)],
                            axis=0)[:, :, None]
            nrm = jax.lax.dynamic_update_slice(nrm, upd, (0, out_ch0, 0))

        # final BN+ReLU apply on the stage-2 channels (lane-dense blocks)
        s2_flat = pl.pallas_call(
            _bn_relu_apply_kernel,
            out_shape=jax.ShapeDtypeStruct((n_b, L * F, S), jnp.float32),
            grid=(n_b, L),
            in_specs=[
                pl.BlockSpec((1, F, S), lambda n, i: (n, s2_blk0 + i, 0)),
                pl.BlockSpec((3, F, 1), lambda n, i: (0, s2_blk0 + i, 0)),
            ],
            out_specs=pl.BlockSpec((1, F, S), lambda n, i: (n, i, 0)),
            compiler_params=pltpu.CompilerParams(
                dimension_semantics=("parallel", "parallel")),
        )(slab, nrm)

        # boundary glue: drop the spatial padding, already NCHW-ordered
        s2 = s2_flat[:, :, :Hp * Wp].reshape(n_b, L * F, Hp, Wp)
        s2 = s2[:, :, pad:pad + H, pad:pad + W]
        feature = jnp.concatenate([x0, s2], axis=1)
        return feature, s2

    return prepare_params, jax.jit(forward)


# -----------------------------------------------------------------------------
# Parameter init (matches reset_parameters: normal(0, std) for ALL parameters)
# -----------------------------------------------------------------------------
def init_clique_params(key, nin, layers, filters, kernel, std=0.01):
    num_kernels = layers * (layers - 1)
    k0, k1, k2, k3, k4 = jax.random.split(key, 5)
    return {
        "W0": std * jax.random.normal(k0, (layers, filters, nin, kernel, kernel), jnp.float32),
        "W": std * jax.random.normal(k1, (num_kernels, filters, filters, kernel, kernel), jnp.float32),
        "b": std * jax.random.normal(k2, (2 * layers, filters), jnp.float32),
        "gamma": std * jax.random.normal(k3, (2 * layers, filters), jnp.float32),
        "beta": std * jax.random.normal(k4, (2 * layers, filters), jnp.float32),
    }


# -----------------------------------------------------------------------------
# Plain-JAX reference (mirrors the PyTorch module) for a numerical cross-check
# -----------------------------------------------------------------------------
def _reference_forward(params, x0, nin, layers, filters, ksize):
    L, F, K = layers, filters, ksize
    pad = K // 2
    W0, Wm, b = params["W0"], params["W"], params["b"]
    gamma, beta = params["gamma"], params["beta"]

    def conv(x, w, bias):
        y = jax.lax.conv_general_dilated(
            x, w, window_strides=(1, 1), padding=[(pad, pad), (pad, pad)],
            dimension_numbers=("NCHW", "OIHW", "NCHW"),
            precision=jax.lax.Precision.HIGHEST)
        return y + bias.reshape(1, -1, 1, 1)

    def bn_relu(x, g, bt):
        mean = jnp.mean(x, axis=(0, 2, 3), keepdims=True)
        var = jnp.mean(jnp.square(x - mean), axis=(0, 2, 3), keepdims=True)
        y = (x - mean) * jax.lax.rsqrt(var + _EPS)
        y = y * g.reshape(1, -1, 1, 1) + bt.reshape(1, -1, 1, 1)
        return jnp.maximum(y, 0.0)

    output, data = None, x0
    for i in range(L):
        if i == 0:
            data, weight = x0, W0[0]
        else:
            data = jnp.concatenate([data, output], axis=1)
            weight = jnp.concatenate(
                [W0[i]] + [Wm[_coord(j, i, L)] for j in range(i)], axis=1)
        output = bn_relu(conv(data, weight, b[i]), gamma[i], beta[i])
    s1 = jnp.concatenate([data[:, nin + F:], output], axis=1)

    from_layers = list(range(1, L))
    data, output = s1, None
    for i in range(L):
        if i > 0:
            data = jnp.concatenate([data[:, F:], output], axis=1)
        weight = jnp.concatenate([Wm[_coord(j, i, L)] for j in from_layers], axis=1)
        from_layers = from_layers[1:] + [(from_layers[-1] + 1) % L]
        output = bn_relu(conv(data, weight, b[L + i]), gamma[L + i], beta[L + i])
    s2 = jnp.concatenate([data, output], axis=1)
    feature = jnp.concatenate([x0, s2], axis=1)
    return feature, s2


# -----------------------------------------------------------------------------
if __name__ == "__main__":
    N, NIN, LAYERS, FILTERS, KSIZE, H, W = 2, 4, 3, 8, 3, 16, 16

    key = jax.random.PRNGKey(0)
    kparams, kx = jax.random.split(key)
    params = init_clique_params(kparams, NIN, LAYERS, FILTERS, KSIZE)
    x0 = jax.random.normal(kx, (N, NIN, H, W), jnp.float32)

    prepare_params, forward = build_clique_block(NIN, LAYERS, FILTERS, KSIZE, H, W)
    prep = prepare_params(params)            # hoisted weight prep (runs once)

    feature, s2 = forward(prep, x0)
    feature = jax.block_until_ready(feature)
    s2 = jax.block_until_ready(s2)

    assert feature.shape == (N, NIN + LAYERS * FILTERS, H, W), feature.shape
    assert s2.shape == (N, LAYERS * FILTERS, H, W), s2.shape
    assert bool(jnp.all(jnp.isfinite(feature))) and bool(jnp.all(jnp.isfinite(s2)))

    # numerical cross-check against a plain-JAX rendition of the PyTorch module
    ref_feature, ref_s2 = _reference_forward(params, x0, NIN, LAYERS, FILTERS, KSIZE)
    max_diff = float(jnp.max(jnp.abs(feature - ref_feature)))
    assert bool(jnp.allclose(feature, ref_feature, atol=1e-3, rtol=1e-2)), max_diff
    assert bool(jnp.allclose(s2, ref_s2, atol=1e-3, rtol=1e-2))

    print("KERNEL_OK")
</pallas_src>

<mosaic_0001>
module attributes {stable_mosaic.version = 11 : i64} {
  func.func @_conv_bn_fused_kernel(%arg0: i32, %arg1: i32, %arg2: memref<1x8x384xf32, #tpu.memory_space<vmem>>, %arg3: memref<1x9x8x8xf32, #tpu.memory_space<vmem>>, %arg4: memref<3x8x1xf32, #tpu.memory_space<vmem>>, %arg5: memref<8x1xf32, #tpu.memory_space<vmem>>, %arg6: memref<1x384xf32, #tpu.memory_space<vmem>>, %arg7: memref<1x8x384xf32, #tpu.memory_space<vmem>>, %arg8: memref<1x8x2xf32, #tpu.memory_space<vmem>>, %arg9: memref<8x288xf32, #tpu.memory_space<vmem>>) attributes {dimension_semantics = [#tpu.dimension_semantics<parallel>, #tpu.dimension_semantics<arbitrary>], iteration_bounds = array<i64: 2, 1>, scalar_prefetch = 0 : i64, scratch_operands = 1 : i64, tpu.core_type = #tpu.core_type<tc>, window_params = [{transform_indices = @transform_0, window_bounds = array<i64: 1, 8, 384>}, {transform_indices = @transform_1, window_bounds = array<i64: 1, 9, 8, 8>}, {transform_indices = @transform_2, window_bounds = array<i64: 3, 8, 1>}, {pipeline_mode = #tpu.pipeline_mode<synchronous>, transform_indices = @transform_3, window_bounds = array<i64: 8, 1>}, {pipeline_mode = #tpu.pipeline_mode<synchronous>, transform_indices = @transform_4, window_bounds = array<i64: 1, 384>}, {transform_indices = @transform_5, window_bounds = array<i64: 1, 8, 384>}, {transform_indices = @transform_6, window_bounds = array<i64: 1, 8, 2>}]} {
    %c0_i32 = arith.constant 0 : i32
    %0 = arith.cmpi eq, %arg1, %c0_i32 : i32
    %1 = arith.extui %0 : i1 to i32
    %c0_i32_0 = arith.constant 0 : i32
    %2 = arith.cmpi ne, %1, %c0_i32_0 : i32
    scf.if %2 {
      %cst_56 = arith.constant 0.000000e+00 : f32
      %70 = vector.broadcast %cst_56 : f32 to vector<8x288xf32>
      %c0_57 = arith.constant 0 : index
      %c0_58 = arith.constant 0 : index
      %71 = vector.load %arg9[%c0_57, %c0_58] : memref<8x288xf32, #tpu.memory_space<vmem>>, vector<8x288xf32>
      tpu.vector_store %arg9[%c0_57, %c0_58], %70 {strides = array<i32>} : memref<8x288xf32, #tpu.memory_space<vmem>>, vector<8x288xf32>,
    } else {
    }
    %c0 = arith.constant 0 : index
    %c0_1 = arith.constant 0 : index
    %c0_2 = arith.constant 0 : index
    %3 = vector.load %arg2[%c0, %c0_1, %c0_2] : memref<1x8x384xf32, #tpu.memory_space<vmem>>, vector<1x8x384xf32>
    %4 = vector.shape_cast %3 : vector<1x8x384xf32> to vector<8x384xf32>
    %c0_3 = arith.constant 0 : index
    %c0_4 = arith.constant 0 : index
    %c0_5 = arith.constant 0 : index
    %5 = vector.load %arg4[%c0_3, %c0_4, %c0_5] : memref<3x8x1xf32, #tpu.memory_space<vmem>>, vector<1x8x1xf32>
    %6 = vector.shape_cast %5 : vector<1x8x1xf32> to vector<8x1xf32>
    %7 = vector.broadcast %6 : vector<8x1xf32> to vector<8x384xf32>
    %8 = arith.mulf %4, %7 : vector<8x384xf32>
    %c1 = arith.constant 1 : index
    %c0_6 = arith.constant 0 : index
    %c0_7 = arith.constant 0 : index
    %9 = vector.load %arg4[%c1, %c0_6, %c0_7] : memref<3x8x1xf32, #tpu.memory_space<vmem>>, vector<1x8x1xf32>
    %10 = vector.shape_cast %9 : vector<1x8x1xf32> to vector<8x1xf32>
    %11 = vector.broadcast %10 : vector<8x1xf32> to vector<8x384xf32>
    %12 = arith.addf %8, %11 : vector<8x384xf32>
    %c2 = arith.constant 2 : index
    %c0_8 = arith.constant 0 : index
    %c0_9 = arith.constant 0 : index
    %13 = vector.load %arg4[%c2, %c0_8, %c0_9] : memref<3x8x1xf32, #tpu.memory_space<vmem>>, vector<1x8x1xf32>
    %14 = vector.shape_cast %13 : vector<1x8x1xf32> to vector<8x1xf32>
    %15 = vector.broadcast %14 : vector<8x1xf32> to vector<8x384xf32>
    %16 = arith.maximumf %12, %15 : vector<8x384xf32>
    %c0_10 = arith.constant 0 : index
    %c0_11 = arith.constant 0 : index
    %17 = vector.load %arg6[%c0_10, %c0_11] : memref<1x384xf32, #tpu.memory_space<vmem>>, vector<1x384xf32>
    %18 = vector.broadcast %17 : vector<1x384xf32> to vector<8x384xf32>
    %19 = arith.mulf %16, %18 : vector<8x384xf32>
    %20 = vector.extract_strided_slice %19 {offsets = [0, 0], sizes = [8, 288], strides = [1, 1]} : vector<8x384xf32> to vector<8x288xf32>
    %c0_12 = arith.constant 0 : index
    %c0_13 = arith.constant 0 : index
    %c0_14 = arith.constant 0 : index
    %c0_15 = arith.constant 0 : index
    %21 = vector.load %arg3[%c0_12, %c0_13, %c0_14, %c0_15] : memref<1x9x8x8xf32, #tpu.memory_space<vmem>>, vector<1x1x8x8xf32>
    %22 = vector.shape_cast %21 : vector<1x1x8x8xf32> to vector<8x8xf32>
    %cst = arith.constant dense<0.000000e+00> : vector<8x288xf32>
    %23 = tpu.matmul %22, %20, %cst {dimension_numbers = #tpu.dot_dimension_numbers<[1], [0], [0], [1], [0, 0, 1, 1], [], []>} : vector<8x8xf32>, vector<8x288xf32>, vector<8x288xf32> -> vector<8x288xf32>
    %24 = vector.extract_strided_slice %19 {offsets = [0, 1], sizes = [8, 288], strides = [1, 1]} : vector<8x384xf32> to vector<8x288xf32>
    %c0_16 = arith.constant 0 : index
    %c1_17 = arith.constant 1 : index
    %c0_18 = arith.constant 0 : index
    %c0_19 = arith.constant 0 : index
    %25 = vector.load %arg3[%c0_16, %c1_17, %c0_18, %c0_19] : memref<1x9x8x8xf32, #tpu.memory_space<vmem>>, vector<1x1x8x8xf32>
    %26 = vector.shape_cast %25 : vector<1x1x8x8xf32> to vector<8x8xf32>
    %cst_20 = arith.constant dense<0.000000e+00> : vector<8x288xf32>
    %27 = tpu.matmul %26, %24, %cst_20 {dimension_numbers = #tpu.dot_dimension_numbers<[1], [0], [0], [1], [0, 0, 1, 1], [], []>} : vector<8x8xf32>, vector<8x288xf32>, vector<8x288xf32> -> vector<8x288xf32>
    %28 = arith.addf %23, %27 : vector<8x288xf32>
    %29 = vector.extract_strided_slice %19 {offsets = [0, 2], sizes = [8, 288], strides = [1, 1]} : vector<8x384xf32> to vector<8x288xf32>
    %c0_21 = arith.constant 0 : index
    %c2_22 = arith.constant 2 : index
    %c0_23 = arith.constant 0 : index
    %c0_24 = arith.constant 0 : index
    %30 = vector.load %arg3[%c0_21, %c2_22, %c0_23, %c0_24] : memref<1x9x8x8xf32, #tpu.memory_space<vmem>>, vector<1x1x8x8xf32>
    %31 = vector.shape_cast %30 : vector<1x1x8x8xf32> to vector<8x8xf32>
    %cst_25 = arith.constant dense<0.000000e+00> : vector<8x288xf32>
    %32 = tpu.matmul %31, %29, %cst_25 {dimension_numbers = #tpu.dot_dimension_numbers<[1], [0], [0], [1], [0, 0, 1, 1], [], []>} : vector<8x8xf32>, vector<8x288xf32>, vector<8x288xf32> -> vector<8x288xf32>
    %33 = arith.addf %28, %32 : vector<8x288xf32>
    %34 = vector.extract_strided_slice %19 {offsets = [0, 18], sizes = [8, 288], strides = [1, 1]} : vector<8x384xf32> to vector<8x288xf32>
    %c0_26 = arith.constant 0 : index
    %c3 = arith.constant 3 : index
    %c0_27 = arith.constant 0 : index
    %c0_28 = arith.constant 0 : index
    %35 = vector.load %arg3[%c0_26, %c3, %c0_27, %c0_28] : memref<1x9x8x8xf32, #tpu.memory_space<vmem>>, vector<1x1x8x8xf32>
    %36 = vector.shape_cast %35 : vector<1x1x8x8xf32> to vector<8x8xf32>
    %cst_29 = arith.constant dense<0.000000e+00> : vector<8x288xf32>
    %37 = tpu.matmul %36, %34, %cst_29 {dimension_numbers = #tpu.dot_dimension_numbers<[1], [0], [0], [1], [0, 0, 1, 1], [], []>} : vector<8x8xf32>, vector<8x288xf32>, vector<8x288xf32> -> vector<8x288xf32>
    %38 = arith.addf %33, %37 : vector<8x288xf32>
    %39 = vector.extract_strided_slice %19 {offsets = [0, 19], sizes = [8, 288], strides = [1, 1]} : vector<8x384xf32> to vector<8x288xf32>
    %c0_30 = arith.constant 0 : index
    %c4 = arith.constant 4 : index
    %c0_31 = arith.constant 0 : index
    %c0_32 = arith.constant 0 : index
    %40 = vector.load %arg3[%c0_30, %c4, %c0_31, %c0_32] : memref<1x9x8x8xf32, #tpu.memory_space<vmem>>, vector<1x1x8x8xf32>
    %41 = vector.shape_cast %40 : vector<1x1x8x8xf32> to vector<8x8xf32>
    %cst_33 = arith.constant dense<0.000000e+00> : vector<8x288xf32>
    %42 = tpu.matmul %41, %39, %cst_33 {dimension_numbers = #tpu.dot_dimension_numbers<[1], [0], [0], [1], [0, 0, 1, 1], [], []>} : vector<8x8xf32>, vector<8x288xf32>, vector<8x288xf32> -> vector<8x288xf32>
    %43 = arith.addf %38, %42 : vector<8x288xf32>
    %44 = vector.extract_strided_slice %19 {offsets = [0, 20], sizes = [8, 288], strides = [1, 1]} : vector<8x384xf32> to vector<8x288xf32>
    %c0_34 = arith.constant 0 : index
    %c5 = arith.constant 5 : index
    %c0_35 = arith.constant 0 : index
    %c0_36 = arith.constant 0 : index
    %45 = vector.load %arg3[%c0_34, %c5, %c0_35, %c0_36] : memref<1x9x8x8xf32, #tpu.memory_space<vmem>>, vector<1x1x8x8xf32>
    %46 = vector.shape_cast %45 : vector<1x1x8x8xf32> to vector<8x8xf32>
    %cst_37 = arith.constant dense<0.000000e+00> : vector<8x288xf32>
    %47 = tpu.matmul %46, %44, %cst_37 {dimension_numbers = #tpu.dot_dimension_numbers<[1], [0], [0], [1], [0, 0, 1, 1], [], []>} : vector<8x8xf32>, vector<8x288xf32>, vector<8x288xf32> -> vector<8x288xf32>
    %48 = arith.addf %43, %47 : vector<8x288xf32>
    %49 = vector.extract_strided_slice %19 {offsets = [0, 36], sizes = [8, 288], strides = [1, 1]} : vector<8x384xf32> to vector<8x288xf32>
    %c0_38 = arith.constant 0 : index
    %c6 = arith.constant 6 : index
    %c0_39 = arith.constant 0 : index
    %c0_40 = arith.constant 0 : index
    %50 = vector.load %arg3[%c0_38, %c6, %c0_39, %c0_40] : memref<1x9x8x8xf32, #tpu.memory_space<vmem>>, vector<1x1x8x8xf32>
    %51 = vector.shape_cast %50 : vector<1x1x8x8xf32> to vector<8x8xf32>
    %cst_41 = arith.constant dense<0.000000e+00> : vector<8x288xf32>
    %52 = tpu.matmul %51, %49, %cst_41 {dimension_numbers = #tpu.dot_dimension_numbers<[1], [0], [0], [1], [0, 0, 1, 1], [], []>} : vector<8x8xf32>, vector<8x288xf32>, vector<8x288xf32> -> vector<8x288xf32>
    %53 = arith.addf %48, %52 : vector<8x288xf32>
    %54 = vector.extract_strided_slice %19 {offsets = [0, 37], sizes = [8, 288], strides = [1, 1]} : vector<8x384xf32> to vector<8x288xf32>
    %c0_42 = arith.constant 0 : index
    %c7 = arith.constant 7 : index
    %c0_43 = arith.constant 0 : index
    %c0_44 = arith.constant 0 : index
    %55 = vector.load %arg3[%c0_42, %c7, %c0_43, %c0_44] : memref<1x9x8x8xf32, #tpu.memory_space<vmem>>, vector<1x1x8x8xf32>
    %56 = vector.shape_cast %55 : vector<1x1x8x8xf32> to vector<8x8xf32>
    %cst_45 = arith.constant dense<0.000000e+00> : vector<8x288xf32>
    %57 = tpu.matmul %56, %54, %cst_45 {dimension_numbers = #tpu.dot_dimension_numbers<[1], [0], [0], [1], [0, 0, 1, 1], [], []>} : vector<8x8xf32>, vector<8x288xf32>, vector<8x288xf32> -> vector<8x288xf32>
    %58 = arith.addf %53, %57 : vector<8x288xf32>
    %59 = vector.extract_strided_slice %19 {offsets = [0, 38], sizes = [8, 288], strides = [1, 1]} : vector<8x384xf32> to vector<8x288xf32>
    %c0_46 = arith.constant 0 : index
    %c8 = arith.constant 8 : index
    %c0_47 = arith.constant 0 : index
    %c0_48 = arith.constant 0 : index
    %60 = vector.load %arg3[%c0_46, %c8, %c0_47, %c0_48] : memref<1x9x8x8xf32, #tpu.memory_space<vmem>>, vector<1x1x8x8xf32>
    %61 = vector.shape_cast %60 : vector<1x1x8x8xf32> to vector<8x8xf32>
    %cst_49 = arith.constant dense<0.000000e+00> : vector<8x288xf32>
    %62 = tpu.matmul %61, %59, %cst_49 {dimension_numbers = #tpu.dot_dimension_numbers<[1], [0], [0], [1], [0, 0, 1, 1], [], []>} : vector<8x8xf32>, vector<8x288xf32>, vector<8x288xf32> -> vector<8x288xf32>
    %63 = arith.addf %58, %62 : vector<8x288xf32>
    %c0_50 = arith.constant 0 : index
    %c0_51 = arith.constant 0 : index
    %64 = vector.load %arg9[%c0_50, %c0_51] : memref<8x288xf32, #tpu.memory_space<vmem>>, vector<8x288xf32>
    %65 = arith.addf %64, %63 : vector<8x288xf32>
    %c0_52 = arith.constant 0 : index
    %c0_53 = arith.constant 0 : index
    %66 = vector.load %arg9[%c0_52, %c0_53] : memref<8x288xf32, #tpu.memory_space<vmem>>, vector<8x288xf32>
    tpu.vector_store %arg9[%c0_52, %c0_53], %65 {strides = array<i32>} : memref<8x288xf32, #tpu.memory_space<vmem>>, vector<8x288xf32>,
    %c0_i32_54 = arith.constant 0 : i32
    %67 = arith.cmpi eq, %arg1, %c0_i32_54 : i32
    %68 = arith.extui %67 : i1 to i32
    %c0_i32_55 = arith.constant 0 : i32
    %69 = arith.cmpi ne, %68, %c0_i32_55 : i32
    scf.if %69 {
      %cst_56 = arith.constant 0.000000e+00 : f32
      %70 = vector.broadcast %cst_56 : f32 to vector<8x19xf32>
      %c0_57 = arith.constant 0 : index
      %c0_58 = arith.constant 0 : index
      %71 = vector.load %arg9[%c0_57, %c0_58] : memref<8x288xf32, #tpu.memory_space<vmem>>, vector<8x288xf32>
      %cst_59 = arith.constant 0.000000e+00 : f32
      %72 = vector.broadcast %cst_59 : f32 to vector<8x77xf32>
      %73 = tpu.concatenate %70, %71, %72 in 1 : vector<8x19xf32>, vector<8x288xf32>, vector<8x77xf32> -> vector<8x384xf32>
      %c0_60 = arith.constant 0 : index
      %c0_61 = arith.constant 0 : index
      %74 = vector.load %arg5[%c0_60, %c0_61] : memref<8x1xf32, #tpu.memory_space<vmem>>, vector<8x1xf32>
      %75 = vector.broadcast %74 : vector<8x1xf32> to vector<8x384xf32>
      %76 = arith.addf %73, %75 : vector<8x384xf32>
      %c0_62 = arith.constant 0 : index
      %c0_63 = arith.constant 0 : index
      %77 = vector.load %arg6[%c0_62, %c0_63] : memref<1x384xf32, #tpu.memory_space<vmem>>, vector<1x384xf32>
      %78 = vector.broadcast %77 : vector<1x384xf32> to vector<8x384xf32>
      %79 = arith.mulf %76, %78 : vector<8x384xf32>
      %c0_64 = arith.constant 0 : index
      %c0_65 = arith.constant 0 : index
      %c0_66 = arith.constant 0 : index
      %80 = vector.load %arg7[%c0_64, %c0_65, %c0_66] : memref<1x8x384xf32, #tpu.memory_space<vmem>>, vector<1x8x384xf32>
      %81 = vector.shape_cast %80 : vector<1x8x384xf32> to vector<8x384xf32>
      %82 = vector.shape_cast %79 : vector<8x384xf32> to vector<1x8x384xf32>
      tpu.vector_store %arg7[%c0_64, %c0_65, %c0_66], %82 {strides = array<i32>} : memref<1x8x384xf32, #tpu.memory_space<vmem>>, vector<1x8x384xf32>,
      %cst_67 = arith.constant dense<0.000000e+00> : vector<8xf32>
      %83 = vector.multi_reduction <add>, %79, %cst_67 [1] : vector<8x384xf32> to vector<8xf32>
      %84 = vector.shape_cast %83 : vector<8xf32> to vector<8x1xf32>
      %85 = arith.mulf %79, %79 : vector<8x384xf32>
      %cst_68 = arith.constant dense<0.000000e+00> : vector<8xf32>
      %86 = vector.multi_reduction <add>, %85, %cst_68 [1] : vector<8x384xf32> to vector<8xf32>
      %87 = vector.shape_cast %86 : vector<8xf32> to vector<8x1xf32>
      %88 = tpu.concatenate %84, %87 in 1 : vector<8x1xf32>, vector<8x1xf32> -> vector<8x2xf32>
      %c0_69 = arith.constant 0 : index
      %c0_70 = arith.constant 0 : index
      %c0_71 = arith.constant 0 : index
      %89 = vector.load %arg8[%c0_69, %c0_70, %c0_71] : memref<1x8x2xf32, #tpu.memory_space<vmem>>, vector<1x8x2xf32>
      %90 = vector.shape_cast %89 : vector<1x8x2xf32> to vector<8x2xf32>
      %91 = vector.shape_cast %88 : vector<8x2xf32> to vector<1x8x2xf32>
      tpu.vector_store %arg8[%c0_69, %c0_70, %c0_71], %91 {strides = array<i32>} : memref<1x8x2xf32, #tpu.memory_space<vmem>>, vector<1x8x2xf32>,
    } else {
    }
    return
  }
  func.func @transform_0(%arg0: i32, %arg1: i32) -> (i32, i32, i32) {
    %c0_i32 = arith.constant 0 : i32
    %0 = arith.addi %c0_i32, %arg1 : i32
    %c0_i32_0 = arith.constant 0 : i32
    %c0_i32_1 = arith.constant 0 : i32
    return %arg0, %0, %c0_i32_0 : i32, i32, i32
  }
  func.func @transform_1(%arg0: i32, %arg1: i32) -> (i32, i32, i32, i32) {
    %c0_i32 = arith.constant 0 : i32
    %c0_i32_0 = arith.constant 0 : i32
    %c0_i32_1 = arith.constant 0 : i32
    %c0_i32_2 = arith.constant 0 : i32
    return %arg1, %c0_i32, %c0_i32_0, %c0_i32_1 : i32, i32, i32, i32
  }
  func.func @transform_2(%arg0: i32, %arg1: i32) -> (i32, i32, i32) {
    %c0_i32 = arith.constant 0 : i32
    %0 = arith.addi %c0_i32, %arg1 : i32
    %c0_i32_0 = arith.constant 0 : i32
    %c0_i32_1 = arith.constant 0 : i32
    %c0_i32_2 = arith.constant 0 : i32
    return %c0_i32_0, %0, %c0_i32_1 : i32, i32, i32
  }
  func.func @transform_3(%arg0: i32, %arg1: i32) -> (i32, i32) {
    %c0_i32 = arith.constant 0 : i32
    %c0_i32_0 = arith.constant 0 : i32
    %c0_i32_1 = arith.constant 0 : i32
    return %c0_i32, %c0_i32_0 : i32, i32
  }
  func.func @transform_4(%arg0: i32, %arg1: i32) -> (i32, i32) {
    %c0_i32 = arith.constant 0 : i32
    %c0_i32_0 = arith.constant 0 : i32
    %c0_i32_1 = arith.constant 0 : i32
    return %c0_i32, %c0_i32_0 : i32, i32
  }
  func.func @transform_5(%arg0: i32, %arg1: i32) -> (i32, i32, i32) {
    %c1_i32 = arith.constant 1 : i32
    %c0_i32 = arith.constant 0 : i32
    %c0_i32_0 = arith.constant 0 : i32
    return %arg0, %c1_i32, %c0_i32 : i32, i32, i32
  }
  func.func @transform_6(%arg0: i32, %arg1: i32) -> (i32, i32, i32) {
    %c0_i32 = arith.constant 0 : i32
    %c0_i32_0 = arith.constant 0 : i32
    %c0_i32_1 = arith.constant 0 : i32
    return %arg0, %c0_i32, %c0_i32_0 : i32, i32, i32
  }
}

module attributes {stable_mosaic.version = 11 : i64} {
  func.func @_conv_bn_fused_kernel(%arg0: i32, %arg1: i32, %arg2: memref<1x8x384xf32, #tpu.memory_space<vmem>>, %arg3: memref<1x9x8x8xf32, #tpu.memory_space<vmem>>, %arg4: memref<3x8x1xf32, #tpu.memory_space<vmem>>, %arg5: memref<8x1xf32, #tpu.memory_space<vmem>>, %arg6: memref<1x384xf32, #tpu.memory_space<vmem>>, %arg7: memref<1x8x384xf32, #tpu.memory_space<vmem>>, %arg8: memref<1x8x2xf32, #tpu.memory_space<vmem>>, %arg9: memref<8x288xf32, #tpu.memory_space<vmem>>) attributes {dimension_semantics = [#tpu.dimension_semantics<parallel>, #tpu.dimension_semantics<arbitrary>], iteration_bounds = array<i64: 2, 2>, scalar_prefetch = 0 : i64, scratch_operands = 1 : i64, tpu.core_type = #tpu.core_type<tc>, window_params = [{transform_indices = @transform_0, window_bounds = array<i64: 1, 8, 384>}, {transform_indices = @transform_1, window_bounds = array<i64: 1, 9, 8, 8>}, {transform_indices = @transform_2, window_bounds = array<i64: 3, 8, 1>}, {pipeline_mode = #tpu.pipeline_mode<synchronous>, transform_indices = @transform_3, window_bounds = array<i64: 8, 1>}, {pipeline_mode = #tpu.pipeline_mode<synchronous>, transform_indices = @transform_4, window_bounds = array<i64: 1, 384>}, {transform_indices = @transform_5, window_bounds = array<i64: 1, 8, 384>}, {transform_indices = @transform_6, window_bounds = array<i64: 1, 8, 2>}]} {
    %c0_i32 = arith.constant 0 : i32
    %0 = arith.cmpi eq, %arg1, %c0_i32 : i32
    %1 = arith.extui %0 : i1 to i32
    %c0_i32_0 = arith.constant 0 : i32
    %2 = arith.cmpi ne, %1, %c0_i32_0 : i32
    scf.if %2 {
      %cst_55 = arith.constant 0.000000e+00 : f32
      %70 = vector.broadcast %cst_55 : f32 to vector<8x288xf32>
      %c0_56 = arith.constant 0 : index
      %c0_57 = arith.constant 0 : index
      %71 = vector.load %arg9[%c0_56, %c0_57] : memref<8x288xf32, #tpu.memory_space<vmem>>, vector<8x288xf32>
      tpu.vector_store %arg9[%c0_56, %c0_57], %70 {strides = array<i32>} : memref<8x288xf32, #tpu.memory_space<vmem>>, vector<8x288xf32>,
    } else {
    }
    %c0 = arith.constant 0 : index
    %c0_1 = arith.constant 0 : index
    %c0_2 = arith.constant 0 : index
    %3 = vector.load %arg2[%c0, %c0_1, %c0_2] : memref<1x8x384xf32, #tpu.memory_space<vmem>>, vector<1x8x384xf32>
    %4 = vector.shape_cast %3 : vector<1x8x384xf32> to vector<8x384xf32>
    %c0_3 = arith.constant 0 : index
    %c0_4 = arith.constant 0 : index
    %c0_5 = arith.constant 0 : index
    %5 = vector.load %arg4[%c0_3, %c0_4, %c0_5] : memref<3x8x1xf32, #tpu.memory_space<vmem>>, vector<1x8x1xf32>
    %6 = vector.shape_cast %5 : vector<1x8x1xf32> to vector<8x1xf32>
    %7 = vector.broadcast %6 : vector<8x1xf32> to vector<8x384xf32>
    %8 = arith.mulf %4, %7 : vector<8x384xf32>
    %c1 = arith.constant 1 : index
    %c0_6 = arith.constant 0 : index
    %c0_7 = arith.constant 0 : index
    %9 = vector.load %arg4[%c1, %c0_6, %c0_7] : memref<3x8x1xf32, #tpu.memory_space<vmem>>, vector<1x8x1xf32>
    %10 = vector.shape_cast %9 : vector<1x8x1xf32> to vector<8x1xf32>
    %11 = vector.broadcast %10 : vector<8x1xf32> to vector<8x384xf32>
    %12 = arith.addf %8, %11 : vector<8x384xf32>
    %c2 = arith.constant 2 : index
    %c0_8 = arith.constant 0 : index
    %c0_9 = arith.constant 0 : index
    %13 = vector.load %arg4[%c2, %c0_8, %c0_9] : memref<3x8x1xf32, #tpu.memory_space<vmem>>, vector<1x8x1xf32>
    %14 = vector.shape_cast %13 : vector<1x8x1xf32> to vector<8x1xf32>
    %15 = vector.broadcast %14 : vector<8x1xf32> to vector<8x384xf32>
    %16 = arith.maximumf %12, %15 : vector<8x384xf32>
    %c0_10 = arith.constant 0 : index
    %c0_11 = arith.constant 0 : index
    %17 = vector.load %arg6[%c0_10, %c0_11] : memref<1x384xf32, #tpu.memory_space<vmem>>, vector<1x384xf32>
    %18 = vector.broadcast %17 : vector<1x384xf32> to vector<8x384xf32>
    %19 = arith.mulf %16, %18 : vector<8x384xf32>
    %20 = vector.extract_strided_slice %19 {offsets = [0, 0], sizes = [8, 288], strides = [1, 1]} : vector<8x384xf32> to vector<8x288xf32>
    %c0_12 = arith.constant 0 : index
    %c0_13 = arith.constant 0 : index
    %c0_14 = arith.constant 0 : index
    %c0_15 = arith.constant 0 : index
    %21 = vector.load %arg3[%c0_12, %c0_13, %c0_14, %c0_15] : memref<1x9x8x8xf32, #tpu.memory_space<vmem>>, vector<1x1x8x8xf32>
    %22 = vector.shape_cast %21 : vector<1x1x8x8xf32> to vector<8x8xf32>
    %cst = arith.constant dense<0.000000e+00> : vector<8x288xf32>
    %23 = tpu.matmul %22, %20, %cst {dimension_numbers = #tpu.dot_dimension_numbers<[1], [0], [0], [1], [0, 0, 1, 1], [], []>} : vector<8x8xf32>, vector<8x288xf32>, vector<8x288xf32> -> vector<8x288xf32>
    %24 = vector.extract_strided_slice %19 {offsets = [0, 1], sizes = [8, 288], strides = [1, 1]} : vector<8x384xf32> to vector<8x288xf32>
    %c0_16 = arith.constant 0 : index
    %c1_17 = arith.constant 1 : index
    %c0_18 = arith.constant 0 : index
    %c0_19 = arith.constant 0 : index
    %25 = vector.load %arg3[%c0_16, %c1_17, %c0_18, %c0_19] : memref<1x9x8x8xf32, #tpu.memory_space<vmem>>, vector<1x1x8x8xf32>
    %26 = vector.shape_cast %25 : vector<1x1x8x8xf32> to vector<8x8xf32>
    %cst_20 = arith.constant dense<0.000000e+00> : vector<8x288xf32>
    %27 = tpu.matmul %26, %24, %cst_20 {dimension_numbers = #tpu.dot_dimension_numbers<[1], [0], [0], [1], [0, 0, 1, 1], [], []>} : vector<8x8xf32>, vector<8x288xf32>, vector<8x288xf32> -> vector<8x288xf32>
    %28 = arith.addf %23, %27 : vector<8x288xf32>
    %29 = vector.extract_strided_slice %19 {offsets = [0, 2], sizes = [8, 288], strides = [1, 1]} : vector<8x384xf32> to vector<8x288xf32>
    %c0_21 = arith.constant 0 : index
    %c2_22 = arith.constant 2 : index
    %c0_23 = arith.constant 0 : index
    %c0_24 = arith.constant 0 : index
    %30 = vector.load %arg3[%c0_21, %c2_22, %c0_23, %c0_24] : memref<1x9x8x8xf32, #tpu.memory_space<vmem>>, vector<1x1x8x8xf32>
    %31 = vector.shape_cast %30 : vector<1x1x8x8xf32> to vector<8x8xf32>
    %cst_25 = arith.constant dense<0.000000e+00> : vector<8x288xf32>
    %32 = tpu.matmul %31, %29, %cst_25 {dimension_numbers = #tpu.dot_dimension_numbers<[1], [0], [0], [1], [0, 0, 1, 1], [], []>} : vector<8x8xf32>, vector<8x288xf32>, vector<8x288xf32> -> vector<8x288xf32>
    %33 = arith.addf %28, %32 : vector<8x288xf32>
    %34 = vector.extract_strided_slice %19 {offsets = [0, 18], sizes = [8, 288], strides = [1, 1]} : vector<8x384xf32> to vector<8x288xf32>
    %c0_26 = arith.constant 0 : index
    %c3 = arith.constant 3 : index
    %c0_27 = arith.constant 0 : index
    %c0_28 = arith.constant 0 : index
    %35 = vector.load %arg3[%c0_26, %c3, %c0_27, %c0_28] : memref<1x9x8x8xf32, #tpu.memory_space<vmem>>, vector<1x1x8x8xf32>
    %36 = vector.shape_cast %35 : vector<1x1x8x8xf32> to vector<8x8xf32>
    %cst_29 = arith.constant dense<0.000000e+00> : vector<8x288xf32>
    %37 = tpu.matmul %36, %34, %cst_29 {dimension_numbers = #tpu.dot_dimension_numbers<[1], [0], [0], [1], [0, 0, 1, 1], [], []>} : vector<8x8xf32>, vector<8x288xf32>, vector<8x288xf32> -> vector<8x288xf32>
    %38 = arith.addf %33, %37 : vector<8x288xf32>
    %39 = vector.extract_strided_slice %19 {offsets = [0, 19], sizes = [8, 288], strides = [1, 1]} : vector<8x384xf32> to vector<8x288xf32>
    %c0_30 = arith.constant 0 : index
    %c4 = arith.constant 4 : index
    %c0_31 = arith.constant 0 : index
    %c0_32 = arith.constant 0 : index
    %40 = vector.load %arg3[%c0_30, %c4, %c0_31, %c0_32] : memref<1x9x8x8xf32, #tpu.memory_space<vmem>>, vector<1x1x8x8xf32>
    %41 = vector.shape_cast %40 : vector<1x1x8x8xf32> to vector<8x8xf32>
    %cst_33 = arith.constant dense<0.000000e+00> : vector<8x288xf32>
    %42 = tpu.matmul %41, %39, %cst_33 {dimension_numbers = #tpu.dot_dimension_numbers<[1], [0], [0], [1], [0, 0, 1, 1], [], []>} : vector<8x8xf32>, vector<8x288xf32>, vector<8x288xf32> -> vector<8x288xf32>
    %43 = arith.addf %38, %42 : vector<8x288xf32>
    %44 = vector.extract_strided_slice %19 {offsets = [0, 20], sizes = [8, 288], strides = [1, 1]} : vector<8x384xf32> to vector<8x288xf32>
    %c0_34 = arith.constant 0 : index
    %c5 = arith.constant 5 : index
    %c0_35 = arith.constant 0 : index
    %c0_36 = arith.constant 0 : index
    %45 = vector.load %arg3[%c0_34, %c5, %c0_35, %c0_36] : memref<1x9x8x8xf32, #tpu.memory_space<vmem>>, vector<1x1x8x8xf32>
    %46 = vector.shape_cast %45 : vector<1x1x8x8xf32> to vector<8x8xf32>
    %cst_37 = arith.constant dense<0.000000e+00> : vector<8x288xf32>
    %47 = tpu.matmul %46, %44, %cst_37 {dimension_numbers = #tpu.dot_dimension_numbers<[1], [0], [0], [1], [0, 0, 1, 1], [], []>} : vector<8x8xf32>, vector<8x288xf32>, vector<8x288xf32> -> vector<8x288xf32>
    %48 = arith.addf %43, %47 : vector<8x288xf32>
    %49 = vector.extract_strided_slice %19 {offsets = [0, 36], sizes = [8, 288], strides = [1, 1]} : vector<8x384xf32> to vector<8x288xf32>
    %c0_38 = arith.constant 0 : index
    %c6 = arith.constant 6 : index
    %c0_39 = arith.constant 0 : index
    %c0_40 = arith.constant 0 : index
    %50 = vector.load %arg3[%c0_38, %c6, %c0_39, %c0_40] : memref<1x9x8x8xf32, #tpu.memory_space<vmem>>, vector<1x1x8x8xf32>
    %51 = vector.shape_cast %50 : vector<1x1x8x8xf32> to vector<8x8xf32>
    %cst_41 = arith.constant dense<0.000000e+00> : vector<8x288xf32>
    %52 = tpu.matmul %51, %49, %cst_41 {dimension_numbers = #tpu.dot_dimension_numbers<[1], [0], [0], [1], [0, 0, 1, 1], [], []>} : vector<8x8xf32>, vector<8x288xf32>, vector<8x288xf32> -> vector<8x288xf32>
    %53 = arith.addf %48, %52 : vector<8x288xf32>
    %54 = vector.extract_strided_slice %19 {offsets = [0, 37], sizes = [8, 288], strides = [1, 1]} : vector<8x384xf32> to vector<8x288xf32>
    %c0_42 = arith.constant 0 : index
    %c7 = arith.constant 7 : index
    %c0_43 = arith.constant 0 : index
    %c0_44 = arith.constant 0 : index
    %55 = vector.load %arg3[%c0_42, %c7, %c0_43, %c0_44] : memref<1x9x8x8xf32, #tpu.memory_space<vmem>>, vector<1x1x8x8xf32>
    %56 = vector.shape_cast %55 : vector<1x1x8x8xf32> to vector<8x8xf32>
    %cst_45 = arith.constant dense<0.000000e+00> : vector<8x288xf32>
    %57 = tpu.matmul %56, %54, %cst_45 {dimension_numbers = #tpu.dot_dimension_numbers<[1], [0], [0], [1], [0, 0, 1, 1], [], []>} : vector<8x8xf32>, vector<8x288xf32>, vector<8x288xf32> -> vector<8x288xf32>
    %58 = arith.addf %53, %57 : vector<8x288xf32>
    %59 = vector.extract_strided_slice %19 {offsets = [0, 38], sizes = [8, 288], strides = [1, 1]} : vector<8x384xf32> to vector<8x288xf32>
    %c0_46 = arith.constant 0 : index
    %c8 = arith.constant 8 : index
    %c0_47 = arith.constant 0 : index
    %c0_48 = arith.constant 0 : index
    %60 = vector.load %arg3[%c0_46, %c8, %c0_47, %c0_48] : memref<1x9x8x8xf32, #tpu.memory_space<vmem>>, vector<1x1x8x8xf32>
    %61 = vector.shape_cast %60 : vector<1x1x8x8xf32> to vector<8x8xf32>
    %cst_49 = arith.constant dense<0.000000e+00> : vector<8x288xf32>
    %62 = tpu.matmul %61, %59, %cst_49 {dimension_numbers = #tpu.dot_dimension_numbers<[1], [0], [0], [1], [0, 0, 1, 1], [], []>} : vector<8x8xf32>, vector<8x288xf32>, vector<8x288xf32> -> vector<8x288xf32>
    %63 = arith.addf %58, %62 : vector<8x288xf32>
    %c0_50 = arith.constant 0 : index
    %c0_51 = arith.constant 0 : index
    %64 = vector.load %arg9[%c0_50, %c0_51] : memref<8x288xf32, #tpu.memory_space<vmem>>, vector<8x288xf32>
    %65 = arith.addf %64, %63 : vector<8x288xf32>
    %c0_52 = arith.constant 0 : index
    %c0_53 = arith.constant 0 : index
    %66 = vector.load %arg9[%c0_52, %c0_53] : memref<8x288xf32, #tpu.memory_space<vmem>>, vector<8x288xf32>
    tpu.vector_store %arg9[%c0_52, %c0_53], %65 {strides = array<i32>} : memref<8x288xf32, #tpu.memory_space<vmem>>, vector<8x288xf32>,
    %c1_i32 = arith.constant 1 : i32
    %67 = arith.cmpi eq, %arg1, %c1_i32 : i32
    %68 = arith.extui %67 : i1 to i32
    %c0_i32_54 = arith.constant 0 : i32
    %69 = arith.cmpi ne, %68, %c0_i32_54 : i32
    scf.if %69 {
      %cst_55 = arith.constant 0.000000e+00 : f32
      %70 = vector.broadcast %cst_55 : f32 to vector<8x19xf32>
      %c0_56 = arith.constant 0 : index
      %c0_57 = arith.constant 0 : index
      %71 = vector.load %arg9[%c0_56, %c0_57] : memref<8x288xf32, #tpu.memory_space<vmem>>, vector<8x288xf32>
      %cst_58 = arith.constant 0.000000e+00 : f32
      %72 = vector.broadcast %cst_58 : f32 to vector<8x77xf32>
      %73 = tpu.concatenate %70, %71, %72 in 1 : vector<8x19xf32>, vector<8x288xf32>, vector<8x77xf32> -> vector<8x384xf32>
      %c0_59 = arith.constant 0 : index
      %c0_60 = arith.constant 0 : index
      %74 = vector.load %arg5[%c0_59, %c0_60] : memref<8x1xf32, #tpu.memory_space<vmem>>, vector<8x1xf32>
      %75 = vector.broadcast %74 : vector<8x1xf32> to vector<8x384xf32>
      %76 = arith.addf %73, %75 : vector<8x384xf32>
      %c0_61 = arith.constant 0 : index
      %c0_62 = arith.constant 0 : index
      %77 = vector.load %arg6[%c0_61, %c0_62] : memref<1x384xf32, #tpu.memory_space<vmem>>, vector<1x384xf32>
      %78 = vector.broadcast %77 : vector<1x384xf32> to vector<8x384xf32>
      %79 = arith.mulf %76, %78 : vector<8x384xf32>
      %c0_63 = arith.constant 0 : index
      %c0_64 = arith.constant 0 : index
      %c0_65 = arith.constant 0 : index
      %80 = vector.load %arg7[%c0_63, %c0_64, %c0_65] : memref<1x8x384xf32, #tpu.memory_space<vmem>>, vector<1x8x384xf32>
      %81 = vector.shape_cast %80 : vector<1x8x384xf32> to vector<8x384xf32>
      %82 = vector.shape_cast %79 : vector<8x384xf32> to vector<1x8x384xf32>
      tpu.vector_store %arg7[%c0_63, %c0_64, %c0_65], %82 {strides = array<i32>} : memref<1x8x384xf32, #tpu.memory_space<vmem>>, vector<1x8x384xf32>,
      %cst_66 = arith.constant dense<0.000000e+00> : vector<8xf32>
      %83 = vector.multi_reduction <add>, %79, %cst_66 [1] : vector<8x384xf32> to vector<8xf32>
      %84 = vector.shape_cast %83 : vector<8xf32> to vector<8x1xf32>
      %85 = arith.mulf %79, %79 : vector<8x384xf32>
      %cst_67 = arith.constant dense<0.000000e+00> : vector<8xf32>
      %86 = vector.multi_reduction <add>, %85, %cst_67 [1] : vector<8x384xf32> to vector<8xf32>
      %87 = vector.shape_cast %86 : vector<8xf32> to vector<8x1xf32>
      %88 = tpu.concatenate %84, %87 in 1 : vector<8x1xf32>, vector<8x1xf32> -> vector<8x2xf32>
      %c0_68 = arith.constant 0 : index
      %c0_69 = arith.constant 0 : index
      %c0_70 = arith.constant 0 : index
      %89 = vector.load %arg8[%c0_68, %c0_69, %c0_70] : memref<1x8x2xf32, #tpu.memory_space<vmem>>, vector<1x8x2xf32>
      %90 = vector.shape_cast %89 : vector<1x8x2xf32> to vector<8x2xf32>
      %91 = vector.shape_cast %88 : vector<8x2xf32> to vector<1x8x2xf32>
      tpu.vector_store %arg8[%c0_68, %c0_69, %c0_70], %91 {strides = array<i32>} : memref<1x8x2xf32, #tpu.memory_space<vmem>>, vector<1x8x2xf32>,
    } else {
    }
    return
  }
  func.func @transform_0(%arg0: i32, %arg1: i32) -> (i32, i32, i32) {
    %c0_i32 = arith.constant 0 : i32
    %0 = arith.addi %c0_i32, %arg1 : i32
    %c0_i32_0 = arith.constant 0 : i32
    %c0_i32_1 = arith.constant 0 : i32
    return %arg0, %0, %c0_i32_0 : i32, i32, i32
  }
  func.func @transform_1(%arg0: i32, %arg1: i32) -> (i32, i32, i32, i32) {
    %c0_i32 = arith.constant 0 : i32
    %c0_i32_0 = arith.constant 0 : i32
    %c0_i32_1 = arith.constant 0 : i32
    %c0_i32_2 = arith.constant 0 : i32
    return %arg1, %c0_i32, %c0_i32_0, %c0_i32_1 : i32, i32, i32, i32
  }
  func.func @transform_2(%arg0: i32, %arg1: i32) -> (i32, i32, i32) {
    %c0_i32 = arith.constant 0 : i32
    %0 = arith.addi %c0_i32, %arg1 : i32
    %c0_i32_0 = arith.constant 0 : i32
    %c0_i32_1 = arith.constant 0 : i32
    %c0_i32_2 = arith.constant 0 : i32
    return %c0_i32_0, %0, %c0_i32_1 : i32, i32, i32
  }
  func.func @transform_3(%arg0: i32, %arg1: i32) -> (i32, i32) {
    %c0_i32 = arith.constant 0 : i32
    %c0_i32_0 = arith.constant 0 : i32
    %c0_i32_1 = arith.constant 0 : i32
    return %c0_i32, %c0_i32_0 : i32, i32
  }
  func.func @transform_4(%arg0: i32, %arg1: i32) -> (i32, i32) {
    %c0_i32 = arith.constant 0 : i32
    %c0_i32_0 = arith.constant 0 : i32
    %c0_i32_1 = arith.constant 0 : i32
    return %c0_i32, %c0_i32_0 : i32, i32
  }
  func.func @transform_5(%arg0: i32, %arg1: i32) -> (i32, i32, i32) {
    %c2_i32 = arith.constant 2 : i32
    %c0_i32 = arith.constant 0 : i32
    %c0_i32_0 = arith.constant 0 : i32
    return %arg0, %c2_i32, %c0_i32 : i32, i32, i32
  }
  func.func @transform_6(%arg0: i32, %arg1: i32) -> (i32, i32, i32) {
    %c0_i32 = arith.constant 0 : i32
    %c0_i32_0 = arith.constant 0 : i32
    %c0_i32_1 = arith.constant 0 : i32
    return %arg0, %c0_i32, %c0_i32_0 : i32, i32, i32
  }
}

module attributes {stable_mosaic.version = 11 : i64} {
  func.func @_conv_bn_fused_kernel(%arg0: i32, %arg1: i32, %arg2: memref<1x8x384xf32, #tpu.memory_space<vmem>>, %arg3: memref<1x9x8x8xf32, #tpu.memory_space<vmem>>, %arg4: memref<3x8x1xf32, #tpu.memory_space<vmem>>, %arg5: memref<8x1xf32, #tpu.memory_space<vmem>>, %arg6: memref<1x384xf32, #tpu.memory_space<vmem>>, %arg7: memref<1x8x384xf32, #tpu.memory_space<vmem>>, %arg8: memref<1x8x2xf32, #tpu.memory_space<vmem>>, %arg9: memref<8x288xf32, #tpu.memory_space<vmem>>) attributes {dimension_semantics = [#tpu.dimension_semantics<parallel>, #tpu.dimension_semantics<arbitrary>], iteration_bounds = array<i64: 2, 3>, scalar_prefetch = 0 : i64, scratch_operands = 1 : i64, tpu.core_type = #tpu.core_type<tc>, window_params = [{transform_indices = @transform_0, window_bounds = array<i64: 1, 8, 384>}, {transform_indices = @transform_1, window_bounds = array<i64: 1, 9, 8, 8>}, {transform_indices = @transform_2, window_bounds = array<i64: 3, 8, 1>}, {pipeline_mode = #tpu.pipeline_mode<synchronous>, transform_indices = @transform_3, window_bounds = array<i64: 8, 1>}, {pipeline_mode = #tpu.pipeline_mode<synchronous>, transform_indices = @transform_4, window_bounds = array<i64: 1, 384>}, {transform_indices = @transform_5, window_bounds = array<i64: 1, 8, 384>}, {transform_indices = @transform_6, window_bounds = array<i64: 1, 8, 2>}]} {
    %c0_i32 = arith.constant 0 : i32
    %0 = arith.cmpi eq, %arg1, %c0_i32 : i32
    %1 = arith.extui %0 : i1 to i32
    %c0_i32_0 = arith.constant 0 : i32
    %2 = arith.cmpi ne, %1, %c0_i32_0 : i32
    scf.if %2 {
      %cst_55 = arith.constant 0.000000e+00 : f32
      %70 = vector.broadcast %cst_55 : f32 to vector<8x288xf32>
      %c0_56 = arith.constant 0 : index
      %c0_57 = arith.constant 0 : index
      %71 = vector.load %arg9[%c0_56, %c0_57] : memref<8x288xf32, #tpu.memory_space<vmem>>, vector<8x288xf32>
      tpu.vector_store %arg9[%c0_56, %c0_57], %70 {strides = array<i32>} : memref<8x288xf32, #tpu.memory_space<vmem>>, vector<8x288xf32>,
    } else {
    }
    %c0 = arith.constant 0 : index
    %c0_1 = arith.constant 0 : index
    %c0_2 = arith.constant 0 : index
    %3 = vector.load %arg2[%c0, %c0_1, %c0_2] : memref<1x8x384xf32, #tpu.memory_space<vmem>>, vector<1x8x384xf32>
    %4 = vector.shape_cast %3 : vector<1x8x384xf32> to vector<8x384xf32>
    %c0_3 = arith.constant 0 : index
    %c0_4 = arith.constant 0 : index
    %c0_5 = arith.constant 0 : index
    %5 = vector.load %arg4[%c0_3, %c0_4, %c0_5] : memref<3x8x1xf32, #tpu.memory_space<vmem>>, vector<1x8x1xf32>
    %6 = vector.shape_cast %5 : vector<1x8x1xf32> to vector<8x1xf32>
    %7 = vector.broadcast %6 : vector<8x1xf32> to vector<8x384xf32>
    %8 = arith.mulf %4, %7 : vector<8x384xf32>
    %c1 = arith.constant 1 : index
    %c0_6 = arith.constant 0 : index
    %c0_7 = arith.constant 0 : index
    %9 = vector.load %arg4[%c1, %c0_6, %c0_7] : memref<3x8x1xf32, #tpu.memory_space<vmem>>, vector<1x8x1xf32>
    %10 = vector.shape_cast %9 : vector<1x8x1xf32> to vector<8x1xf32>
    %11 = vector.broadcast %10 : vector<8x1xf32> to vector<8x384xf32>
    %12 = arith.addf %8, %11 : vector<8x384xf32>
    %c2 = arith.constant 2 : index
    %c0_8 = arith.constant 0 : index
    %c0_9 = arith.constant 0 : index
    %13 = vector.load %arg4[%c2, %c0_8, %c0_9] : memref<3x8x1xf32, #tpu.memory_space<vmem>>, vector<1x8x1xf32>
    %14 = vector.shape_cast %13 : vector<1x8x1xf32> to vector<8x1xf32>
    %15 = vector.broadcast %14 : vector<8x1xf32> to vector<8x384xf32>
    %16 = arith.maximumf %12, %15 : vector<8x384xf32>
    %c0_10 = arith.constant 0 : index
    %c0_11 = arith.constant 0 : index
    %17 = vector.load %arg6[%c0_10, %c0_11] : memref<1x384xf32, #tpu.memory_space<vmem>>, vector<1x384xf32>
    %18 = vector.broadcast %17 : vector<1x384xf32> to vector<8x384xf32>
    %19 = arith.mulf %16, %18 : vector<8x384xf32>
    %20 = vector.extract_strided_slice %19 {offsets = [0, 0], sizes = [8, 288], strides = [1, 1]} : vector<8x384xf32> to vector<8x288xf32>
    %c0_12 = arith.constant 0 : index
    %c0_13 = arith.constant 0 : index
    %c0_14 = arith.constant 0 : index
    %c0_15 = arith.constant 0 : index
    %21 = vector.load %arg3[%c0_12, %c0_13, %c0_14, %c0_15] : memref<1x9x8x8xf32, #tpu.memory_space<vmem>>, vector<1x1x8x8xf32>
    %22 = vector.shape_cast %21 : vector<1x1x8x8xf32> to vector<8x8xf32>
    %cst = arith.constant dense<0.000000e+00> : vector<8x288xf32>
    %23 = tpu.matmul %22, %20, %cst {dimension_numbers = #tpu.dot_dimension_numbers<[1], [0], [0], [1], [0, 0, 1, 1], [], []>} : vector<8x8xf32>, vector<8x288xf32>, vector<8x288xf32> -> vector<8x288xf32>
    %24 = vector.extract_strided_slice %19 {offsets = [0, 1], sizes = [8, 288], strides = [1, 1]} : vector<8x384xf32> to vector<8x288xf32>
    %c0_16 = arith.constant 0 : index
    %c1_17 = arith.constant 1 : index
    %c0_18 = arith.constant 0 : index
    %c0_19 = arith.constant 0 : index
    %25 = vector.load %arg3[%c0_16, %c1_17, %c0_18, %c0_19] : memref<1x9x8x8xf32, #tpu.memory_space<vmem>>, vector<1x1x8x8xf32>
    %26 = vector.shape_cast %25 : vector<1x1x8x8xf32> to vector<8x8xf32>
    %cst_20 = arith.constant dense<0.000000e+00> : vector<8x288xf32>
    %27 = tpu.matmul %26, %24, %cst_20 {dimension_numbers = #tpu.dot_dimension_numbers<[1], [0], [0], [1], [0, 0, 1, 1], [], []>} : vector<8x8xf32>, vector<8x288xf32>, vector<8x288xf32> -> vector<8x288xf32>
    %28 = arith.addf %23, %27 : vector<8x288xf32>
    %29 = vector.extract_strided_slice %19 {offsets = [0, 2], sizes = [8, 288], strides = [1, 1]} : vector<8x384xf32> to vector<8x288xf32>
    %c0_21 = arith.constant 0 : index
    %c2_22 = arith.constant 2 : index
    %c0_23 = arith.constant 0 : index
    %c0_24 = arith.constant 0 : index
    %30 = vector.load %arg3[%c0_21, %c2_22, %c0_23, %c0_24] : memref<1x9x8x8xf32, #tpu.memory_space<vmem>>, vector<1x1x8x8xf32>
    %31 = vector.shape_cast %30 : vector<1x1x8x8xf32> to vector<8x8xf32>
    %cst_25 = arith.constant dense<0.000000e+00> : vector<8x288xf32>
    %32 = tpu.matmul %31, %29, %cst_25 {dimension_numbers = #tpu.dot_dimension_numbers<[1], [0], [0], [1], [0, 0, 1, 1], [], []>} : vector<8x8xf32>, vector<8x288xf32>, vector<8x288xf32> -> vector<8x288xf32>
    %33 = arith.addf %28, %32 : vector<8x288xf32>
    %34 = vector.extract_strided_slice %19 {offsets = [0, 18], sizes = [8, 288], strides = [1, 1]} : vector<8x384xf32> to vector<8x288xf32>
    %c0_26 = arith.constant 0 : index
    %c3 = arith.constant 3 : index
    %c0_27 = arith.constant 0 : index
    %c0_28 = arith.constant 0 : index
    %35 = vector.load %arg3[%c0_26, %c3, %c0_27, %c0_28] : memref<1x9x8x8xf32, #tpu.memory_space<vmem>>, vector<1x1x8x8xf32>
    %36 = vector.shape_cast %35 : vector<1x1x8x8xf32> to vector<8x8xf32>
    %cst_29 = arith.constant dense<0.000000e+00> : vector<8x288xf32>
    %37 = tpu.matmul %36, %34, %cst_29 {dimension_numbers = #tpu.dot_dimension_numbers<[1], [0], [0], [1], [0, 0, 1, 1], [], []>} : vector<8x8xf32>, vector<8x288xf32>, vector<8x288xf32> -> vector<8x288xf32>
    %38 = arith.addf %33, %37 : vector<8x288xf32>
    %39 = vector.extract_strided_slice %19 {offsets = [0, 19], sizes = [8, 288], strides = [1, 1]} : vector<8x384xf32> to vector<8x288xf32>
    %c0_30 = arith.constant 0 : index
    %c4 = arith.constant 4 : index
    %c0_31 = arith.constant 0 : index
    %c0_32 = arith.constant 0 : index
    %40 = vector.load %arg3[%c0_30, %c4, %c0_31, %c0_32] : memref<1x9x8x8xf32, #tpu.memory_space<vmem>>, vector<1x1x8x8xf32>
    %41 = vector.shape_cast %40 : vector<1x1x8x8xf32> to vector<8x8xf32>
    %cst_33 = arith.constant dense<0.000000e+00> : vector<8x288xf32>
    %42 = tpu.matmul %41, %39, %cst_33 {dimension_numbers = #tpu.dot_dimension_numbers<[1], [0], [0], [1], [0, 0, 1, 1], [], []>} : vector<8x8xf32>, vector<8x288xf32>, vector<8x288xf32> -> vector<8x288xf32>
    %43 = arith.addf %38, %42 : vector<8x288xf32>
    %44 = vector.extract_strided_slice %19 {offsets = [0, 20], sizes = [8, 288], strides = [1, 1]} : vector<8x384xf32> to vector<8x288xf32>
    %c0_34 = arith.constant 0 : index
    %c5 = arith.constant 5 : index
    %c0_35 = arith.constant 0 : index
    %c0_36 = arith.constant 0 : index
    %45 = vector.load %arg3[%c0_34, %c5, %c0_35, %c0_36] : memref<1x9x8x8xf32, #tpu.memory_space<vmem>>, vector<1x1x8x8xf32>
    %46 = vector.shape_cast %45 : vector<1x1x8x8xf32> to vector<8x8xf32>
    %cst_37 = arith.constant dense<0.000000e+00> : vector<8x288xf32>
    %47 = tpu.matmul %46, %44, %cst_37 {dimension_numbers = #tpu.dot_dimension_numbers<[1], [0], [0], [1], [0, 0, 1, 1], [], []>} : vector<8x8xf32>, vector<8x288xf32>, vector<8x288xf32> -> vector<8x288xf32>
    %48 = arith.addf %43, %47 : vector<8x288xf32>
    %49 = vector.extract_strided_slice %19 {offsets = [0, 36], sizes = [8, 288], strides = [1, 1]} : vector<8x384xf32> to vector<8x288xf32>
    %c0_38 = arith.constant 0 : index
    %c6 = arith.constant 6 : index
    %c0_39 = arith.constant 0 : index
    %c0_40 = arith.constant 0 : index
    %50 = vector.load %arg3[%c0_38, %c6, %c0_39, %c0_40] : memref<1x9x8x8xf32, #tpu.memory_space<vmem>>, vector<1x1x8x8xf32>
    %51 = vector.shape_cast %50 : vector<1x1x8x8xf32> to vector<8x8xf32>
    %cst_41 = arith.constant dense<0.000000e+00> : vector<8x288xf32>
    %52 = tpu.matmul %51, %49, %cst_41 {dimension_numbers = #tpu.dot_dimension_numbers<[1], [0], [0], [1], [0, 0, 1, 1], [], []>} : vector<8x8xf32>, vector<8x288xf32>, vector<8x288xf32> -> vector<8x288xf32>
    %53 = arith.addf %48, %52 : vector<8x288xf32>
    %54 = vector.extract_strided_slice %19 {offsets = [0, 37], sizes = [8, 288], strides = [1, 1]} : vector<8x384xf32> to vector<8x288xf32>
    %c0_42 = arith.constant 0 : index
    %c7 = arith.constant 7 : index
    %c0_43 = arith.constant 0 : index
    %c0_44 = arith.constant 0 : index
    %55 = vector.load %arg3[%c0_42, %c7, %c0_43, %c0_44] : memref<1x9x8x8xf32, #tpu.memory_space<vmem>>, vector<1x1x8x8xf32>
    %56 = vector.shape_cast %55 : vector<1x1x8x8xf32> to vector<8x8xf32>
    %cst_45 = arith.constant dense<0.000000e+00> : vector<8x288xf32>
    %57 = tpu.matmul %56, %54, %cst_45 {dimension_numbers = #tpu.dot_dimension_numbers<[1], [0], [0], [1], [0, 0, 1, 1], [], []>} : vector<8x8xf32>, vector<8x288xf32>, vector<8x288xf32> -> vector<8x288xf32>
    %58 = arith.addf %53, %57 : vector<8x288xf32>
    %59 = vector.extract_strided_slice %19 {offsets = [0, 38], sizes = [8, 288], strides = [1, 1]} : vector<8x384xf32> to vector<8x288xf32>
    %c0_46 = arith.constant 0 : index
    %c8 = arith.constant 8 : index
    %c0_47 = arith.constant 0 : index
    %c0_48 = arith.constant 0 : index
    %60 = vector.load %arg3[%c0_46, %c8, %c0_47, %c0_48] : memref<1x9x8x8xf32, #tpu.memory_space<vmem>>, vector<1x1x8x8xf32>
    %61 = vector.shape_cast %60 : vector<1x1x8x8xf32> to vector<8x8xf32>
    %cst_49 = arith.constant dense<0.000000e+00> : vector<8x288xf32>
    %62 = tpu.matmul %61, %59, %cst_49 {dimension_numbers = #tpu.dot_dimension_numbers<[1], [0], [0], [1], [0, 0, 1, 1], [], []>} : vector<8x8xf32>, vector<8x288xf32>, vector<8x288xf32> -> vector<8x288xf32>
    %63 = arith.addf %58, %62 : vector<8x288xf32>
    %c0_50 = arith.constant 0 : index
    %c0_51 = arith.constant 0 : index
    %64 = vector.load %arg9[%c0_50, %c0_51] : memref<8x288xf32, #tpu.memory_space<vmem>>, vector<8x288xf32>
    %65 = arith.addf %64, %63 : vector<8x288xf32>
    %c0_52 = arith.constant 0 : index
    %c0_53 = arith.constant 0 : index
    %66 = vector.load %arg9[%c0_52, %c0_53] : memref<8x288xf32, #tpu.memory_space<vmem>>, vector<8x288xf32>
    tpu.vector_store %arg9[%c0_52, %c0_53], %65 {strides = array<i32>} : memref<8x288xf32, #tpu.memory_space<vmem>>, vector<8x288xf32>,
    %c2_i32 = arith.constant 2 : i32
    %67 = arith.cmpi eq, %arg1, %c2_i32 : i32
    %68 = arith.extui %67 : i1 to i32
    %c0_i32_54 = arith.constant 0 : i32
    %69 = arith.cmpi ne, %68, %c0_i32_54 : i32
    scf.if %69 {
      %cst_55 = arith.constant 0.000000e+00 : f32
      %70 = vector.broadcast %cst_55 : f32 to vector<8x19xf32>
      %c0_56 = arith.constant 0 : index
      %c0_57 = arith.constant 0 : index
      %71 = vector.load %arg9[%c0_56, %c0_57] : memref<8x288xf32, #tpu.memory_space<vmem>>, vector<8x288xf32>
      %cst_58 = arith.constant 0.000000e+00 : f32
      %72 = vector.broadcast %cst_58 : f32 to vector<8x77xf32>
      %73 = tpu.concatenate %70, %71, %72 in 1 : vector<8x19xf32>, vector<8x288xf32>, vector<8x77xf32> -> vector<8x384xf32>
      %c0_59 = arith.constant 0 : index
      %c0_60 = arith.constant 0 : index
      %74 = vector.load %arg5[%c0_59, %c0_60] : memref<8x1xf32, #tpu.memory_space<vmem>>, vector<8x1xf32>
      %75 = vector.broadcast %74 : vector<8x1xf32> to vector<8x384xf32>
      %76 = arith.addf %73, %75 : vector<8x384xf32>
      %c0_61 = arith.constant 0 : index
      %c0_62 = arith.constant 0 : index
      %77 = vector.load %arg6[%c0_61, %c0_62] : memref<1x384xf32, #tpu.memory_space<vmem>>, vector<1x384xf32>
      %78 = vector.broadcast %77 : vector<1x384xf32> to vector<8x384xf32>
      %79 = arith.mulf %76, %78 : vector<8x384xf32>
      %c0_63 = arith.constant 0 : index
      %c0_64 = arith.constant 0 : index
      %c0_65 = arith.constant 0 : index
      %80 = vector.load %arg7[%c0_63, %c0_64, %c0_65] : memref<1x8x384xf32, #tpu.memory_space<vmem>>, vector<1x8x384xf32>
      %81 = vector.shape_cast %80 : vector<1x8x384xf32> to vector<8x384xf32>
      %82 = vector.shape_cast %79 : vector<8x384xf32> to vector<1x8x384xf32>
      tpu.vector_store %arg7[%c0_63, %c0_64, %c0_65], %82 {strides = array<i32>} : memref<1x8x384xf32, #tpu.memory_space<vmem>>, vector<1x8x384xf32>,
      %cst_66 = arith.constant dense<0.000000e+00> : vector<8xf32>
      %83 = vector.multi_reduction <add>, %79, %cst_66 [1] : vector<8x384xf32> to vector<8xf32>
      %84 = vector.shape_cast %83 : vector<8xf32> to vector<8x1xf32>
      %85 = arith.mulf %79, %79 : vector<8x384xf32>
      %cst_67 = arith.constant dense<0.000000e+00> : vector<8xf32>
      %86 = vector.multi_reduction <add>, %85, %cst_67 [1] : vector<8x384xf32> to vector<8xf32>
      %87 = vector.shape_cast %86 : vector<8xf32> to vector<8x1xf32>
      %88 = tpu.concatenate %84, %87 in 1 : vector<8x1xf32>, vector<8x1xf32> -> vector<8x2xf32>
      %c0_68 = arith.constant 0 : index
      %c0_69 = arith.constant 0 : index
      %c0_70 = arith.constant 0 : index
      %89 = vector.load %arg8[%c0_68, %c0_69, %c0_70] : memref<1x8x2xf32, #tpu.memory_space<vmem>>, vector<1x8x2xf32>
      %90 = vector.shape_cast %89 : vector<1x8x2xf32> to vector<8x2xf32>
      %91 = vector.shape_cast %88 : vector<8x2xf32> to vector<1x8x2xf32>
      tpu.vector_store %arg8[%c0_68, %c0_69, %c0_70], %91 {strides = array<i32>} : memref<1x8x2xf32, #tpu.memory_space<vmem>>, vector<1x8x2xf32>,
    } else {
    }
    return
  }
  func.func @transform_0(%arg0: i32, %arg1: i32) -> (i32, i32, i32) {
    %c0_i32 = arith.constant 0 : i32
    %0 = arith.addi %c0_i32, %arg1 : i32
    %c0_i32_0 = arith.constant 0 : i32
    %c0_i32_1 = arith.constant 0 : i32
    return %arg0, %0, %c0_i32_0 : i32, i32, i32
  }
  func.func @transform_1(%arg0: i32, %arg1: i32) -> (i32, i32, i32, i32) {
    %c0_i32 = arith.constant 0 : i32
    %c0_i32_0 = arith.constant 0 : i32
    %c0_i32_1 = arith.constant 0 : i32
    %c0_i32_2 = arith.constant 0 : i32
    return %arg1, %c0_i32, %c0_i32_0, %c0_i32_1 : i32, i32, i32, i32
  }
  func.func @transform_2(%arg0: i32, %arg1: i32) -> (i32, i32, i32) {
    %c0_i32 = arith.constant 0 : i32
    %0 = arith.addi %c0_i32, %arg1 : i32
    %c0_i32_0 = arith.constant 0 : i32
    %c0_i32_1 = arith.constant 0 : i32
    %c0_i32_2 = arith.constant 0 : i32
    return %c0_i32_0, %0, %c0_i32_1 : i32, i32, i32
  }
  func.func @transform_3(%arg0: i32, %arg1: i32) -> (i32, i32) {
    %c0_i32 = arith.constant 0 : i32
    %c0_i32_0 = arith.constant 0 : i32
    %c0_i32_1 = arith.constant 0 : i32
    return %c0_i32, %c0_i32_0 : i32, i32
  }
  func.func @transform_4(%arg0: i32, %arg1: i32) -> (i32, i32) {
    %c0_i32 = arith.constant 0 : i32
    %c0_i32_0 = arith.constant 0 : i32
    %c0_i32_1 = arith.constant 0 : i32
    return %c0_i32, %c0_i32_0 : i32, i32
  }
  func.func @transform_5(%arg0: i32, %arg1: i32) -> (i32, i32, i32) {
    %c3_i32 = arith.constant 3 : i32
    %c0_i32 = arith.constant 0 : i32
    %c0_i32_0 = arith.constant 0 : i32
    return %arg0, %c3_i32, %c0_i32 : i32, i32, i32
  }
  func.func @transform_6(%arg0: i32, %arg1: i32) -> (i32, i32, i32) {
    %c0_i32 = arith.constant 0 : i32
    %c0_i32_0 = arith.constant 0 : i32
    %c0_i32_1 = arith.constant 0 : i32
    return %arg0, %c0_i32, %c0_i32_0 : i32, i32, i32
  }
}

module attributes {stable_mosaic.version = 11 : i64} {
  func.func @_conv_bn_fused_kernel(%arg0: i32, %arg1: i32, %arg2: memref<1x8x384xf32, #tpu.memory_space<vmem>>, %arg3: memref<1x9x8x8xf32, #tpu.memory_space<vmem>>, %arg4: memref<3x8x1xf32, #tpu.memory_space<vmem>>, %arg5: memref<8x1xf32, #tpu.memory_space<vmem>>, %arg6: memref<1x384xf32, #tpu.memory_space<vmem>>, %arg7: memref<1x8x384xf32, #tpu.memory_space<vmem>>, %arg8: memref<1x8x2xf32, #tpu.memory_space<vmem>>, %arg9: memref<8x288xf32, #tpu.memory_space<vmem>>) attributes {dimension_semantics = [#tpu.dimension_semantics<parallel>, #tpu.dimension_semantics<arbitrary>], iteration_bounds = array<i64: 2, 2>, scalar_prefetch = 0 : i64, scratch_operands = 1 : i64, tpu.core_type = #tpu.core_type<tc>, window_params = [{transform_indices = @transform_0, window_bounds = array<i64: 1, 8, 384>}, {transform_indices = @transform_1, window_bounds = array<i64: 1, 9, 8, 8>}, {transform_indices = @transform_2, window_bounds = array<i64: 3, 8, 1>}, {pipeline_mode = #tpu.pipeline_mode<synchronous>, transform_indices = @transform_3, window_bounds = array<i64: 8, 1>}, {pipeline_mode = #tpu.pipeline_mode<synchronous>, transform_indices = @transform_4, window_bounds = array<i64: 1, 384>}, {transform_indices = @transform_5, window_bounds = array<i64: 1, 8, 384>}, {transform_indices = @transform_6, window_bounds = array<i64: 1, 8, 2>}]} {
    %c0_i32 = arith.constant 0 : i32
    %0 = arith.cmpi eq, %arg1, %c0_i32 : i32
    %1 = arith.extui %0 : i1 to i32
    %c0_i32_0 = arith.constant 0 : i32
    %2 = arith.cmpi ne, %1, %c0_i32_0 : i32
    scf.if %2 {
      %cst_55 = arith.constant 0.000000e+00 : f32
      %70 = vector.broadcast %cst_55 : f32 to vector<8x288xf32>
      %c0_56 = arith.constant 0 : index
      %c0_57 = arith.constant 0 : index
      %71 = vector.load %arg9[%c0_56, %c0_57] : memref<8x288xf32, #tpu.memory_space<vmem>>, vector<8x288xf32>
      tpu.vector_store %arg9[%c0_56, %c0_57], %70 {strides = array<i32>} : memref<8x288xf32, #tpu.memory_space<vmem>>, vector<8x288xf32>,
    } else {
    }
    %c0 = arith.constant 0 : index
    %c0_1 = arith.constant 0 : index
    %c0_2 = arith.constant 0 : index
    %3 = vector.load %arg2[%c0, %c0_1, %c0_2] : memref<1x8x384xf32, #tpu.memory_space<vmem>>, vector<1x8x384xf32>
    %4 = vector.shape_cast %3 : vector<1x8x384xf32> to vector<8x384xf32>
    %c0_3 = arith.constant 0 : index
    %c0_4 = arith.constant 0 : index
    %c0_5 = arith.constant 0 : index
    %5 = vector.load %arg4[%c0_3, %c0_4, %c0_5] : memref<3x8x1xf32, #tpu.memory_space<vmem>>, vector<1x8x1xf32>
    %6 = vector.shape_cast %5 : vector<1x8x1xf32> to vector<8x1xf32>
    %7 = vector.broadcast %6 : vector<8x1xf32> to vector<8x384xf32>
    %8 = arith.mulf %4, %7 : vector<8x384xf32>
    %c1 = arith.constant 1 : index
    %c0_6 = arith.constant 0 : index
    %c0_7 = arith.constant 0 : index
    %9 = vector.load %arg4[%c1, %c0_6, %c0_7] : memref<3x8x1xf32, #tpu.memory_space<vmem>>, vector<1x8x1xf32>
    %10 = vector.shape_cast %9 : vector<1x8x1xf32> to vector<8x1xf32>
    %11 = vector.broadcast %10 : vector<8x1xf32> to vector<8x384xf32>
    %12 = arith.addf %8, %11 : vector<8x384xf32>
    %c2 = arith.constant 2 : index
    %c0_8 = arith.constant 0 : index
    %c0_9 = arith.constant 0 : index
    %13 = vector.load %arg4[%c2, %c0_8, %c0_9] : memref<3x8x1xf32, #tpu.memory_space<vmem>>, vector<1x8x1xf32>
    %14 = vector.shape_cast %13 : vector<1x8x1xf32> to vector<8x1xf32>
    %15 = vector.broadcast %14 : vector<8x1xf32> to vector<8x384xf32>
    %16 = arith.maximumf %12, %15 : vector<8x384xf32>
    %c0_10 = arith.constant 0 : index
    %c0_11 = arith.constant 0 : index
    %17 = vector.load %arg6[%c0_10, %c0_11] : memref<1x384xf32, #tpu.memory_space<vmem>>, vector<1x384xf32>
    %18 = vector.broadcast %17 : vector<1x384xf32> to vector<8x384xf32>
    %19 = arith.mulf %16, %18 : vector<8x384xf32>
    %20 = vector.extract_strided_slice %19 {offsets = [0, 0], sizes = [8, 288], strides = [1, 1]} : vector<8x384xf32> to vector<8x288xf32>
    %c0_12 = arith.constant 0 : index
    %c0_13 = arith.constant 0 : index
    %c0_14 = arith.constant 0 : index
    %c0_15 = arith.constant 0 : index
    %21 = vector.load %arg3[%c0_12, %c0_13, %c0_14, %c0_15] : memref<1x9x8x8xf32, #tpu.memory_space<vmem>>, vector<1x1x8x8xf32>
    %22 = vector.shape_cast %21 : vector<1x1x8x8xf32> to vector<8x8xf32>
    %cst = arith.constant dense<0.000000e+00> : vector<8x288xf32>
    %23 = tpu.matmul %22, %20, %cst {dimension_numbers = #tpu.dot_dimension_numbers<[1], [0], [0], [1], [0, 0, 1, 1], [], []>} : vector<8x8xf32>, vector<8x288xf32>, vector<8x288xf32> -> vector<8x288xf32>
    %24 = vector.extract_strided_slice %19 {offsets = [0, 1], sizes = [8, 288], strides = [1, 1]} : vector<8x384xf32> to vector<8x288xf32>
    %c0_16 = arith.constant 0 : index
    %c1_17 = arith.constant 1 : index
    %c0_18 = arith.constant 0 : index
    %c0_19 = arith.constant 0 : index
    %25 = vector.load %arg3[%c0_16, %c1_17, %c0_18, %c0_19] : memref<1x9x8x8xf32, #tpu.memory_space<vmem>>, vector<1x1x8x8xf32>
    %26 = vector.shape_cast %25 : vector<1x1x8x8xf32> to vector<8x8xf32>
    %cst_20 = arith.constant dense<0.000000e+00> : vector<8x288xf32>
    %27 = tpu.matmul %26, %24, %cst_20 {dimension_numbers = #tpu.dot_dimension_numbers<[1], [0], [0], [1], [0, 0, 1, 1], [], []>} : vector<8x8xf32>, vector<8x288xf32>, vector<8x288xf32> -> vector<8x288xf32>
    %28 = arith.addf %23, %27 : vector<8x288xf32>
    %29 = vector.extract_strided_slice %19 {offsets = [0, 2], sizes = [8, 288], strides = [1, 1]} : vector<8x384xf32> to vector<8x288xf32>
    %c0_21 = arith.constant 0 : index
    %c2_22 = arith.constant 2 : index
    %c0_23 = arith.constant 0 : index
    %c0_24 = arith.constant 0 : index
    %30 = vector.load %arg3[%c0_21, %c2_22, %c0_23, %c0_24] : memref<1x9x8x8xf32, #tpu.memory_space<vmem>>, vector<1x1x8x8xf32>
    %31 = vector.shape_cast %30 : vector<1x1x8x8xf32> to vector<8x8xf32>
    %cst_25 = arith.constant dense<0.000000e+00> : vector<8x288xf32>
    %32 = tpu.matmul %31, %29, %cst_25 {dimension_numbers = #tpu.dot_dimension_numbers<[1], [0], [0], [1], [0, 0, 1, 1], [], []>} : vector<8x8xf32>, vector<8x288xf32>, vector<8x288xf32> -> vector<8x288xf32>
    %33 = arith.addf %28, %32 : vector<8x288xf32>
    %34 = vector.extract_strided_slice %19 {offsets = [0, 18], sizes = [8, 288], strides = [1, 1]} : vector<8x384xf32> to vector<8x288xf32>
    %c0_26 = arith.constant 0 : index
    %c3 = arith.constant 3 : index
    %c0_27 = arith.constant 0 : index
    %c0_28 = arith.constant 0 : index
    %35 = vector.load %arg3[%c0_26, %c3, %c0_27, %c0_28] : memref<1x9x8x8xf32, #tpu.memory_space<vmem>>, vector<1x1x8x8xf32>
    %36 = vector.shape_cast %35 : vector<1x1x8x8xf32> to vector<8x8xf32>
    %cst_29 = arith.constant dense<0.000000e+00> : vector<8x288xf32>
    %37 = tpu.matmul %36, %34, %cst_29 {dimension_numbers = #tpu.dot_dimension_numbers<[1], [0], [0], [1], [0, 0, 1, 1], [], []>} : vector<8x8xf32>, vector<8x288xf32>, vector<8x288xf32> -> vector<8x288xf32>
    %38 = arith.addf %33, %37 : vector<8x288xf32>
    %39 = vector.extract_strided_slice %19 {offsets = [0, 19], sizes = [8, 288], strides = [1, 1]} : vector<8x384xf32> to vector<8x288xf32>
    %c0_30 = arith.constant 0 : index
    %c4 = arith.constant 4 : index
    %c0_31 = arith.constant 0 : index
    %c0_32 = arith.constant 0 : index
    %40 = vector.load %arg3[%c0_30, %c4, %c0_31, %c0_32] : memref<1x9x8x8xf32, #tpu.memory_space<vmem>>, vector<1x1x8x8xf32>
    %41 = vector.shape_cast %40 : vector<1x1x8x8xf32> to vector<8x8xf32>
    %cst_33 = arith.constant dense<0.000000e+00> : vector<8x288xf32>
    %42 = tpu.matmul %41, %39, %cst_33 {dimension_numbers = #tpu.dot_dimension_numbers<[1], [0], [0], [1], [0, 0, 1, 1], [], []>} : vector<8x8xf32>, vector<8x288xf32>, vector<8x288xf32> -> vector<8x288xf32>
    %43 = arith.addf %38, %42 : vector<8x288xf32>
    %44 = vector.extract_strided_slice %19 {offsets = [0, 20], sizes = [8, 288], strides = [1, 1]} : vector<8x384xf32> to vector<8x288xf32>
    %c0_34 = arith.constant 0 : index
    %c5 = arith.constant 5 : index
    %c0_35 = arith.constant 0 : index
    %c0_36 = arith.constant 0 : index
    %45 = vector.load %arg3[%c0_34, %c5, %c0_35, %c0_36] : memref<1x9x8x8xf32, #tpu.memory_space<vmem>>, vector<1x1x8x8xf32>
    %46 = vector.shape_cast %45 : vector<1x1x8x8xf32> to vector<8x8xf32>
    %cst_37 = arith.constant dense<0.000000e+00> : vector<8x288xf32>
    %47 = tpu.matmul %46, %44, %cst_37 {dimension_numbers = #tpu.dot_dimension_numbers<[1], [0], [0], [1], [0, 0, 1, 1], [], []>} : vector<8x8xf32>, vector<8x288xf32>, vector<8x288xf32> -> vector<8x288xf32>
    %48 = arith.addf %43, %47 : vector<8x288xf32>
    %49 = vector.extract_strided_slice %19 {offsets = [0, 36], sizes = [8, 288], strides = [1, 1]} : vector<8x384xf32> to vector<8x288xf32>
    %c0_38 = arith.constant 0 : index
    %c6 = arith.constant 6 : index
    %c0_39 = arith.constant 0 : index
    %c0_40 = arith.constant 0 : index
    %50 = vector.load %arg3[%c0_38, %c6, %c0_39, %c0_40] : memref<1x9x8x8xf32, #tpu.memory_space<vmem>>, vector<1x1x8x8xf32>
    %51 = vector.shape_cast %50 : vector<1x1x8x8xf32> to vector<8x8xf32>
    %cst_41 = arith.constant dense<0.000000e+00> : vector<8x288xf32>
    %52 = tpu.matmul %51, %49, %cst_41 {dimension_numbers = #tpu.dot_dimension_numbers<[1], [0], [0], [1], [0, 0, 1, 1], [], []>} : vector<8x8xf32>, vector<8x288xf32>, vector<8x288xf32> -> vector<8x288xf32>
    %53 = arith.addf %48, %52 : vector<8x288xf32>
    %54 = vector.extract_strided_slice %19 {offsets = [0, 37], sizes = [8, 288], strides = [1, 1]} : vector<8x384xf32> to vector<8x288xf32>
    %c0_42 = arith.constant 0 : index
    %c7 = arith.constant 7 : index
    %c0_43 = arith.constant 0 : index
    %c0_44 = arith.constant 0 : index
    %55 = vector.load %arg3[%c0_42, %c7, %c0_43, %c0_44] : memref<1x9x8x8xf32, #tpu.memory_space<vmem>>, vector<1x1x8x8xf32>
    %56 = vector.shape_cast %55 : vector<1x1x8x8xf32> to vector<8x8xf32>
    %cst_45 = arith.constant dense<0.000000e+00> : vector<8x288xf32>
    %57 = tpu.matmul %56, %54, %cst_45 {dimension_numbers = #tpu.dot_dimension_numbers<[1], [0], [0], [1], [0, 0, 1, 1], [], []>} : vector<8x8xf32>, vector<8x288xf32>, vector<8x288xf32> -> vector<8x288xf32>
    %58 = arith.addf %53, %57 : vector<8x288xf32>
    %59 = vector.extract_strided_slice %19 {offsets = [0, 38], sizes = [8, 288], strides = [1, 1]} : vector<8x384xf32> to vector<8x288xf32>
    %c0_46 = arith.constant 0 : index
    %c8 = arith.constant 8 : index
    %c0_47 = arith.constant 0 : index
    %c0_48 = arith.constant 0 : index
    %60 = vector.load %arg3[%c0_46, %c8, %c0_47, %c0_48] : memref<1x9x8x8xf32, #tpu.memory_space<vmem>>, vector<1x1x8x8xf32>
    %61 = vector.shape_cast %60 : vector<1x1x8x8xf32> to vector<8x8xf32>
    %cst_49 = arith.constant dense<0.000000e+00> : vector<8x288xf32>
    %62 = tpu.matmul %61, %59, %cst_49 {dimension_numbers = #tpu.dot_dimension_numbers<[1], [0], [0], [1], [0, 0, 1, 1], [], []>} : vector<8x8xf32>, vector<8x288xf32>, vector<8x288xf32> -> vector<8x288xf32>
    %63 = arith.addf %58, %62 : vector<8x288xf32>
    %c0_50 = arith.constant 0 : index
    %c0_51 = arith.constant 0 : index
    %64 = vector.load %arg9[%c0_50, %c0_51] : memref<8x288xf32, #tpu.memory_space<vmem>>, vector<8x288xf32>
    %65 = arith.addf %64, %63 : vector<8x288xf32>
    %c0_52 = arith.constant 0 : index
    %c0_53 = arith.constant 0 : index
    %66 = vector.load %arg9[%c0_52, %c0_53] : memref<8x288xf32, #tpu.memory_space<vmem>>, vector<8x288xf32>
    tpu.vector_store %arg9[%c0_52, %c0_53], %65 {strides = array<i32>} : memref<8x288xf32, #tpu.memory_space<vmem>>, vector<8x288xf32>,
    %c1_i32 = arith.constant 1 : i32
    %67 = arith.cmpi eq, %arg1, %c1_i32 : i32
    %68 = arith.extui %67 : i1 to i32
    %c0_i32_54 = arith.constant 0 : i32
    %69 = arith.cmpi ne, %68, %c0_i32_54 : i32
    scf.if %69 {
      %cst_55 = arith.constant 0.000000e+00 : f32
      %70 = vector.broadcast %cst_55 : f32 to vector<8x19xf32>
      %c0_56 = arith.constant 0 : index
      %c0_57 = arith.constant 0 : index
      %71 = vector.load %arg9[%c0_56, %c0_57] : memref<8x288xf32, #tpu.memory_space<vmem>>, vector<8x288xf32>
      %cst_58 = arith.constant 0.000000e+00 : f32
      %72 = vector.broadcast %cst_58 : f32 to vector<8x77xf32>
      %73 = tpu.concatenate %70, %71, %72 in 1 : vector<8x19xf32>, vector<8x288xf32>, vector<8x77xf32> -> vector<8x384xf32>
      %c0_59 = arith.constant 0 : index
      %c0_60 = arith.constant 0 : index
      %74 = vector.load %arg5[%c0_59, %c0_60] : memref<8x1xf32, #tpu.memory_space<vmem>>, vector<8x1xf32>
      %75 = vector.broadcast %74 : vector<8x1xf32> to vector<8x384xf32>
      %76 = arith.addf %73, %75 : vector<8x384xf32>
      %c0_61 = arith.constant 0 : index
      %c0_62 = arith.constant 0 : index
      %77 = vector.load %arg6[%c0_61, %c0_62] : memref<1x384xf32, #tpu.memory_space<vmem>>, vector<1x384xf32>
      %78 = vector.broadcast %77 : vector<1x384xf32> to vector<8x384xf32>
      %79 = arith.mulf %76, %78 : vector<8x384xf32>
      %c0_63 = arith.constant 0 : index
      %c0_64 = arith.constant 0 : index
      %c0_65 = arith.constant 0 : index
      %80 = vector.load %arg7[%c0_63, %c0_64, %c0_65] : memref<1x8x384xf32, #tpu.memory_space<vmem>>, vector<1x8x384xf32>
      %81 = vector.shape_cast %80 : vector<1x8x384xf32> to vector<8x384xf32>
      %82 = vector.shape_cast %79 : vector<8x384xf32> to vector<1x8x384xf32>
      tpu.vector_store %arg7[%c0_63, %c0_64, %c0_65], %82 {strides = array<i32>} : memref<1x8x384xf32, #tpu.memory_space<vmem>>, vector<1x8x384xf32>,
      %cst_66 = arith.constant dense<0.000000e+00> : vector<8xf32>
      %83 = vector.multi_reduction <add>, %79, %cst_66 [1] : vector<8x384xf32> to vector<8xf32>
      %84 = vector.shape_cast %83 : vector<8xf32> to vector<8x1xf32>
      %85 = arith.mulf %79, %79 : vector<8x384xf32>
      %cst_67 = arith.constant dense<0.000000e+00> : vector<8xf32>
      %86 = vector.multi_reduction <add>, %85, %cst_67 [1] : vector<8x384xf32> to vector<8xf32>
      %87 = vector.shape_cast %86 : vector<8xf32> to vector<8x1xf32>
      %88 = tpu.concatenate %84, %87 in 1 : vector<8x1xf32>, vector<8x1xf32> -> vector<8x2xf32>
      %c0_68 = arith.constant 0 : index
      %c0_69 = arith.constant 0 : index
      %c0_70 = arith.constant 0 : index
      %89 = vector.load %arg8[%c0_68, %c0_69, %c0_70] : memref<1x8x2xf32, #tpu.memory_space<vmem>>, vector<1x8x2xf32>
      %90 = vector.shape_cast %89 : vector<1x8x2xf32> to vector<8x2xf32>
      %91 = vector.shape_cast %88 : vector<8x2xf32> to vector<1x8x2xf32>
      tpu.vector_store %arg8[%c0_68, %c0_69, %c0_70], %91 {strides = array<i32>} : memref<1x8x2xf32, #tpu.memory_space<vmem>>, vector<1x8x2xf32>,
    } else {
    }
    return
  }
  func.func @transform_0(%arg0: i32, %arg1: i32) -> (i32, i32, i32) {
    %c2_i32 = arith.constant 2 : i32
    %0 = arith.addi %c2_i32, %arg1 : i32
    %c0_i32 = arith.constant 0 : i32
    %c0_i32_0 = arith.constant 0 : i32
    return %arg0, %0, %c0_i32 : i32, i32, i32
  }
  func.func @transform_1(%arg0: i32, %arg1: i32) -> (i32, i32, i32, i32) {
    %c0_i32 = arith.constant 0 : i32
    %c0_i32_0 = arith.constant 0 : i32
    %c0_i32_1 = arith.constant 0 : i32
    %c0_i32_2 = arith.constant 0 : i32
    return %arg1, %c0_i32, %c0_i32_0, %c0_i32_1 : i32, i32, i32, i32
  }
  func.func @transform_2(%arg0: i32, %arg1: i32) -> (i32, i32, i32) {
    %c2_i32 = arith.constant 2 : i32
    %0 = arith.addi %c2_i32, %arg1 : i32
    %c0_i32 = arith.constant 0 : i32
    %c0_i32_0 = arith.constant 0 : i32
    %c0_i32_1 = arith.constant 0 : i32
    return %c0_i32, %0, %c0_i32_0 : i32, i32, i32
  }
  func.func @transform_3(%arg0: i32, %arg1: i32) -> (i32, i32) {
    %c0_i32 = arith.constant 0 : i32
    %c0_i32_0 = arith.constant 0 : i32
    %c0_i32_1 = arith.constant 0 : i32
    return %c0_i32, %c0_i32_0 : i32, i32
  }
  func.func @transform_4(%arg0: i32, %arg1: i32) -> (i32, i32) {
    %c0_i32 = arith.constant 0 : i32
    %c0_i32_0 = arith.constant 0 : i32
    %c0_i32_1 = arith.constant 0 : i32
    return %c0_i32, %c0_i32_0 : i32, i32
  }
  func.func @transform_5(%arg0: i32, %arg1: i32) -> (i32, i32, i32) {
    %c4_i32 = arith.constant 4 : i32
    %c0_i32 = arith.constant 0 : i32
    %c0_i32_0 = arith.constant 0 : i32
    return %arg0, %c4_i32, %c0_i32 : i32, i32, i32
  }
  func.func @transform_6(%arg0: i32, %arg1: i32) -> (i32, i32, i32) {
    %c0_i32 = arith.constant 0 : i32
    %c0_i32_0 = arith.constant 0 : i32
    %c0_i32_1 = arith.constant 0 : i32
    return %arg0, %c0_i32, %c0_i32_0 : i32, i32, i32
  }
}

module attributes {stable_mosaic.version = 11 : i64} {
  func.func @_conv_bn_fused_kernel(%arg0: i32, %arg1: i32, %arg2: memref<1x8x384xf32, #tpu.memory_space<vmem>>, %arg3: memref<1x9x8x8xf32, #tpu.memory_space<vmem>>, %arg4: memref<3x8x1xf32, #tpu.memory_space<vmem>>, %arg5: memref<8x1xf32, #tpu.memory_space<vmem>>, %arg6: memref<1x384xf32, #tpu.memory_space<vmem>>, %arg7: memref<1x8x384xf32, #tpu.memory_space<vmem>>, %arg8: memref<1x8x2xf32, #tpu.memory_space<vmem>>, %arg9: memref<8x288xf32, #tpu.memory_space<vmem>>) attributes {dimension_semantics = [#tpu.dimension_semantics<parallel>, #tpu.dimension_semantics<arbitrary>], iteration_bounds = array<i64: 2, 2>, scalar_prefetch = 0 : i64, scratch_operands = 1 : i64, tpu.core_type = #tpu.core_type<tc>, window_params = [{transform_indices = @transform_0, window_bounds = array<i64: 1, 8, 384>}, {transform_indices = @transform_1, window_bounds = array<i64: 1, 9, 8, 8>}, {transform_indices = @transform_2, window_bounds = array<i64: 3, 8, 1>}, {pipeline_mode = #tpu.pipeline_mode<synchronous>, transform_indices = @transform_3, window_bounds = array<i64: 8, 1>}, {pipeline_mode = #tpu.pipeline_mode<synchronous>, transform_indices = @transform_4, window_bounds = array<i64: 1, 384>}, {transform_indices = @transform_5, window_bounds = array<i64: 1, 8, 384>}, {transform_indices = @transform_6, window_bounds = array<i64: 1, 8, 2>}]} {
    %c0_i32 = arith.constant 0 : i32
    %0 = arith.cmpi eq, %arg1, %c0_i32 : i32
    %1 = arith.extui %0 : i1 to i32
    %c0_i32_0 = arith.constant 0 : i32
    %2 = arith.cmpi ne, %1, %c0_i32_0 : i32
    scf.if %2 {
      %cst_55 = arith.constant 0.000000e+00 : f32
      %70 = vector.broadcast %cst_55 : f32 to vector<8x288xf32>
      %c0_56 = arith.constant 0 : index
      %c0_57 = arith.constant 0 : index
      %71 = vector.load %arg9[%c0_56, %c0_57] : memref<8x288xf32, #tpu.memory_space<vmem>>, vector<8x288xf32>
      tpu.vector_store %arg9[%c0_56, %c0_57], %70 {strides = array<i32>} : memref<8x288xf32, #tpu.memory_space<vmem>>, vector<8x288xf32>,
    } else {
    }
    %c0 = arith.constant 0 : index
    %c0_1 = arith.constant 0 : index
    %c0_2 = arith.constant 0 : index
    %3 = vector.load %arg2[%c0, %c0_1, %c0_2] : memref<1x8x384xf32, #tpu.memory_space<vmem>>, vector<1x8x384xf32>
    %4 = vector.shape_cast %3 : vector<1x8x384xf32> to vector<8x384xf32>
    %c0_3 = arith.constant 0 : index
    %c0_4 = arith.constant 0 : index
    %c0_5 = arith.constant 0 : index
    %5 = vector.load %arg4[%c0_3, %c0_4, %c0_5] : memref<3x8x1xf32, #tpu.memory_space<vmem>>, vector<1x8x1xf32>
    %6 = vector.shape_cast %5 : vector<1x8x1xf32> to vector<8x1xf32>
    %7 = vector.broadcast %6 : vector<8x1xf32> to vector<8x384xf32>
    %8 = arith.mulf %4, %7 : vector<8x384xf32>
    %c1 = arith.constant 1 : index
    %c0_6 = arith.constant 0 : index
    %c0_7 = arith.constant 0 : index
    %9 = vector.load %arg4[%c1, %c0_6, %c0_7] : memref<3x8x1xf32, #tpu.memory_space<vmem>>, vector<1x8x1xf32>
    %10 = vector.shape_cast %9 : vector<1x8x1xf32> to vector<8x1xf32>
    %11 = vector.broadcast %10 : vector<8x1xf32> to vector<8x384xf32>
    %12 = arith.addf %8, %11 : vector<8x384xf32>
    %c2 = arith.constant 2 : index
    %c0_8 = arith.constant 0 : index
    %c0_9 = arith.constant 0 : index
    %13 = vector.load %arg4[%c2, %c0_8, %c0_9] : memref<3x8x1xf32, #tpu.memory_space<vmem>>, vector<1x8x1xf32>
    %14 = vector.shape_cast %13 : vector<1x8x1xf32> to vector<8x1xf32>
    %15 = vector.broadcast %14 : vector<8x1xf32> to vector<8x384xf32>
    %16 = arith.maximumf %12, %15 : vector<8x384xf32>
    %c0_10 = arith.constant 0 : index
    %c0_11 = arith.constant 0 : index
    %17 = vector.load %arg6[%c0_10, %c0_11] : memref<1x384xf32, #tpu.memory_space<vmem>>, vector<1x384xf32>
    %18 = vector.broadcast %17 : vector<1x384xf32> to vector<8x384xf32>
    %19 = arith.mulf %16, %18 : vector<8x384xf32>
    %20 = vector.extract_strided_slice %19 {offsets = [0, 0], sizes = [8, 288], strides = [1, 1]} : vector<8x384xf32> to vector<8x288xf32>
    %c0_12 = arith.constant 0 : index
    %c0_13 = arith.constant 0 : index
    %c0_14 = arith.constant 0 : index
    %c0_15 = arith.constant 0 : index
    %21 = vector.load %arg3[%c0_12, %c0_13, %c0_14, %c0_15] : memref<1x9x8x8xf32, #tpu.memory_space<vmem>>, vector<1x1x8x8xf32>
    %22 = vector.shape_cast %21 : vector<1x1x8x8xf32> to vector<8x8xf32>
    %cst = arith.constant dense<0.000000e+00> : vector<8x288xf32>
    %23 = tpu.matmul %22, %20, %cst {dimension_numbers = #tpu.dot_dimension_numbers<[1], [0], [0], [1], [0, 0, 1, 1], [], []>} : vector<8x8xf32>, vector<8x288xf32>, vector<8x288xf32> -> vector<8x288xf32>
    %24 = vector.extract_strided_slice %19 {offsets = [0, 1], sizes = [8, 288], strides = [1, 1]} : vector<8x384xf32> to vector<8x288xf32>
    %c0_16 = arith.constant 0 : index
    %c1_17 = arith.constant 1 : index
    %c0_18 = arith.constant 0 : index
    %c0_19 = arith.constant 0 : index
    %25 = vector.load %arg3[%c0_16, %c1_17, %c0_18, %c0_19] : memref<1x9x8x8xf32, #tpu.memory_space<vmem>>, vector<1x1x8x8xf32>
    %26 = vector.shape_cast %25 : vector<1x1x8x8xf32> to vector<8x8xf32>
    %cst_20 = arith.constant dense<0.000000e+00> : vector<8x288xf32>
    %27 = tpu.matmul %26, %24, %cst_20 {dimension_numbers = #tpu.dot_dimension_numbers<[1], [0], [0], [1], [0, 0, 1, 1], [], []>} : vector<8x8xf32>, vector<8x288xf32>, vector<8x288xf32> -> vector<8x288xf32>
    %28 = arith.addf %23, %27 : vector<8x288xf32>
    %29 = vector.extract_strided_slice %19 {offsets = [0, 2], sizes = [8, 288], strides = [1, 1]} : vector<8x384xf32> to vector<8x288xf32>
    %c0_21 = arith.constant 0 : index
    %c2_22 = arith.constant 2 : index
    %c0_23 = arith.constant 0 : index
    %c0_24 = arith.constant 0 : index
    %30 = vector.load %arg3[%c0_21, %c2_22, %c0_23, %c0_24] : memref<1x9x8x8xf32, #tpu.memory_space<vmem>>, vector<1x1x8x8xf32>
    %31 = vector.shape_cast %30 : vector<1x1x8x8xf32> to vector<8x8xf32>
    %cst_25 = arith.constant dense<0.000000e+00> : vector<8x288xf32>
    %32 = tpu.matmul %31, %29, %cst_25 {dimension_numbers = #tpu.dot_dimension_numbers<[1], [0], [0], [1], [0, 0, 1, 1], [], []>} : vector<8x8xf32>, vector<8x288xf32>, vector<8x288xf32> -> vector<8x288xf32>
    %33 = arith.addf %28, %32 : vector<8x288xf32>
    %34 = vector.extract_strided_slice %19 {offsets = [0, 18], sizes = [8, 288], strides = [1, 1]} : vector<8x384xf32> to vector<8x288xf32>
    %c0_26 = arith.constant 0 : index
    %c3 = arith.constant 3 : index
    %c0_27 = arith.constant 0 : index
    %c0_28 = arith.constant 0 : index
    %35 = vector.load %arg3[%c0_26, %c3, %c0_27, %c0_28] : memref<1x9x8x8xf32, #tpu.memory_space<vmem>>, vector<1x1x8x8xf32>
    %36 = vector.shape_cast %35 : vector<1x1x8x8xf32> to vector<8x8xf32>
    %cst_29 = arith.constant dense<0.000000e+00> : vector<8x288xf32>
    %37 = tpu.matmul %36, %34, %cst_29 {dimension_numbers = #tpu.dot_dimension_numbers<[1], [0], [0], [1], [0, 0, 1, 1], [], []>} : vector<8x8xf32>, vector<8x288xf32>, vector<8x288xf32> -> vector<8x288xf32>
    %38 = arith.addf %33, %37 : vector<8x288xf32>
    %39 = vector.extract_strided_slice %19 {offsets = [0, 19], sizes = [8, 288], strides = [1, 1]} : vector<8x384xf32> to vector<8x288xf32>
    %c0_30 = arith.constant 0 : index
    %c4 = arith.constant 4 : index
    %c0_31 = arith.constant 0 : index
    %c0_32 = arith.constant 0 : index
    %40 = vector.load %arg3[%c0_30, %c4, %c0_31, %c0_32] : memref<1x9x8x8xf32, #tpu.memory_space<vmem>>, vector<1x1x8x8xf32>
    %41 = vector.shape_cast %40 : vector<1x1x8x8xf32> to vector<8x8xf32>
    %cst_33 = arith.constant dense<0.000000e+00> : vector<8x288xf32>
    %42 = tpu.matmul %41, %39, %cst_33 {dimension_numbers = #tpu.dot_dimension_numbers<[1], [0], [0], [1], [0, 0, 1, 1], [], []>} : vector<8x8xf32>, vector<8x288xf32>, vector<8x288xf32> -> vector<8x288xf32>
    %43 = arith.addf %38, %42 : vector<8x288xf32>
    %44 = vector.extract_strided_slice %19 {offsets = [0, 20], sizes = [8, 288], strides = [1, 1]} : vector<8x384xf32> to vector<8x288xf32>
    %c0_34 = arith.constant 0 : index
    %c5 = arith.constant 5 : index
    %c0_35 = arith.constant 0 : index
    %c0_36 = arith.constant 0 : index
    %45 = vector.load %arg3[%c0_34, %c5, %c0_35, %c0_36] : memref<1x9x8x8xf32, #tpu.memory_space<vmem>>, vector<1x1x8x8xf32>
    %46 = vector.shape_cast %45 : vector<1x1x8x8xf32> to vector<8x8xf32>
    %cst_37 = arith.constant dense<0.000000e+00> : vector<8x288xf32>
    %47 = tpu.matmul %46, %44, %cst_37 {dimension_numbers = #tpu.dot_dimension_numbers<[1], [0], [0], [1], [0, 0, 1, 1], [], []>} : vector<8x8xf32>, vector<8x288xf32>, vector<8x288xf32> -> vector<8x288xf32>
    %48 = arith.addf %43, %47 : vector<8x288xf32>
    %49 = vector.extract_strided_slice %19 {offsets = [0, 36], sizes = [8, 288], strides = [1, 1]} : vector<8x384xf32> to vector<8x288xf32>
    %c0_38 = arith.constant 0 : index
    %c6 = arith.constant 6 : index
    %c0_39 = arith.constant 0 : index
    %c0_40 = arith.constant 0 : index
    %50 = vector.load %arg3[%c0_38, %c6, %c0_39, %c0_40] : memref<1x9x8x8xf32, #tpu.memory_space<vmem>>, vector<1x1x8x8xf32>
    %51 = vector.shape_cast %50 : vector<1x1x8x8xf32> to vector<8x8xf32>
    %cst_41 = arith.constant dense<0.000000e+00> : vector<8x288xf32>
    %52 = tpu.matmul %51, %49, %cst_41 {dimension_numbers = #tpu.dot_dimension_numbers<[1], [0], [0], [1], [0, 0, 1, 1], [], []>} : vector<8x8xf32>, vector<8x288xf32>, vector<8x288xf32> -> vector<8x288xf32>
    %53 = arith.addf %48, %52 : vector<8x288xf32>
    %54 = vector.extract_strided_slice %19 {offsets = [0, 37], sizes = [8, 288], strides = [1, 1]} : vector<8x384xf32> to vector<8x288xf32>
    %c0_42 = arith.constant 0 : index
    %c7 = arith.constant 7 : index
    %c0_43 = arith.constant 0 : index
    %c0_44 = arith.constant 0 : index
    %55 = vector.load %arg3[%c0_42, %c7, %c0_43, %c0_44] : memref<1x9x8x8xf32, #tpu.memory_space<vmem>>, vector<1x1x8x8xf32>
    %56 = vector.shape_cast %55 : vector<1x1x8x8xf32> to vector<8x8xf32>
    %cst_45 = arith.constant dense<0.000000e+00> : vector<8x288xf32>
    %57 = tpu.matmul %56, %54, %cst_45 {dimension_numbers = #tpu.dot_dimension_numbers<[1], [0], [0], [1], [0, 0, 1, 1], [], []>} : vector<8x8xf32>, vector<8x288xf32>, vector<8x288xf32> -> vector<8x288xf32>
    %58 = arith.addf %53, %57 : vector<8x288xf32>
    %59 = vector.extract_strided_slice %19 {offsets = [0, 38], sizes = [8, 288], strides = [1, 1]} : vector<8x384xf32> to vector<8x288xf32>
    %c0_46 = arith.constant 0 : index
    %c8 = arith.constant 8 : index
    %c0_47 = arith.constant 0 : index
    %c0_48 = arith.constant 0 : index
    %60 = vector.load %arg3[%c0_46, %c8, %c0_47, %c0_48] : memref<1x9x8x8xf32, #tpu.memory_space<vmem>>, vector<1x1x8x8xf32>
    %61 = vector.shape_cast %60 : vector<1x1x8x8xf32> to vector<8x8xf32>
    %cst_49 = arith.constant dense<0.000000e+00> : vector<8x288xf32>
    %62 = tpu.matmul %61, %59, %cst_49 {dimension_numbers = #tpu.dot_dimension_numbers<[1], [0], [0], [1], [0, 0, 1, 1], [], []>} : vector<8x8xf32>, vector<8x288xf32>, vector<8x288xf32> -> vector<8x288xf32>
    %63 = arith.addf %58, %62 : vector<8x288xf32>
    %c0_50 = arith.constant 0 : index
    %c0_51 = arith.constant 0 : index
    %64 = vector.load %arg9[%c0_50, %c0_51] : memref<8x288xf32, #tpu.memory_space<vmem>>, vector<8x288xf32>
    %65 = arith.addf %64, %63 : vector<8x288xf32>
    %c0_52 = arith.constant 0 : index
    %c0_53 = arith.constant 0 : index
    %66 = vector.load %arg9[%c0_52, %c0_53] : memref<8x288xf32, #tpu.memory_space<vmem>>, vector<8x288xf32>
    tpu.vector_store %arg9[%c0_52, %c0_53], %65 {strides = array<i32>} : memref<8x288xf32, #tpu.memory_space<vmem>>, vector<8x288xf32>,
    %c1_i32 = arith.constant 1 : i32
    %67 = arith.cmpi eq, %arg1, %c1_i32 : i32
    %68 = arith.extui %67 : i1 to i32
    %c0_i32_54 = arith.constant 0 : i32
    %69 = arith.cmpi ne, %68, %c0_i32_54 : i32
    scf.if %69 {
      %cst_55 = arith.constant 0.000000e+00 : f32
      %70 = vector.broadcast %cst_55 : f32 to vector<8x19xf32>
      %c0_56 = arith.constant 0 : index
      %c0_57 = arith.constant 0 : index
      %71 = vector.load %arg9[%c0_56, %c0_57] : memref<8x288xf32, #tpu.memory_space<vmem>>, vector<8x288xf32>
      %cst_58 = arith.constant 0.000000e+00 : f32
      %72 = vector.broadcast %cst_58 : f32 to vector<8x77xf32>
      %73 = tpu.concatenate %70, %71, %72 in 1 : vector<8x19xf32>, vector<8x288xf32>, vector<8x77xf32> -> vector<8x384xf32>
      %c0_59 = arith.constant 0 : index
      %c0_60 = arith.constant 0 : index
      %74 = vector.load %arg5[%c0_59, %c0_60] : memref<8x1xf32, #tpu.memory_space<vmem>>, vector<8x1xf32>
      %75 = vector.broadcast %74 : vector<8x1xf32> to vector<8x384xf32>
      %76 = arith.addf %73, %75 : vector<8x384xf32>
      %c0_61 = arith.constant 0 : index
      %c0_62 = arith.constant 0 : index
      %77 = vector.load %arg6[%c0_61, %c0_62] : memref<1x384xf32, #tpu.memory_space<vmem>>, vector<1x384xf32>
      %78 = vector.broadcast %77 : vector<1x384xf32> to vector<8x384xf32>
      %79 = arith.mulf %76, %78 : vector<8x384xf32>
      %c0_63 = arith.constant 0 : index
      %c0_64 = arith.constant 0 : index
      %c0_65 = arith.constant 0 : index
      %80 = vector.load %arg7[%c0_63, %c0_64, %c0_65] : memref<1x8x384xf32, #tpu.memory_space<vmem>>, vector<1x8x384xf32>
      %81 = vector.shape_cast %80 : vector<1x8x384xf32> to vector<8x384xf32>
      %82 = vector.shape_cast %79 : vector<8x384xf32> to vector<1x8x384xf32>
      tpu.vector_store %arg7[%c0_63, %c0_64, %c0_65], %82 {strides = array<i32>} : memref<1x8x384xf32, #tpu.memory_space<vmem>>, vector<1x8x384xf32>,
      %cst_66 = arith.constant dense<0.000000e+00> : vector<8xf32>
      %83 = vector.multi_reduction <add>, %79, %cst_66 [1] : vector<8x384xf32> to vector<8xf32>
      %84 = vector.shape_cast %83 : vector<8xf32> to vector<8x1xf32>
      %85 = arith.mulf %79, %79 : vector<8x384xf32>
      %cst_67 = arith.constant dense<0.000000e+00> : vector<8xf32>
      %86 = vector.multi_reduction <add>, %85, %cst_67 [1] : vector<8x384xf32> to vector<8xf32>
      %87 = vector.shape_cast %86 : vector<8xf32> to vector<8x1xf32>
      %88 = tpu.concatenate %84, %87 in 1 : vector<8x1xf32>, vector<8x1xf32> -> vector<8x2xf32>
      %c0_68 = arith.constant 0 : index
      %c0_69 = arith.constant 0 : index
      %c0_70 = arith.constant 0 : index
      %89 = vector.load %arg8[%c0_68, %c0_69, %c0_70] : memref<1x8x2xf32, #tpu.memory_space<vmem>>, vector<1x8x2xf32>
      %90 = vector.shape_cast %89 : vector<1x8x2xf32> to vector<8x2xf32>
      %91 = vector.shape_cast %88 : vector<8x2xf32> to vector<1x8x2xf32>
      tpu.vector_store %arg8[%c0_68, %c0_69, %c0_70], %91 {strides = array<i32>} : memref<1x8x2xf32, #tpu.memory_space<vmem>>, vector<1x8x2xf32>,
    } else {
    }
    return
  }
  func.func @transform_0(%arg0: i32, %arg1: i32) -> (i32, i32, i32) {
    %c3_i32 = arith.constant 3 : i32
    %0 = arith.addi %c3_i32, %arg1 : i32
    %c0_i32 = arith.constant 0 : i32
    %c0_i32_0 = arith.constant 0 : i32
    return %arg0, %0, %c0_i32 : i32, i32, i32
  }
  func.func @transform_1(%arg0: i32, %arg1: i32) -> (i32, i32, i32, i32) {
    %c0_i32 = arith.constant 0 : i32
    %c0_i32_0 = arith.constant 0 : i32
    %c0_i32_1 = arith.constant 0 : i32
    %c0_i32_2 = arith.constant 0 : i32
    return %arg1, %c0_i32, %c0_i32_0, %c0_i32_1 : i32, i32, i32, i32
  }
  func.func @transform_2(%arg0: i32, %arg1: i32) -> (i32, i32, i32) {
    %c3_i32 = arith.constant 3 : i32
    %0 = arith.addi %c3_i32, %arg1 : i32
    %c0_i32 = arith.constant 0 : i32
    %c0_i32_0 = arith.constant 0 : i32
    %c0_i32_1 = arith.constant 0 : i32
    return %c0_i32, %0, %c0_i32_0 : i32, i32, i32
  }
  func.func @transform_3(%arg0: i32, %arg1: i32) -> (i32, i32) {
    %c0_i32 = arith.constant 0 : i32
    %c0_i32_0 = arith.constant 0 : i32
    %c0_i32_1 = arith.constant 0 : i32
    return %c0_i32, %c0_i32_0 : i32, i32
  }
  func.func @transform_4(%arg0: i32, %arg1: i32) -> (i32, i32) {
    %c0_i32 = arith.constant 0 : i32
    %c0_i32_0 = arith.constant 0 : i32
    %c0_i32_1 = arith.constant 0 : i32
    return %c0_i32, %c0_i32_0 : i32, i32
  }
  func.func @transform_5(%arg0: i32, %arg1: i32) -> (i32, i32, i32) {
    %c5_i32 = arith.constant 5 : i32
    %c0_i32 = arith.constant 0 : i32
    %c0_i32_0 = arith.constant 0 : i32
    return %arg0, %c5_i32, %c0_i32 : i32, i32, i32
  }
  func.func @transform_6(%arg0: i32, %arg1: i32) -> (i32, i32, i32) {
    %c0_i32 = arith.constant 0 : i32
    %c0_i32_0 = arith.constant 0 : i32
    %c0_i32_1 = arith.constant 0 : i32
    return %arg0, %c0_i32, %c0_i32_0 : i32, i32, i32
  }
}

module attributes {stable_mosaic.version = 11 : i64} {
  func.func @_conv_bn_fused_kernel(%arg0: i32, %arg1: i32, %arg2: memref<1x8x384xf32, #tpu.memory_space<vmem>>, %arg3: memref<1x9x8x8xf32, #tpu.memory_space<vmem>>, %arg4: memref<3x8x1xf32, #tpu.memory_space<vmem>>, %arg5: memref<8x1xf32, #tpu.memory_space<vmem>>, %arg6: memref<1x384xf32, #tpu.memory_space<vmem>>, %arg7: memref<1x8x384xf32, #tpu.memory_space<vmem>>, %arg8: memref<1x8x2xf32, #tpu.memory_space<vmem>>, %arg9: memref<8x288xf32, #tpu.memory_space<vmem>>) attributes {dimension_semantics = [#tpu.dimension_semantics<parallel>, #tpu.dimension_semantics<arbitrary>], iteration_bounds = array<i64: 2, 2>, scalar_prefetch = 0 : i64, scratch_operands = 1 : i64, tpu.core_type = #tpu.core_type<tc>, window_params = [{transform_indices = @transform_0, window_bounds = array<i64: 1, 8, 384>}, {transform_indices = @transform_1, window_bounds = array<i64: 1, 9, 8, 8>}, {transform_indices = @transform_2, window_bounds = array<i64: 3, 8, 1>}, {pipeline_mode = #tpu.pipeline_mode<synchronous>, transform_indices = @transform_3, window_bounds = array<i64: 8, 1>}, {pipeline_mode = #tpu.pipeline_mode<synchronous>, transform_indices = @transform_4, window_bounds = array<i64: 1, 384>}, {transform_indices = @transform_5, window_bounds = array<i64: 1, 8, 384>}, {transform_indices = @transform_6, window_bounds = array<i64: 1, 8, 2>}]} {
    %c0_i32 = arith.constant 0 : i32
    %0 = arith.cmpi eq, %arg1, %c0_i32 : i32
    %1 = arith.extui %0 : i1 to i32
    %c0_i32_0 = arith.constant 0 : i32
    %2 = arith.cmpi ne, %1, %c0_i32_0 : i32
    scf.if %2 {
      %cst_55 = arith.constant 0.000000e+00 : f32
      %70 = vector.broadcast %cst_55 : f32 to vector<8x288xf32>
      %c0_56 = arith.constant 0 : index
      %c0_57 = arith.constant 0 : index
      %71 = vector.load %arg9[%c0_56, %c0_57] : memref<8x288xf32, #tpu.memory_space<vmem>>, vector<8x288xf32>
      tpu.vector_store %arg9[%c0_56, %c0_57], %70 {strides = array<i32>} : memref<8x288xf32, #tpu.memory_space<vmem>>, vector<8x288xf32>,
    } else {
    }
    %c0 = arith.constant 0 : index
    %c0_1 = arith.constant 0 : index
    %c0_2 = arith.constant 0 : index
    %3 = vector.load %arg2[%c0, %c0_1, %c0_2] : memref<1x8x384xf32, #tpu.memory_space<vmem>>, vector<1x8x384xf32>
    %4 = vector.shape_cast %3 : vector<1x8x384xf32> to vector<8x384xf32>
    %c0_3 = arith.constant 0 : index
    %c0_4 = arith.constant 0 : index
    %c0_5 = arith.constant 0 : index
    %5 = vector.load %arg4[%c0_3, %c0_4, %c0_5] : memref<3x8x1xf32, #tpu.memory_space<vmem>>, vector<1x8x1xf32>
    %6 = vector.shape_cast %5 : vector<1x8x1xf32> to vector<8x1xf32>
    %7 = vector.broadcast %6 : vector<8x1xf32> to vector<8x384xf32>
    %8 = arith.mulf %4, %7 : vector<8x384xf32>
    %c1 = arith.constant 1 : index
    %c0_6 = arith.constant 0 : index
    %c0_7 = arith.constant 0 : index
    %9 = vector.load %arg4[%c1, %c0_6, %c0_7] : memref<3x8x1xf32, #tpu.memory_space<vmem>>, vector<1x8x1xf32>
    %10 = vector.shape_cast %9 : vector<1x8x1xf32> to vector<8x1xf32>
    %11 = vector.broadcast %10 : vector<8x1xf32> to vector<8x384xf32>
    %12 = arith.addf %8, %11 : vector<8x384xf32>
    %c2 = arith.constant 2 : index
    %c0_8 = arith.constant 0 : index
    %c0_9 = arith.constant 0 : index
    %13 = vector.load %arg4[%c2, %c0_8, %c0_9] : memref<3x8x1xf32, #tpu.memory_space<vmem>>, vector<1x8x1xf32>
    %14 = vector.shape_cast %13 : vector<1x8x1xf32> to vector<8x1xf32>
    %15 = vector.broadcast %14 : vector<8x1xf32> to vector<8x384xf32>
    %16 = arith.maximumf %12, %15 : vector<8x384xf32>
    %c0_10 = arith.constant 0 : index
    %c0_11 = arith.constant 0 : index
    %17 = vector.load %arg6[%c0_10, %c0_11] : memref<1x384xf32, #tpu.memory_space<vmem>>, vector<1x384xf32>
    %18 = vector.broadcast %17 : vector<1x384xf32> to vector<8x384xf32>
    %19 = arith.mulf %16, %18 : vector<8x384xf32>
    %20 = vector.extract_strided_slice %19 {offsets = [0, 0], sizes = [8, 288], strides = [1, 1]} : vector<8x384xf32> to vector<8x288xf32>
    %c0_12 = arith.constant 0 : index
    %c0_13 = arith.constant 0 : index
    %c0_14 = arith.constant 0 : index
    %c0_15 = arith.constant 0 : index
    %21 = vector.load %arg3[%c0_12, %c0_13, %c0_14, %c0_15] : memref<1x9x8x8xf32, #tpu.memory_space<vmem>>, vector<1x1x8x8xf32>
    %22 = vector.shape_cast %21 : vector<1x1x8x8xf32> to vector<8x8xf32>
    %cst = arith.constant dense<0.000000e+00> : vector<8x288xf32>
    %23 = tpu.matmul %22, %20, %cst {dimension_numbers = #tpu.dot_dimension_numbers<[1], [0], [0], [1], [0, 0, 1, 1], [], []>} : vector<8x8xf32>, vector<8x288xf32>, vector<8x288xf32> -> vector<8x288xf32>
    %24 = vector.extract_strided_slice %19 {offsets = [0, 1], sizes = [8, 288], strides = [1, 1]} : vector<8x384xf32> to vector<8x288xf32>
    %c0_16 = arith.constant 0 : index
    %c1_17 = arith.constant 1 : index
    %c0_18 = arith.constant 0 : index
    %c0_19 = arith.constant 0 : index
    %25 = vector.load %arg3[%c0_16, %c1_17, %c0_18, %c0_19] : memref<1x9x8x8xf32, #tpu.memory_space<vmem>>, vector<1x1x8x8xf32>
    %26 = vector.shape_cast %25 : vector<1x1x8x8xf32> to vector<8x8xf32>
    %cst_20 = arith.constant dense<0.000000e+00> : vector<8x288xf32>
    %27 = tpu.matmul %26, %24, %cst_20 {dimension_numbers = #tpu.dot_dimension_numbers<[1], [0], [0], [1], [0, 0, 1, 1], [], []>} : vector<8x8xf32>, vector<8x288xf32>, vector<8x288xf32> -> vector<8x288xf32>
    %28 = arith.addf %23, %27 : vector<8x288xf32>
    %29 = vector.extract_strided_slice %19 {offsets = [0, 2], sizes = [8, 288], strides = [1, 1]} : vector<8x384xf32> to vector<8x288xf32>
    %c0_21 = arith.constant 0 : index
    %c2_22 = arith.constant 2 : index
    %c0_23 = arith.constant 0 : index
    %c0_24 = arith.constant 0 : index
    %30 = vector.load %arg3[%c0_21, %c2_22, %c0_23, %c0_24] : memref<1x9x8x8xf32, #tpu.memory_space<vmem>>, vector<1x1x8x8xf32>
    %31 = vector.shape_cast %30 : vector<1x1x8x8xf32> to vector<8x8xf32>
    %cst_25 = arith.constant dense<0.000000e+00> : vector<8x288xf32>
    %32 = tpu.matmul %31, %29, %cst_25 {dimension_numbers = #tpu.dot_dimension_numbers<[1], [0], [0], [1], [0, 0, 1, 1], [], []>} : vector<8x8xf32>, vector<8x288xf32>, vector<8x288xf32> -> vector<8x288xf32>
    %33 = arith.addf %28, %32 : vector<8x288xf32>
    %34 = vector.extract_strided_slice %19 {offsets = [0, 18], sizes = [8, 288], strides = [1, 1]} : vector<8x384xf32> to vector<8x288xf32>
    %c0_26 = arith.constant 0 : index
    %c3 = arith.constant 3 : index
    %c0_27 = arith.constant 0 : index
    %c0_28 = arith.constant 0 : index
    %35 = vector.load %arg3[%c0_26, %c3, %c0_27, %c0_28] : memref<1x9x8x8xf32, #tpu.memory_space<vmem>>, vector<1x1x8x8xf32>
    %36 = vector.shape_cast %35 : vector<1x1x8x8xf32> to vector<8x8xf32>
    %cst_29 = arith.constant dense<0.000000e+00> : vector<8x288xf32>
    %37 = tpu.matmul %36, %34, %cst_29 {dimension_numbers = #tpu.dot_dimension_numbers<[1], [0], [0], [1], [0, 0, 1, 1], [], []>} : vector<8x8xf32>, vector<8x288xf32>, vector<8x288xf32> -> vector<8x288xf32>
    %38 = arith.addf %33, %37 : vector<8x288xf32>
    %39 = vector.extract_strided_slice %19 {offsets = [0, 19], sizes = [8, 288], strides = [1, 1]} : vector<8x384xf32> to vector<8x288xf32>
    %c0_30 = arith.constant 0 : index
    %c4 = arith.constant 4 : index
    %c0_31 = arith.constant 0 : index
    %c0_32 = arith.constant 0 : index
    %40 = vector.load %arg3[%c0_30, %c4, %c0_31, %c0_32] : memref<1x9x8x8xf32, #tpu.memory_space<vmem>>, vector<1x1x8x8xf32>
    %41 = vector.shape_cast %40 : vector<1x1x8x8xf32> to vector<8x8xf32>
    %cst_33 = arith.constant dense<0.000000e+00> : vector<8x288xf32>
    %42 = tpu.matmul %41, %39, %cst_33 {dimension_numbers = #tpu.dot_dimension_numbers<[1], [0], [0], [1], [0, 0, 1, 1], [], []>} : vector<8x8xf32>, vector<8x288xf32>, vector<8x288xf32> -> vector<8x288xf32>
    %43 = arith.addf %38, %42 : vector<8x288xf32>
    %44 = vector.extract_strided_slice %19 {offsets = [0, 20], sizes = [8, 288], strides = [1, 1]} : vector<8x384xf32> to vector<8x288xf32>
    %c0_34 = arith.constant 0 : index
    %c5 = arith.constant 5 : index
    %c0_35 = arith.constant 0 : index
    %c0_36 = arith.constant 0 : index
    %45 = vector.load %arg3[%c0_34, %c5, %c0_35, %c0_36] : memref<1x9x8x8xf32, #tpu.memory_space<vmem>>, vector<1x1x8x8xf32>
    %46 = vector.shape_cast %45 : vector<1x1x8x8xf32> to vector<8x8xf32>
    %cst_37 = arith.constant dense<0.000000e+00> : vector<8x288xf32>
    %47 = tpu.matmul %46, %44, %cst_37 {dimension_numbers = #tpu.dot_dimension_numbers<[1], [0], [0], [1], [0, 0, 1, 1], [], []>} : vector<8x8xf32>, vector<8x288xf32>, vector<8x288xf32> -> vector<8x288xf32>
    %48 = arith.addf %43, %47 : vector<8x288xf32>
    %49 = vector.extract_strided_slice %19 {offsets = [0, 36], sizes = [8, 288], strides = [1, 1]} : vector<8x384xf32> to vector<8x288xf32>
    %c0_38 = arith.constant 0 : index
    %c6 = arith.constant 6 : index
    %c0_39 = arith.constant 0 : index
    %c0_40 = arith.constant 0 : index
    %50 = vector.load %arg3[%c0_38, %c6, %c0_39, %c0_40] : memref<1x9x8x8xf32, #tpu.memory_space<vmem>>, vector<1x1x8x8xf32>
    %51 = vector.shape_cast %50 : vector<1x1x8x8xf32> to vector<8x8xf32>
    %cst_41 = arith.constant dense<0.000000e+00> : vector<8x288xf32>
    %52 = tpu.matmul %51, %49, %cst_41 {dimension_numbers = #tpu.dot_dimension_numbers<[1], [0], [0], [1], [0, 0, 1, 1], [], []>} : vector<8x8xf32>, vector<8x288xf32>, vector<8x288xf32> -> vector<8x288xf32>
    %53 = arith.addf %48, %52 : vector<8x288xf32>
    %54 = vector.extract_strided_slice %19 {offsets = [0, 37], sizes = [8, 288], strides = [1, 1]} : vector<8x384xf32> to vector<8x288xf32>
    %c0_42 = arith.constant 0 : index
    %c7 = arith.constant 7 : index
    %c0_43 = arith.constant 0 : index
    %c0_44 = arith.constant 0 : index
    %55 = vector.load %arg3[%c0_42, %c7, %c0_43, %c0_44] : memref<1x9x8x8xf32, #tpu.memory_space<vmem>>, vector<1x1x8x8xf32>
    %56 = vector.shape_cast %55 : vector<1x1x8x8xf32> to vector<8x8xf32>
    %cst_45 = arith.constant dense<0.000000e+00> : vector<8x288xf32>
    %57 = tpu.matmul %56, %54, %cst_45 {dimension_numbers = #tpu.dot_dimension_numbers<[1], [0], [0], [1], [0, 0, 1, 1], [], []>} : vector<8x8xf32>, vector<8x288xf32>, vector<8x288xf32> -> vector<8x288xf32>
    %58 = arith.addf %53, %57 : vector<8x288xf32>
    %59 = vector.extract_strided_slice %19 {offsets = [0, 38], sizes = [8, 288], strides = [1, 1]} : vector<8x384xf32> to vector<8x288xf32>
    %c0_46 = arith.constant 0 : index
    %c8 = arith.constant 8 : index
    %c0_47 = arith.constant 0 : index
    %c0_48 = arith.constant 0 : index
    %60 = vector.load %arg3[%c0_46, %c8, %c0_47, %c0_48] : memref<1x9x8x8xf32, #tpu.memory_space<vmem>>, vector<1x1x8x8xf32>
    %61 = vector.shape_cast %60 : vector<1x1x8x8xf32> to vector<8x8xf32>
    %cst_49 = arith.constant dense<0.000000e+00> : vector<8x288xf32>
    %62 = tpu.matmul %61, %59, %cst_49 {dimension_numbers = #tpu.dot_dimension_numbers<[1], [0], [0], [1], [0, 0, 1, 1], [], []>} : vector<8x8xf32>, vector<8x288xf32>, vector<8x288xf32> -> vector<8x288xf32>
    %63 = arith.addf %58, %62 : vector<8x288xf32>
    %c0_50 = arith.constant 0 : index
    %c0_51 = arith.constant 0 : index
    %64 = vector.load %arg9[%c0_50, %c0_51] : memref<8x288xf32, #tpu.memory_space<vmem>>, vector<8x288xf32>
    %65 = arith.addf %64, %63 : vector<8x288xf32>
    %c0_52 = arith.constant 0 : index
    %c0_53 = arith.constant 0 : index
    %66 = vector.load %arg9[%c0_52, %c0_53] : memref<8x288xf32, #tpu.memory_space<vmem>>, vector<8x288xf32>
    tpu.vector_store %arg9[%c0_52, %c0_53], %65 {strides = array<i32>} : memref<8x288xf32, #tpu.memory_space<vmem>>, vector<8x288xf32>,
    %c1_i32 = arith.constant 1 : i32
    %67 = arith.cmpi eq, %arg1, %c1_i32 : i32
    %68 = arith.extui %67 : i1 to i32
    %c0_i32_54 = arith.constant 0 : i32
    %69 = arith.cmpi ne, %68, %c0_i32_54 : i32
    scf.if %69 {
      %cst_55 = arith.constant 0.000000e+00 : f32
      %70 = vector.broadcast %cst_55 : f32 to vector<8x19xf32>
      %c0_56 = arith.constant 0 : index
      %c0_57 = arith.constant 0 : index
      %71 = vector.load %arg9[%c0_56, %c0_57] : memref<8x288xf32, #tpu.memory_space<vmem>>, vector<8x288xf32>
      %cst_58 = arith.constant 0.000000e+00 : f32
      %72 = vector.broadcast %cst_58 : f32 to vector<8x77xf32>
      %73 = tpu.concatenate %70, %71, %72 in 1 : vector<8x19xf32>, vector<8x288xf32>, vector<8x77xf32> -> vector<8x384xf32>
      %c0_59 = arith.constant 0 : index
      %c0_60 = arith.constant 0 : index
      %74 = vector.load %arg5[%c0_59, %c0_60] : memref<8x1xf32, #tpu.memory_space<vmem>>, vector<8x1xf32>
      %75 = vector.broadcast %74 : vector<8x1xf32> to vector<8x384xf32>
      %76 = arith.addf %73, %75 : vector<8x384xf32>
      %c0_61 = arith.constant 0 : index
      %c0_62 = arith.constant 0 : index
      %77 = vector.load %arg6[%c0_61, %c0_62] : memref<1x384xf32, #tpu.memory_space<vmem>>, vector<1x384xf32>
      %78 = vector.broadcast %77 : vector<1x384xf32> to vector<8x384xf32>
      %79 = arith.mulf %76, %78 : vector<8x384xf32>
      %c0_63 = arith.constant 0 : index
      %c0_64 = arith.constant 0 : index
      %c0_65 = arith.constant 0 : index
      %80 = vector.load %arg7[%c0_63, %c0_64, %c0_65] : memref<1x8x384xf32, #tpu.memory_space<vmem>>, vector<1x8x384xf32>
      %81 = vector.shape_cast %80 : vector<1x8x384xf32> to vector<8x384xf32>
      %82 = vector.shape_cast %79 : vector<8x384xf32> to vector<1x8x384xf32>
      tpu.vector_store %arg7[%c0_63, %c0_64, %c0_65], %82 {strides = array<i32>} : memref<1x8x384xf32, #tpu.memory_space<vmem>>, vector<1x8x384xf32>,
      %cst_66 = arith.constant dense<0.000000e+00> : vector<8xf32>
      %83 = vector.multi_reduction <add>, %79, %cst_66 [1] : vector<8x384xf32> to vector<8xf32>
      %84 = vector.shape_cast %83 : vector<8xf32> to vector<8x1xf32>
      %85 = arith.mulf %79, %79 : vector<8x384xf32>
      %cst_67 = arith.constant dense<0.000000e+00> : vector<8xf32>
      %86 = vector.multi_reduction <add>, %85, %cst_67 [1] : vector<8x384xf32> to vector<8xf32>
      %87 = vector.shape_cast %86 : vector<8xf32> to vector<8x1xf32>
      %88 = tpu.concatenate %84, %87 in 1 : vector<8x1xf32>, vector<8x1xf32> -> vector<8x2xf32>
      %c0_68 = arith.constant 0 : index
      %c0_69 = arith.constant 0 : index
      %c0_70 = arith.constant 0 : index
      %89 = vector.load %arg8[%c0_68, %c0_69, %c0_70] : memref<1x8x2xf32, #tpu.memory_space<vmem>>, vector<1x8x2xf32>
      %90 = vector.shape_cast %89 : vector<1x8x2xf32> to vector<8x2xf32>
      %91 = vector.shape_cast %88 : vector<8x2xf32> to vector<1x8x2xf32>
      tpu.vector_store %arg8[%c0_68, %c0_69, %c0_70], %91 {strides = array<i32>} : memref<1x8x2xf32, #tpu.memory_space<vmem>>, vector<1x8x2xf32>,
    } else {
    }
    return
  }
  func.func @transform_0(%arg0: i32, %arg1: i32) -> (i32, i32, i32) {
    %c4_i32 = arith.constant 4 : i32
    %0 = arith.addi %c4_i32, %arg1 : i32
    %c0_i32 = arith.constant 0 : i32
    %c0_i32_0 = arith.constant 0 : i32
    return %arg0, %0, %c0_i32 : i32, i32, i32
  }
  func.func @transform_1(%arg0: i32, %arg1: i32) -> (i32, i32, i32, i32) {
    %c0_i32 = arith.constant 0 : i32
    %c0_i32_0 = arith.constant 0 : i32
    %c0_i32_1 = arith.constant 0 : i32
    %c0_i32_2 = arith.constant 0 : i32
    return %arg1, %c0_i32, %c0_i32_0, %c0_i32_1 : i32, i32, i32, i32
  }
  func.func @transform_2(%arg0: i32, %arg1: i32) -> (i32, i32, i32) {
    %c4_i32 = arith.constant 4 : i32
    %0 = arith.addi %c4_i32, %arg1 : i32
    %c0_i32 = arith.constant 0 : i32
    %c0_i32_0 = arith.constant 0 : i32
    %c0_i32_1 = arith.constant 0 : i32
    return %c0_i32, %0, %c0_i32_0 : i32, i32, i32
  }
  func.func @transform_3(%arg0: i32, %arg1: i32) -> (i32, i32) {
    %c0_i32 = arith.constant 0 : i32
    %c0_i32_0 = arith.constant 0 : i32
    %c0_i32_1 = arith.constant 0 : i32
    return %c0_i32, %c0_i32_0 : i32, i32
  }
  func.func @transform_4(%arg0: i32, %arg1: i32) -> (i32, i32) {
    %c0_i32 = arith.constant 0 : i32
    %c0_i32_0 = arith.constant 0 : i32
    %c0_i32_1 = arith.constant 0 : i32
    return %c0_i32, %c0_i32_0 : i32, i32
  }
  func.func @transform_5(%arg0: i32, %arg1: i32) -> (i32, i32, i32) {
    %c6_i32 = arith.constant 6 : i32
    %c0_i32 = arith.constant 0 : i32
    %c0_i32_0 = arith.constant 0 : i32
    return %arg0, %c6_i32, %c0_i32 : i32, i32, i32
  }
  func.func @transform_6(%arg0: i32, %arg1: i32) -> (i32, i32, i32) {
    %c0_i32 = arith.constant 0 : i32
    %c0_i32_0 = arith.constant 0 : i32
    %c0_i32_1 = arith.constant 0 : i32
    return %arg0, %c0_i32, %c0_i32_0 : i32, i32, i32
  }
}

module attributes {stable_mosaic.version = 11 : i64} {
  func.func @_bn_relu_apply_kernel(%arg0: i32, %arg1: i32, %arg2: memref<1x8x384xf32, #tpu.memory_space<vmem>>, %arg3: memref<3x8x1xf32, #tpu.memory_space<vmem>>, %arg4: memref<1x8x384xf32, #tpu.memory_space<vmem>>) attributes {dimension_semantics = [#tpu.dimension_semantics<parallel>, #tpu.dimension_semantics<parallel>], iteration_bounds = array<i64: 2, 3>, scalar_prefetch = 0 : i64, scratch_operands = 0 : i64, tpu.core_type = #tpu.core_type<tc>, window_params = [{transform_indices = @transform_0, window_bounds = array<i64: 1, 8, 384>}, {transform_indices = @transform_1, window_bounds = array<i64: 3, 8, 1>}, {transform_indices = @transform_2, window_bounds = array<i64: 1, 8, 384>}]} {
    %c0 = arith.constant 0 : index
    %c0_0 = arith.constant 0 : index
    %c0_1 = arith.constant 0 : index
    %0 = vector.load %arg2[%c0, %c0_0, %c0_1] : memref<1x8x384xf32, #tpu.memory_space<vmem>>, vector<1x8x384xf32>
    %1 = vector.shape_cast %0 : vector<1x8x384xf32> to vector<8x384xf32>
    %c0_2 = arith.constant 0 : index
    %c0_3 = arith.constant 0 : index
    %c0_4 = arith.constant 0 : index
    %2 = vector.load %arg3[%c0_2, %c0_3, %c0_4] : memref<3x8x1xf32, #tpu.memory_space<vmem>>, vector<1x8x1xf32>
    %3 = vector.shape_cast %2 : vector<1x8x1xf32> to vector<8x1xf32>
    %4 = vector.broadcast %3 : vector<8x1xf32> to vector<8x384xf32>
    %5 = arith.mulf %1, %4 : vector<8x384xf32>
    %c1 = arith.constant 1 : index
    %c0_5 = arith.constant 0 : index
    %c0_6 = arith.constant 0 : index
    %6 = vector.load %arg3[%c1, %c0_5, %c0_6] : memref<3x8x1xf32, #tpu.memory_space<vmem>>, vector<1x8x1xf32>
    %7 = vector.shape_cast %6 : vector<1x8x1xf32> to vector<8x1xf32>
    %8 = vector.broadcast %7 : vector<8x1xf32> to vector<8x384xf32>
    %9 = arith.addf %5, %8 : vector<8x384xf32>
    %cst = arith.constant 0.000000e+00 : f32
    %10 = vector.broadcast %cst : f32 to vector<8x384xf32>
    %11 = arith.maximumf %9, %10 : vector<8x384xf32>
    %c0_7 = arith.constant 0 : index
    %c0_8 = arith.constant 0 : index
    %c0_9 = arith.constant 0 : index
    %12 = vector.load %arg4[%c0_7, %c0_8, %c0_9] : memref<1x8x384xf32, #tpu.memory_space<vmem>>, vector<1x8x384xf32>
    %13 = vector.shape_cast %12 : vector<1x8x384xf32> to vector<8x384xf32>
    %14 = vector.shape_cast %11 : vector<8x384xf32> to vector<1x8x384xf32>
    tpu.vector_store %arg4[%c0_7, %c0_8, %c0_9], %14 {strides = array<i32>} : memref<1x8x384xf32, #tpu.memory_space<vmem>>, vector<1x8x384xf32>,
    return
  }
  func.func @transform_0(%arg0: i32, %arg1: i32) -> (i32, i32, i32) {
    %c4_i32 = arith.constant 4 : i32
    %0 = arith.addi %c4_i32, %arg1 : i32
    %c0_i32 = arith.constant 0 : i32
    %c0_i32_0 = arith.constant 0 : i32
    return %arg0, %0, %c0_i32 : i32, i32, i32
  }
  func.func @transform_1(%arg0: i32, %arg1: i32) -> (i32, i32, i32) {
    %c4_i32 = arith.constant 4 : i32
    %0 = arith.addi %c4_i32, %arg1 : i32
    %c0_i32 = arith.constant 0 : i32
    %c0_i32_0 = arith.constant 0 : i32
    %c0_i32_1 = arith.constant 0 : i32
    return %c0_i32, %0, %c0_i32_0 : i32, i32, i32
  }
  func.func @transform_2(%arg0: i32, %arg1: i32) -> (i32, i32, i32) {
    %c0_i32 = arith.constant 0 : i32
    %c0_i32_0 = arith.constant 0 : i32
    return %arg0, %arg1, %c0_i32 : i32, i32, i32
  }
}

</mosaic_0001>

<llo_original>
// kernel: forward.8
$region0: #{forward.8}
  #allocation0 [shape = 'u32[]', space=smem, size = 0x4, offset = 0x4, fixed_abs, tag = 'smem constant byte address 0x4 - core index']
  #allocation1 [shape = 'u32[72,128]{1,0:T(1,128)}', space=vmem, size = 0x9000, scoped, tag = 'internal scratch']
  #allocation2 [shape = 'f32[8,288]{1,0:T(8,128)}', space=vmem, size = 0x3000, scoped, tag = 'scratch operand']
  %s0 = inlined_call_operand.vmem [shape: f32[2,56,384], index: 0, kind: input, shape index: {}, may-alias: {0,5}]
  %s1 = inlined_call_operand.vmem [shape: f32[2,9,8,8], index: 1, kind: input, shape index: {}]
  %s2 = inlined_call_operand.vmem [shape: f32[3,56,1], index: 2, kind: input, shape index: {}]
  %s3 = inlined_call_operand.vmem [shape: f32[8,1], index: 3, kind: input, shape index: {}]
  %s4 = inlined_call_operand.vmem [shape: f32[1,384], index: 4, kind: input, shape index: {}]
  %s5 = inlined_call_operand.vmem [shape: f32[2,56,384], index: 5, kind: output, shape index: {0}, may-alias: {0,5}]
  %s6 = inlined_call_operand.vmem [shape: f32[2,8,2], index: 6, kind: output, shape index: {1}]
  %7 = xla_tuple %s5, %s6
  %s8 = sld [smem:[#allocation0]]
  $region107: #{forward.8} parent=0
    _
  %s10 = ssub.s32 1, %s8
  %s11 = scalar_select 0, %s10, %s8
  $region1: #{forward.8} parent=0
    #allocation3 [shape = 'u8[24576]{0}', space=vmem, size = 0x6000, scoped, tag = 'input window, operand 2']
    loop: start=0, step=1, limit=6
    $region2: #{forward.8} parent=1 // loop_pre_header
      _
    $region3: #{forward.8} parent=1 // loop_header
      %s13 = sphi 0, %s17
      %p14 = scmp.ge.s32.totalorder %s13, 6
      %s20 = sphi 0, %s32
      %s21 = sphi 0, %s28
      %s22 = sphi 0, %s20
      %s23 = sphi 0, %s21
      %s24 = sphi 0, %s22
      %s25 = sphi 0, %s23
      %s37 = sphi 0, %s39
      %s40 = sphi 0, %s37
      %s41 = sphi 0, %s40
      %s57 = sphi 0, %s41
      %s63 = sphi 0, %s65
      %s66 = sphi 0, %s63
      %s67 = sphi 0, %s66
      %s83 = sphi 0, %s67
      %s89 = sphi 0, %s91
      %s92 = sphi 0, %s89
      %s93 = sphi 0, %s92
      %s109 = sphi 0, %s93
      %s113 = sphi 0, %s113
      %s115 = sphi 0, %s113
      %s116 = sphi 0, %s115
      %s130 = sphi 0, %s116
      %s134 = sphi 0, %s134
      %s136 = sphi 0, %s134
      %s137 = sphi 0, %s136
      %s151 = sphi 0, %s137
      %s157 = sphi 0, %s159
      %s160 = sphi 0, %s157
      %s161 = sphi 0, %s160
      %s177 = sphi 0, %s161
      %s183 = sphi 0, %s185
      %s186 = sphi 0, %s183
      %s187 = sphi 0, %s186
      %s203 = sphi 0, %s187
    $region4: #{forward.8} parent=1 // loop_header_branch
      %16 = sbr.rel (%p14) target = $region8
    $region5: #{forward.8} parent=1 // loop_body
      %s18 = ssub.s32 %s13, 1
      %s19 = ssub.s32 %s13, 2
      %s26 = sadd.s32 1, %s21
      %p27 = scmp.ge.s32.totalorder %s26, 2
      %s28 = scalar_select %p27, 0, %s26
      %s29 = sadd.s32 1, %s20
      %s30 = scalar_select %p27, %s29, %s20
      %p31 = scmp.ge.s32.totalorder %s30, 2
      %s32 = scalar_select %p31, 0, %s30
      %s33 = ssub.s32 %s20, %s32
      %s34 = ssub.s32 %s21, %s28
      %s35 = sor.u32 %s33, %s34
      %p36 = scmp.eq.s32.totalorder %s35, 0
      %s38 = sadd.s32 %s37, 1
      %s39 = scalar_select %p36, %s37, %s38
      %p42 = pneg %p36
      %p43 = scmp.eq.s32.totalorder %s13, 3
      %p44 = por %p42, %p43
      %p45 = scmp.ne.s32.totalorder %s37, %s40
      %p46 = scmp.eq.s32.totalorder %s13, 0
      %p47 = por %p45, %p46
      %p48 = scmp.ne.s32.totalorder %s37, %s40
      %p49 = scmp.eq.s32.totalorder %s18, 3
      %p50 = por %p48, %p49
      %p51 = scmp.ne.s32.totalorder %s40, %s41
      %p52 = scmp.eq.s32.totalorder %s18, 0
      %p53 = por %p51, %p52
      %p54 = scmp.ne.s32.totalorder %s40, %s41
      %p55 = scmp.eq.s32.totalorder %s19, 3
      %p56 = por %p54, %p55
      %p58 = scmp.ne.s32.totalorder %s41, %s57
      %p59 = scmp.eq.s32.totalorder %s19, 0
      %p60 = por %p58, %p59
      %s61 = ssub.s32 %s21, %s28
      %p62 = scmp.eq.s32.totalorder %s61, 0
      %s64 = sadd.s32 %s63, 1
      %s65 = scalar_select %p62, %s63, %s64
      %p68 = pneg %p62
      %p69 = scmp.eq.s32.totalorder %s13, 3
      %p70 = por %p68, %p69
      %p71 = scmp.ne.s32.totalorder %s63, %s66
      %p72 = scmp.eq.s32.totalorder %s13, 0
      %p73 = por %p71, %p72
      %p74 = scmp.ne.s32.totalorder %s63, %s66
      %p75 = scmp.eq.s32.totalorder %s18, 3
      %p76 = por %p74, %p75
      %p77 = scmp.ne.s32.totalorder %s66, %s67
      %p78 = scmp.eq.s32.totalorder %s18, 0
      %p79 = por %p77, %p78
      %p80 = scmp.ne.s32.totalorder %s66, %s67
      %p81 = scmp.eq.s32.totalorder %s19, 3
      %p82 = por %p80, %p81
      %p84 = scmp.ne.s32.totalorder %s67, %s83
      %p85 = scmp.eq.s32.totalorder %s19, 0
      %p86 = por %p84, %p85
      %s87 = ssub.s32 %s21, %s28
      %p88 = scmp.eq.s32.totalorder %s87, 0
      %s90 = sadd.s32 %s89, 1
      %s91 = scalar_select %p88, %s89, %s90
      %p94 = pneg %p88
      %p95 = scmp.eq.s32.totalorder %s13, 3
      %p96 = por %p94, %p95
      %p97 = scmp.ne.s32.totalorder %s89, %s92
      %p98 = scmp.eq.s32.totalorder %s13, 0
      %p99 = por %p97, %p98
      %p100 = scmp.ne.s32.totalorder %s89, %s92
      %p101 = scmp.eq.s32.totalorder %s18, 3
      %p102 = por %p100, %p101
      %p103 = scmp.ne.s32.totalorder %s92, %s93
      %p104 = scmp.eq.s32.totalorder %s18, 0
      %p105 = por %p103, %p104
      %p106 = scmp.ne.s32.totalorder %s92, %s93
      %p107 = scmp.eq.s32.totalorder %s19, 3
      %p108 = por %p106, %p107
      %p110 = scmp.ne.s32.totalorder %s93, %s109
      %p111 = scmp.eq.s32.totalorder %s19, 0
      %p112 = por %p110, %p111
      %s114 = sadd.s32 %s113, 1
      %p117 = scmp.eq.s32.totalorder %s13, 3
      %p118 = scmp.ne.s32.totalorder %s113, %s115
      %p119 = scmp.eq.s32.totalorder %s13, 0
      %p120 = por %p118, %p119
      %p121 = scmp.ne.s32.totalorder %s113, %s115
      %p122 = scmp.eq.s32.totalorder %s18, 3
      %p123 = por %p121, %p122
      %p124 = scmp.ne.s32.totalorder %s115, %s116
      %p125 = scmp.eq.s32.totalorder %s18, 0
      %p126 = por %p124, %p125
      %p127 = scmp.ne.s32.totalorder %s115, %s116
      %p128 = scmp.eq.s32.totalorder %s19, 3
      %p129 = por %p127, %p128
      %p131 = scmp.ne.s32.totalorder %s116, %s130
      %p132 = scmp.eq.s32.totalorder %s19, 0
      %p133 = por %p131, %p132
      %s135 = sadd.s32 %s134, 1
      %p138 = scmp.eq.s32.totalorder %s13, 3
      %p139 = scmp.ne.s32.totalorder %s134, %s136
      %p140 = scmp.eq.s32.totalorder %s13, 0
      %p141 = por %p139, %p140
      %p142 = scmp.ne.s32.totalorder %s134, %s136
      %p143 = scmp.eq.s32.totalorder %s18, 3
      %p144 = por %p142, %p143
      %p145 = scmp.ne.s32.totalorder %s136, %s137
      %p146 = scmp.eq.s32.totalorder %s18, 0
      %p147 = por %p145, %p146
      %p148 = scmp.ne.s32.totalorder %s136, %s137
      %p149 = scmp.eq.s32.totalorder %s19, 3
      %p150 = por %p148, %p149
      %p152 = scmp.ne.s32.totalorder %s137, %s151
      %p153 = scmp.eq.s32.totalorder %s19, 0
      %p154 = por %p152, %p153
      %s155 = ssub.s32 %s20, %s32
      %p156 = scmp.eq.s32.totalorder %s155, 0
      %s158 = sadd.s32 %s157, 1
      %s159 = scalar_select %p156, %s157, %s158
      %p162 = pneg %p156
      %p163 = scmp.eq.s32.totalorder %s13, 3
      %p164 = por %p162, %p163
      %p165 = scmp.ne.s32.totalorder %s157, %s160
      %p166 = scmp.eq.s32.totalorder %s13, 0
      %p167 = por %p165, %p166
      %p168 = scmp.ne.s32.totalorder %s157, %s160
      %p169 = scmp.eq.s32.totalorder %s18, 3
      %p170 = por %p168, %p169
      %p171 = scmp.ne.s32.totalorder %s160, %s161
      %p172 = scmp.eq.s32.totalorder %s18, 0
      %p173 = por %p171, %p172
      %p174 = scmp.ne.s32.totalorder %s160, %s161
      %p175 = scmp.eq.s32.totalorder %s19, 3
      %p176 = por %p174, %p175
      %p178 = scmp.ne.s32.totalorder %s161, %s177
      %p179 = scmp.eq.s32.totalorder %s19, 0
      %p180 = por %p178, %p179
      %s181 = ssub.s32 %s20, %s32
      %p182 = scmp.eq.s32.totalorder %s181, 0
      %s184 = sadd.s32 %s183, 1
      %s185 = scalar_select %p182, %s183, %s184
      %p188 = pneg %p182
      %p189 = scmp.eq.s32.totalorder %s13, 3
      %p190 = por %p188, %p189
      %p191 = scmp.ne.s32.totalorder %s183, %s186
      %p192 = scmp.eq.s32.totalorder %s13, 0
      %p193 = por %p191, %p192
      %p194 = scmp.ne.s32.totalorder %s183, %s186
      %p195 = scmp.eq.s32.totalorder %s18, 3
      %p196 = por %p194, %p195
      %p197 = scmp.ne.s32.totalorder %s186, %s187
      %p198 = scmp.eq.s32.totalorder %s18, 0
      %p199 = por %p197, %p198
      %p200 = scmp.ne.s32.totalorder %s186, %s187
      %p201 = scmp.eq.s32.totalorder %s19, 3
      %p202 = por %p200, %p201
      %p204 = scmp.ne.s32.totalorder %s187, %s203
      %p205 = scmp.eq.s32.totalorder %s19, 0
      %p206 = por %p204, %p205
      %p207 = scmp.le.s32.totalorder 1, %s13
      %p208 = scmp.lt.s32.totalorder %s13, 5
      %p209 = pnand %p207, %p208
      %p210 = pneg %p209
      // Predicated region
      $region9: #{forward.8} parent=5 // pred_check
        _
      $region10: #{forward.8} parent=5 // pred_check_branch
        %212 = sbr.rel (%p209) target = $region12
      $region11: #{forward.8} parent=5 // pred_region
        %s213 = ssub.s32 %s13, 1
        // Predicated region
        $region13: #{forward.8} parent=11 // pred_check
          %p214 = pneg %p126
        $region14: #{forward.8} parent=11 // pred_check_branch
          %216 = sbr.rel (%p214) target = $region16
        $region15: #{forward.8} parent=11 // pred_region
          _
        $region16: #{forward.8} parent=11 // pred_fallthru
          _
        // Predicated region
        $region17: #{forward.8} parent=11 // pred_check
          %p217 = pneg %p147
        $region18: #{forward.8} parent=11 // pred_check_branch
          %219 = sbr.rel (%p217) target = $region20
        $region19: #{forward.8} parent=11 // pred_region
          _
        $region20: #{forward.8} parent=11 // pred_fallthru
          _
      $region12: #{forward.8} parent=5 // pred_fallthru
        _
      %p220 = scmp.lt.s32.totalorder %s13, 4
      // Predicated region
      $region21: #{forward.8} parent=5 // pred_check
        %p221 = pneg %p220
      $region22: #{forward.8} parent=5 // pred_check_branch
        %223 = sbr.rel (%p221) target = $region24
      $region23: #{forward.8} parent=5 // pred_region
        // Predicated region
        $region25: #{forward.8} parent=23 // pred_check
          %p224 = pneg %p47
        $region26: #{forward.8} parent=23 // pred_check_branch
          %226 = sbr.rel (%p224) target = $region28
        $region27: #{forward.8} parent=23 // pred_region
          %p227 = scmp.lt.s32.totalorder %s20, 1
          %s228 = scalar_select %p227, %s20, 1
          %p229 = scmp.lt.s32.totalorder %s21, 6
          %s230 = scalar_select %p229, %s21, 6
          %s231 = smul.addr %s230, 3
          %s232 = smul.addr %s228, 21
          %s233 = sadd.s32 %s231, %s232
          %s234 = smul.addr %s233, 8
          %s235 = scalar_lea.vmem %s0, %s234
        $region28: #{forward.8} parent=23 // pred_fallthru
          _
        // Predicated region
        $region29: #{forward.8} parent=23 // pred_check
          %p236 = pneg %p73
        $region30: #{forward.8} parent=23 // pred_check_branch
          %238 = sbr.rel (%p236) target = $region32
        $region31: #{forward.8} parent=23 // pred_region
          %p239 = scmp.lt.s32.totalorder %s21, 1
          %s240 = scalar_select %p239, %s21, 1
          %s241 = smul.addr %s240, 9
          %s242 = smul.addr %s241, 8
          %s243 = scalar_lea.vmem %s1, %s242
        $region32: #{forward.8} parent=23 // pred_fallthru
          _
        // Predicated region
        $region33: #{forward.8} parent=23 // pred_check
          %p244 = pneg %p99
        $region34: #{forward.8} parent=23 // pred_check_branch
          %246 = sbr.rel (%p244) target = $region36
        $region35: #{forward.8} parent=23 // pred_region
          %s247 = sand.u32 %s89, 1
          %s248 = sand.u32 %s89, 1
          %s249 = smul.addr %s248, 24
          %s250 = scalar_lea.vmem [#allocation3], %s249
          %s251 = smul.addr %s21, 8
          %s252 = scalar_lea.vmem %s2, %s251
          // Predicated region
          $region37: #{forward.8} parent=35 // pred_check
            _
          $region38: #{forward.8} parent=35 // pred_check_branch
            %254 = sbr.rel (0) target = $region40
          $region39: #{forward.8} parent=35 // pred_region
            // Predicated region
            $region41: #{forward.8} parent=39 // pred_check
              _
            $region42: #{forward.8} parent=39 // pred_check_branch
              %256 = sbr.rel (0) target = $region44
            $region43: #{forward.8} parent=39 // pred_region
              // Predicated region
              $region56: #{forward.8} parent=43 // pred_check
                _
              $region57: #{forward.8} parent=43 // pred_check_branch
                %276 = sbr.rel (0) target = $region59
              $region58: #{forward.8} parent=43 // pred_region
                loop: start=0, step=1, limit=1
                $region60: #{forward.8} parent=58 // loop_pre_header
                  _
                $region61: #{forward.8} parent=58 // loop_header
                  %s278 = sphi 0, %s282
                  %p279 = scmp.ge.s32.totalorder %s278, 1
                  %s283 = sphi %s252, %s252
                  %s284 = sphi %s250, %s250
                $region62: #{forward.8} parent=58 // loop_header_branch
                  %281 = sbr.rel (%p279) target = $region66
                $region63: #{forward.8} parent=58 // loop_body
                  %v285 = vld [vmem:[%s283] sm:$0xff]
                  %286 = vst [vmem:[%s284] sm:$0xff] %v285
                  %v287 = vld [vmem:[%s283 + $0x38] sm:$0xff]
                  %288 = vst [vmem:[%s284 + $0x8] sm:$0xff] %v287
                  %v289 = vld [vmem:[%s283 + $0x70] sm:$0xff]
                  %290 = vst [vmem:[%s284 + $0x10] sm:$0xff] %v289
                $region64: #{forward.8} parent=58 // loop_footer
                  %s282 = sadd.s32 1, %s278
                $region65: #{forward.8} parent=58 // loop_footer_branch
                  %277 = sbr.rel target = $region61
                $region66: #{forward.8} parent=58 // loop_exit
                  _
              $region59: #{forward.8} parent=43 // pred_fallthru
                _
              // Predicated region
              $region67: #{forward.8} parent=43 // pred_check
                _
              $region68: #{forward.8} parent=43 // pred_check_branch
                %292 = sbr.rel target = $region70
              $region69: #{forward.8} parent=43 // pred_region
                _
              $region70: #{forward.8} parent=43 // pred_fallthru
                _
            $region44: #{forward.8} parent=39 // pred_fallthru
              _
            // Predicated region
            $region45: #{forward.8} parent=39 // pred_check
              _
            $region46: #{forward.8} parent=39 // pred_check_branch
              %258 = sbr.rel target = $region48
            $region47: #{forward.8} parent=39 // pred_region
              %s260 = ssub.s32 256, 1
              loop: start=0, step=1, limit=1
              $region49: #{forward.8} parent=47 // loop_pre_header
                _
              $region50: #{forward.8} parent=47 // loop_header
                %s262 = sphi 0, %s266
                %p263 = scmp.ge.s32.totalorder %s262, 1
                %s267 = sphi %s252, %s252
                %s268 = sphi %s250, %s250
              $region51: #{forward.8} parent=47 // loop_header_branch
                %265 = sbr.rel (%p263) target = $region55
              $region52: #{forward.8} parent=47 // loop_body
                %v269 = vld [vmem:[%s267] sm:%s260]
                %270 = vst [vmem:[%s268] sm:%s260] %v269
                %v271 = vld [vmem:[%s267 + $0x38] sm:%s260]
                %272 = vst [vmem:[%s268 + $0x8] sm:%s260] %v271
                %v273 = vld [vmem:[%s267 + $0x70] sm:%s260]
                %274 = vst [vmem:[%s268 + $0x10] sm:%s260] %v273
              $region53: #{forward.8} parent=47 // loop_footer
                %s266 = sadd.s32 1, %s262
              $region54: #{forward.8} parent=47 // loop_footer_branch
                %261 = sbr.rel target = $region50
              $region55: #{forward.8} parent=47 // loop_exit
                _
            $region48: #{forward.8} parent=39 // pred_fallthru
              _
          $region40: #{forward.8} parent=35 // pred_fallthru
            _
          %293 = vnop
        $region36: #{forward.8} parent=23 // pred_fallthru
          _
      $region24: #{forward.8} parent=5 // pred_fallthru
        _
      %p294 = scmp.le.s32.totalorder 1, %s13
      %p295 = scmp.lt.s32.totalorder %s13, 5
      %p296 = pnand %p294, %p295
      %p297 = pneg %p296
      // Predicated region
      $region71: #{forward.8} parent=5 // pred_check
        _
      $region72: #{forward.8} parent=5 // pred_check_branch
        %299 = sbr.rel (%p296) target = $region74
      $region73: #{forward.8} parent=5 // pred_region
        %s300 = ssub.s32 %s13, 1
        %s301 = sand.u32 %s92, 1
        %s302 = sand.u32 %s92, 1
        %s303 = smul.addr %s302, 24
        %s304 = scalar_lea.vmem [#allocation3], %s303
        // Predicated region
        $region75: #{forward.8} parent=73 // pred_check
          %p305 = pneg %p105
        $region76: #{forward.8} parent=73 // pred_check_branch
          %307 = sbr.rel (%p305) target = $region78
        $region77: #{forward.8} parent=73 // pred_region
          _
        $region78: #{forward.8} parent=73 // pred_fallthru
          _
        %p308 = scmp.lt.s32.totalorder %s22, 1
        %s309 = scalar_select %p308, %s22, 1
        %p310 = scmp.lt.s32.totalorder %s23, 6
        %s311 = scalar_select %p310, %s23, 6
        %s312 = smul.addr %s311, 3
        %s313 = smul.addr %s309, 21
        %s314 = sadd.s32 %s312, %s313
        %s315 = smul.addr %s314, 8
        %s316 = scalar_lea.vmem %s0, %s315
        %p317 = pneg %p53
        %p318 = pneg %p50
        %p319 = scmp.lt.s32.totalorder %s23, 1
        %s320 = scalar_select %p319, %s23, 1
        %s321 = smul.addr %s320, 9
        %s322 = smul.addr %s321, 8
        %s323 = scalar_lea.vmem %s1, %s322
        %p324 = pneg %p79
        %p325 = pneg %p76
        %s326 = sand.u32 %s92, 1
        %s327 = sand.u32 %s92, 1
        %s328 = smul.addr %s327, 24
        %s329 = scalar_lea.vmem [#allocation3], %s328
        %p330 = pneg %p105
        %p331 = pneg %p102
        %p332 = pneg %p126
        %p333 = pneg %p123
        %p334 = pneg %p147
        %p335 = pneg %p144
        %p336 = pneg %p173
        %p337 = pneg %p170
        %p338 = scmp.lt.s32.totalorder %s22, 1
        %s339 = scalar_select %p338, %s22, 1
        %s340 = smul.addr %s339, 21
        %s341 = sadd.s32 6, %s340
        %s342 = smul.addr %s341, 8
        %s343 = scalar_lea.vmem %s5, %s342
        %p344 = pneg %p199
        %p345 = pneg %p196
        %p346 = scmp.lt.s32.totalorder %s22, 1
        %s347 = scalar_select %p346, %s22, 1
        %s348 = smul.addr %s347, 8
        %s349 = scalar_lea.vmem %s6, %s348
        %p350 = scmp.lt.s32.totalorder %s22, 1
        %s351 = scalar_select %p350, %s22, 1
        %p352 = scmp.lt.s32.totalorder %s23, 6
        %s353 = scalar_select %p352, %s23, 6
        %s354 = smul.addr %s353, 3
        %s355 = smul.addr %s351, 21
        %s356 = sadd.s32 %s354, %s355
        %s357 = smul.addr %s356, 8
        %s358 = scalar_lea.vmem %s0, %s357
        %p359 = scmp.lt.s32.totalorder %s23, 1
        %s360 = scalar_select %p359, %s23, 1
        %s361 = smul.addr %s360, 9
        %s362 = smul.addr %s361, 8
        %s363 = scalar_lea.vmem %s1, %s362
        %p364 = scmp.lt.s32.totalorder %s22, 1
        %s365 = scalar_select %p364, %s22, 1
        %s366 = smul.addr %s365, 21
        %s367 = sadd.s32 6, %s366
        %s368 = smul.addr %s367, 8
        %s369 = scalar_lea.vmem %s5, %s368
        %p370 = scmp.lt.s32.totalorder %s22, 1
        %s371 = scalar_select %p370, %s22, 1
        %s372 = smul.addr %s371, 8
        %s373 = scalar_lea.vmem %s6, %s372
        %p374 = scmp.eq.s32.totalorder %s23, 0
        // Predicated region
        $region79: #{forward.8} parent=73 // pred_check
          %p375 = pneg %p374
        $region80: #{forward.8} parent=73 // pred_check_branch
          %377 = sbr.rel (%p375) target = $region82
        $region81: #{forward.8} parent=73 // pred_region
          %378 = vst [vmem:[#allocation2] sm:$0xff] 0.0
          %379 = vst [vmem:[#allocation2 + $0x8] sm:$0xff] 0.0
          %vm380 = vcmask 261120
          %381 = vst.msk [vmem:[#allocation2 + $0x10] sm:$0xff] %vm380, 0.0
        $region82: #{forward.8} parent=73 // pred_fallthru
          _
        %v382 = vld [vmem:[%s358] sm:$0xff]
        %v383 = vld [vmem:[%s358 + $0x8] sm:$0xff]
        %v384 = vld [vmem:[%s358 + $0x10] sm:$0xff]
        %v385 = vld [vmem:[%s304] sm:$0xff]
        %387 = vset.pattern.permute.xlu0 0
        %388 = vperm.xlu0 %387, %v385
        %v389 = vpop.permute.xlu0 %388
        %v391 = vmul.f32 %v382, %v389
        %v392 = vmul.f32 %v383, %v389
        %v393 = vmul.f32 %v384, %v389
        %s394 = scalar_lea.vmem %s304, 8 [#allocation3]
        %v395 = vld [vmem:[%s394] sm:$0xff]
        %397 = vset.pattern.permute.xlu0 0
        %398 = vperm.xlu0 %397, %v395
        %v399 = vpop.permute.xlu0 %398
        %v401 = vadd.f32 %v391, %v399
        %v402 = vadd.f32 %v392, %v399
        %v403 = vadd.f32 %v393, %v399
        %s404 = scalar_lea.vmem %s304, 16 [#allocation3]
        %v405 = vld [vmem:[%s404] sm:$0xff]
        %407 = vset.pattern.permute.xlu0 0
        %408 = vperm.xlu0 %407, %v405
        %v409 = vpop.permute.xlu0 %408
        %v411 = vmax.f32 %v401, %v409
        %v412 = vmax.f32 %v402, %v409
        %v413 = vmax.f32 %v403, %v409
        %v414 = vld [vmem:[%s4] sm:$0x7]
        %v416 = vperm.slane %v414, 0
        %v417 = vperm.slane %v414, 1
        %v418 = vperm.slane %v414, 2
        %v422 = vmul.f32 %v411, %v416
        %v423 = vmul.f32 %v412, %v417
        %v424 = vmul.f32 %v413, %v418
        %v425 = vld [vmem:[%s363] sm:$0xff]
        %s426 = scalar_lea.vmem %s363, 8
        %v427 = vld [vmem:[%s426] sm:$0xff]
        %431 = vrot.lane.b32.xlu0 %v422, 127
        %v432 = vpop.permute.xlu0 %431
        %433 = vrot.lane.b32.xlu0 %v423, 127
        %v434 = vpop.permute.xlu0 %433
        %435 = vrot.lane.b32.xlu0 %v424, 127
        %v436 = vpop.permute.xlu0 %435
        %vm437 = vcmask 1039360
        %v438 = vsel %vm437, %v432, %v434
        %v439 = vsel %vm437, %v434, %v436
        %vm443 = vcmask 64512
        %v445 = vsel %vm443, %v427, 0
        %447 = vmatpush.msra.mxu0 0.0
        %448 = vmatpush.msra.mxu0 0.0
        %449 = vmatpush.msra.mxu0 0.0
        %450 = vmatpush.msra.mxu0 0.0
        %451 = vmatpush.msra.mxu0 0.0
        %452 = vmatpush.msra.mxu0 0.0
        %453 = vmatpush.msra.mxu0 0.0
        %454 = vmatpush.msra.mxu0 0.0
        %455 = vmatpush.msra.mxu0 0.0
        %456 = vmatpush.msra.mxu0 0.0
        %457 = vmatpush.msra.mxu0 0.0
        %458 = vmatpush.msra.mxu0 0.0
        %459 = vmatpush.msra.mxu0 0.0
        %460 = vmatpush.msra.mxu0 0.0
        %461 = vmatpush.msra.mxu0 0.0
        %462 = vmatpush.msra.mxu0 %v438
        %463 = vmatmul.f32.gmra.mxu0 %v445
        %v464 = vpop.f32.mrf.mxu0
        %v465 = vadd.f32 0.0, %v464
        %466 = vdwg.mxu0
        %467 = vmatpush.msra.mxu0 0.0
        %468 = vmatpush.msra.mxu0 0.0
        %469 = vmatpush.msra.mxu0 0.0
        %470 = vmatpush.msra.mxu0 0.0
        %471 = vmatpush.msra.mxu0 0.0
        %472 = vmatpush.msra.mxu0 0.0
        %473 = vmatpush.msra.mxu0 0.0
        %474 = vmatpush.msra.mxu0 0.0
        %475 = vmatpush.msra.mxu0 0.0
        %476 = vmatpush.msra.mxu0 0.0
        %477 = vmatpush.msra.mxu0 0.0
        %478 = vmatpush.msra.mxu0 0.0
        %479 = vmatpush.msra.mxu0 0.0
        %480 = vmatpush.msra.mxu0 0.0
        %481 = vmatpush.msra.mxu0 0.0
        %482 = vmatpush.msra.mxu0 %v439
        %483 = vmatmul.f32.gmra.mxu0 %v445
        %v484 = vpop.f32.mrf.mxu0
        %v485 = vadd.f32 0.0, %v484
        %486 = vdwg.mxu0
        %487 = vmatpush.msra.mxu0 0.0
        %488 = vmatpush.msra.mxu0 0.0
        %489 = vmatpush.msra.mxu0 0.0
        %490 = vmatpush.msra.mxu0 0.0
        %491 = vmatpush.msra.mxu0 0.0
        %492 = vmatpush.msra.mxu0 0.0
        %493 = vmatpush.msra.mxu0 0.0
        %494 = vmatpush.msra.mxu0 0.0
        %495 = vmatpush.msra.mxu0 0.0
        %496 = vmatpush.msra.mxu0 0.0
        %497 = vmatpush.msra.mxu0 0.0
        %498 = vmatpush.msra.mxu0 0.0
        %499 = vmatpush.msra.mxu0 0.0
        %500 = vmatpush.msra.mxu0 0.0
        %501 = vmatpush.msra.mxu0 0.0
        %502 = vmatpush.msra.mxu0 %v436
        %503 = vmatmul.f32.gmra.mxu0 %v445
        %v504 = vpop.f32.mrf.mxu0
        %v505 = vadd.f32 0.0, %v504
        %506 = vdwg.mxu0
        %v508 = vsel %vm443, %v425, 0
        %510 = vmatpush.msra.mxu0 0.0
        %511 = vmatpush.msra.mxu0 0.0
        %512 = vmatpush.msra.mxu0 0.0
        %513 = vmatpush.msra.mxu0 0.0
        %514 = vmatpush.msra.mxu0 0.0
        %515 = vmatpush.msra.mxu0 0.0
        %516 = vmatpush.msra.mxu0 0.0
        %517 = vmatpush.msra.mxu0 0.0
        %518 = vmatpush.msra.mxu0 0.0
        %519 = vmatpush.msra.mxu0 0.0
        %520 = vmatpush.msra.mxu0 0.0
        %521 = vmatpush.msra.mxu0 0.0
        %522 = vmatpush.msra.mxu0 0.0
        %523 = vmatpush.msra.mxu0 0.0
        %524 = vmatpush.msra.mxu0 0.0
        %525 = vmatpush.msra.mxu0 %v422
        %526 = vmatmul.f32.gmra.mxu0 %v508
        %v527 = vpop.f32.mrf.mxu0
        %v528 = vadd.f32 %v465, %v527
        %529 = vdwg.mxu0
        %530 = vmatpush.msra.mxu0 0.0
        %531 = vmatpush.msra.mxu0 0.0
        %532 = vmatpush.msra.mxu0 0.0
        %533 = vmatpush.msra.mxu0 0.0
        %534 = vmatpush.msra.mxu0 0.0
        %535 = vmatpush.msra.mxu0 0.0
        %536 = vmatpush.msra.mxu0 0.0
        %537 = vmatpush.msra.mxu0 0.0
        %538 = vmatpush.msra.mxu0 0.0
        %539 = vmatpush.msra.mxu0 0.0
        %540 = vmatpush.msra.mxu0 0.0
        %541 = vmatpush.msra.mxu0 0.0
        %542 = vmatpush.msra.mxu0 0.0
        %543 = vmatpush.msra.mxu0 0.0
        %544 = vmatpush.msra.mxu0 0.0
        %545 = vmatpush.msra.mxu0 %v423
        %546 = vmatmul.f32.gmra.mxu0 %v508
        %v547 = vpop.f32.mrf.mxu0
        %v548 = vadd.f32 %v485, %v547
        %549 = vdwg.mxu0
        %550 = vmatpush.msra.mxu0 0.0
        %551 = vmatpush.msra.mxu0 0.0
        %552 = vmatpush.msra.mxu0 0.0
        %553 = vmatpush.msra.mxu0 0.0
        %554 = vmatpush.msra.mxu0 0.0
        %555 = vmatpush.msra.mxu0 0.0
        %556 = vmatpush.msra.mxu0 0.0
        %557 = vmatpush.msra.mxu0 0.0
        %558 = vmatpush.msra.mxu0 0.0
        %559 = vmatpush.msra.mxu0 0.0
        %560 = vmatpush.msra.mxu0 0.0
        %561 = vmatpush.msra.mxu0 0.0
        %562 = vmatpush.msra.mxu0 0.0
        %563 = vmatpush.msra.mxu0 0.0
        %564 = vmatpush.msra.mxu0 0.0
        %565 = vmatpush.msra.mxu0 %v424
        %566 = vmatmul.f32.gmra.mxu0 %v508
        %v567 = vpop.f32.mrf.mxu0
        %v568 = vadd.f32 %v505, %v567
        %569 = vdwg.mxu0
        %s570 = scalar_lea.vmem %s363, 16
        %v571 = vld [vmem:[%s570] sm:$0xff]
        %572 = vrot.lane.b32.xlu0 %v422, 126
        %v573 = vpop.permute.xlu0 %572
        %574 = vrot.lane.b32.xlu0 %v423, 126
        %v575 = vpop.permute.xlu0 %574
        %576 = vrot.lane.b32.xlu0 %v424, 126
        %v577 = vpop.permute.xlu0 %576
        %vm578 = vcmask 1031168
        %v579 = vsel %vm578, %v573, %v575
        %v580 = vsel %vm578, %v575, %v577
        %v585 = vsel %vm443, %v571, 0
        %587 = vmatpush.msra.mxu0 0.0
        %588 = vmatpush.msra.mxu0 0.0
        %589 = vmatpush.msra.mxu0 0.0
        %590 = vmatpush.msra.mxu0 0.0
        %591 = vmatpush.msra.mxu0 0.0
        %592 = vmatpush.msra.mxu0 0.0
        %593 = vmatpush.msra.mxu0 0.0
        %594 = vmatpush.msra.mxu0 0.0
        %595 = vmatpush.msra.mxu0 0.0
        %596 = vmatpush.msra.mxu0 0.0
        %597 = vmatpush.msra.mxu0 0.0
        %598 = vmatpush.msra.mxu0 0.0
        %599 = vmatpush.msra.mxu0 0.0
        %600 = vmatpush.msra.mxu0 0.0
        %601 = vmatpush.msra.mxu0 0.0
        %602 = vmatpush.msra.mxu0 %v579
        %603 = vmatmul.f32.gmra.mxu0 %v585
        %v604 = vpop.f32.mrf.mxu0
        %v605 = vadd.f32 0.0, %v604
        %606 = vdwg.mxu0
        %607 = vmatpush.msra.mxu0 0.0
        %608 = vmatpush.msra.mxu0 0.0
        %609 = vmatpush.msra.mxu0 0.0
        %610 = vmatpush.msra.mxu0 0.0
        %611 = vmatpush.msra.mxu0 0.0
        %612 = vmatpush.msra.mxu0 0.0
        %613 = vmatpush.msra.mxu0 0.0
        %614 = vmatpush.msra.mxu0 0.0
        %615 = vmatpush.msra.mxu0 0.0
        %616 = vmatpush.msra.mxu0 0.0
        %617 = vmatpush.msra.mxu0 0.0
        %618 = vmatpush.msra.mxu0 0.0
        %619 = vmatpush.msra.mxu0 0.0
        %620 = vmatpush.msra.mxu0 0.0
        %621 = vmatpush.msra.mxu0 0.0
        %622 = vmatpush.msra.mxu0 %v580
        %623 = vmatmul.f32.gmra.mxu0 %v585
        %v624 = vpop.f32.mrf.mxu0
        %v625 = vadd.f32 0.0, %v624
        %626 = vdwg.mxu0
        %627 = vmatpush.msra.mxu0 0.0
        %628 = vmatpush.msra.mxu0 0.0
        %629 = vmatpush.msra.mxu0 0.0
        %630 = vmatpush.msra.mxu0 0.0
        %631 = vmatpush.msra.mxu0 0.0
        %632 = vmatpush.msra.mxu0 0.0
        %633 = vmatpush.msra.mxu0 0.0
        %634 = vmatpush.msra.mxu0 0.0
        %635 = vmatpush.msra.mxu0 0.0
        %636 = vmatpush.msra.mxu0 0.0
        %637 = vmatpush.msra.mxu0 0.0
        %638 = vmatpush.msra.mxu0 0.0
        %639 = vmatpush.msra.mxu0 0.0
        %640 = vmatpush.msra.mxu0 0.0
        %641 = vmatpush.msra.mxu0 0.0
        %642 = vmatpush.msra.mxu0 %v577
        %643 = vmatmul.f32.gmra.mxu0 %v585
        %v644 = vpop.f32.mrf.mxu0
        %v645 = vadd.f32 0.0, %v644
        %646 = vdwg.mxu0
        %v647 = vadd.f32 %v528, %v605
        %v648 = vadd.f32 %v548, %v625
        %v649 = vadd.f32 %v568, %v645
        %s650 = scalar_lea.vmem %s363, 24
        %v651 = vld [vmem:[%s650] sm:$0xff]
        %652 = vrot.lane.b32.xlu0 %v422, 110
        %v653 = vpop.permute.xlu0 %652
        %654 = vrot.lane.b32.xlu0 %v423, 110
        %v655 = vpop.permute.xlu0 %654
        %656 = vrot.lane.b32.xlu0 %v424, 110
        %v657 = vpop.permute.xlu0 %656
        %vm658 = vcmask 900096
        %v659 = vsel %vm658, %v653, %v655
        %v660 = vsel %vm658, %v655, %v657
        %v665 = vsel %vm443, %v651, 0
        %667 = vmatpush.msra.mxu0 0.0
        %668 = vmatpush.msra.mxu0 0.0
        %669 = vmatpush.msra.mxu0 0.0
        %670 = vmatpush.msra.mxu0 0.0
        %671 = vmatpush.msra.mxu0 0.0
        %672 = vmatpush.msra.mxu0 0.0
        %673 = vmatpush.msra.mxu0 0.0
        %674 = vmatpush.msra.mxu0 0.0
        %675 = vmatpush.msra.mxu0 0.0
        %676 = vmatpush.msra.mxu0 0.0
        %677 = vmatpush.msra.mxu0 0.0
        %678 = vmatpush.msra.mxu0 0.0
        %679 = vmatpush.msra.mxu0 0.0
        %680 = vmatpush.msra.mxu0 0.0
        %681 = vmatpush.msra.mxu0 0.0
        %682 = vmatpush.msra.mxu0 %v659
        %683 = vmatmul.f32.gmra.mxu0 %v665
        %v684 = vpop.f32.mrf.mxu0
        %v685 = vadd.f32 0.0, %v684
        %686 = vdwg.mxu0
        %687 = vmatpush.msra.mxu0 0.0
        %688 = vmatpush.msra.mxu0 0.0
        %689 = vmatpush.msra.mxu0 0.0
        %690 = vmatpush.msra.mxu0 0.0
        %691 = vmatpush.msra.mxu0 0.0
        %692 = vmatpush.msra.mxu0 0.0
        %693 = vmatpush.msra.mxu0 0.0
        %694 = vmatpush.msra.mxu0 0.0
        %695 = vmatpush.msra.mxu0 0.0
        %696 = vmatpush.msra.mxu0 0.0
        %697 = vmatpush.msra.mxu0 0.0
        %698 = vmatpush.msra.mxu0 0.0
        %699 = vmatpush.msra.mxu0 0.0
        %700 = vmatpush.msra.mxu0 0.0
        %701 = vmatpush.msra.mxu0 0.0
        %702 = vmatpush.msra.mxu0 %v660
        %703 = vmatmul.f32.gmra.mxu0 %v665
        %v704 = vpop.f32.mrf.mxu0
        %v705 = vadd.f32 0.0, %v704
        %706 = vdwg.mxu0
        %707 = vmatpush.msra.mxu0 0.0
        %708 = vmatpush.msra.mxu0 0.0
        %709 = vmatpush.msra.mxu0 0.0
        %710 = vmatpush.msra.mxu0 0.0
        %711 = vmatpush.msra.mxu0 0.0
        %712 = vmatpush.msra.mxu0 0.0
        %713 = vmatpush.msra.mxu0 0.0
        %714 = vmatpush.msra.mxu0 0.0
        %715 = vmatpush.msra.mxu0 0.0
        %716 = vmatpush.msra.mxu0 0.0
        %717 = vmatpush.msra.mxu0 0.0
        %718 = vmatpush.msra.mxu0 0.0
        %719 = vmatpush.msra.mxu0 0.0
        %720 = vmatpush.msra.mxu0 0.0
        %721 = vmatpush.msra.mxu0 0.0
        %722 = vmatpush.msra.mxu0 %v657
        %723 = vmatmul.f32.gmra.mxu0 %v665
        %v724 = vpop.f32.mrf.mxu0
        %v725 = vadd.f32 0.0, %v724
        %726 = vdwg.mxu0
        %v727 = vadd.f32 %v647, %v685
        %v728 = vadd.f32 %v648, %v705
        %v729 = vadd.f32 %v649, %v725
        %s730 = scalar_lea.vmem %s363, 32
        %v731 = vld [vmem:[%s730] sm:$0xff]
        %732 = vrot.lane.b32.xlu0 %v422, 109
        %v733 = vpop.permute.xlu0 %732
        %734 = vrot.lane.b32.xlu0 %v423, 109
        %v735 = vpop.permute.xlu0 %734
        %736 = vrot.lane.b32.xlu0 %v424, 109
        %v737 = vpop.permute.xlu0 %736
        %vm738 = vcmask 891904
        %v739 = vsel %vm738, %v733, %v735
        %v740 = vsel %vm738, %v735, %v737
        %v745 = vsel %vm443, %v731, 0
        %747 = vmatpush.msra.mxu0 0.0
        %748 = vmatpush.msra.mxu0 0.0
        %749 = vmatpush.msra.mxu0 0.0
        %750 = vmatpush.msra.mxu0 0.0
        %751 = vmatpush.msra.mxu0 0.0
        %752 = vmatpush.msra.mxu0 0.0
        %753 = vmatpush.msra.mxu0 0.0
        %754 = vmatpush.msra.mxu0 0.0
        %755 = vmatpush.msra.mxu0 0.0
        %756 = vmatpush.msra.mxu0 0.0
        %757 = vmatpush.msra.mxu0 0.0
        %758 = vmatpush.msra.mxu0 0.0
        %759 = vmatpush.msra.mxu0 0.0
        %760 = vmatpush.msra.mxu0 0.0
        %761 = vmatpush.msra.mxu0 0.0
        %762 = vmatpush.msra.mxu0 %v739
        %763 = vmatmul.f32.gmra.mxu0 %v745
        %v764 = vpop.f32.mrf.mxu0
        %v765 = vadd.f32 0.0, %v764
        %766 = vdwg.mxu0
        %767 = vmatpush.msra.mxu0 0.0
        %768 = vmatpush.msra.mxu0 0.0
        %769 = vmatpush.msra.mxu0 0.0
        %770 = vmatpush.msra.mxu0 0.0
        %771 = vmatpush.msra.mxu0 0.0
        %772 = vmatpush.msra.mxu0 0.0
        %773 = vmatpush.msra.mxu0 0.0
        %774 = vmatpush.msra.mxu0 0.0
        %775 = vmatpush.msra.mxu0 0.0
        %776 = vmatpush.msra.mxu0 0.0
        %777 = vmatpush.msra.mxu0 0.0
        %778 = vmatpush.msra.mxu0 0.0
        %779 = vmatpush.msra.mxu0 0.0
        %780 = vmatpush.msra.mxu0 0.0
        %781 = vmatpush.msra.mxu0 0.0
        %782 = vmatpush.msra.mxu0 %v740
        %783 = vmatmul.f32.gmra.mxu0 %v745
        %v784 = vpop.f32.mrf.mxu0
        %v785 = vadd.f32 0.0, %v784
        %786 = vdwg.mxu0
        %787 = vmatpush.msra.mxu0 0.0
        %788 = vmatpush.msra.mxu0 0.0
        %789 = vmatpush.msra.mxu0 0.0
        %790 = vmatpush.msra.mxu0 0.0
        %791 = vmatpush.msra.mxu0 0.0
        %792 = vmatpush.msra.mxu0 0.0
        %793 = vmatpush.msra.mxu0 0.0
        %794 = vmatpush.msra.mxu0 0.0
        %795 = vmatpush.msra.mxu0 0.0
        %796 = vmatpush.msra.mxu0 0.0
        %797 = vmatpush.msra.mxu0 0.0
        %798 = vmatpush.msra.mxu0 0.0
        %799 = vmatpush.msra.mxu0 0.0
        %800 = vmatpush.msra.mxu0 0.0
        %801 = vmatpush.msra.mxu0 0.0
        %802 = vmatpush.msra.mxu0 %v737
        %803 = vmatmul.f32.gmra.mxu0 %v745
        %v804 = vpop.f32.mrf.mxu0
        %v805 = vadd.f32 0.0, %v804
        %806 = vdwg.mxu0
        %v807 = vadd.f32 %v727, %v765
        %v808 = vadd.f32 %v728, %v785
        %v809 = vadd.f32 %v729, %v805
        %s810 = scalar_lea.vmem %s363, 40
        %v811 = vld [vmem:[%s810] sm:$0xff]
        %812 = vrot.lane.b32.xlu0 %v422, 108
        %v813 = vpop.permute.xlu0 %812
        %814 = vrot.lane.b32.xlu0 %v423, 108
        %v815 = vpop.permute.xlu0 %814
        %816 = vrot.lane.b32.xlu0 %v424, 108
        %v817 = vpop.permute.xlu0 %816
        %vm818 = vcmask 883712
        %v819 = vsel %vm818, %v813, %v815
        %v820 = vsel %vm818, %v815, %v817
        %v825 = vsel %vm443, %v811, 0
        %827 = vmatpush.msra.mxu0 0.0
        %828 = vmatpush.msra.mxu0 0.0
        %829 = vmatpush.msra.mxu0 0.0
        %830 = vmatpush.msra.mxu0 0.0
        %831 = vmatpush.msra.mxu0 0.0
        %832 = vmatpush.msra.mxu0 0.0
        %833 = vmatpush.msra.mxu0 0.0
        %834 = vmatpush.msra.mxu0 0.0
        %835 = vmatpush.msra.mxu0 0.0
        %836 = vmatpush.msra.mxu0 0.0
        %837 = vmatpush.msra.mxu0 0.0
        %838 = vmatpush.msra.mxu0 0.0
        %839 = vmatpush.msra.mxu0 0.0
        %840 = vmatpush.msra.mxu0 0.0
        %841 = vmatpush.msra.mxu0 0.0
        %842 = vmatpush.msra.mxu0 %v819
        %843 = vmatmul.f32.gmra.mxu0 %v825
        %v844 = vpop.f32.mrf.mxu0
        %v845 = vadd.f32 0.0, %v844
        %846 = vdwg.mxu0
        %847 = vmatpush.msra.mxu0 0.0
        %848 = vmatpush.msra.mxu0 0.0
        %849 = vmatpush.msra.mxu0 0.0
        %850 = vmatpush.msra.mxu0 0.0
        %851 = vmatpush.msra.mxu0 0.0
        %852 = vmatpush.msra.mxu0 0.0
        %853 = vmatpush.msra.mxu0 0.0
        %854 = vmatpush.msra.mxu0 0.0
        %855 = vmatpush.msra.mxu0 0.0
        %856 = vmatpush.msra.mxu0 0.0
        %857 = vmatpush.msra.mxu0 0.0
        %858 = vmatpush.msra.mxu0 0.0
        %859 = vmatpush.msra.mxu0 0.0
        %860 = vmatpush.msra.mxu0 0.0
        %861 = vmatpush.msra.mxu0 0.0
        %862 = vmatpush.msra.mxu0 %v820
        %863 = vmatmul.f32.gmra.mxu0 %v825
        %v864 = vpop.f32.mrf.mxu0
        %v865 = vadd.f32 0.0, %v864
        %866 = vdwg.mxu0
        %867 = vmatpush.msra.mxu0 0.0
        %868 = vmatpush.msra.mxu0 0.0
        %869 = vmatpush.msra.mxu0 0.0
        %870 = vmatpush.msra.mxu0 0.0
        %871 = vmatpush.msra.mxu0 0.0
        %872 = vmatpush.msra.mxu0 0.0
        %873 = vmatpush.msra.mxu0 0.0
        %874 = vmatpush.msra.mxu0 0.0
        %875 = vmatpush.msra.mxu0 0.0
        %876 = vmatpush.msra.mxu0 0.0
        %877 = vmatpush.msra.mxu0 0.0
        %878 = vmatpush.msra.mxu0 0.0
        %879 = vmatpush.msra.mxu0 0.0
        %880 = vmatpush.msra.mxu0 0.0
        %881 = vmatpush.msra.mxu0 0.0
        %882 = vmatpush.msra.mxu0 %v817
        %883 = vmatmul.f32.gmra.mxu0 %v825
        %v884 = vpop.f32.mrf.mxu0
        %v885 = vadd.f32 0.0, %v884
        %886 = vdwg.mxu0
        %v887 = vadd.f32 %v807, %v845
        %v888 = vadd.f32 %v808, %v865
        %v889 = vadd.f32 %v809, %v885
        %s890 = scalar_lea.vmem %s363, 48
        %v891 = vld [vmem:[%s890] sm:$0xff]
        %892 = vrot.lane.b32.xlu0 %v422, 92
        %v893 = vpop.permute.xlu0 %892
        %894 = vrot.lane.b32.xlu0 %v423, 92
        %v895 = vpop.permute.xlu0 %894
        %896 = vrot.lane.b32.xlu0 %v424, 92
        %v897 = vpop.permute.xlu0 %896
        %vm898 = vcmask 752640
        %v899 = vsel %vm898, %v893, %v895
        %v900 = vsel %vm898, %v895, %v897
        %v905 = vsel %vm443, %v891, 0
        %907 = vmatpush.msra.mxu0 0.0
        %908 = vmatpush.msra.mxu0 0.0
        %909 = vmatpush.msra.mxu0 0.0
        %910 = vmatpush.msra.mxu0 0.0
        %911 = vmatpush.msra.mxu0 0.0
        %912 = vmatpush.msra.mxu0 0.0
        %913 = vmatpush.msra.mxu0 0.0
        %914 = vmatpush.msra.mxu0 0.0
        %915 = vmatpush.msra.mxu0 0.0
        %916 = vmatpush.msra.mxu0 0.0
        %917 = vmatpush.msra.mxu0 0.0
        %918 = vmatpush.msra.mxu0 0.0
        %919 = vmatpush.msra.mxu0 0.0
        %920 = vmatpush.msra.mxu0 0.0
        %921 = vmatpush.msra.mxu0 0.0
        %922 = vmatpush.msra.mxu0 %v899
        %923 = vmatmul.f32.gmra.mxu0 %v905
        %v924 = vpop.f32.mrf.mxu0
        %v925 = vadd.f32 0.0, %v924
        %926 = vdwg.mxu0
        %927 = vmatpush.msra.mxu0 0.0
        %928 = vmatpush.msra.mxu0 0.0
        %929 = vmatpush.msra.mxu0 0.0
        %930 = vmatpush.msra.mxu0 0.0
        %931 = vmatpush.msra.mxu0 0.0
        %932 = vmatpush.msra.mxu0 0.0
        %933 = vmatpush.msra.mxu0 0.0
        %934 = vmatpush.msra.mxu0 0.0
        %935 = vmatpush.msra.mxu0 0.0
        %936 = vmatpush.msra.mxu0 0.0
        %937 = vmatpush.msra.mxu0 0.0
        %938 = vmatpush.msra.mxu0 0.0
        %939 = vmatpush.msra.mxu0 0.0
        %940 = vmatpush.msra.mxu0 0.0
        %941 = vmatpush.msra.mxu0 0.0
        %942 = vmatpush.msra.mxu0 %v900
        %943 = vmatmul.f32.gmra.mxu0 %v905
        %v944 = vpop.f32.mrf.mxu0
        %v945 = vadd.f32 0.0, %v944
        %946 = vdwg.mxu0
        %947 = vmatpush.msra.mxu0 0.0
        %948 = vmatpush.msra.mxu0 0.0
        %949 = vmatpush.msra.mxu0 0.0
        %950 = vmatpush.msra.mxu0 0.0
        %951 = vmatpush.msra.mxu0 0.0
        %952 = vmatpush.msra.mxu0 0.0
        %953 = vmatpush.msra.mxu0 0.0
        %954 = vmatpush.msra.mxu0 0.0
        %955 = vmatpush.msra.mxu0 0.0
        %956 = vmatpush.msra.mxu0 0.0
        %957 = vmatpush.msra.mxu0 0.0
        %958 = vmatpush.msra.mxu0 0.0
        %959 = vmatpush.msra.mxu0 0.0
        %960 = vmatpush.msra.mxu0 0.0
        %961 = vmatpush.msra.mxu0 0.0
        %962 = vmatpush.msra.mxu0 %v897
        %963 = vmatmul.f32.gmra.mxu0 %v905
        %v964 = vpop.f32.mrf.mxu0
        %v965 = vadd.f32 0.0, %v964
        %966 = vdwg.mxu0
        %v967 = vadd.f32 %v887, %v925
        %v968 = vadd.f32 %v888, %v945
        %v969 = vadd.f32 %v889, %v965
        %s970 = scalar_lea.vmem %s363, 56
        %v971 = vld [vmem:[%s970] sm:$0xff]
        %972 = vrot.lane.b32.xlu0 %v422, 91
        %v973 = vpop.permute.xlu0 %972
        %974 = vrot.lane.b32.xlu0 %v423, 91
        %v975 = vpop.permute.xlu0 %974
        %976 = vrot.lane.b32.xlu0 %v424, 91
        %v977 = vpop.permute.xlu0 %976
        %vm978 = vcmask 744448
        %v979 = vsel %vm978, %v973, %v975
        %v980 = vsel %vm978, %v975, %v977
        %v985 = vsel %vm443, %v971, 0
        %987 = vmatpush.msra.mxu0 0.0
        %988 = vmatpush.msra.mxu0 0.0
        %989 = vmatpush.msra.mxu0 0.0
        %990 = vmatpush.msra.mxu0 0.0
        %991 = vmatpush.msra.mxu0 0.0
        %992 = vmatpush.msra.mxu0 0.0
        %993 = vmatpush.msra.mxu0 0.0
        %994 = vmatpush.msra.mxu0 0.0
        %995 = vmatpush.msra.mxu0 0.0
        %996 = vmatpush.msra.mxu0 0.0
        %997 = vmatpush.msra.mxu0 0.0
        %998 = vmatpush.msra.mxu0 0.0
        %999 = vmatpush.msra.mxu0 0.0
        %1000 = vmatpush.msra.mxu0 0.0
        %1001 = vmatpush.msra.mxu0 0.0
        %1002 = vmatpush.msra.mxu0 %v979
        %1003 = vmatmul.f32.gmra.mxu0 %v985
        %v1004 = vpop.f32.mrf.mxu0
        %v1005 = vadd.f32 0.0, %v1004
        %1006 = vdwg.mxu0
        %1007 = vmatpush.msra.mxu0 0.0
        %1008 = vmatpush.msra.mxu0 0.0
        %1009 = vmatpush.msra.mxu0 0.0
        %1010 = vmatpush.msra.mxu0 0.0
        %1011 = vmatpush.msra.mxu0 0.0
        %1012 = vmatpush.msra.mxu0 0.0
        %1013 = vmatpush.msra.mxu0 0.0
        %1014 = vmatpush.msra.mxu0 0.0
        %1015 = vmatpush.msra.mxu0 0.0
        %1016 = vmatpush.msra.mxu0 0.0
        %1017 = vmatpush.msra.mxu0 0.0
        %1018 = vmatpush.msra.mxu0 0.0
        %1019 = vmatpush.msra.mxu0 0.0
        %1020 = vmatpush.msra.mxu0 0.0
        %1021 = vmatpush.msra.mxu0 0.0
        %1022 = vmatpush.msra.mxu0 %v980
        %1023 = vmatmul.f32.gmra.mxu0 %v985
        %v1024 = vpop.f32.mrf.mxu0
        %v1025 = vadd.f32 0.0, %v1024
        %1026 = vdwg.mxu0
        %1027 = vmatpush.msra.mxu0 0.0
        %1028 = vmatpush.msra.mxu0 0.0
        %1029 = vmatpush.msra.mxu0 0.0
        %1030 = vmatpush.msra.mxu0 0.0
        %1031 = vmatpush.msra.mxu0 0.0
        %1032 = vmatpush.msra.mxu0 0.0
        %1033 = vmatpush.msra.mxu0 0.0
        %1034 = vmatpush.msra.mxu0 0.0
        %1035 = vmatpush.msra.mxu0 0.0
        %1036 = vmatpush.msra.mxu0 0.0
        %1037 = vmatpush.msra.mxu0 0.0
        %1038 = vmatpush.msra.mxu0 0.0
        %1039 = vmatpush.msra.mxu0 0.0
        %1040 = vmatpush.msra.mxu0 0.0
        %1041 = vmatpush.msra.mxu0 0.0
        %1042 = vmatpush.msra.mxu0 %v977
        %1043 = vmatmul.f32.gmra.mxu0 %v985
        %v1044 = vpop.f32.mrf.mxu0
        %v1045 = vadd.f32 0.0, %v1044
        %1046 = vdwg.mxu0
        %v1047 = vadd.f32 %v967, %v1005
        %v1048 = vadd.f32 %v968, %v1025
        %v1049 = vadd.f32 %v969, %v1045
        %s1050 = scalar_lea.vmem %s363, 64
        %v1051 = vld [vmem:[%s1050] sm:$0xff]
        %1052 = vrot.lane.b32.xlu0 %v422, 90
        %v1053 = vpop.permute.xlu0 %1052
        %1054 = vrot.lane.b32.xlu0 %v423, 90
        %v1055 = vpop.permute.xlu0 %1054
        %1056 = vrot.lane.b32.xlu0 %v424, 90
        %v1057 = vpop.permute.xlu0 %1056
        %vm1058 = vcmask 736256
        %v1059 = vsel %vm1058, %v1053, %v1055
        %v1060 = vsel %vm1058, %v1055, %v1057
        %v1065 = vsel %vm443, %v1051, 0
        %1067 = vmatpush.msra.mxu0 0.0
        %1068 = vmatpush.msra.mxu0 0.0
        %1069 = vmatpush.msra.mxu0 0.0
        %1070 = vmatpush.msra.mxu0 0.0
        %1071 = vmatpush.msra.mxu0 0.0
        %1072 = vmatpush.msra.mxu0 0.0
        %1073 = vmatpush.msra.mxu0 0.0
        %1074 = vmatpush.msra.mxu0 0.0
        %1075 = vmatpush.msra.mxu0 0.0
        %1076 = vmatpush.msra.mxu0 0.0
        %1077 = vmatpush.msra.mxu0 0.0
        %1078 = vmatpush.msra.mxu0 0.0
        %1079 = vmatpush.msra.mxu0 0.0
        %1080 = vmatpush.msra.mxu0 0.0
        %1081 = vmatpush.msra.mxu0 0.0
        %1082 = vmatpush.msra.mxu0 %v1059
        %1083 = vmatmul.f32.gmra.mxu0 %v1065
        %v1084 = vpop.f32.mrf.mxu0
        %v1085 = vadd.f32 0.0, %v1084
        %1086 = vdwg.mxu0
        %1087 = vmatpush.msra.mxu0 0.0
        %1088 = vmatpush.msra.mxu0 0.0
        %1089 = vmatpush.msra.mxu0 0.0
        %1090 = vmatpush.msra.mxu0 0.0
        %1091 = vmatpush.msra.mxu0 0.0
        %1092 = vmatpush.msra.mxu0 0.0
        %1093 = vmatpush.msra.mxu0 0.0
        %1094 = vmatpush.msra.mxu0 0.0
        %1095 = vmatpush.msra.mxu0 0.0
        %1096 = vmatpush.msra.mxu0 0.0
        %1097 = vmatpush.msra.mxu0 0.0
        %1098 = vmatpush.msra.mxu0 0.0
        %1099 = vmatpush.msra.mxu0 0.0
        %1100 = vmatpush.msra.mxu0 0.0
        %1101 = vmatpush.msra.mxu0 0.0
        %1102 = vmatpush.msra.mxu0 %v1060
        %1103 = vmatmul.f32.gmra.mxu0 %v1065
        %v1104 = vpop.f32.mrf.mxu0
        %v1105 = vadd.f32 0.0, %v1104
        %1106 = vdwg.mxu0
        %1107 = vmatpush.msra.mxu0 0.0
        %1108 = vmatpush.msra.mxu0 0.0
        %1109 = vmatpush.msra.mxu0 0.0
        %1110 = vmatpush.msra.mxu0 0.0
        %1111 = vmatpush.msra.mxu0 0.0
        %1112 = vmatpush.msra.mxu0 0.0
        %1113 = vmatpush.msra.mxu0 0.0
        %1114 = vmatpush.msra.mxu0 0.0
        %1115 = vmatpush.msra.mxu0 0.0
        %1116 = vmatpush.msra.mxu0 0.0
        %1117 = vmatpush.msra.mxu0 0.0
        %1118 = vmatpush.msra.mxu0 0.0
        %1119 = vmatpush.msra.mxu0 0.0
        %1120 = vmatpush.msra.mxu0 0.0
        %1121 = vmatpush.msra.mxu0 0.0
        %1122 = vmatpush.msra.mxu0 %v1057
        %1123 = vmatmul.f32.gmra.mxu0 %v1065
        %v1124 = vpop.f32.mrf.mxu0
        %v1125 = vadd.f32 0.0, %v1124
        %1126 = vdwg.mxu0
        %v1127 = vadd.f32 %v1047, %v1085
        %v1128 = vadd.f32 %v1048, %v1105
        %v1129 = vadd.f32 %v1049, %v1125
        %v1130 = vld [vmem:[#allocation2] sm:$0xff]
        %v1131 = vld [vmem:[#allocation2 + $0x8] sm:$0xff]
        %v1132 = vld [vmem:[#allocation2 + $0x10] sm:$0xff]
        %v1133 = vadd.f32 %v1130, %v1127
        %v1134 = vadd.f32 %v1131, %v1128
        %v1135 = vadd.f32 %v1132, %v1129
        %1136 = vst [vmem:[#allocation2] sm:$0xff] %v1133
        %1137 = vst [vmem:[#allocation2 + $0x8] sm:$0xff] %v1134
        %vm1138 = vcmask 261120
        %1139 = vst.msk [vmem:[#allocation2 + $0x10] sm:$0xff] %vm1138, %v1135
        %p1140 = scmp.eq.s32.totalorder %s23, 1
        // Predicated region
        $region83: #{forward.8} parent=73 // pred_check
          %p1141 = pneg %p1140
        $region84: #{forward.8} parent=73 // pred_check_branch
          %1143 = sbr.rel (%p1141) target = $region86
        $region85: #{forward.8} parent=73 // pred_region
          %v1144 = vld [vmem:[#allocation2] sm:$0xff]
          %v1145 = vld [vmem:[#allocation2 + $0x8] sm:$0xff]
          %v1146 = vld [vmem:[#allocation2 + $0x10] sm:$0xff]
          %1150 = vrot.lane.b32.xlu0 %v1144, 19
          %v1151 = vpop.permute.xlu0 %1150
          %1152 = vrot.lane.b32.xlu0 %v1145, 19
          %v1153 = vpop.permute.xlu0 %1152
          %1154 = vrot.lane.b32.xlu0 %v1146, 19
          %v1155 = vpop.permute.xlu0 %1154
          %vm1156 = vcmask 154624
          %v1157 = vsel %vm1156, %v1151, %v1153
          %v1158 = vsel %vm1156, %v1153, %v1155
          %v1162 = vsel %vm1156, 0.0, %v1151
          %vm1163 = vcmask 416768
          %v1164 = vsel %vm1163, %v1158, 0.0
          %v1165 = vld [vmem:[%s3] sm:$0xff]
          %1167 = vset.pattern.permute.xlu0 0
          %1168 = vperm.xlu0 %1167, %v1165
          %v1169 = vpop.permute.xlu0 %1168
          %v1171 = vadd.f32 %v1162, %v1169
          %v1172 = vadd.f32 %v1157, %v1169
          %v1173 = vadd.f32 %v1164, %v1169
          %v1174 = vld [vmem:[%s4] sm:$0x7]
          %v1176 = vperm.slane %v1174, 0
          %v1177 = vperm.slane %v1174, 1
          %v1178 = vperm.slane %v1174, 2
          %v1182 = vmul.f32 %v1171, %v1176
          %v1183 = vmul.f32 %v1172, %v1177
          %v1184 = vmul.f32 %v1173, %v1178
          %1185 = vst [vmem:[%s369] sm:$0xff] %v1182
          %1186 = vst [vmem:[%s369 + $0x8] sm:$0xff] %v1183
          %1187 = vst [vmem:[%s369 + $0x10] sm:$0xff] %v1184
          %v1188 = vadd.f32 %v1182, %v1183
          %v1189 = vadd.f32 %v1188, %v1184
          %1190 = vadd.xlane.f32.xlu0 %v1189
          %v1191 = vpop.xlane.xlu0 %1190
          %v1192 = vmul.f32 %v1182, %v1182
          %v1193 = vmul.f32 %v1183, %v1183
          %v1194 = vmul.f32 %v1184, %v1184
          %v1195 = vadd.f32 %v1192, %v1193
          %v1196 = vadd.f32 %v1195, %v1194
          %1197 = vadd.xlane.f32.xlu0 %v1196
          %v1198 = vpop.xlane.xlu0 %1197
          %vm1199 = vcmask 7168
          %v1200 = vsel %vm1199, %v1191, %v1198
          %vm1201 = vcmask 15360
          %1202 = vst.msk [vmem:[%s373] sm:$0xff] %vm1201, %v1200
        $region86: #{forward.8} parent=73 // pred_fallthru
          _
        %p1203 = scmp.lt.s32.totalorder %s22, 1
        %s1204 = scalar_select %p1203, %s22, 1
        %s1205 = smul.addr %s1204, 21
        %s1206 = sadd.s32 6, %s1205
        %s1207 = smul.addr %s1206, 8
        %s1208 = scalar_lea.vmem %s5, %s1207
        %p1209 = scmp.lt.s32.totalorder %s22, 1
        %s1210 = scalar_select %p1209, %s22, 1
        %s1211 = smul.addr %s1210, 8
        %s1212 = scalar_lea.vmem %s6, %s1211
        // Predicated region
        $region87: #{forward.8} parent=73 // pred_check
          %p1213 = pneg %p170
        $region88: #{forward.8} parent=73 // pred_check_branch
          %1215 = sbr.rel (%p1213) target = $region90
        $region89: #{forward.8} parent=73 // pred_region
          _
        $region90: #{forward.8} parent=73 // pred_fallthru
          _
        // Predicated region
        $region91: #{forward.8} parent=73 // pred_check
          %p1216 = pneg %p196
        $region92: #{forward.8} parent=73 // pred_check_branch
          %1218 = sbr.rel (%p1216) target = $region94
        $region93: #{forward.8} parent=73 // pred_region
          _
        $region94: #{forward.8} parent=73 // pred_fallthru
          _
      $region74: #{forward.8} parent=5 // pred_fallthru
        _
      %p1219 = scmp.le.s32.totalorder 2, %s13
      // Predicated region
      $region95: #{forward.8} parent=5 // pred_check
        %p1220 = pneg %p1219
      $region96: #{forward.8} parent=5 // pred_check_branch
        %1222 = sbr.rel (%p1220) target = $region98
      $region97: #{forward.8} parent=5 // pred_region
        %s1223 = ssub.s32 %s13, 2
        // Predicated region
        $region99: #{forward.8} parent=97 // pred_check
          %p1224 = pneg %p176
        $region100: #{forward.8} parent=97 // pred_check_branch
          %1226 = sbr.rel (%p1224) target = $region102
        $region101: #{forward.8} parent=97 // pred_region
          %p1227 = scmp.lt.s32.totalorder %s24, 1
          %s1228 = scalar_select %p1227, %s24, 1
          %s1229 = smul.addr %s1228, 21
          %s1230 = sadd.s32 6, %s1229
          %s1231 = smul.addr %s1230, 8
          %s1232 = scalar_lea.vmem %s5, %s1231
        $region102: #{forward.8} parent=97 // pred_fallthru
          _
        // Predicated region
        $region103: #{forward.8} parent=97 // pred_check
          %p1233 = pneg %p202
        $region104: #{forward.8} parent=97 // pred_check_branch
          %1235 = sbr.rel (%p1233) target = $region106
        $region105: #{forward.8} parent=97 // pred_region
          %p1236 = scmp.lt.s32.totalorder %s24, 1
          %s1237 = scalar_select %p1236, %s24, 1
          %s1238 = smul.addr %s1237, 8
          %s1239 = scalar_lea.vmem %s6, %s1238
        $region106: #{forward.8} parent=97 // pred_fallthru
          _
      $region98: #{forward.8} parent=5 // pred_fallthru
        _
    $region6: #{forward.8} parent=1 // loop_footer
      %s17 = sadd.s32 1, %s13
    $region7: #{forward.8} parent=1 // loop_footer_branch
      %12 = sbr.rel target = $region3
    $region8: #{forward.8} parent=1 // loop_exit
      _

// kernel: forward.7
$region0: #{forward.7}
  #allocation0 [shape = 'u32[]', space=smem, size = 0x4, offset = 0x4, fixed_abs, tag = 'smem constant byte address 0x4 - core index']
  #allocation1 [shape = 'u32[72,128]{1,0:T(1,128)}', space=vmem, size = 0x9000, scoped, tag = 'internal scratch']
  #allocation2 [shape = 'f32[8,288]{1,0:T(8,128)}', space=vmem, size = 0x3000, scoped, tag = 'scratch operand']
  %s0 = inlined_call_operand.vmem [shape: f32[2,56,384], index: 0, kind: input, shape index: {}, may-alias: {0,5}]
  %s1 = inlined_call_operand.vmem [shape: f32[1,9,8,8], index: 1, kind: input, shape index: {}]
  %s2 = inlined_call_operand.vmem [shape: f32[3,56,1], index: 2, kind: input, shape index: {}]
  %s3 = inlined_call_operand.vmem [shape: f32[8,1], index: 3, kind: input, shape index: {}]
  %s4 = inlined_call_operand.vmem [shape: f32[1,384], index: 4, kind: input, shape index: {}]
  %s5 = inlined_call_operand.vmem [shape: f32[2,56,384], index: 5, kind: output, shape index: {0}, may-alias: {0,5}]
  %s6 = inlined_call_operand.vmem [shape: f32[2,8,2], index: 6, kind: output, shape index: {1}]
  %7 = xla_tuple %s5, %s6
  %s8 = sld [smem:[#allocation0]]
  $region107: #{forward.7} parent=0
    _
  %s10 = ssub.s32 1, %s8
  %s11 = scalar_select 0, %s10, %s8
  $region1: #{forward.7} parent=0
    #allocation3 [shape = 'u8[12288]{0}', space=vmem, size = 0x3000, scoped, tag = 'input window, operand 2, single buffered']
    loop: start=0, step=1, limit=4
    $region2: #{forward.7} parent=1 // loop_pre_header
      _
    $region3: #{forward.7} parent=1 // loop_header
      %s13 = sphi 0, %s17
      %p14 = scmp.ge.s32.totalorder %s13, 4
      %s20 = sphi 0, %s32
      %s21 = sphi 0, %s28
      %s22 = sphi 0, %s20
      %s23 = sphi 0, %s21
      %s24 = sphi 0, %s22
      %s25 = sphi 0, %s23
      %s37 = sphi 0, %s39
      %s40 = sphi 0, %s37
      %s41 = sphi 0, %s40
      %s57 = sphi 0, %s41
      %s63 = sphi 0, %s65
      %s66 = sphi 0, %s63
      %s67 = sphi 0, %s66
      %s83 = sphi 0, %s67
      %s89 = sphi 0, %s91
      %s92 = sphi 0, %s89
      %s93 = sphi 0, %s92
      %s109 = sphi 0, %s93
      %s113 = sphi 0, %s113
      %s115 = sphi 0, %s113
      %s116 = sphi 0, %s115
      %s130 = sphi 0, %s116
      %s134 = sphi 0, %s134
      %s136 = sphi 0, %s134
      %s137 = sphi 0, %s136
      %s151 = sphi 0, %s137
      %s157 = sphi 0, %s159
      %s160 = sphi 0, %s157
      %s161 = sphi 0, %s160
      %s177 = sphi 0, %s161
      %s183 = sphi 0, %s185
      %s186 = sphi 0, %s183
      %s187 = sphi 0, %s186
      %s203 = sphi 0, %s187
    $region4: #{forward.7} parent=1 // loop_header_branch
      %16 = sbr.rel (%p14) target = $region8
    $region5: #{forward.7} parent=1 // loop_body
      %s18 = ssub.s32 %s13, 1
      %s19 = ssub.s32 %s13, 2
      %s26 = sadd.s32 1, %s21
      %p27 = scmp.ge.s32.totalorder %s26, 1
      %s28 = scalar_select %p27, 0, %s26
      %s29 = sadd.s32 1, %s20
      %s30 = scalar_select %p27, %s29, %s20
      %p31 = scmp.ge.s32.totalorder %s30, 2
      %s32 = scalar_select %p31, 0, %s30
      %s33 = ssub.s32 %s20, %s32
      %s34 = ssub.s32 %s21, %s28
      %s35 = sor.u32 %s33, %s34
      %p36 = scmp.eq.s32.totalorder %s35, 0
      %s38 = sadd.s32 %s37, 1
      %s39 = scalar_select %p36, %s37, %s38
      %p42 = pneg %p36
      %p43 = scmp.eq.s32.totalorder %s13, 1
      %p44 = por %p42, %p43
      %p45 = scmp.ne.s32.totalorder %s37, %s40
      %p46 = scmp.eq.s32.totalorder %s13, 0
      %p47 = por %p45, %p46
      %p48 = scmp.ne.s32.totalorder %s37, %s40
      %p49 = scmp.eq.s32.totalorder %s18, 1
      %p50 = por %p48, %p49
      %p51 = scmp.ne.s32.totalorder %s40, %s41
      %p52 = scmp.eq.s32.totalorder %s18, 0
      %p53 = por %p51, %p52
      %p54 = scmp.ne.s32.totalorder %s40, %s41
      %p55 = scmp.eq.s32.totalorder %s19, 1
      %p56 = por %p54, %p55
      %p58 = scmp.ne.s32.totalorder %s41, %s57
      %p59 = scmp.eq.s32.totalorder %s19, 0
      %p60 = por %p58, %p59
      %s61 = ssub.s32 %s21, %s28
      %p62 = scmp.eq.s32.totalorder %s61, 0
      %s64 = sadd.s32 %s63, 1
      %s65 = scalar_select %p62, %s63, %s64
      %p68 = pneg %p62
      %p69 = scmp.eq.s32.totalorder %s13, 1
      %p70 = por %p68, %p69
      %p71 = scmp.ne.s32.totalorder %s63, %s66
      %p72 = scmp.eq.s32.totalorder %s13, 0
      %p73 = por %p71, %p72
      %p74 = scmp.ne.s32.totalorder %s63, %s66
      %p75 = scmp.eq.s32.totalorder %s18, 1
      %p76 = por %p74, %p75
      %p77 = scmp.ne.s32.totalorder %s66, %s67
      %p78 = scmp.eq.s32.totalorder %s18, 0
      %p79 = por %p77, %p78
      %p80 = scmp.ne.s32.totalorder %s66, %s67
      %p81 = scmp.eq.s32.totalorder %s19, 1
      %p82 = por %p80, %p81
      %p84 = scmp.ne.s32.totalorder %s67, %s83
      %p85 = scmp.eq.s32.totalorder %s19, 0
      %p86 = por %p84, %p85
      %s87 = ssub.s32 %s21, %s28
      %p88 = scmp.eq.s32.totalorder %s87, 0
      %s90 = sadd.s32 %s89, 1
      %s91 = scalar_select %p88, %s89, %s90
      %p94 = pneg %p88
      %p95 = scmp.eq.s32.totalorder %s13, 1
      %p96 = por %p94, %p95
      %p97 = scmp.ne.s32.totalorder %s89, %s92
      %p98 = scmp.eq.s32.totalorder %s13, 0
      %p99 = por %p97, %p98
      %p100 = scmp.ne.s32.totalorder %s89, %s92
      %p101 = scmp.eq.s32.totalorder %s18, 1
      %p102 = por %p100, %p101
      %p103 = scmp.ne.s32.totalorder %s92, %s93
      %p104 = scmp.eq.s32.totalorder %s18, 0
      %p105 = por %p103, %p104
      %p106 = scmp.ne.s32.totalorder %s92, %s93
      %p107 = scmp.eq.s32.totalorder %s19, 1
      %p108 = por %p106, %p107
      %p110 = scmp.ne.s32.totalorder %s93, %s109
      %p111 = scmp.eq.s32.totalorder %s19, 0
      %p112 = por %p110, %p111
      %s114 = sadd.s32 %s113, 1
      %p117 = scmp.eq.s32.totalorder %s13, 1
      %p118 = scmp.ne.s32.totalorder %s113, %s115
      %p119 = scmp.eq.s32.totalorder %s13, 0
      %p120 = por %p118, %p119
      %p121 = scmp.ne.s32.totalorder %s113, %s115
      %p122 = scmp.eq.s32.totalorder %s18, 1
      %p123 = por %p121, %p122
      %p124 = scmp.ne.s32.totalorder %s115, %s116
      %p125 = scmp.eq.s32.totalorder %s18, 0
      %p126 = por %p124, %p125
      %p127 = scmp.ne.s32.totalorder %s115, %s116
      %p128 = scmp.eq.s32.totalorder %s19, 1
      %p129 = por %p127, %p128
      %p131 = scmp.ne.s32.totalorder %s116, %s130
      %p132 = scmp.eq.s32.totalorder %s19, 0
      %p133 = por %p131, %p132
      %s135 = sadd.s32 %s134, 1
      %p138 = scmp.eq.s32.totalorder %s13, 1
      %p139 = scmp.ne.s32.totalorder %s134, %s136
      %p140 = scmp.eq.s32.totalorder %s13, 0
      %p141 = por %p139, %p140
      %p142 = scmp.ne.s32.totalorder %s134, %s136
      %p143 = scmp.eq.s32.totalorder %s18, 1
      %p144 = por %p142, %p143
      %p145 = scmp.ne.s32.totalorder %s136, %s137
      %p146 = scmp.eq.s32.totalorder %s18, 0
      %p147 = por %p145, %p146
      %p148 = scmp.ne.s32.totalorder %s136, %s137
      %p149 = scmp.eq.s32.totalorder %s19, 1
      %p150 = por %p148, %p149
      %p152 = scmp.ne.s32.totalorder %s137, %s151
      %p153 = scmp.eq.s32.totalorder %s19, 0
      %p154 = por %p152, %p153
      %s155 = ssub.s32 %s20, %s32
      %p156 = scmp.eq.s32.totalorder %s155, 0
      %s158 = sadd.s32 %s157, 1
      %s159 = scalar_select %p156, %s157, %s158
      %p162 = pneg %p156
      %p163 = scmp.eq.s32.totalorder %s13, 1
      %p164 = por %p162, %p163
      %p165 = scmp.ne.s32.totalorder %s157, %s160
      %p166 = scmp.eq.s32.totalorder %s13, 0
      %p167 = por %p165, %p166
      %p168 = scmp.ne.s32.totalorder %s157, %s160
      %p169 = scmp.eq.s32.totalorder %s18, 1
      %p170 = por %p168, %p169
      %p171 = scmp.ne.s32.totalorder %s160, %s161
      %p172 = scmp.eq.s32.totalorder %s18, 0
      %p173 = por %p171, %p172
      %p174 = scmp.ne.s32.totalorder %s160, %s161
      %p175 = scmp.eq.s32.totalorder %s19, 1
      %p176 = por %p174, %p175
      %p178 = scmp.ne.s32.totalorder %s161, %s177
      %p179 = scmp.eq.s32.totalorder %s19, 0
      %p180 = por %p178, %p179
      %s181 = ssub.s32 %s20, %s32
      %p182 = scmp.eq.s32.totalorder %s181, 0
      %s184 = sadd.s32 %s183, 1
      %s185 = scalar_select %p182, %s183, %s184
      %p188 = pneg %p182
      %p189 = scmp.eq.s32.totalorder %s13, 1
      %p190 = por %p188, %p189
      %p191 = scmp.ne.s32.totalorder %s183, %s186
      %p192 = scmp.eq.s32.totalorder %s13, 0
      %p193 = por %p191, %p192
      %p194 = scmp.ne.s32.totalorder %s183, %s186
      %p195 = scmp.eq.s32.totalorder %s18, 1
      %p196 = por %p194, %p195
      %p197 = scmp.ne.s32.totalorder %s186, %s187
      %p198 = scmp.eq.s32.totalorder %s18, 0
      %p199 = por %p197, %p198
      %p200 = scmp.ne.s32.totalorder %s186, %s187
      %p201 = scmp.eq.s32.totalorder %s19, 1
      %p202 = por %p200, %p201
      %p204 = scmp.ne.s32.totalorder %s187, %s203
      %p205 = scmp.eq.s32.totalorder %s19, 0
      %p206 = por %p204, %p205
      %p207 = scmp.le.s32.totalorder 1, %s13
      %p208 = scmp.lt.s32.totalorder %s13, 3
      %p209 = pnand %p207, %p208
      %p210 = pneg %p209
      // Predicated region
      $region9: #{forward.7} parent=5 // pred_check
        _
      $region10: #{forward.7} parent=5 // pred_check_branch
        %212 = sbr.rel (%p209) target = $region12
      $region11: #{forward.7} parent=5 // pred_region
        %s213 = ssub.s32 %s13, 1
        // Predicated region
        $region13: #{forward.7} parent=11 // pred_check
          %p214 = pneg %p79
        $region14: #{forward.7} parent=11 // pred_check_branch
          %216 = sbr.rel (%p214) target = $region16
        $region15: #{forward.7} parent=11 // pred_region
          %p217 = scmp.lt.s32.totalorder %s23, 0
          %s218 = scalar_select %p217, %s23, 0
          %s219 = smul.addr %s218, 9
          %s220 = smul.addr %s219, 8
          %s221 = scalar_lea.vmem %s1, %s220
        $region16: #{forward.7} parent=11 // pred_fallthru
          _
        // Predicated region
        $region17: #{forward.7} parent=11 // pred_check
          %p222 = pneg %p105
        $region18: #{forward.7} parent=11 // pred_check_branch
          %224 = sbr.rel (%p222) target = $region20
        $region19: #{forward.7} parent=11 // pred_region
          %s225 = smul.addr %s23, 8
          %s226 = scalar_lea.vmem %s2, %s225
          // Predicated region
          $region21: #{forward.7} parent=19 // pred_check
            _
          $region22: #{forward.7} parent=19 // pred_check_branch
            %228 = sbr.rel (0) target = $region24
          $region23: #{forward.7} parent=19 // pred_region
            // Predicated region
            $region25: #{forward.7} parent=23 // pred_check
              _
            $region26: #{forward.7} parent=23 // pred_check_branch
              %230 = sbr.rel (0) target = $region28
            $region27: #{forward.7} parent=23 // pred_region
              // Predicated region
              $region40: #{forward.7} parent=27 // pred_check
                _
              $region41: #{forward.7} parent=27 // pred_check_branch
                %250 = sbr.rel (0) target = $region43
              $region42: #{forward.7} parent=27 // pred_region
                loop: start=0, step=1, limit=1
                $region44: #{forward.7} parent=42 // loop_pre_header
                  _
                $region45: #{forward.7} parent=42 // loop_header
                  %s252 = sphi 0, %s256
                  %p253 = scmp.ge.s32.totalorder %s252, 1
                  %s257 = sphi %s226, %s226
                  %s258 = sphi [#allocation3], [#allocation3]
                $region46: #{forward.7} parent=42 // loop_header_branch
                  %255 = sbr.rel (%p253) target = $region50
                $region47: #{forward.7} parent=42 // loop_body
                  %v259 = vld [vmem:[%s257] sm:$0xff]
                  %260 = vst [vmem:[%s258] sm:$0xff] %v259
                  %v261 = vld [vmem:[%s257 + $0x38] sm:$0xff]
                  %262 = vst [vmem:[%s258 + $0x8] sm:$0xff] %v261
                  %v263 = vld [vmem:[%s257 + $0x70] sm:$0xff]
                  %264 = vst [vmem:[%s258 + $0x10] sm:$0xff] %v263
                $region48: #{forward.7} parent=42 // loop_footer
                  %s256 = sadd.s32 1, %s252
                $region49: #{forward.7} parent=42 // loop_footer_branch
                  %251 = sbr.rel target = $region45
                $region50: #{forward.7} parent=42 // loop_exit
                  _
              $region43: #{forward.7} parent=27 // pred_fallthru
                _
              // Predicated region
              $region51: #{forward.7} parent=27 // pred_check
                _
              $region52: #{forward.7} parent=27 // pred_check_branch
                %266 = sbr.rel target = $region54
              $region53: #{forward.7} parent=27 // pred_region
                _
              $region54: #{forward.7} parent=27 // pred_fallthru
                _
            $region28: #{forward.7} parent=23 // pred_fallthru
              _
            // Predicated region
            $region29: #{forward.7} parent=23 // pred_check
              _
            $region30: #{forward.7} parent=23 // pred_check_branch
              %232 = sbr.rel target = $region32
            $region31: #{forward.7} parent=23 // pred_region
              %s234 = ssub.s32 256, 1
              loop: start=0, step=1, limit=1
              $region33: #{forward.7} parent=31 // loop_pre_header
                _
              $region34: #{forward.7} parent=31 // loop_header
                %s236 = sphi 0, %s240
                %p237 = scmp.ge.s32.totalorder %s236, 1
                %s241 = sphi %s226, %s226
                %s242 = sphi [#allocation3], [#allocation3]
              $region35: #{forward.7} parent=31 // loop_header_branch
                %239 = sbr.rel (%p237) target = $region39
              $region36: #{forward.7} parent=31 // loop_body
                %v243 = vld [vmem:[%s241] sm:%s234]
                %244 = vst [vmem:[%s242] sm:%s234] %v243
                %v245 = vld [vmem:[%s241 + $0x38] sm:%s234]
                %246 = vst [vmem:[%s242 + $0x8] sm:%s234] %v245
                %v247 = vld [vmem:[%s241 + $0x70] sm:%s234]
                %248 = vst [vmem:[%s242 + $0x10] sm:%s234] %v247
              $region37: #{forward.7} parent=31 // loop_footer
                %s240 = sadd.s32 1, %s236
              $region38: #{forward.7} parent=31 // loop_footer_branch
                %235 = sbr.rel target = $region34
              $region39: #{forward.7} parent=31 // loop_exit
                _
            $region32: #{forward.7} parent=23 // pred_fallthru
              _
          $region24: #{forward.7} parent=19 // pred_fallthru
            _
          %267 = vnop
        $region20: #{forward.7} parent=11 // pred_fallthru
          _
        // Predicated region
        $region55: #{forward.7} parent=11 // pred_check
          %p268 = pneg %p126
        $region56: #{forward.7} parent=11 // pred_check_branch
          %270 = sbr.rel (%p268) target = $region58
        $region57: #{forward.7} parent=11 // pred_region
          _
        $region58: #{forward.7} parent=11 // pred_fallthru
          _
        // Predicated region
        $region59: #{forward.7} parent=11 // pred_check
          %p271 = pneg %p147
        $region60: #{forward.7} parent=11 // pred_check_branch
          %273 = sbr.rel (%p271) target = $region62
        $region61: #{forward.7} parent=11 // pred_region
          _
        $region62: #{forward.7} parent=11 // pred_fallthru
          _
      $region12: #{forward.7} parent=5 // pred_fallthru
        _
      %p274 = scmp.lt.s32.totalorder %s13, 2
      // Predicated region
      $region63: #{forward.7} parent=5 // pred_check
        %p275 = pneg %p274
      $region64: #{forward.7} parent=5 // pred_check_branch
        %277 = sbr.rel (%p275) target = $region66
      $region65: #{forward.7} parent=5 // pred_region
        // Predicated region
        $region67: #{forward.7} parent=65 // pred_check
          %p278 = pneg %p47
        $region68: #{forward.7} parent=65 // pred_check_branch
          %280 = sbr.rel (%p278) target = $region70
        $region69: #{forward.7} parent=65 // pred_region
          %p281 = scmp.lt.s32.totalorder %s20, 1
          %s282 = scalar_select %p281, %s20, 1
          %p283 = scmp.lt.s32.totalorder %s21, 6
          %s284 = scalar_select %p283, %s21, 6
          %s285 = smul.addr %s284, 3
          %s286 = smul.addr %s282, 21
          %s287 = sadd.s32 %s285, %s286
          %s288 = smul.addr %s287, 8
          %s289 = scalar_lea.vmem %s0, %s288
        $region70: #{forward.7} parent=65 // pred_fallthru
          _
      $region66: #{forward.7} parent=5 // pred_fallthru
        _
      %p290 = scmp.le.s32.totalorder 1, %s13
      %p291 = scmp.lt.s32.totalorder %s13, 3
      %p292 = pnand %p290, %p291
      %p293 = pneg %p292
      // Predicated region
      $region71: #{forward.7} parent=5 // pred_check
        _
      $region72: #{forward.7} parent=5 // pred_check_branch
        %295 = sbr.rel (%p292) target = $region74
      $region73: #{forward.7} parent=5 // pred_region
        %s296 = ssub.s32 %s13, 1
        // Predicated region
        $region75: #{forward.7} parent=73 // pred_check
          %p297 = pneg %p105
        $region76: #{forward.7} parent=73 // pred_check_branch
          %299 = sbr.rel (%p297) target = $region78
        $region77: #{forward.7} parent=73 // pred_region
          _
        $region78: #{forward.7} parent=73 // pred_fallthru
          _
        %p300 = scmp.lt.s32.totalorder %s22, 1
        %s301 = scalar_select %p300, %s22, 1
        %p302 = scmp.lt.s32.totalorder %s23, 6
        %s303 = scalar_select %p302, %s23, 6
        %s304 = smul.addr %s303, 3
        %s305 = smul.addr %s301, 21
        %s306 = sadd.s32 %s304, %s305
        %s307 = smul.addr %s306, 8
        %s308 = scalar_lea.vmem %s0, %s307
        %p309 = pneg %p53
        %p310 = pneg %p50
        %p311 = scmp.lt.s32.totalorder %s23, 0
        %s312 = scalar_select %p311, %s23, 0
        %s313 = smul.addr %s312, 9
        %s314 = smul.addr %s313, 8
        %s315 = scalar_lea.vmem %s1, %s314
        %p316 = pneg %p79
        %p317 = pneg %p76
        %p318 = pneg %p105
        %p319 = pneg %p102
        %p320 = pneg %p126
        %p321 = pneg %p123
        %p322 = pneg %p147
        %p323 = pneg %p144
        %p324 = pneg %p173
        %p325 = pneg %p170
        %p326 = scmp.lt.s32.totalorder %s22, 1
        %s327 = scalar_select %p326, %s22, 1
        %s328 = smul.addr %s327, 21
        %s329 = sadd.s32 3, %s328
        %s330 = smul.addr %s329, 8
        %s331 = scalar_lea.vmem %s5, %s330
        %p332 = pneg %p199
        %p333 = pneg %p196
        %p334 = scmp.lt.s32.totalorder %s22, 1
        %s335 = scalar_select %p334, %s22, 1
        %s336 = smul.addr %s335, 8
        %s337 = scalar_lea.vmem %s6, %s336
        %p338 = scmp.lt.s32.totalorder %s22, 1
        %s339 = scalar_select %p338, %s22, 1
        %p340 = scmp.lt.s32.totalorder %s23, 6
        %s341 = scalar_select %p340, %s23, 6
        %s342 = smul.addr %s341, 3
        %s343 = smul.addr %s339, 21
        %s344 = sadd.s32 %s342, %s343
        %s345 = smul.addr %s344, 8
        %s346 = scalar_lea.vmem %s0, %s345
        %p347 = scmp.lt.s32.totalorder %s23, 0
        %s348 = scalar_select %p347, %s23, 0
        %s349 = smul.addr %s348, 9
        %s350 = smul.addr %s349, 8
        %s351 = scalar_lea.vmem %s1, %s350
        %p352 = scmp.lt.s32.totalorder %s22, 1
        %s353 = scalar_select %p352, %s22, 1
        %s354 = smul.addr %s353, 21
        %s355 = sadd.s32 3, %s354
        %s356 = smul.addr %s355, 8
        %s357 = scalar_lea.vmem %s5, %s356
        %p358 = scmp.lt.s32.totalorder %s22, 1
        %s359 = scalar_select %p358, %s22, 1
        %s360 = smul.addr %s359, 8
        %s361 = scalar_lea.vmem %s6, %s360
        %p362 = scmp.eq.s32.totalorder %s23, 0
        // Predicated region
        $region79: #{forward.7} parent=73 // pred_check
          %p363 = pneg %p362
        $region80: #{forward.7} parent=73 // pred_check_branch
          %365 = sbr.rel (%p363) target = $region82
        $region81: #{forward.7} parent=73 // pred_region
          %366 = vst [vmem:[#allocation2] sm:$0xff] 0.0
          %367 = vst [vmem:[#allocation2 + $0x8] sm:$0xff] 0.0
          %vm368 = vcmask 261120
          %369 = vst.msk [vmem:[#allocation2 + $0x10] sm:$0xff] %vm368, 0.0
        $region82: #{forward.7} parent=73 // pred_fallthru
          _
        %v370 = vld [vmem:[%s346] sm:$0xff]
        %v371 = vld [vmem:[%s346 + $0x8] sm:$0xff]
        %v372 = vld [vmem:[%s346 + $0x10] sm:$0xff]
        %v373 = vld [vmem:[#allocation3] sm:$0xff]
        %375 = vset.pattern.permute.xlu0 0
        %376 = vperm.xlu0 %375, %v373
        %v377 = vpop.permute.xlu0 %376
        %v379 = vmul.f32 %v370, %v377
        %v380 = vmul.f32 %v371, %v377
        %v381 = vmul.f32 %v372, %v377
        %s382 = scalar_lea.vmem [#allocation3], 8
        %v383 = vld [vmem:[%s382] sm:$0xff]
        %385 = vset.pattern.permute.xlu0 0
        %386 = vperm.xlu0 %385, %v383
        %v387 = vpop.permute.xlu0 %386
        %v389 = vadd.f32 %v379, %v387
        %v390 = vadd.f32 %v380, %v387
        %v391 = vadd.f32 %v381, %v387
        %s392 = scalar_lea.vmem [#allocation3], 16
        %v393 = vld [vmem:[%s392] sm:$0xff]
        %395 = vset.pattern.permute.xlu0 0
        %396 = vperm.xlu0 %395, %v393
        %v397 = vpop.permute.xlu0 %396
        %v399 = vmax.f32 %v389, %v397
        %v400 = vmax.f32 %v390, %v397
        %v401 = vmax.f32 %v391, %v397
        %v402 = vld [vmem:[%s4] sm:$0x7]
        %v404 = vperm.slane %v402, 0
        %v405 = vperm.slane %v402, 1
        %v406 = vperm.slane %v402, 2
        %v410 = vmul.f32 %v399, %v404
        %v411 = vmul.f32 %v400, %v405
        %v412 = vmul.f32 %v401, %v406
        %v413 = vld [vmem:[%s351] sm:$0xff]
        %s414 = scalar_lea.vmem %s351, 8
        %v415 = vld [vmem:[%s414] sm:$0xff]
        %419 = vrot.lane.b32.xlu0 %v410, 127
        %v420 = vpop.permute.xlu0 %419
        %421 = vrot.lane.b32.xlu0 %v411, 127
        %v422 = vpop.permute.xlu0 %421
        %423 = vrot.lane.b32.xlu0 %v412, 127
        %v424 = vpop.permute.xlu0 %423
        %vm425 = vcmask 1039360
        %v426 = vsel %vm425, %v420, %v422
        %v427 = vsel %vm425, %v422, %v424
        %vm431 = vcmask 64512
        %v433 = vsel %vm431, %v415, 0
        %435 = vmatpush.msra.mxu0 0.0
        %436 = vmatpush.msra.mxu0 0.0
        %437 = vmatpush.msra.mxu0 0.0
        %438 = vmatpush.msra.mxu0 0.0
        %439 = vmatpush.msra.mxu0 0.0
        %440 = vmatpush.msra.mxu0 0.0
        %441 = vmatpush.msra.mxu0 0.0
        %442 = vmatpush.msra.mxu0 0.0
        %443 = vmatpush.msra.mxu0 0.0
        %444 = vmatpush.msra.mxu0 0.0
        %445 = vmatpush.msra.mxu0 0.0
        %446 = vmatpush.msra.mxu0 0.0
        %447 = vmatpush.msra.mxu0 0.0
        %448 = vmatpush.msra.mxu0 0.0
        %449 = vmatpush.msra.mxu0 0.0
        %450 = vmatpush.msra.mxu0 %v426
        %451 = vmatmul.f32.gmra.mxu0 %v433
        %v452 = vpop.f32.mrf.mxu0
        %v453 = vadd.f32 0.0, %v452
        %454 = vdwg.mxu0
        %455 = vmatpush.msra.mxu0 0.0
        %456 = vmatpush.msra.mxu0 0.0
        %457 = vmatpush.msra.mxu0 0.0
        %458 = vmatpush.msra.mxu0 0.0
        %459 = vmatpush.msra.mxu0 0.0
        %460 = vmatpush.msra.mxu0 0.0
        %461 = vmatpush.msra.mxu0 0.0
        %462 = vmatpush.msra.mxu0 0.0
        %463 = vmatpush.msra.mxu0 0.0
        %464 = vmatpush.msra.mxu0 0.0
        %465 = vmatpush.msra.mxu0 0.0
        %466 = vmatpush.msra.mxu0 0.0
        %467 = vmatpush.msra.mxu0 0.0
        %468 = vmatpush.msra.mxu0 0.0
        %469 = vmatpush.msra.mxu0 0.0
        %470 = vmatpush.msra.mxu0 %v427
        %471 = vmatmul.f32.gmra.mxu0 %v433
        %v472 = vpop.f32.mrf.mxu0
        %v473 = vadd.f32 0.0, %v472
        %474 = vdwg.mxu0
        %475 = vmatpush.msra.mxu0 0.0
        %476 = vmatpush.msra.mxu0 0.0
        %477 = vmatpush.msra.mxu0 0.0
        %478 = vmatpush.msra.mxu0 0.0
        %479 = vmatpush.msra.mxu0 0.0
        %480 = vmatpush.msra.mxu0 0.0
        %481 = vmatpush.msra.mxu0 0.0
        %482 = vmatpush.msra.mxu0 0.0
        %483 = vmatpush.msra.mxu0 0.0
        %484 = vmatpush.msra.mxu0 0.0
        %485 = vmatpush.msra.mxu0 0.0
        %486 = vmatpush.msra.mxu0 0.0
        %487 = vmatpush.msra.mxu0 0.0
        %488 = vmatpush.msra.mxu0 0.0
        %489 = vmatpush.msra.mxu0 0.0
        %490 = vmatpush.msra.mxu0 %v424
        %491 = vmatmul.f32.gmra.mxu0 %v433
        %v492 = vpop.f32.mrf.mxu0
        %v493 = vadd.f32 0.0, %v492
        %494 = vdwg.mxu0
        %v496 = vsel %vm431, %v413, 0
        %498 = vmatpush.msra.mxu0 0.0
        %499 = vmatpush.msra.mxu0 0.0
        %500 = vmatpush.msra.mxu0 0.0
        %501 = vmatpush.msra.mxu0 0.0
        %502 = vmatpush.msra.mxu0 0.0
        %503 = vmatpush.msra.mxu0 0.0
        %504 = vmatpush.msra.mxu0 0.0
        %505 = vmatpush.msra.mxu0 0.0
        %506 = vmatpush.msra.mxu0 0.0
        %507 = vmatpush.msra.mxu0 0.0
        %508 = vmatpush.msra.mxu0 0.0
        %509 = vmatpush.msra.mxu0 0.0
        %510 = vmatpush.msra.mxu0 0.0
        %511 = vmatpush.msra.mxu0 0.0
        %512 = vmatpush.msra.mxu0 0.0
        %513 = vmatpush.msra.mxu0 %v410
        %514 = vmatmul.f32.gmra.mxu0 %v496
        %v515 = vpop.f32.mrf.mxu0
        %v516 = vadd.f32 %v453, %v515
        %517 = vdwg.mxu0
        %518 = vmatpush.msra.mxu0 0.0
        %519 = vmatpush.msra.mxu0 0.0
        %520 = vmatpush.msra.mxu0 0.0
        %521 = vmatpush.msra.mxu0 0.0
        %522 = vmatpush.msra.mxu0 0.0
        %523 = vmatpush.msra.mxu0 0.0
        %524 = vmatpush.msra.mxu0 0.0
        %525 = vmatpush.msra.mxu0 0.0
        %526 = vmatpush.msra.mxu0 0.0
        %527 = vmatpush.msra.mxu0 0.0
        %528 = vmatpush.msra.mxu0 0.0
        %529 = vmatpush.msra.mxu0 0.0
        %530 = vmatpush.msra.mxu0 0.0
        %531 = vmatpush.msra.mxu0 0.0
        %532 = vmatpush.msra.mxu0 0.0
        %533 = vmatpush.msra.mxu0 %v411
        %534 = vmatmul.f32.gmra.mxu0 %v496
        %v535 = vpop.f32.mrf.mxu0
        %v536 = vadd.f32 %v473, %v535
        %537 = vdwg.mxu0
        %538 = vmatpush.msra.mxu0 0.0
        %539 = vmatpush.msra.mxu0 0.0
        %540 = vmatpush.msra.mxu0 0.0
        %541 = vmatpush.msra.mxu0 0.0
        %542 = vmatpush.msra.mxu0 0.0
        %543 = vmatpush.msra.mxu0 0.0
        %544 = vmatpush.msra.mxu0 0.0
        %545 = vmatpush.msra.mxu0 0.0
        %546 = vmatpush.msra.mxu0 0.0
        %547 = vmatpush.msra.mxu0 0.0
        %548 = vmatpush.msra.mxu0 0.0
        %549 = vmatpush.msra.mxu0 0.0
        %550 = vmatpush.msra.mxu0 0.0
        %551 = vmatpush.msra.mxu0 0.0
        %552 = vmatpush.msra.mxu0 0.0
        %553 = vmatpush.msra.mxu0 %v412
        %554 = vmatmul.f32.gmra.mxu0 %v496
        %v555 = vpop.f32.mrf.mxu0
        %v556 = vadd.f32 %v493, %v555
        %557 = vdwg.mxu0
        %s558 = scalar_lea.vmem %s351, 16
        %v559 = vld [vmem:[%s558] sm:$0xff]
        %560 = vrot.lane.b32.xlu0 %v410, 126
        %v561 = vpop.permute.xlu0 %560
        %562 = vrot.lane.b32.xlu0 %v411, 126
        %v563 = vpop.permute.xlu0 %562
        %564 = vrot.lane.b32.xlu0 %v412, 126
        %v565 = vpop.permute.xlu0 %564
        %vm566 = vcmask 1031168
        %v567 = vsel %vm566, %v561, %v563
        %v568 = vsel %vm566, %v563, %v565
        %v573 = vsel %vm431, %v559, 0
        %575 = vmatpush.msra.mxu0 0.0
        %576 = vmatpush.msra.mxu0 0.0
        %577 = vmatpush.msra.mxu0 0.0
        %578 = vmatpush.msra.mxu0 0.0
        %579 = vmatpush.msra.mxu0 0.0
        %580 = vmatpush.msra.mxu0 0.0
        %581 = vmatpush.msra.mxu0 0.0
        %582 = vmatpush.msra.mxu0 0.0
        %583 = vmatpush.msra.mxu0 0.0
        %584 = vmatpush.msra.mxu0 0.0
        %585 = vmatpush.msra.mxu0 0.0
        %586 = vmatpush.msra.mxu0 0.0
        %587 = vmatpush.msra.mxu0 0.0
        %588 = vmatpush.msra.mxu0 0.0
        %589 = vmatpush.msra.mxu0 0.0
        %590 = vmatpush.msra.mxu0 %v567
        %591 = vmatmul.f32.gmra.mxu0 %v573
        %v592 = vpop.f32.mrf.mxu0
        %v593 = vadd.f32 0.0, %v592
        %594 = vdwg.mxu0
        %595 = vmatpush.msra.mxu0 0.0
        %596 = vmatpush.msra.mxu0 0.0
        %597 = vmatpush.msra.mxu0 0.0
        %598 = vmatpush.msra.mxu0 0.0
        %599 = vmatpush.msra.mxu0 0.0
        %600 = vmatpush.msra.mxu0 0.0
        %601 = vmatpush.msra.mxu0 0.0
        %602 = vmatpush.msra.mxu0 0.0
        %603 = vmatpush.msra.mxu0 0.0
        %604 = vmatpush.msra.mxu0 0.0
        %605 = vmatpush.msra.mxu0 0.0
        %606 = vmatpush.msra.mxu0 0.0
        %607 = vmatpush.msra.mxu0 0.0
        %608 = vmatpush.msra.mxu0 0.0
        %609 = vmatpush.msra.mxu0 0.0
        %610 = vmatpush.msra.mxu0 %v568
        %611 = vmatmul.f32.gmra.mxu0 %v573
        %v612 = vpop.f32.mrf.mxu0
        %v613 = vadd.f32 0.0, %v612
        %614 = vdwg.mxu0
        %615 = vmatpush.msra.mxu0 0.0
        %616 = vmatpush.msra.mxu0 0.0
        %617 = vmatpush.msra.mxu0 0.0
        %618 = vmatpush.msra.mxu0 0.0
        %619 = vmatpush.msra.mxu0 0.0
        %620 = vmatpush.msra.mxu0 0.0
        %621 = vmatpush.msra.mxu0 0.0
        %622 = vmatpush.msra.mxu0 0.0
        %623 = vmatpush.msra.mxu0 0.0
        %624 = vmatpush.msra.mxu0 0.0
        %625 = vmatpush.msra.mxu0 0.0
        %626 = vmatpush.msra.mxu0 0.0
        %627 = vmatpush.msra.mxu0 0.0
        %628 = vmatpush.msra.mxu0 0.0
        %629 = vmatpush.msra.mxu0 0.0
        %630 = vmatpush.msra.mxu0 %v565
        %631 = vmatmul.f32.gmra.mxu0 %v573
        %v632 = vpop.f32.mrf.mxu0
        %v633 = vadd.f32 0.0, %v632
        %634 = vdwg.mxu0
        %v635 = vadd.f32 %v516, %v593
        %v636 = vadd.f32 %v536, %v613
        %v637 = vadd.f32 %v556, %v633
        %s638 = scalar_lea.vmem %s351, 24
        %v639 = vld [vmem:[%s638] sm:$0xff]
        %640 = vrot.lane.b32.xlu0 %v410, 110
        %v641 = vpop.permute.xlu0 %640
        %642 = vrot.lane.b32.xlu0 %v411, 110
        %v643 = vpop.permute.xlu0 %642
        %644 = vrot.lane.b32.xlu0 %v412, 110
        %v645 = vpop.permute.xlu0 %644
        %vm646 = vcmask 900096
        %v647 = vsel %vm646, %v641, %v643
        %v648 = vsel %vm646, %v643, %v645
        %v653 = vsel %vm431, %v639, 0
        %655 = vmatpush.msra.mxu0 0.0
        %656 = vmatpush.msra.mxu0 0.0
        %657 = vmatpush.msra.mxu0 0.0
        %658 = vmatpush.msra.mxu0 0.0
        %659 = vmatpush.msra.mxu0 0.0
        %660 = vmatpush.msra.mxu0 0.0
        %661 = vmatpush.msra.mxu0 0.0
        %662 = vmatpush.msra.mxu0 0.0
        %663 = vmatpush.msra.mxu0 0.0
        %664 = vmatpush.msra.mxu0 0.0
        %665 = vmatpush.msra.mxu0 0.0
        %666 = vmatpush.msra.mxu0 0.0
        %667 = vmatpush.msra.mxu0 0.0
        %668 = vmatpush.msra.mxu0 0.0
        %669 = vmatpush.msra.mxu0 0.0
        %670 = vmatpush.msra.mxu0 %v647
        %671 = vmatmul.f32.gmra.mxu0 %v653
        %v672 = vpop.f32.mrf.mxu0
        %v673 = vadd.f32 0.0, %v672
        %674 = vdwg.mxu0
        %675 = vmatpush.msra.mxu0 0.0
        %676 = vmatpush.msra.mxu0 0.0
        %677 = vmatpush.msra.mxu0 0.0
        %678 = vmatpush.msra.mxu0 0.0
        %679 = vmatpush.msra.mxu0 0.0
        %680 = vmatpush.msra.mxu0 0.0
        %681 = vmatpush.msra.mxu0 0.0
        %682 = vmatpush.msra.mxu0 0.0
        %683 = vmatpush.msra.mxu0 0.0
        %684 = vmatpush.msra.mxu0 0.0
        %685 = vmatpush.msra.mxu0 0.0
        %686 = vmatpush.msra.mxu0 0.0
        %687 = vmatpush.msra.mxu0 0.0
        %688 = vmatpush.msra.mxu0 0.0
        %689 = vmatpush.msra.mxu0 0.0
        %690 = vmatpush.msra.mxu0 %v648
        %691 = vmatmul.f32.gmra.mxu0 %v653
        %v692 = vpop.f32.mrf.mxu0
        %v693 = vadd.f32 0.0, %v692
        %694 = vdwg.mxu0
        %695 = vmatpush.msra.mxu0 0.0
        %696 = vmatpush.msra.mxu0 0.0
        %697 = vmatpush.msra.mxu0 0.0
        %698 = vmatpush.msra.mxu0 0.0
        %699 = vmatpush.msra.mxu0 0.0
        %700 = vmatpush.msra.mxu0 0.0
        %701 = vmatpush.msra.mxu0 0.0
        %702 = vmatpush.msra.mxu0 0.0
        %703 = vmatpush.msra.mxu0 0.0
        %704 = vmatpush.msra.mxu0 0.0
        %705 = vmatpush.msra.mxu0 0.0
        %706 = vmatpush.msra.mxu0 0.0
        %707 = vmatpush.msra.mxu0 0.0
        %708 = vmatpush.msra.mxu0 0.0
        %709 = vmatpush.msra.mxu0 0.0
        %710 = vmatpush.msra.mxu0 %v645
        %711 = vmatmul.f32.gmra.mxu0 %v653
        %v712 = vpop.f32.mrf.mxu0
        %v713 = vadd.f32 0.0, %v712
        %714 = vdwg.mxu0
        %v715 = vadd.f32 %v635, %v673
        %v716 = vadd.f32 %v636, %v693
        %v717 = vadd.f32 %v637, %v713
        %s718 = scalar_lea.vmem %s351, 32
        %v719 = vld [vmem:[%s718] sm:$0xff]
        %720 = vrot.lane.b32.xlu0 %v410, 109
        %v721 = vpop.permute.xlu0 %720
        %722 = vrot.lane.b32.xlu0 %v411, 109
        %v723 = vpop.permute.xlu0 %722
        %724 = vrot.lane.b32.xlu0 %v412, 109
        %v725 = vpop.permute.xlu0 %724
        %vm726 = vcmask 891904
        %v727 = vsel %vm726, %v721, %v723
        %v728 = vsel %vm726, %v723, %v725
        %v733 = vsel %vm431, %v719, 0
        %735 = vmatpush.msra.mxu0 0.0
        %736 = vmatpush.msra.mxu0 0.0
        %737 = vmatpush.msra.mxu0 0.0
        %738 = vmatpush.msra.mxu0 0.0
        %739 = vmatpush.msra.mxu0 0.0
        %740 = vmatpush.msra.mxu0 0.0
        %741 = vmatpush.msra.mxu0 0.0
        %742 = vmatpush.msra.mxu0 0.0
        %743 = vmatpush.msra.mxu0 0.0
        %744 = vmatpush.msra.mxu0 0.0
        %745 = vmatpush.msra.mxu0 0.0
        %746 = vmatpush.msra.mxu0 0.0
        %747 = vmatpush.msra.mxu0 0.0
        %748 = vmatpush.msra.mxu0 0.0
        %749 = vmatpush.msra.mxu0 0.0
        %750 = vmatpush.msra.mxu0 %v727
        %751 = vmatmul.f32.gmra.mxu0 %v733
        %v752 = vpop.f32.mrf.mxu0
        %v753 = vadd.f32 0.0, %v752
        %754 = vdwg.mxu0
        %755 = vmatpush.msra.mxu0 0.0
        %756 = vmatpush.msra.mxu0 0.0
        %757 = vmatpush.msra.mxu0 0.0
        %758 = vmatpush.msra.mxu0 0.0
        %759 = vmatpush.msra.mxu0 0.0
        %760 = vmatpush.msra.mxu0 0.0
        %761 = vmatpush.msra.mxu0 0.0
        %762 = vmatpush.msra.mxu0 0.0
        %763 = vmatpush.msra.mxu0 0.0
        %764 = vmatpush.msra.mxu0 0.0
        %765 = vmatpush.msra.mxu0 0.0
        %766 = vmatpush.msra.mxu0 0.0
        %767 = vmatpush.msra.mxu0 0.0
        %768 = vmatpush.msra.mxu0 0.0
        %769 = vmatpush.msra.mxu0 0.0
        %770 = vmatpush.msra.mxu0 %v728
        %771 = vmatmul.f32.gmra.mxu0 %v733
        %v772 = vpop.f32.mrf.mxu0
        %v773 = vadd.f32 0.0, %v772
        %774 = vdwg.mxu0
        %775 = vmatpush.msra.mxu0 0.0
        %776 = vmatpush.msra.mxu0 0.0
        %777 = vmatpush.msra.mxu0 0.0
        %778 = vmatpush.msra.mxu0 0.0
        %779 = vmatpush.msra.mxu0 0.0
        %780 = vmatpush.msra.mxu0 0.0
        %781 = vmatpush.msra.mxu0 0.0
        %782 = vmatpush.msra.mxu0 0.0
        %783 = vmatpush.msra.mxu0 0.0
        %784 = vmatpush.msra.mxu0 0.0
        %785 = vmatpush.msra.mxu0 0.0
        %786 = vmatpush.msra.mxu0 0.0
        %787 = vmatpush.msra.mxu0 0.0
        %788 = vmatpush.msra.mxu0 0.0
        %789 = vmatpush.msra.mxu0 0.0
        %790 = vmatpush.msra.mxu0 %v725
        %791 = vmatmul.f32.gmra.mxu0 %v733
        %v792 = vpop.f32.mrf.mxu0
        %v793 = vadd.f32 0.0, %v792
        %794 = vdwg.mxu0
        %v795 = vadd.f32 %v715, %v753
        %v796 = vadd.f32 %v716, %v773
        %v797 = vadd.f32 %v717, %v793
        %s798 = scalar_lea.vmem %s351, 40
        %v799 = vld [vmem:[%s798] sm:$0xff]
        %800 = vrot.lane.b32.xlu0 %v410, 108
        %v801 = vpop.permute.xlu0 %800
        %802 = vrot.lane.b32.xlu0 %v411, 108
        %v803 = vpop.permute.xlu0 %802
        %804 = vrot.lane.b32.xlu0 %v412, 108
        %v805 = vpop.permute.xlu0 %804
        %vm806 = vcmask 883712
        %v807 = vsel %vm806, %v801, %v803
        %v808 = vsel %vm806, %v803, %v805
        %v813 = vsel %vm431, %v799, 0
        %815 = vmatpush.msra.mxu0 0.0
        %816 = vmatpush.msra.mxu0 0.0
        %817 = vmatpush.msra.mxu0 0.0
        %818 = vmatpush.msra.mxu0 0.0
        %819 = vmatpush.msra.mxu0 0.0
        %820 = vmatpush.msra.mxu0 0.0
        %821 = vmatpush.msra.mxu0 0.0
        %822 = vmatpush.msra.mxu0 0.0
        %823 = vmatpush.msra.mxu0 0.0
        %824 = vmatpush.msra.mxu0 0.0
        %825 = vmatpush.msra.mxu0 0.0
        %826 = vmatpush.msra.mxu0 0.0
        %827 = vmatpush.msra.mxu0 0.0
        %828 = vmatpush.msra.mxu0 0.0
        %829 = vmatpush.msra.mxu0 0.0
        %830 = vmatpush.msra.mxu0 %v807
        %831 = vmatmul.f32.gmra.mxu0 %v813
        %v832 = vpop.f32.mrf.mxu0
        %v833 = vadd.f32 0.0, %v832
        %834 = vdwg.mxu0
        %835 = vmatpush.msra.mxu0 0.0
        %836 = vmatpush.msra.mxu0 0.0
        %837 = vmatpush.msra.mxu0 0.0
        %838 = vmatpush.msra.mxu0 0.0
        %839 = vmatpush.msra.mxu0 0.0
        %840 = vmatpush.msra.mxu0 0.0
        %841 = vmatpush.msra.mxu0 0.0
        %842 = vmatpush.msra.mxu0 0.0
        %843 = vmatpush.msra.mxu0 0.0
        %844 = vmatpush.msra.mxu0 0.0
        %845 = vmatpush.msra.mxu0 0.0
        %846 = vmatpush.msra.mxu0 0.0
        %847 = vmatpush.msra.mxu0 0.0
        %848 = vmatpush.msra.mxu0 0.0
        %849 = vmatpush.msra.mxu0 0.0
        %850 = vmatpush.msra.mxu0 %v808
        %851 = vmatmul.f32.gmra.mxu0 %v813
        %v852 = vpop.f32.mrf.mxu0
        %v853 = vadd.f32 0.0, %v852
        %854 = vdwg.mxu0
        %855 = vmatpush.msra.mxu0 0.0
        %856 = vmatpush.msra.mxu0 0.0
        %857 = vmatpush.msra.mxu0 0.0
        %858 = vmatpush.msra.mxu0 0.0
        %859 = vmatpush.msra.mxu0 0.0
        %860 = vmatpush.msra.mxu0 0.0
        %861 = vmatpush.msra.mxu0 0.0
        %862 = vmatpush.msra.mxu0 0.0
        %863 = vmatpush.msra.mxu0 0.0
        %864 = vmatpush.msra.mxu0 0.0
        %865 = vmatpush.msra.mxu0 0.0
        %866 = vmatpush.msra.mxu0 0.0
        %867 = vmatpush.msra.mxu0 0.0
        %868 = vmatpush.msra.mxu0 0.0
        %869 = vmatpush.msra.mxu0 0.0
        %870 = vmatpush.msra.mxu0 %v805
        %871 = vmatmul.f32.gmra.mxu0 %v813
        %v872 = vpop.f32.mrf.mxu0
        %v873 = vadd.f32 0.0, %v872
        %874 = vdwg.mxu0
        %v875 = vadd.f32 %v795, %v833
        %v876 = vadd.f32 %v796, %v853
        %v877 = vadd.f32 %v797, %v873
        %s878 = scalar_lea.vmem %s351, 48
        %v879 = vld [vmem:[%s878] sm:$0xff]
        %880 = vrot.lane.b32.xlu0 %v410, 92
        %v881 = vpop.permute.xlu0 %880
        %882 = vrot.lane.b32.xlu0 %v411, 92
        %v883 = vpop.permute.xlu0 %882
        %884 = vrot.lane.b32.xlu0 %v412, 92
        %v885 = vpop.permute.xlu0 %884
        %vm886 = vcmask 752640
        %v887 = vsel %vm886, %v881, %v883
        %v888 = vsel %vm886, %v883, %v885
        %v893 = vsel %vm431, %v879, 0
        %895 = vmatpush.msra.mxu0 0.0
        %896 = vmatpush.msra.mxu0 0.0
        %897 = vmatpush.msra.mxu0 0.0
        %898 = vmatpush.msra.mxu0 0.0
        %899 = vmatpush.msra.mxu0 0.0
        %900 = vmatpush.msra.mxu0 0.0
        %901 = vmatpush.msra.mxu0 0.0
        %902 = vmatpush.msra.mxu0 0.0
        %903 = vmatpush.msra.mxu0 0.0
        %904 = vmatpush.msra.mxu0 0.0
        %905 = vmatpush.msra.mxu0 0.0
        %906 = vmatpush.msra.mxu0 0.0
        %907 = vmatpush.msra.mxu0 0.0
        %908 = vmatpush.msra.mxu0 0.0
        %909 = vmatpush.msra.mxu0 0.0
        %910 = vmatpush.msra.mxu0 %v887
        %911 = vmatmul.f32.gmra.mxu0 %v893
        %v912 = vpop.f32.mrf.mxu0
        %v913 = vadd.f32 0.0, %v912
        %914 = vdwg.mxu0
        %915 = vmatpush.msra.mxu0 0.0
        %916 = vmatpush.msra.mxu0 0.0
        %917 = vmatpush.msra.mxu0 0.0
        %918 = vmatpush.msra.mxu0 0.0
        %919 = vmatpush.msra.mxu0 0.0
        %920 = vmatpush.msra.mxu0 0.0
        %921 = vmatpush.msra.mxu0 0.0
        %922 = vmatpush.msra.mxu0 0.0
        %923 = vmatpush.msra.mxu0 0.0
        %924 = vmatpush.msra.mxu0 0.0
        %925 = vmatpush.msra.mxu0 0.0
        %926 = vmatpush.msra.mxu0 0.0
        %927 = vmatpush.msra.mxu0 0.0
        %928 = vmatpush.msra.mxu0 0.0
        %929 = vmatpush.msra.mxu0 0.0
        %930 = vmatpush.msra.mxu0 %v888
        %931 = vmatmul.f32.gmra.mxu0 %v893
        %v932 = vpop.f32.mrf.mxu0
        %v933 = vadd.f32 0.0, %v932
        %934 = vdwg.mxu0
        %935 = vmatpush.msra.mxu0 0.0
        %936 = vmatpush.msra.mxu0 0.0
        %937 = vmatpush.msra.mxu0 0.0
        %938 = vmatpush.msra.mxu0 0.0
        %939 = vmatpush.msra.mxu0 0.0
        %940 = vmatpush.msra.mxu0 0.0
        %941 = vmatpush.msra.mxu0 0.0
        %942 = vmatpush.msra.mxu0 0.0
        %943 = vmatpush.msra.mxu0 0.0
        %944 = vmatpush.msra.mxu0 0.0
        %945 = vmatpush.msra.mxu0 0.0
        %946 = vmatpush.msra.mxu0 0.0
        %947 = vmatpush.msra.mxu0 0.0
        %948 = vmatpush.msra.mxu0 0.0
        %949 = vmatpush.msra.mxu0 0.0
        %950 = vmatpush.msra.mxu0 %v885
        %951 = vmatmul.f32.gmra.mxu0 %v893
        %v952 = vpop.f32.mrf.mxu0
        %v953 = vadd.f32 0.0, %v952
        %954 = vdwg.mxu0
        %v955 = vadd.f32 %v875, %v913
        %v956 = vadd.f32 %v876, %v933
        %v957 = vadd.f32 %v877, %v953
        %s958 = scalar_lea.vmem %s351, 56
        %v959 = vld [vmem:[%s958] sm:$0xff]
        %960 = vrot.lane.b32.xlu0 %v410, 91
        %v961 = vpop.permute.xlu0 %960
        %962 = vrot.lane.b32.xlu0 %v411, 91
        %v963 = vpop.permute.xlu0 %962
        %964 = vrot.lane.b32.xlu0 %v412, 91
        %v965 = vpop.permute.xlu0 %964
        %vm966 = vcmask 744448
        %v967 = vsel %vm966, %v961, %v963
        %v968 = vsel %vm966, %v963, %v965
        %v973 = vsel %vm431, %v959, 0
        %975 = vmatpush.msra.mxu0 0.0
        %976 = vmatpush.msra.mxu0 0.0
        %977 = vmatpush.msra.mxu0 0.0
        %978 = vmatpush.msra.mxu0 0.0
        %979 = vmatpush.msra.mxu0 0.0
        %980 = vmatpush.msra.mxu0 0.0
        %981 = vmatpush.msra.mxu0 0.0
        %982 = vmatpush.msra.mxu0 0.0
        %983 = vmatpush.msra.mxu0 0.0
        %984 = vmatpush.msra.mxu0 0.0
        %985 = vmatpush.msra.mxu0 0.0
        %986 = vmatpush.msra.mxu0 0.0
        %987 = vmatpush.msra.mxu0 0.0
        %988 = vmatpush.msra.mxu0 0.0
        %989 = vmatpush.msra.mxu0 0.0
        %990 = vmatpush.msra.mxu0 %v967
        %991 = vmatmul.f32.gmra.mxu0 %v973
        %v992 = vpop.f32.mrf.mxu0
        %v993 = vadd.f32 0.0, %v992
        %994 = vdwg.mxu0
        %995 = vmatpush.msra.mxu0 0.0
        %996 = vmatpush.msra.mxu0 0.0
        %997 = vmatpush.msra.mxu0 0.0
        %998 = vmatpush.msra.mxu0 0.0
        %999 = vmatpush.msra.mxu0 0.0
        %1000 = vmatpush.msra.mxu0 0.0
        %1001 = vmatpush.msra.mxu0 0.0
        %1002 = vmatpush.msra.mxu0 0.0
        %1003 = vmatpush.msra.mxu0 0.0
        %1004 = vmatpush.msra.mxu0 0.0
        %1005 = vmatpush.msra.mxu0 0.0
        %1006 = vmatpush.msra.mxu0 0.0
        %1007 = vmatpush.msra.mxu0 0.0
        %1008 = vmatpush.msra.mxu0 0.0
        %1009 = vmatpush.msra.mxu0 0.0
        %1010 = vmatpush.msra.mxu0 %v968
        %1011 = vmatmul.f32.gmra.mxu0 %v973
        %v1012 = vpop.f32.mrf.mxu0
        %v1013 = vadd.f32 0.0, %v1012
        %1014 = vdwg.mxu0
        %1015 = vmatpush.msra.mxu0 0.0
        %1016 = vmatpush.msra.mxu0 0.0
        %1017 = vmatpush.msra.mxu0 0.0
        %1018 = vmatpush.msra.mxu0 0.0
        %1019 = vmatpush.msra.mxu0 0.0
        %1020 = vmatpush.msra.mxu0 0.0
        %1021 = vmatpush.msra.mxu0 0.0
        %1022 = vmatpush.msra.mxu0 0.0
        %1023 = vmatpush.msra.mxu0 0.0
        %1024 = vmatpush.msra.mxu0 0.0
        %1025 = vmatpush.msra.mxu0 0.0
        %1026 = vmatpush.msra.mxu0 0.0
        %1027 = vmatpush.msra.mxu0 0.0
        %1028 = vmatpush.msra.mxu0 0.0
        %1029 = vmatpush.msra.mxu0 0.0
        %1030 = vmatpush.msra.mxu0 %v965
        %1031 = vmatmul.f32.gmra.mxu0 %v973
        %v1032 = vpop.f32.mrf.mxu0
        %v1033 = vadd.f32 0.0, %v1032
        %1034 = vdwg.mxu0
        %v1035 = vadd.f32 %v955, %v993
        %v1036 = vadd.f32 %v956, %v1013
        %v1037 = vadd.f32 %v957, %v1033
        %s1038 = scalar_lea.vmem %s351, 64
        %v1039 = vld [vmem:[%s1038] sm:$0xff]
        %1040 = vrot.lane.b32.xlu0 %v410, 90
        %v1041 = vpop.permute.xlu0 %1040
        %1042 = vrot.lane.b32.xlu0 %v411, 90
        %v1043 = vpop.permute.xlu0 %1042
        %1044 = vrot.lane.b32.xlu0 %v412, 90
        %v1045 = vpop.permute.xlu0 %1044
        %vm1046 = vcmask 736256
        %v1047 = vsel %vm1046, %v1041, %v1043
        %v1048 = vsel %vm1046, %v1043, %v1045
        %v1053 = vsel %vm431, %v1039, 0
        %1055 = vmatpush.msra.mxu0 0.0
        %1056 = vmatpush.msra.mxu0 0.0
        %1057 = vmatpush.msra.mxu0 0.0
        %1058 = vmatpush.msra.mxu0 0.0
        %1059 = vmatpush.msra.mxu0 0.0
        %1060 = vmatpush.msra.mxu0 0.0
        %1061 = vmatpush.msra.mxu0 0.0
        %1062 = vmatpush.msra.mxu0 0.0
        %1063 = vmatpush.msra.mxu0 0.0
        %1064 = vmatpush.msra.mxu0 0.0
        %1065 = vmatpush.msra.mxu0 0.0
        %1066 = vmatpush.msra.mxu0 0.0
        %1067 = vmatpush.msra.mxu0 0.0
        %1068 = vmatpush.msra.mxu0 0.0
        %1069 = vmatpush.msra.mxu0 0.0
        %1070 = vmatpush.msra.mxu0 %v1047
        %1071 = vmatmul.f32.gmra.mxu0 %v1053
        %v1072 = vpop.f32.mrf.mxu0
        %v1073 = vadd.f32 0.0, %v1072
        %1074 = vdwg.mxu0
        %1075 = vmatpush.msra.mxu0 0.0
        %1076 = vmatpush.msra.mxu0 0.0
        %1077 = vmatpush.msra.mxu0 0.0
        %1078 = vmatpush.msra.mxu0 0.0
        %1079 = vmatpush.msra.mxu0 0.0
        %1080 = vmatpush.msra.mxu0 0.0
        %1081 = vmatpush.msra.mxu0 0.0
        %1082 = vmatpush.msra.mxu0 0.0
        %1083 = vmatpush.msra.mxu0 0.0
        %1084 = vmatpush.msra.mxu0 0.0
        %1085 = vmatpush.msra.mxu0 0.0
        %1086 = vmatpush.msra.mxu0 0.0
        %1087 = vmatpush.msra.mxu0 0.0
        %1088 = vmatpush.msra.mxu0 0.0
        %1089 = vmatpush.msra.mxu0 0.0
        %1090 = vmatpush.msra.mxu0 %v1048
        %1091 = vmatmul.f32.gmra.mxu0 %v1053
        %v1092 = vpop.f32.mrf.mxu0
        %v1093 = vadd.f32 0.0, %v1092
        %1094 = vdwg.mxu0
        %1095 = vmatpush.msra.mxu0 0.0
        %1096 = vmatpush.msra.mxu0 0.0
        %1097 = vmatpush.msra.mxu0 0.0
        %1098 = vmatpush.msra.mxu0 0.0
        %1099 = vmatpush.msra.mxu0 0.0
        %1100 = vmatpush.msra.mxu0 0.0
        %1101 = vmatpush.msra.mxu0 0.0
        %1102 = vmatpush.msra.mxu0 0.0
        %1103 = vmatpush.msra.mxu0 0.0
        %1104 = vmatpush.msra.mxu0 0.0
        %1105 = vmatpush.msra.mxu0 0.0
        %1106 = vmatpush.msra.mxu0 0.0
        %1107 = vmatpush.msra.mxu0 0.0
        %1108 = vmatpush.msra.mxu0 0.0
        %1109 = vmatpush.msra.mxu0 0.0
        %1110 = vmatpush.msra.mxu0 %v1045
        %1111 = vmatmul.f32.gmra.mxu0 %v1053
        %v1112 = vpop.f32.mrf.mxu0
        %v1113 = vadd.f32 0.0, %v1112
        %1114 = vdwg.mxu0
        %v1115 = vadd.f32 %v1035, %v1073
        %v1116 = vadd.f32 %v1036, %v1093
        %v1117 = vadd.f32 %v1037, %v1113
        %v1118 = vld [vmem:[#allocation2] sm:$0xff]
        %v1119 = vld [vmem:[#allocation2 + $0x8] sm:$0xff]
        %v1120 = vld [vmem:[#allocation2 + $0x10] sm:$0xff]
        %v1121 = vadd.f32 %v1118, %v1115
        %v1122 = vadd.f32 %v1119, %v1116
        %v1123 = vadd.f32 %v1120, %v1117
        %1124 = vst [vmem:[#allocation2] sm:$0xff] %v1121
        %1125 = vst [vmem:[#allocation2 + $0x8] sm:$0xff] %v1122
        %vm1126 = vcmask 261120
        %1127 = vst.msk [vmem:[#allocation2 + $0x10] sm:$0xff] %vm1126, %v1123
        // Predicated region
        $region83: #{forward.7} parent=73 // pred_check
          %p1128 = pneg %p362
        $region84: #{forward.7} parent=73 // pred_check_branch
          %1130 = sbr.rel (%p1128) target = $region86
        $region85: #{forward.7} parent=73 // pred_region
          %v1131 = vld [vmem:[#allocation2] sm:$0xff]
          %v1132 = vld [vmem:[#allocation2 + $0x8] sm:$0xff]
          %v1133 = vld [vmem:[#allocation2 + $0x10] sm:$0xff]
          %1137 = vrot.lane.b32.xlu0 %v1131, 19
          %v1138 = vpop.permute.xlu0 %1137
          %1139 = vrot.lane.b32.xlu0 %v1132, 19
          %v1140 = vpop.permute.xlu0 %1139
          %1141 = vrot.lane.b32.xlu0 %v1133, 19
          %v1142 = vpop.permute.xlu0 %1141
          %vm1143 = vcmask 154624
          %v1144 = vsel %vm1143, %v1138, %v1140
          %v1145 = vsel %vm1143, %v1140, %v1142
          %v1149 = vsel %vm1143, 0.0, %v1138
          %vm1150 = vcmask 416768
          %v1151 = vsel %vm1150, %v1145, 0.0
          %v1152 = vld [vmem:[%s3] sm:$0xff]
          %1154 = vset.pattern.permute.xlu0 0
          %1155 = vperm.xlu0 %1154, %v1152
          %v1156 = vpop.permute.xlu0 %1155
          %v1158 = vadd.f32 %v1149, %v1156
          %v1159 = vadd.f32 %v1144, %v1156
          %v1160 = vadd.f32 %v1151, %v1156
          %v1161 = vld [vmem:[%s4] sm:$0x7]
          %v1163 = vperm.slane %v1161, 0
          %v1164 = vperm.slane %v1161, 1
          %v1165 = vperm.slane %v1161, 2
          %v1169 = vmul.f32 %v1158, %v1163
          %v1170 = vmul.f32 %v1159, %v1164
          %v1171 = vmul.f32 %v1160, %v1165
          %1172 = vst [vmem:[%s357] sm:$0xff] %v1169
          %1173 = vst [vmem:[%s357 + $0x8] sm:$0xff] %v1170
          %1174 = vst [vmem:[%s357 + $0x10] sm:$0xff] %v1171
          %v1175 = vadd.f32 %v1169, %v1170
          %v1176 = vadd.f32 %v1175, %v1171
          %1177 = vadd.xlane.f32.xlu0 %v1176
          %v1178 = vpop.xlane.xlu0 %1177
          %v1179 = vmul.f32 %v1169, %v1169
          %v1180 = vmul.f32 %v1170, %v1170
          %v1181 = vmul.f32 %v1171, %v1171
          %v1182 = vadd.f32 %v1179, %v1180
          %v1183 = vadd.f32 %v1182, %v1181
          %1184 = vadd.xlane.f32.xlu0 %v1183
          %v1185 = vpop.xlane.xlu0 %1184
          %vm1186 = vcmask 7168
          %v1187 = vsel %vm1186, %v1178, %v1185
          %vm1188 = vcmask 15360
          %1189 = vst.msk [vmem:[%s361] sm:$0xff] %vm1188, %v1187
        $region86: #{forward.7} parent=73 // pred_fallthru
          _
        %p1190 = scmp.lt.s32.totalorder %s22, 1
        %s1191 = scalar_select %p1190, %s22, 1
        %s1192 = smul.addr %s1191, 21
        %s1193 = sadd.s32 3, %s1192
        %s1194 = smul.addr %s1193, 8
        %s1195 = scalar_lea.vmem %s5, %s1194
        %p1196 = scmp.lt.s32.totalorder %s22, 1
        %s1197 = scalar_select %p1196, %s22, 1
        %s1198 = smul.addr %s1197, 8
        %s1199 = scalar_lea.vmem %s6, %s1198
        // Predicated region
        $region87: #{forward.7} parent=73 // pred_check
          %p1200 = pneg %p170
        $region88: #{forward.7} parent=73 // pred_check_branch
          %1202 = sbr.rel (%p1200) target = $region90
        $region89: #{forward.7} parent=73 // pred_region
          _
        $region90: #{forward.7} parent=73 // pred_fallthru
          _
        // Predicated region
        $region91: #{forward.7} parent=73 // pred_check
          %p1203 = pneg %p196
        $region92: #{forward.7} parent=73 // pred_check_branch
          %1205 = sbr.rel (%p1203) target = $region94
        $region93: #{forward.7} parent=73 // pred_region
          _
        $region94: #{forward.7} parent=73 // pred_fallthru
          _
      $region74: #{forward.7} parent=5 // pred_fallthru
        _
      %p1206 = scmp.le.s32.totalorder 2, %s13
      // Predicated region
      $region95: #{forward.7} parent=5 // pred_check
        %p1207 = pneg %p1206
      $region96: #{forward.7} parent=5 // pred_check_branch
        %1209 = sbr.rel (%p1207) target = $region98
      $region97: #{forward.7} parent=5 // pred_region
        %s1210 = ssub.s32 %s13, 2
        // Predicated region
        $region99: #{forward.7} parent=97 // pred_check
          %p1211 = pneg %p176
        $region100: #{forward.7} parent=97 // pred_check_branch
          %1213 = sbr.rel (%p1211) target = $region102
        $region101: #{forward.7} parent=97 // pred_region
          %p1214 = scmp.lt.s32.totalorder %s24, 1
          %s1215 = scalar_select %p1214, %s24, 1
          %s1216 = smul.addr %s1215, 21
          %s1217 = sadd.s32 3, %s1216
          %s1218 = smul.addr %s1217, 8
          %s1219 = scalar_lea.vmem %s5, %s1218
        $region102: #{forward.7} parent=97 // pred_fallthru
          _
        // Predicated region
        $region103: #{forward.7} parent=97 // pred_check
          %p1220 = pneg %p202
        $region104: #{forward.7} parent=97 // pred_check_branch
          %1222 = sbr.rel (%p1220) target = $region106
        $region105: #{forward.7} parent=97 // pred_region
          %p1223 = scmp.lt.s32.totalorder %s24, 1
          %s1224 = scalar_select %p1223, %s24, 1
          %s1225 = smul.addr %s1224, 8
          %s1226 = scalar_lea.vmem %s6, %s1225
        $region106: #{forward.7} parent=97 // pred_fallthru
          _
      $region98: #{forward.7} parent=5 // pred_fallthru
        _
    $region6: #{forward.7} parent=1 // loop_footer
      %s17 = sadd.s32 1, %s13
    $region7: #{forward.7} parent=1 // loop_footer_branch
      %12 = sbr.rel target = $region3
    $region8: #{forward.7} parent=1 // loop_exit
      _

// kernel: forward.9
$region0: #{forward.9}
  #allocation0 [shape = 'u32[]', space=smem, size = 0x4, offset = 0x4, fixed_abs, tag = 'smem constant byte address 0x4 - core index']
  #allocation1 [shape = 'u32[72,128]{1,0:T(1,128)}', space=vmem, size = 0x9000, scoped, tag = 'internal scratch']
  #allocation2 [shape = 'f32[8,288]{1,0:T(8,128)}', space=vmem, size = 0x3000, scoped, tag = 'scratch operand']
  %s0 = inlined_call_operand.vmem [shape: f32[2,56,384], index: 0, kind: input, shape index: {}, may-alias: {0,5}]
  %s1 = inlined_call_operand.vmem [shape: f32[3,9,8,8], index: 1, kind: input, shape index: {}]
  %s2 = inlined_call_operand.vmem [shape: f32[3,56,1], index: 2, kind: input, shape index: {}]
  %s3 = inlined_call_operand.vmem [shape: f32[8,1], index: 3, kind: input, shape index: {}]
  %s4 = inlined_call_operand.vmem [shape: f32[1,384], index: 4, kind: input, shape index: {}]
  %s5 = inlined_call_operand.vmem [shape: f32[2,56,384], index: 5, kind: output, shape index: {0}, may-alias: {0,5}]
  %s6 = inlined_call_operand.vmem [shape: f32[2,8,2], index: 6, kind: output, shape index: {1}]
  %7 = xla_tuple %s5, %s6
  %s8 = sld [smem:[#allocation0]]
  $region107: #{forward.9} parent=0
    _
  %s10 = ssub.s32 1, %s8
  %s11 = scalar_select 0, %s10, %s8
  $region1: #{forward.9} parent=0
    #allocation3 [shape = 'u8[24576]{0}', space=vmem, size = 0x6000, scoped, tag = 'input window, operand 2']
    loop: start=0, step=1, limit=8
    $region2: #{forward.9} parent=1 // loop_pre_header
      _
    $region3: #{forward.9} parent=1 // loop_header
      %s13 = sphi 0, %s17
      %p14 = scmp.ge.s32.totalorder %s13, 8
      %s20 = sphi 0, %s32
      %s21 = sphi 0, %s28
      %s22 = sphi 0, %s20
      %s23 = sphi 0, %s21
      %s24 = sphi 0, %s22
      %s25 = sphi 0, %s23
      %s37 = sphi 0, %s39
      %s40 = sphi 0, %s37
      %s41 = sphi 0, %s40
      %s57 = sphi 0, %s41
      %s63 = sphi 0, %s65
      %s66 = sphi 0, %s63
      %s67 = sphi 0, %s66
      %s83 = sphi 0, %s67
      %s89 = sphi 0, %s91
      %s92 = sphi 0, %s89
      %s93 = sphi 0, %s92
      %s109 = sphi 0, %s93
      %s113 = sphi 0, %s113
      %s115 = sphi 0, %s113
      %s116 = sphi 0, %s115
      %s130 = sphi 0, %s116
      %s134 = sphi 0, %s134
      %s136 = sphi 0, %s134
      %s137 = sphi 0, %s136
      %s151 = sphi 0, %s137
      %s157 = sphi 0, %s159
      %s160 = sphi 0, %s157
      %s161 = sphi 0, %s160
      %s177 = sphi 0, %s161
      %s183 = sphi 0, %s185
      %s186 = sphi 0, %s183
      %s187 = sphi 0, %s186
      %s203 = sphi 0, %s187
    $region4: #{forward.9} parent=1 // loop_header_branch
      %16 = sbr.rel (%p14) target = $region8
    $region5: #{forward.9} parent=1 // loop_body
      %s18 = ssub.s32 %s13, 1
      %s19 = ssub.s32 %s13, 2
      %s26 = sadd.s32 1, %s21
      %p27 = scmp.ge.s32.totalorder %s26, 3
      %s28 = scalar_select %p27, 0, %s26
      %s29 = sadd.s32 1, %s20
      %s30 = scalar_select %p27, %s29, %s20
      %p31 = scmp.ge.s32.totalorder %s30, 2
      %s32 = scalar_select %p31, 0, %s30
      %s33 = ssub.s32 %s20, %s32
      %s34 = ssub.s32 %s21, %s28
      %s35 = sor.u32 %s33, %s34
      %p36 = scmp.eq.s32.totalorder %s35, 0
      %s38 = sadd.s32 %s37, 1
      %s39 = scalar_select %p36, %s37, %s38
      %p42 = pneg %p36
      %p43 = scmp.eq.s32.totalorder %s13, 5
      %p44 = por %p42, %p43
      %p45 = scmp.ne.s32.totalorder %s37, %s40
      %p46 = scmp.eq.s32.totalorder %s13, 0
      %p47 = por %p45, %p46
      %p48 = scmp.ne.s32.totalorder %s37, %s40
      %p49 = scmp.eq.s32.totalorder %s18, 5
      %p50 = por %p48, %p49
      %p51 = scmp.ne.s32.totalorder %s40, %s41
      %p52 = scmp.eq.s32.totalorder %s18, 0
      %p53 = por %p51, %p52
      %p54 = scmp.ne.s32.totalorder %s40, %s41
      %p55 = scmp.eq.s32.totalorder %s19, 5
      %p56 = por %p54, %p55
      %p58 = scmp.ne.s32.totalorder %s41, %s57
      %p59 = scmp.eq.s32.totalorder %s19, 0
      %p60 = por %p58, %p59
      %s61 = ssub.s32 %s21, %s28
      %p62 = scmp.eq.s32.totalorder %s61, 0
      %s64 = sadd.s32 %s63, 1
      %s65 = scalar_select %p62, %s63, %s64
      %p68 = pneg %p62
      %p69 = scmp.eq.s32.totalorder %s13, 5
      %p70 = por %p68, %p69
      %p71 = scmp.ne.s32.totalorder %s63, %s66
      %p72 = scmp.eq.s32.totalorder %s13, 0
      %p73 = por %p71, %p72
      %p74 = scmp.ne.s32.totalorder %s63, %s66
      %p75 = scmp.eq.s32.totalorder %s18, 5
      %p76 = por %p74, %p75
      %p77 = scmp.ne.s32.totalorder %s66, %s67
      %p78 = scmp.eq.s32.totalorder %s18, 0
      %p79 = por %p77, %p78
      %p80 = scmp.ne.s32.totalorder %s66, %s67
      %p81 = scmp.eq.s32.totalorder %s19, 5
      %p82 = por %p80, %p81
      %p84 = scmp.ne.s32.totalorder %s67, %s83
      %p85 = scmp.eq.s32.totalorder %s19, 0
      %p86 = por %p84, %p85
      %s87 = ssub.s32 %s21, %s28
      %p88 = scmp.eq.s32.totalorder %s87, 0
      %s90 = sadd.s32 %s89, 1
      %s91 = scalar_select %p88, %s89, %s90
      %p94 = pneg %p88
      %p95 = scmp.eq.s32.totalorder %s13, 5
      %p96 = por %p94, %p95
      %p97 = scmp.ne.s32.totalorder %s89, %s92
      %p98 = scmp.eq.s32.totalorder %s13, 0
      %p99 = por %p97, %p98
      %p100 = scmp.ne.s32.totalorder %s89, %s92
      %p101 = scmp.eq.s32.totalorder %s18, 5
      %p102 = por %p100, %p101
      %p103 = scmp.ne.s32.totalorder %s92, %s93
      %p104 = scmp.eq.s32.totalorder %s18, 0
      %p105 = por %p103, %p104
      %p106 = scmp.ne.s32.totalorder %s92, %s93
      %p107 = scmp.eq.s32.totalorder %s19, 5
      %p108 = por %p106, %p107
      %p110 = scmp.ne.s32.totalorder %s93, %s109
      %p111 = scmp.eq.s32.totalorder %s19, 0
      %p112 = por %p110, %p111
      %s114 = sadd.s32 %s113, 1
      %p117 = scmp.eq.s32.totalorder %s13, 5
      %p118 = scmp.ne.s32.totalorder %s113, %s115
      %p119 = scmp.eq.s32.totalorder %s13, 0
      %p120 = por %p118, %p119
      %p121 = scmp.ne.s32.totalorder %s113, %s115
      %p122 = scmp.eq.s32.totalorder %s18, 5
      %p123 = por %p121, %p122
      %p124 = scmp.ne.s32.totalorder %s115, %s116
      %p125 = scmp.eq.s32.totalorder %s18, 0
      %p126 = por %p124, %p125
      %p127 = scmp.ne.s32.totalorder %s115, %s116
      %p128 = scmp.eq.s32.totalorder %s19, 5
      %p129 = por %p127, %p128
      %p131 = scmp.ne.s32.totalorder %s116, %s130
      %p132 = scmp.eq.s32.totalorder %s19, 0
      %p133 = por %p131, %p132
      %s135 = sadd.s32 %s134, 1
      %p138 = scmp.eq.s32.totalorder %s13, 5
      %p139 = scmp.ne.s32.totalorder %s134, %s136
      %p140 = scmp.eq.s32.totalorder %s13, 0
      %p141 = por %p139, %p140
      %p142 = scmp.ne.s32.totalorder %s134, %s136
      %p143 = scmp.eq.s32.totalorder %s18, 5
      %p144 = por %p142, %p143
      %p145 = scmp.ne.s32.totalorder %s136, %s137
      %p146 = scmp.eq.s32.totalorder %s18, 0
      %p147 = por %p145, %p146
      %p148 = scmp.ne.s32.totalorder %s136, %s137
      %p149 = scmp.eq.s32.totalorder %s19, 5
      %p150 = por %p148, %p149
      %p152 = scmp.ne.s32.totalorder %s137, %s151
      %p153 = scmp.eq.s32.totalorder %s19, 0
      %p154 = por %p152, %p153
      %s155 = ssub.s32 %s20, %s32
      %p156 = scmp.eq.s32.totalorder %s155, 0
      %s158 = sadd.s32 %s157, 1
      %s159 = scalar_select %p156, %s157, %s158
      %p162 = pneg %p156
      %p163 = scmp.eq.s32.totalorder %s13, 5
      %p164 = por %p162, %p163
      %p165 = scmp.ne.s32.totalorder %s157, %s160
      %p166 = scmp.eq.s32.totalorder %s13, 0
      %p167 = por %p165, %p166
      %p168 = scmp.ne.s32.totalorder %s157, %s160
      %p169 = scmp.eq.s32.totalorder %s18, 5
      %p170 = por %p168, %p169
      %p171 = scmp.ne.s32.totalorder %s160, %s161
      %p172 = scmp.eq.s32.totalorder %s18, 0
      %p173 = por %p171, %p172
      %p174 = scmp.ne.s32.totalorder %s160, %s161
      %p175 = scmp.eq.s32.totalorder %s19, 5
      %p176 = por %p174, %p175
      %p178 = scmp.ne.s32.totalorder %s161, %s177
      %p179 = scmp.eq.s32.totalorder %s19, 0
      %p180 = por %p178, %p179
      %s181 = ssub.s32 %s20, %s32
      %p182 = scmp.eq.s32.totalorder %s181, 0
      %s184 = sadd.s32 %s183, 1
      %s185 = scalar_select %p182, %s183, %s184
      %p188 = pneg %p182
      %p189 = scmp.eq.s32.totalorder %s13, 5
      %p190 = por %p188, %p189
      %p191 = scmp.ne.s32.totalorder %s183, %s186
      %p192 = scmp.eq.s32.totalorder %s13, 0
      %p193 = por %p191, %p192
      %p194 = scmp.ne.s32.totalorder %s183, %s186
      %p195 = scmp.eq.s32.totalorder %s18, 5
      %p196 = por %p194, %p195
      %p197 = scmp.ne.s32.totalorder %s186, %s187
      %p198 = scmp.eq.s32.totalorder %s18, 0
      %p199 = por %p197, %p198
      %p200 = scmp.ne.s32.totalorder %s186, %s187
      %p201 = scmp.eq.s32.totalorder %s19, 5
      %p202 = por %p200, %p201
      %p204 = scmp.ne.s32.totalorder %s187, %s203
      %p205 = scmp.eq.s32.totalorder %s19, 0
      %p206 = por %p204, %p205
      %p207 = scmp.le.s32.totalorder 1, %s13
      %p208 = scmp.lt.s32.totalorder %s13, 7
      %p209 = pnand %p207, %p208
      %p210 = pneg %p209
      // Predicated region
      $region9: #{forward.9} parent=5 // pred_check
        _
      $region10: #{forward.9} parent=5 // pred_check_branch
        %212 = sbr.rel (%p209) target = $region12
      $region11: #{forward.9} parent=5 // pred_region
        %s213 = ssub.s32 %s13, 1
        // Predicated region
        $region13: #{forward.9} parent=11 // pred_check
          %p214 = pneg %p126
        $region14: #{forward.9} parent=11 // pred_check_branch
          %216 = sbr.rel (%p214) target = $region16
        $region15: #{forward.9} parent=11 // pred_region
          _
        $region16: #{forward.9} parent=11 // pred_fallthru
          _
        // Predicated region
        $region17: #{forward.9} parent=11 // pred_check
          %p217 = pneg %p147
        $region18: #{forward.9} parent=11 // pred_check_branch
          %219 = sbr.rel (%p217) target = $region20
        $region19: #{forward.9} parent=11 // pred_region
          _
        $region20: #{forward.9} parent=11 // pred_fallthru
          _
      $region12: #{forward.9} parent=5 // pred_fallthru
        _
      %p220 = scmp.lt.s32.totalorder %s13, 6
      // Predicated region
      $region21: #{forward.9} parent=5 // pred_check
        %p221 = pneg %p220
      $region22: #{forward.9} parent=5 // pred_check_branch
        %223 = sbr.rel (%p221) target = $region24
      $region23: #{forward.9} parent=5 // pred_region
        // Predicated region
        $region25: #{forward.9} parent=23 // pred_check
          %p224 = pneg %p47
        $region26: #{forward.9} parent=23 // pred_check_branch
          %226 = sbr.rel (%p224) target = $region28
        $region27: #{forward.9} parent=23 // pred_region
          %p227 = scmp.lt.s32.totalorder %s20, 1
          %s228 = scalar_select %p227, %s20, 1
          %p229 = scmp.lt.s32.totalorder %s21, 6
          %s230 = scalar_select %p229, %s21, 6
          %s231 = smul.addr %s230, 3
          %s232 = smul.addr %s228, 21
          %s233 = sadd.s32 %s231, %s232
          %s234 = smul.addr %s233, 8
          %s235 = scalar_lea.vmem %s0, %s234
        $region28: #{forward.9} parent=23 // pred_fallthru
          _
        // Predicated region
        $region29: #{forward.9} parent=23 // pred_check
          %p236 = pneg %p73
        $region30: #{forward.9} parent=23 // pred_check_branch
          %238 = sbr.rel (%p236) target = $region32
        $region31: #{forward.9} parent=23 // pred_region
          %p239 = scmp.lt.s32.totalorder %s21, 2
          %s240 = scalar_select %p239, %s21, 2
          %s241 = smul.addr %s240, 9
          %s242 = smul.addr %s241, 8
          %s243 = scalar_lea.vmem %s1, %s242
        $region32: #{forward.9} parent=23 // pred_fallthru
          _
        // Predicated region
        $region33: #{forward.9} parent=23 // pred_check
          %p244 = pneg %p99
        $region34: #{forward.9} parent=23 // pred_check_branch
          %246 = sbr.rel (%p244) target = $region36
        $region35: #{forward.9} parent=23 // pred_region
          %s247 = sand.u32 %s89, 1
          %s248 = sand.u32 %s89, 1
          %s249 = smul.addr %s248, 24
          %s250 = scalar_lea.vmem [#allocation3], %s249
          %s251 = smul.addr %s21, 8
          %s252 = scalar_lea.vmem %s2, %s251
          // Predicated region
          $region37: #{forward.9} parent=35 // pred_check
            _
          $region38: #{forward.9} parent=35 // pred_check_branch
            %254 = sbr.rel (0) target = $region40
          $region39: #{forward.9} parent=35 // pred_region
            // Predicated region
            $region41: #{forward.9} parent=39 // pred_check
              _
            $region42: #{forward.9} parent=39 // pred_check_branch
              %256 = sbr.rel (0) target = $region44
            $region43: #{forward.9} parent=39 // pred_region
              // Predicated region
              $region56: #{forward.9} parent=43 // pred_check
                _
              $region57: #{forward.9} parent=43 // pred_check_branch
                %276 = sbr.rel (0) target = $region59
              $region58: #{forward.9} parent=43 // pred_region
                loop: start=0, step=1, limit=1
                $region60: #{forward.9} parent=58 // loop_pre_header
                  _
                $region61: #{forward.9} parent=58 // loop_header
                  %s278 = sphi 0, %s282
                  %p279 = scmp.ge.s32.totalorder %s278, 1
                  %s283 = sphi %s252, %s252
                  %s284 = sphi %s250, %s250
                $region62: #{forward.9} parent=58 // loop_header_branch
                  %281 = sbr.rel (%p279) target = $region66
                $region63: #{forward.9} parent=58 // loop_body
                  %v285 = vld [vmem:[%s283] sm:$0xff]
                  %286 = vst [vmem:[%s284] sm:$0xff] %v285
                  %v287 = vld [vmem:[%s283 + $0x38] sm:$0xff]
                  %288 = vst [vmem:[%s284 + $0x8] sm:$0xff] %v287
                  %v289 = vld [vmem:[%s283 + $0x70] sm:$0xff]
                  %290 = vst [vmem:[%s284 + $0x10] sm:$0xff] %v289
                $region64: #{forward.9} parent=58 // loop_footer
                  %s282 = sadd.s32 1, %s278
                $region65: #{forward.9} parent=58 // loop_footer_branch
                  %277 = sbr.rel target = $region61
                $region66: #{forward.9} parent=58 // loop_exit
                  _
              $region59: #{forward.9} parent=43 // pred_fallthru
                _
              // Predicated region
              $region67: #{forward.9} parent=43 // pred_check
                _
              $region68: #{forward.9} parent=43 // pred_check_branch
                %292 = sbr.rel target = $region70
              $region69: #{forward.9} parent=43 // pred_region
                _
              $region70: #{forward.9} parent=43 // pred_fallthru
                _
            $region44: #{forward.9} parent=39 // pred_fallthru
              _
            // Predicated region
            $region45: #{forward.9} parent=39 // pred_check
              _
            $region46: #{forward.9} parent=39 // pred_check_branch
              %258 = sbr.rel target = $region48
            $region47: #{forward.9} parent=39 // pred_region
              %s260 = ssub.s32 256, 1
              loop: start=0, step=1, limit=1
              $region49: #{forward.9} parent=47 // loop_pre_header
                _
              $region50: #{forward.9} parent=47 // loop_header
                %s262 = sphi 0, %s266
                %p263 = scmp.ge.s32.totalorder %s262, 1
                %s267 = sphi %s252, %s252
                %s268 = sphi %s250, %s250
              $region51: #{forward.9} parent=47 // loop_header_branch
                %265 = sbr.rel (%p263) target = $region55
              $region52: #{forward.9} parent=47 // loop_body
                %v269 = vld [vmem:[%s267] sm:%s260]
                %270 = vst [vmem:[%s268] sm:%s260] %v269
                %v271 = vld [vmem:[%s267 + $0x38] sm:%s260]
                %272 = vst [vmem:[%s268 + $0x8] sm:%s260] %v271
                %v273 = vld [vmem:[%s267 + $0x70] sm:%s260]
                %274 = vst [vmem:[%s268 + $0x10] sm:%s260] %v273
              $region53: #{forward.9} parent=47 // loop_footer
                %s266 = sadd.s32 1, %s262
              $region54: #{forward.9} parent=47 // loop_footer_branch
                %261 = sbr.rel target = $region50
              $region55: #{forward.9} parent=47 // loop_exit
                _
            $region48: #{forward.9} parent=39 // pred_fallthru
              _
          $region40: #{forward.9} parent=35 // pred_fallthru
            _
          %293 = vnop
        $region36: #{forward.9} parent=23 // pred_fallthru
          _
      $region24: #{forward.9} parent=5 // pred_fallthru
        _
      %p294 = scmp.le.s32.totalorder 1, %s13
      %p295 = scmp.lt.s32.totalorder %s13, 7
      %p296 = pnand %p294, %p295
      %p297 = pneg %p296
      // Predicated region
      $region71: #{forward.9} parent=5 // pred_check
        _
      $region72: #{forward.9} parent=5 // pred_check_branch
        %299 = sbr.rel (%p296) target = $region74
      $region73: #{forward.9} parent=5 // pred_region
        %s300 = ssub.s32 %s13, 1
        %s301 = sand.u32 %s92, 1
        %s302 = sand.u32 %s92, 1
        %s303 = smul.addr %s302, 24
        %s304 = scalar_lea.vmem [#allocation3], %s303
        // Predicated region
        $region75: #{forward.9} parent=73 // pred_check
          %p305 = pneg %p105
        $region76: #{forward.9} parent=73 // pred_check_branch
          %307 = sbr.rel (%p305) target = $region78
        $region77: #{forward.9} parent=73 // pred_region
          _
        $region78: #{forward.9} parent=73 // pred_fallthru
          _
        %p308 = scmp.lt.s32.totalorder %s22, 1
        %s309 = scalar_select %p308, %s22, 1
        %p310 = scmp.lt.s32.totalorder %s23, 6
        %s311 = scalar_select %p310, %s23, 6
        %s312 = smul.addr %s311, 3
        %s313 = smul.addr %s309, 21
        %s314 = sadd.s32 %s312, %s313
        %s315 = smul.addr %s314, 8
        %s316 = scalar_lea.vmem %s0, %s315
        %p317 = pneg %p53
        %p318 = pneg %p50
        %p319 = scmp.lt.s32.totalorder %s23, 2
        %s320 = scalar_select %p319, %s23, 2
        %s321 = smul.addr %s320, 9
        %s322 = smul.addr %s321, 8
        %s323 = scalar_lea.vmem %s1, %s322
        %p324 = pneg %p79
        %p325 = pneg %p76
        %s326 = sand.u32 %s92, 1
        %s327 = sand.u32 %s92, 1
        %s328 = smul.addr %s327, 24
        %s329 = scalar_lea.vmem [#allocation3], %s328
        %p330 = pneg %p105
        %p331 = pneg %p102
        %p332 = pneg %p126
        %p333 = pneg %p123
        %p334 = pneg %p147
        %p335 = pneg %p144
        %p336 = pneg %p173
        %p337 = pneg %p170
        %p338 = scmp.lt.s32.totalorder %s22, 1
        %s339 = scalar_select %p338, %s22, 1
        %s340 = smul.addr %s339, 21
        %s341 = sadd.s32 9, %s340
        %s342 = smul.addr %s341, 8
        %s343 = scalar_lea.vmem %s5, %s342
        %p344 = pneg %p199
        %p345 = pneg %p196
        %p346 = scmp.lt.s32.totalorder %s22, 1
        %s347 = scalar_select %p346, %s22, 1
        %s348 = smul.addr %s347, 8
        %s349 = scalar_lea.vmem %s6, %s348
        %p350 = scmp.lt.s32.totalorder %s22, 1
        %s351 = scalar_select %p350, %s22, 1
        %p352 = scmp.lt.s32.totalorder %s23, 6
        %s353 = scalar_select %p352, %s23, 6
        %s354 = smul.addr %s353, 3
        %s355 = smul.addr %s351, 21
        %s356 = sadd.s32 %s354, %s355
        %s357 = smul.addr %s356, 8
        %s358 = scalar_lea.vmem %s0, %s357
        %p359 = scmp.lt.s32.totalorder %s23, 2
        %s360 = scalar_select %p359, %s23, 2
        %s361 = smul.addr %s360, 9
        %s362 = smul.addr %s361, 8
        %s363 = scalar_lea.vmem %s1, %s362
        %p364 = scmp.lt.s32.totalorder %s22, 1
        %s365 = scalar_select %p364, %s22, 1
        %s366 = smul.addr %s365, 21
        %s367 = sadd.s32 9, %s366
        %s368 = smul.addr %s367, 8
        %s369 = scalar_lea.vmem %s5, %s368
        %p370 = scmp.lt.s32.totalorder %s22, 1
        %s371 = scalar_select %p370, %s22, 1
        %s372 = smul.addr %s371, 8
        %s373 = scalar_lea.vmem %s6, %s372
        %p374 = scmp.eq.s32.totalorder %s23, 0
        // Predicated region
        $region79: #{forward.9} parent=73 // pred_check
          %p375 = pneg %p374
        $region80: #{forward.9} parent=73 // pred_check_branch
          %377 = sbr.rel (%p375) target = $region82
        $region81: #{forward.9} parent=73 // pred_region
          %378 = vst [vmem:[#allocation2] sm:$0xff] 0.0
          %379 = vst [vmem:[#allocation2 + $0x8] sm:$0xff] 0.0
          %vm380 = vcmask 261120
          %381 = vst.msk [vmem:[#allocation2 + $0x10] sm:$0xff] %vm380, 0.0
        $region82: #{forward.9} parent=73 // pred_fallthru
          _
        %v382 = vld [vmem:[%s358] sm:$0xff]
        %v383 = vld [vmem:[%s358 + $0x8] sm:$0xff]
        %v384 = vld [vmem:[%s358 + $0x10] sm:$0xff]
        %v385 = vld [vmem:[%s304] sm:$0xff]
        %387 = vset.pattern.permute.xlu0 0
        %388 = vperm.xlu0 %387, %v385
        %v389 = vpop.permute.xlu0 %388
        %v391 = vmul.f32 %v382, %v389
        %v392 = vmul.f32 %v383, %v389
        %v393 = vmul.f32 %v384, %v389
        %s394 = scalar_lea.vmem %s304, 8 [#allocation3]
        %v395 = vld [vmem:[%s394] sm:$0xff]
        %397 = vset.pattern.permute.xlu0 0
        %398 = vperm.xlu0 %397, %v395
        %v399 = vpop.permute.xlu0 %398
        %v401 = vadd.f32 %v391, %v399
        %v402 = vadd.f32 %v392, %v399
        %v403 = vadd.f32 %v393, %v399
        %s404 = scalar_lea.vmem %s304, 16 [#allocation3]
        %v405 = vld [vmem:[%s404] sm:$0xff]
        %407 = vset.pattern.permute.xlu0 0
        %408 = vperm.xlu0 %407, %v405
        %v409 = vpop.permute.xlu0 %408
        %v411 = vmax.f32 %v401, %v409
        %v412 = vmax.f32 %v402, %v409
        %v413 = vmax.f32 %v403, %v409
        %v414 = vld [vmem:[%s4] sm:$0x7]
        %v416 = vperm.slane %v414, 0
        %v417 = vperm.slane %v414, 1
        %v418 = vperm.slane %v414, 2
        %v422 = vmul.f32 %v411, %v416
        %v423 = vmul.f32 %v412, %v417
        %v424 = vmul.f32 %v413, %v418
        %v425 = vld [vmem:[%s363] sm:$0xff]
        %s426 = scalar_lea.vmem %s363, 8
        %v427 = vld [vmem:[%s426] sm:$0xff]
        %431 = vrot.lane.b32.xlu0 %v422, 127
        %v432 = vpop.permute.xlu0 %431
        %433 = vrot.lane.b32.xlu0 %v423, 127
        %v434 = vpop.permute.xlu0 %433
        %435 = vrot.lane.b32.xlu0 %v424, 127
        %v436 = vpop.permute.xlu0 %435
        %vm437 = vcmask 1039360
        %v438 = vsel %vm437, %v432, %v434
        %v439 = vsel %vm437, %v434, %v436
        %vm443 = vcmask 64512
        %v445 = vsel %vm443, %v427, 0
        %447 = vmatpush.msra.mxu0 0.0
        %448 = vmatpush.msra.mxu0 0.0
        %449 = vmatpush.msra.mxu0 0.0
        %450 = vmatpush.msra.mxu0 0.0
        %451 = vmatpush.msra.mxu0 0.0
        %452 = vmatpush.msra.mxu0 0.0
        %453 = vmatpush.msra.mxu0 0.0
        %454 = vmatpush.msra.mxu0 0.0
        %455 = vmatpush.msra.mxu0 0.0
        %456 = vmatpush.msra.mxu0 0.0
        %457 = vmatpush.msra.mxu0 0.0
        %458 = vmatpush.msra.mxu0 0.0
        %459 = vmatpush.msra.mxu0 0.0
        %460 = vmatpush.msra.mxu0 0.0
        %461 = vmatpush.msra.mxu0 0.0
        %462 = vmatpush.msra.mxu0 %v438
        %463 = vmatmul.f32.gmra.mxu0 %v445
        %v464 = vpop.f32.mrf.mxu0
        %v465 = vadd.f32 0.0, %v464
        %466 = vdwg.mxu0
        %467 = vmatpush.msra.mxu0 0.0
        %468 = vmatpush.msra.mxu0 0.0
        %469 = vmatpush.msra.mxu0 0.0
        %470 = vmatpush.msra.mxu0 0.0
        %471 = vmatpush.msra.mxu0 0.0
        %472 = vmatpush.msra.mxu0 0.0
        %473 = vmatpush.msra.mxu0 0.0
        %474 = vmatpush.msra.mxu0 0.0
        %475 = vmatpush.msra.mxu0 0.0
        %476 = vmatpush.msra.mxu0 0.0
        %477 = vmatpush.msra.mxu0 0.0
        %478 = vmatpush.msra.mxu0 0.0
        %479 = vmatpush.msra.mxu0 0.0
        %480 = vmatpush.msra.mxu0 0.0
        %481 = vmatpush.msra.mxu0 0.0
        %482 = vmatpush.msra.mxu0 %v439
        %483 = vmatmul.f32.gmra.mxu0 %v445
        %v484 = vpop.f32.mrf.mxu0
        %v485 = vadd.f32 0.0, %v484
        %486 = vdwg.mxu0
        %487 = vmatpush.msra.mxu0 0.0
        %488 = vmatpush.msra.mxu0 0.0
        %489 = vmatpush.msra.mxu0 0.0
        %490 = vmatpush.msra.mxu0 0.0
        %491 = vmatpush.msra.mxu0 0.0
        %492 = vmatpush.msra.mxu0 0.0
        %493 = vmatpush.msra.mxu0 0.0
        %494 = vmatpush.msra.mxu0 0.0
        %495 = vmatpush.msra.mxu0 0.0
        %496 = vmatpush.msra.mxu0 0.0
        %497 = vmatpush.msra.mxu0 0.0
        %498 = vmatpush.msra.mxu0 0.0
        %499 = vmatpush.msra.mxu0 0.0
        %500 = vmatpush.msra.mxu0 0.0
        %501 = vmatpush.msra.mxu0 0.0
        %502 = vmatpush.msra.mxu0 %v436
        %503 = vmatmul.f32.gmra.mxu0 %v445
        %v504 = vpop.f32.mrf.mxu0
        %v505 = vadd.f32 0.0, %v504
        %506 = vdwg.mxu0
        %v508 = vsel %vm443, %v425, 0
        %510 = vmatpush.msra.mxu0 0.0
        %511 = vmatpush.msra.mxu0 0.0
        %512 = vmatpush.msra.mxu0 0.0
        %513 = vmatpush.msra.mxu0 0.0
        %514 = vmatpush.msra.mxu0 0.0
        %515 = vmatpush.msra.mxu0 0.0
        %516 = vmatpush.msra.mxu0 0.0
        %517 = vmatpush.msra.mxu0 0.0
        %518 = vmatpush.msra.mxu0 0.0
        %519 = vmatpush.msra.mxu0 0.0
        %520 = vmatpush.msra.mxu0 0.0
        %521 = vmatpush.msra.mxu0 0.0
        %522 = vmatpush.msra.mxu0 0.0
        %523 = vmatpush.msra.mxu0 0.0
        %524 = vmatpush.msra.mxu0 0.0
        %525 = vmatpush.msra.mxu0 %v422
        %526 = vmatmul.f32.gmra.mxu0 %v508
        %v527 = vpop.f32.mrf.mxu0
        %v528 = vadd.f32 %v465, %v527
        %529 = vdwg.mxu0
        %530 = vmatpush.msra.mxu0 0.0
        %531 = vmatpush.msra.mxu0 0.0
        %532 = vmatpush.msra.mxu0 0.0
        %533 = vmatpush.msra.mxu0 0.0
        %534 = vmatpush.msra.mxu0 0.0
        %535 = vmatpush.msra.mxu0 0.0
        %536 = vmatpush.msra.mxu0 0.0
        %537 = vmatpush.msra.mxu0 0.0
        %538 = vmatpush.msra.mxu0 0.0
        %539 = vmatpush.msra.mxu0 0.0
        %540 = vmatpush.msra.mxu0 0.0
        %541 = vmatpush.msra.mxu0 0.0
        %542 = vmatpush.msra.mxu0 0.0
        %543 = vmatpush.msra.mxu0 0.0
        %544 = vmatpush.msra.mxu0 0.0
        %545 = vmatpush.msra.mxu0 %v423
        %546 = vmatmul.f32.gmra.mxu0 %v508
        %v547 = vpop.f32.mrf.mxu0
        %v548 = vadd.f32 %v485, %v547
        %549 = vdwg.mxu0
        %550 = vmatpush.msra.mxu0 0.0
        %551 = vmatpush.msra.mxu0 0.0
        %552 = vmatpush.msra.mxu0 0.0
        %553 = vmatpush.msra.mxu0 0.0
        %554 = vmatpush.msra.mxu0 0.0
        %555 = vmatpush.msra.mxu0 0.0
        %556 = vmatpush.msra.mxu0 0.0
        %557 = vmatpush.msra.mxu0 0.0
        %558 = vmatpush.msra.mxu0 0.0
        %559 = vmatpush.msra.mxu0 0.0
        %560 = vmatpush.msra.mxu0 0.0
        %561 = vmatpush.msra.mxu0 0.0
        %562 = vmatpush.msra.mxu0 0.0
        %563 = vmatpush.msra.mxu0 0.0
        %564 = vmatpush.msra.mxu0 0.0
        %565 = vmatpush.msra.mxu0 %v424
        %566 = vmatmul.f32.gmra.mxu0 %v508
        %v567 = vpop.f32.mrf.mxu0
        %v568 = vadd.f32 %v505, %v567
        %569 = vdwg.mxu0
        %s570 = scalar_lea.vmem %s363, 16
        %v571 = vld [vmem:[%s570] sm:$0xff]
        %572 = vrot.lane.b32.xlu0 %v422, 126
        %v573 = vpop.permute.xlu0 %572
        %574 = vrot.lane.b32.xlu0 %v423, 126
        %v575 = vpop.permute.xlu0 %574
        %576 = vrot.lane.b32.xlu0 %v424, 126
        %v577 = vpop.permute.xlu0 %576
        %vm578 = vcmask 1031168
        %v579 = vsel %vm578, %v573, %v575
        %v580 = vsel %vm578, %v575, %v577
        %v585 = vsel %vm443, %v571, 0
        %587 = vmatpush.msra.mxu0 0.0
        %588 = vmatpush.msra.mxu0 0.0
        %589 = vmatpush.msra.mxu0 0.0
        %590 = vmatpush.msra.mxu0 0.0
        %591 = vmatpush.msra.mxu0 0.0
        %592 = vmatpush.msra.mxu0 0.0
        %593 = vmatpush.msra.mxu0 0.0
        %594 = vmatpush.msra.mxu0 0.0
        %595 = vmatpush.msra.mxu0 0.0
        %596 = vmatpush.msra.mxu0 0.0
        %597 = vmatpush.msra.mxu0 0.0
        %598 = vmatpush.msra.mxu0 0.0
        %599 = vmatpush.msra.mxu0 0.0
        %600 = vmatpush.msra.mxu0 0.0
        %601 = vmatpush.msra.mxu0 0.0
        %602 = vmatpush.msra.mxu0 %v579
        %603 = vmatmul.f32.gmra.mxu0 %v585
        %v604 = vpop.f32.mrf.mxu0
        %v605 = vadd.f32 0.0, %v604
        %606 = vdwg.mxu0
        %607 = vmatpush.msra.mxu0 0.0
        %608 = vmatpush.msra.mxu0 0.0
        %609 = vmatpush.msra.mxu0 0.0
        %610 = vmatpush.msra.mxu0 0.0
        %611 = vmatpush.msra.mxu0 0.0
        %612 = vmatpush.msra.mxu0 0.0
        %613 = vmatpush.msra.mxu0 0.0
        %614 = vmatpush.msra.mxu0 0.0
        %615 = vmatpush.msra.mxu0 0.0
        %616 = vmatpush.msra.mxu0 0.0
        %617 = vmatpush.msra.mxu0 0.0
        %618 = vmatpush.msra.mxu0 0.0
        %619 = vmatpush.msra.mxu0 0.0
        %620 = vmatpush.msra.mxu0 0.0
        %621 = vmatpush.msra.mxu0 0.0
        %622 = vmatpush.msra.mxu0 %v580
        %623 = vmatmul.f32.gmra.mxu0 %v585
        %v624 = vpop.f32.mrf.mxu0
        %v625 = vadd.f32 0.0, %v624
        %626 = vdwg.mxu0
        %627 = vmatpush.msra.mxu0 0.0
        %628 = vmatpush.msra.mxu0 0.0
        %629 = vmatpush.msra.mxu0 0.0
        %630 = vmatpush.msra.mxu0 0.0
        %631 = vmatpush.msra.mxu0 0.0
        %632 = vmatpush.msra.mxu0 0.0
        %633 = vmatpush.msra.mxu0 0.0
        %634 = vmatpush.msra.mxu0 0.0
        %635 = vmatpush.msra.mxu0 0.0
        %636 = vmatpush.msra.mxu0 0.0
        %637 = vmatpush.msra.mxu0 0.0
        %638 = vmatpush.msra.mxu0 0.0
        %639 = vmatpush.msra.mxu0 0.0
        %640 = vmatpush.msra.mxu0 0.0
        %641 = vmatpush.msra.mxu0 0.0
        %642 = vmatpush.msra.mxu0 %v577
        %643 = vmatmul.f32.gmra.mxu0 %v585
        %v644 = vpop.f32.mrf.mxu0
        %v645 = vadd.f32 0.0, %v644
        %646 = vdwg.mxu0
        %v647 = vadd.f32 %v528, %v605
        %v648 = vadd.f32 %v548, %v625
        %v649 = vadd.f32 %v568, %v645
        %s650 = scalar_lea.vmem %s363, 24
        %v651 = vld [vmem:[%s650] sm:$0xff]
        %652 = vrot.lane.b32.xlu0 %v422, 110
        %v653 = vpop.permute.xlu0 %652
        %654 = vrot.lane.b32.xlu0 %v423, 110
        %v655 = vpop.permute.xlu0 %654
        %656 = vrot.lane.b32.xlu0 %v424, 110
        %v657 = vpop.permute.xlu0 %656
        %vm658 = vcmask 900096
        %v659 = vsel %vm658, %v653, %v655
        %v660 = vsel %vm658, %v655, %v657
        %v665 = vsel %vm443, %v651, 0
        %667 = vmatpush.msra.mxu0 0.0
        %668 = vmatpush.msra.mxu0 0.0
        %669 = vmatpush.msra.mxu0 0.0
        %670 = vmatpush.msra.mxu0 0.0
        %671 = vmatpush.msra.mxu0 0.0
        %672 = vmatpush.msra.mxu0 0.0
        %673 = vmatpush.msra.mxu0 0.0
        %674 = vmatpush.msra.mxu0 0.0
        %675 = vmatpush.msra.mxu0 0.0
        %676 = vmatpush.msra.mxu0 0.0
        %677 = vmatpush.msra.mxu0 0.0
        %678 = vmatpush.msra.mxu0 0.0
        %679 = vmatpush.msra.mxu0 0.0
        %680 = vmatpush.msra.mxu0 0.0
        %681 = vmatpush.msra.mxu0 0.0
        %682 = vmatpush.msra.mxu0 %v659
        %683 = vmatmul.f32.gmra.mxu0 %v665
        %v684 = vpop.f32.mrf.mxu0
        %v685 = vadd.f32 0.0, %v684
        %686 = vdwg.mxu0
        %687 = vmatpush.msra.mxu0 0.0
        %688 = vmatpush.msra.mxu0 0.0
        %689 = vmatpush.msra.mxu0 0.0
        %690 = vmatpush.msra.mxu0 0.0
        %691 = vmatpush.msra.mxu0 0.0
        %692 = vmatpush.msra.mxu0 0.0
        %693 = vmatpush.msra.mxu0 0.0
        %694 = vmatpush.msra.mxu0 0.0
        %695 = vmatpush.msra.mxu0 0.0
        %696 = vmatpush.msra.mxu0 0.0
        %697 = vmatpush.msra.mxu0 0.0
        %698 = vmatpush.msra.mxu0 0.0
        %699 = vmatpush.msra.mxu0 0.0
        %700 = vmatpush.msra.mxu0 0.0
        %701 = vmatpush.msra.mxu0 0.0
        %702 = vmatpush.msra.mxu0 %v660
        %703 = vmatmul.f32.gmra.mxu0 %v665
        %v704 = vpop.f32.mrf.mxu0
        %v705 = vadd.f32 0.0, %v704
        %706 = vdwg.mxu0
        %707 = vmatpush.msra.mxu0 0.0
        %708 = vmatpush.msra.mxu0 0.0
        %709 = vmatpush.msra.mxu0 0.0
        %710 = vmatpush.msra.mxu0 0.0
        %711 = vmatpush.msra.mxu0 0.0
        %712 = vmatpush.msra.mxu0 0.0
        %713 = vmatpush.msra.mxu0 0.0
        %714 = vmatpush.msra.mxu0 0.0
        %715 = vmatpush.msra.mxu0 0.0
        %716 = vmatpush.msra.mxu0 0.0
        %717 = vmatpush.msra.mxu0 0.0
        %718 = vmatpush.msra.mxu0 0.0
        %719 = vmatpush.msra.mxu0 0.0
        %720 = vmatpush.msra.mxu0 0.0
        %721 = vmatpush.msra.mxu0 0.0
        %722 = vmatpush.msra.mxu0 %v657
        %723 = vmatmul.f32.gmra.mxu0 %v665
        %v724 = vpop.f32.mrf.mxu0
        %v725 = vadd.f32 0.0, %v724
        %726 = vdwg.mxu0
        %v727 = vadd.f32 %v647, %v685
        %v728 = vadd.f32 %v648, %v705
        %v729 = vadd.f32 %v649, %v725
        %s730 = scalar_lea.vmem %s363, 32
        %v731 = vld [vmem:[%s730] sm:$0xff]
        %732 = vrot.lane.b32.xlu0 %v422, 109
        %v733 = vpop.permute.xlu0 %732
        %734 = vrot.lane.b32.xlu0 %v423, 109
        %v735 = vpop.permute.xlu0 %734
        %736 = vrot.lane.b32.xlu0 %v424, 109
        %v737 = vpop.permute.xlu0 %736
        %vm738 = vcmask 891904
        %v739 = vsel %vm738, %v733, %v735
        %v740 = vsel %vm738, %v735, %v737
        %v745 = vsel %vm443, %v731, 0
        %747 = vmatpush.msra.mxu0 0.0
        %748 = vmatpush.msra.mxu0 0.0
        %749 = vmatpush.msra.mxu0 0.0
        %750 = vmatpush.msra.mxu0 0.0
        %751 = vmatpush.msra.mxu0 0.0
        %752 = vmatpush.msra.mxu0 0.0
        %753 = vmatpush.msra.mxu0 0.0
        %754 = vmatpush.msra.mxu0 0.0
        %755 = vmatpush.msra.mxu0 0.0
        %756 = vmatpush.msra.mxu0 0.0
        %757 = vmatpush.msra.mxu0 0.0
        %758 = vmatpush.msra.mxu0 0.0
        %759 = vmatpush.msra.mxu0 0.0
        %760 = vmatpush.msra.mxu0 0.0
        %761 = vmatpush.msra.mxu0 0.0
        %762 = vmatpush.msra.mxu0 %v739
        %763 = vmatmul.f32.gmra.mxu0 %v745
        %v764 = vpop.f32.mrf.mxu0
        %v765 = vadd.f32 0.0, %v764
        %766 = vdwg.mxu0
        %767 = vmatpush.msra.mxu0 0.0
        %768 = vmatpush.msra.mxu0 0.0
        %769 = vmatpush.msra.mxu0 0.0
        %770 = vmatpush.msra.mxu0 0.0
        %771 = vmatpush.msra.mxu0 0.0
        %772 = vmatpush.msra.mxu0 0.0
        %773 = vmatpush.msra.mxu0 0.0
        %774 = vmatpush.msra.mxu0 0.0
        %775 = vmatpush.msra.mxu0 0.0
        %776 = vmatpush.msra.mxu0 0.0
        %777 = vmatpush.msra.mxu0 0.0
        %778 = vmatpush.msra.mxu0 0.0
        %779 = vmatpush.msra.mxu0 0.0
        %780 = vmatpush.msra.mxu0 0.0
        %781 = vmatpush.msra.mxu0 0.0
        %782 = vmatpush.msra.mxu0 %v740
        %783 = vmatmul.f32.gmra.mxu0 %v745
        %v784 = vpop.f32.mrf.mxu0
        %v785 = vadd.f32 0.0, %v784
        %786 = vdwg.mxu0
        %787 = vmatpush.msra.mxu0 0.0
        %788 = vmatpush.msra.mxu0 0.0
        %789 = vmatpush.msra.mxu0 0.0
        %790 = vmatpush.msra.mxu0 0.0
        %791 = vmatpush.msra.mxu0 0.0
        %792 = vmatpush.msra.mxu0 0.0
        %793 = vmatpush.msra.mxu0 0.0
        %794 = vmatpush.msra.mxu0 0.0
        %795 = vmatpush.msra.mxu0 0.0
        %796 = vmatpush.msra.mxu0 0.0
        %797 = vmatpush.msra.mxu0 0.0
        %798 = vmatpush.msra.mxu0 0.0
        %799 = vmatpush.msra.mxu0 0.0
        %800 = vmatpush.msra.mxu0 0.0
        %801 = vmatpush.msra.mxu0 0.0
        %802 = vmatpush.msra.mxu0 %v737
        %803 = vmatmul.f32.gmra.mxu0 %v745
        %v804 = vpop.f32.mrf.mxu0
        %v805 = vadd.f32 0.0, %v804
        %806 = vdwg.mxu0
        %v807 = vadd.f32 %v727, %v765
        %v808 = vadd.f32 %v728, %v785
        %v809 = vadd.f32 %v729, %v805
        %s810 = scalar_lea.vmem %s363, 40
        %v811 = vld [vmem:[%s810] sm:$0xff]
        %812 = vrot.lane.b32.xlu0 %v422, 108
        %v813 = vpop.permute.xlu0 %812
        %814 = vrot.lane.b32.xlu0 %v423, 108
        %v815 = vpop.permute.xlu0 %814
        %816 = vrot.lane.b32.xlu0 %v424, 108
        %v817 = vpop.permute.xlu0 %816
        %vm818 = vcmask 883712
        %v819 = vsel %vm818, %v813, %v815
        %v820 = vsel %vm818, %v815, %v817
        %v825 = vsel %vm443, %v811, 0
        %827 = vmatpush.msra.mxu0 0.0
        %828 = vmatpush.msra.mxu0 0.0
        %829 = vmatpush.msra.mxu0 0.0
        %830 = vmatpush.msra.mxu0 0.0
        %831 = vmatpush.msra.mxu0 0.0
        %832 = vmatpush.msra.mxu0 0.0
        %833 = vmatpush.msra.mxu0 0.0
        %834 = vmatpush.msra.mxu0 0.0
        %835 = vmatpush.msra.mxu0 0.0
        %836 = vmatpush.msra.mxu0 0.0
        %837 = vmatpush.msra.mxu0 0.0
        %838 = vmatpush.msra.mxu0 0.0
        %839 = vmatpush.msra.mxu0 0.0
        %840 = vmatpush.msra.mxu0 0.0
        %841 = vmatpush.msra.mxu0 0.0
        %842 = vmatpush.msra.mxu0 %v819
        %843 = vmatmul.f32.gmra.mxu0 %v825
        %v844 = vpop.f32.mrf.mxu0
        %v845 = vadd.f32 0.0, %v844
        %846 = vdwg.mxu0
        %847 = vmatpush.msra.mxu0 0.0
        %848 = vmatpush.msra.mxu0 0.0
        %849 = vmatpush.msra.mxu0 0.0
        %850 = vmatpush.msra.mxu0 0.0
        %851 = vmatpush.msra.mxu0 0.0
        %852 = vmatpush.msra.mxu0 0.0
        %853 = vmatpush.msra.mxu0 0.0
        %854 = vmatpush.msra.mxu0 0.0
        %855 = vmatpush.msra.mxu0 0.0
        %856 = vmatpush.msra.mxu0 0.0
        %857 = vmatpush.msra.mxu0 0.0
        %858 = vmatpush.msra.mxu0 0.0
        %859 = vmatpush.msra.mxu0 0.0
        %860 = vmatpush.msra.mxu0 0.0
        %861 = vmatpush.msra.mxu0 0.0
        %862 = vmatpush.msra.mxu0 %v820
        %863 = vmatmul.f32.gmra.mxu0 %v825
        %v864 = vpop.f32.mrf.mxu0
        %v865 = vadd.f32 0.0, %v864
        %866 = vdwg.mxu0
        %867 = vmatpush.msra.mxu0 0.0
        %868 = vmatpush.msra.mxu0 0.0
        %869 = vmatpush.msra.mxu0 0.0
        %870 = vmatpush.msra.mxu0 0.0
        %871 = vmatpush.msra.mxu0 0.0
        %872 = vmatpush.msra.mxu0 0.0
        %873 = vmatpush.msra.mxu0 0.0
        %874 = vmatpush.msra.mxu0 0.0
        %875 = vmatpush.msra.mxu0 0.0
        %876 = vmatpush.msra.mxu0 0.0
        %877 = vmatpush.msra.mxu0 0.0
        %878 = vmatpush.msra.mxu0 0.0
        %879 = vmatpush.msra.mxu0 0.0
        %880 = vmatpush.msra.mxu0 0.0
        %881 = vmatpush.msra.mxu0 0.0
        %882 = vmatpush.msra.mxu0 %v817
        %883 = vmatmul.f32.gmra.mxu0 %v825
        %v884 = vpop.f32.mrf.mxu0
        %v885 = vadd.f32 0.0, %v884
        %886 = vdwg.mxu0
        %v887 = vadd.f32 %v807, %v845
        %v888 = vadd.f32 %v808, %v865
        %v889 = vadd.f32 %v809, %v885
        %s890 = scalar_lea.vmem %s363, 48
        %v891 = vld [vmem:[%s890] sm:$0xff]
        %892 = vrot.lane.b32.xlu0 %v422, 92
        %v893 = vpop.permute.xlu0 %892
        %894 = vrot.lane.b32.xlu0 %v423, 92
        %v895 = vpop.permute.xlu0 %894
        %896 = vrot.lane.b32.xlu0 %v424, 92
        %v897 = vpop.permute.xlu0 %896
        %vm898 = vcmask 752640
        %v899 = vsel %vm898, %v893, %v895
        %v900 = vsel %vm898, %v895, %v897
        %v905 = vsel %vm443, %v891, 0
        %907 = vmatpush.msra.mxu0 0.0
        %908 = vmatpush.msra.mxu0 0.0
        %909 = vmatpush.msra.mxu0 0.0
        %910 = vmatpush.msra.mxu0 0.0
        %911 = vmatpush.msra.mxu0 0.0
        %912 = vmatpush.msra.mxu0 0.0
        %913 = vmatpush.msra.mxu0 0.0
        %914 = vmatpush.msra.mxu0 0.0
        %915 = vmatpush.msra.mxu0 0.0
        %916 = vmatpush.msra.mxu0 0.0
        %917 = vmatpush.msra.mxu0 0.0
        %918 = vmatpush.msra.mxu0 0.0
        %919 = vmatpush.msra.mxu0 0.0
        %920 = vmatpush.msra.mxu0 0.0
        %921 = vmatpush.msra.mxu0 0.0
        %922 = vmatpush.msra.mxu0 %v899
        %923 = vmatmul.f32.gmra.mxu0 %v905
        %v924 = vpop.f32.mrf.mxu0
        %v925 = vadd.f32 0.0, %v924
        %926 = vdwg.mxu0
        %927 = vmatpush.msra.mxu0 0.0
        %928 = vmatpush.msra.mxu0 0.0
        %929 = vmatpush.msra.mxu0 0.0
        %930 = vmatpush.msra.mxu0 0.0
        %931 = vmatpush.msra.mxu0 0.0
        %932 = vmatpush.msra.mxu0 0.0
        %933 = vmatpush.msra.mxu0 0.0
        %934 = vmatpush.msra.mxu0 0.0
        %935 = vmatpush.msra.mxu0 0.0
        %936 = vmatpush.msra.mxu0 0.0
        %937 = vmatpush.msra.mxu0 0.0
        %938 = vmatpush.msra.mxu0 0.0
        %939 = vmatpush.msra.mxu0 0.0
        %940 = vmatpush.msra.mxu0 0.0
        %941 = vmatpush.msra.mxu0 0.0
        %942 = vmatpush.msra.mxu0 %v900
        %943 = vmatmul.f32.gmra.mxu0 %v905
        %v944 = vpop.f32.mrf.mxu0
        %v945 = vadd.f32 0.0, %v944
        %946 = vdwg.mxu0
        %947 = vmatpush.msra.mxu0 0.0
        %948 = vmatpush.msra.mxu0 0.0
        %949 = vmatpush.msra.mxu0 0.0
        %950 = vmatpush.msra.mxu0 0.0
        %951 = vmatpush.msra.mxu0 0.0
        %952 = vmatpush.msra.mxu0 0.0
        %953 = vmatpush.msra.mxu0 0.0
        %954 = vmatpush.msra.mxu0 0.0
        %955 = vmatpush.msra.mxu0 0.0
        %956 = vmatpush.msra.mxu0 0.0
        %957 = vmatpush.msra.mxu0 0.0
        %958 = vmatpush.msra.mxu0 0.0
        %959 = vmatpush.msra.mxu0 0.0
        %960 = vmatpush.msra.mxu0 0.0
        %961 = vmatpush.msra.mxu0 0.0
        %962 = vmatpush.msra.mxu0 %v897
        %963 = vmatmul.f32.gmra.mxu0 %v905
        %v964 = vpop.f32.mrf.mxu0
        %v965 = vadd.f32 0.0, %v964
        %966 = vdwg.mxu0
        %v967 = vadd.f32 %v887, %v925
        %v968 = vadd.f32 %v888, %v945
        %v969 = vadd.f32 %v889, %v965
        %s970 = scalar_lea.vmem %s363, 56
        %v971 = vld [vmem:[%s970] sm:$0xff]
        %972 = vrot.lane.b32.xlu0 %v422, 91
        %v973 = vpop.permute.xlu0 %972
        %974 = vrot.lane.b32.xlu0 %v423, 91
        %v975 = vpop.permute.xlu0 %974
        %976 = vrot.lane.b32.xlu0 %v424, 91
        %v977 = vpop.permute.xlu0 %976
        %vm978 = vcmask 744448
        %v979 = vsel %vm978, %v973, %v975
        %v980 = vsel %vm978, %v975, %v977
        %v985 = vsel %vm443, %v971, 0
        %987 = vmatpush.msra.mxu0 0.0
        %988 = vmatpush.msra.mxu0 0.0
        %989 = vmatpush.msra.mxu0 0.0
        %990 = vmatpush.msra.mxu0 0.0
        %991 = vmatpush.msra.mxu0 0.0
        %992 = vmatpush.msra.mxu0 0.0
        %993 = vmatpush.msra.mxu0 0.0
        %994 = vmatpush.msra.mxu0 0.0
        %995 = vmatpush.msra.mxu0 0.0
        %996 = vmatpush.msra.mxu0 0.0
        %997 = vmatpush.msra.mxu0 0.0
        %998 = vmatpush.msra.mxu0 0.0
        %999 = vmatpush.msra.mxu0 0.0
        %1000 = vmatpush.msra.mxu0 0.0
        %1001 = vmatpush.msra.mxu0 0.0
        %1002 = vmatpush.msra.mxu0 %v979
        %1003 = vmatmul.f32.gmra.mxu0 %v985
        %v1004 = vpop.f32.mrf.mxu0
        %v1005 = vadd.f32 0.0, %v1004
        %1006 = vdwg.mxu0
        %1007 = vmatpush.msra.mxu0 0.0
        %1008 = vmatpush.msra.mxu0 0.0
        %1009 = vmatpush.msra.mxu0 0.0
        %1010 = vmatpush.msra.mxu0 0.0
        %1011 = vmatpush.msra.mxu0 0.0
        %1012 = vmatpush.msra.mxu0 0.0
        %1013 = vmatpush.msra.mxu0 0.0
        %1014 = vmatpush.msra.mxu0 0.0
        %1015 = vmatpush.msra.mxu0 0.0
        %1016 = vmatpush.msra.mxu0 0.0
        %1017 = vmatpush.msra.mxu0 0.0
        %1018 = vmatpush.msra.mxu0 0.0
        %1019 = vmatpush.msra.mxu0 0.0
        %1020 = vmatpush.msra.mxu0 0.0
        %1021 = vmatpush.msra.mxu0 0.0
        %1022 = vmatpush.msra.mxu0 %v980
        %1023 = vmatmul.f32.gmra.mxu0 %v985
        %v1024 = vpop.f32.mrf.mxu0
        %v1025 = vadd.f32 0.0, %v1024
        %1026 = vdwg.mxu0
        %1027 = vmatpush.msra.mxu0 0.0
        %1028 = vmatpush.msra.mxu0 0.0
        %1029 = vmatpush.msra.mxu0 0.0
        %1030 = vmatpush.msra.mxu0 0.0
        %1031 = vmatpush.msra.mxu0 0.0
        %1032 = vmatpush.msra.mxu0 0.0
        %1033 = vmatpush.msra.mxu0 0.0
        %1034 = vmatpush.msra.mxu0 0.0
        %1035 = vmatpush.msra.mxu0 0.0
        %1036 = vmatpush.msra.mxu0 0.0
        %1037 = vmatpush.msra.mxu0 0.0
        %1038 = vmatpush.msra.mxu0 0.0
        %1039 = vmatpush.msra.mxu0 0.0
        %1040 = vmatpush.msra.mxu0 0.0
        %1041 = vmatpush.msra.mxu0 0.0
        %1042 = vmatpush.msra.mxu0 %v977
        %1043 = vmatmul.f32.gmra.mxu0 %v985
        %v1044 = vpop.f32.mrf.mxu0
        %v1045 = vadd.f32 0.0, %v1044
        %1046 = vdwg.mxu0
        %v1047 = vadd.f32 %v967, %v1005
        %v1048 = vadd.f32 %v968, %v1025
        %v1049 = vadd.f32 %v969, %v1045
        %s1050 = scalar_lea.vmem %s363, 64
        %v1051 = vld [vmem:[%s1050] sm:$0xff]
        %1052 = vrot.lane.b32.xlu0 %v422, 90
        %v1053 = vpop.permute.xlu0 %1052
        %1054 = vrot.lane.b32.xlu0 %v423, 90
        %v1055 = vpop.permute.xlu0 %1054
        %1056 = vrot.lane.b32.xlu0 %v424, 90
        %v1057 = vpop.permute.xlu0 %1056
        %vm1058 = vcmask 736256
        %v1059 = vsel %vm1058, %v1053, %v1055
        %v1060 = vsel %vm1058, %v1055, %v1057
        %v1065 = vsel %vm443, %v1051, 0
        %1067 = vmatpush.msra.mxu0 0.0
        %1068 = vmatpush.msra.mxu0 0.0
        %1069 = vmatpush.msra.mxu0 0.0
        %1070 = vmatpush.msra.mxu0 0.0
        %1071 = vmatpush.msra.mxu0 0.0
        %1072 = vmatpush.msra.mxu0 0.0
        %1073 = vmatpush.msra.mxu0 0.0
        %1074 = vmatpush.msra.mxu0 0.0
        %1075 = vmatpush.msra.mxu0 0.0
        %1076 = vmatpush.msra.mxu0 0.0
        %1077 = vmatpush.msra.mxu0 0.0
        %1078 = vmatpush.msra.mxu0 0.0
        %1079 = vmatpush.msra.mxu0 0.0
        %1080 = vmatpush.msra.mxu0 0.0
        %1081 = vmatpush.msra.mxu0 0.0
        %1082 = vmatpush.msra.mxu0 %v1059
        %1083 = vmatmul.f32.gmra.mxu0 %v1065
        %v1084 = vpop.f32.mrf.mxu0
        %v1085 = vadd.f32 0.0, %v1084
        %1086 = vdwg.mxu0
        %1087 = vmatpush.msra.mxu0 0.0
        %1088 = vmatpush.msra.mxu0 0.0
        %1089 = vmatpush.msra.mxu0 0.0
        %1090 = vmatpush.msra.mxu0 0.0
        %1091 = vmatpush.msra.mxu0 0.0
        %1092 = vmatpush.msra.mxu0 0.0
        %1093 = vmatpush.msra.mxu0 0.0
        %1094 = vmatpush.msra.mxu0 0.0
        %1095 = vmatpush.msra.mxu0 0.0
        %1096 = vmatpush.msra.mxu0 0.0
        %1097 = vmatpush.msra.mxu0 0.0
        %1098 = vmatpush.msra.mxu0 0.0
        %1099 = vmatpush.msra.mxu0 0.0
        %1100 = vmatpush.msra.mxu0 0.0
        %1101 = vmatpush.msra.mxu0 0.0
        %1102 = vmatpush.msra.mxu0 %v1060
        %1103 = vmatmul.f32.gmra.mxu0 %v1065
        %v1104 = vpop.f32.mrf.mxu0
        %v1105 = vadd.f32 0.0, %v1104
        %1106 = vdwg.mxu0
        %1107 = vmatpush.msra.mxu0 0.0
        %1108 = vmatpush.msra.mxu0 0.0
        %1109 = vmatpush.msra.mxu0 0.0
        %1110 = vmatpush.msra.mxu0 0.0
        %1111 = vmatpush.msra.mxu0 0.0
        %1112 = vmatpush.msra.mxu0 0.0
        %1113 = vmatpush.msra.mxu0 0.0
        %1114 = vmatpush.msra.mxu0 0.0
        %1115 = vmatpush.msra.mxu0 0.0
        %1116 = vmatpush.msra.mxu0 0.0
        %1117 = vmatpush.msra.mxu0 0.0
        %1118 = vmatpush.msra.mxu0 0.0
        %1119 = vmatpush.msra.mxu0 0.0
        %1120 = vmatpush.msra.mxu0 0.0
        %1121 = vmatpush.msra.mxu0 0.0
        %1122 = vmatpush.msra.mxu0 %v1057
        %1123 = vmatmul.f32.gmra.mxu0 %v1065
        %v1124 = vpop.f32.mrf.mxu0
        %v1125 = vadd.f32 0.0, %v1124
        %1126 = vdwg.mxu0
        %v1127 = vadd.f32 %v1047, %v1085
        %v1128 = vadd.f32 %v1048, %v1105
        %v1129 = vadd.f32 %v1049, %v1125
        %v1130 = vld [vmem:[#allocation2] sm:$0xff]
        %v1131 = vld [vmem:[#allocation2 + $0x8] sm:$0xff]
        %v1132 = vld [vmem:[#allocation2 + $0x10] sm:$0xff]
        %v1133 = vadd.f32 %v1130, %v1127
        %v1134 = vadd.f32 %v1131, %v1128
        %v1135 = vadd.f32 %v1132, %v1129
        %1136 = vst [vmem:[#allocation2] sm:$0xff] %v1133
        %1137 = vst [vmem:[#allocation2 + $0x8] sm:$0xff] %v1134
        %vm1138 = vcmask 261120
        %1139 = vst.msk [vmem:[#allocation2 + $0x10] sm:$0xff] %vm1138, %v1135
        %p1140 = scmp.eq.s32.totalorder %s23, 2
        // Predicated region
        $region83: #{forward.9} parent=73 // pred_check
          %p1141 = pneg %p1140
        $region84: #{forward.9} parent=73 // pred_check_branch
          %1143 = sbr.rel (%p1141) target = $region86
        $region85: #{forward.9} parent=73 // pred_region
          %v1144 = vld [vmem:[#allocation2] sm:$0xff]
          %v1145 = vld [vmem:[#allocation2 + $0x8] sm:$0xff]
          %v1146 = vld [vmem:[#allocation2 + $0x10] sm:$0xff]
          %1150 = vrot.lane.b32.xlu0 %v1144, 19
          %v1151 = vpop.permute.xlu0 %1150
          %1152 = vrot.lane.b32.xlu0 %v1145, 19
          %v1153 = vpop.permute.xlu0 %1152
          %1154 = vrot.lane.b32.xlu0 %v1146, 19
          %v1155 = vpop.permute.xlu0 %1154
          %vm1156 = vcmask 154624
          %v1157 = vsel %vm1156, %v1151, %v1153
          %v1158 = vsel %vm1156, %v1153, %v1155
          %v1162 = vsel %vm1156, 0.0, %v1151
          %vm1163 = vcmask 416768
          %v1164 = vsel %vm1163, %v1158, 0.0
          %v1165 = vld [vmem:[%s3] sm:$0xff]
          %1167 = vset.pattern.permute.xlu0 0
          %1168 = vperm.xlu0 %1167, %v1165
          %v1169 = vpop.permute.xlu0 %1168
          %v1171 = vadd.f32 %v1162, %v1169
          %v1172 = vadd.f32 %v1157, %v1169
          %v1173 = vadd.f32 %v1164, %v1169
          %v1174 = vld [vmem:[%s4] sm:$0x7]
          %v1176 = vperm.slane %v1174, 0
          %v1177 = vperm.slane %v1174, 1
          %v1178 = vperm.slane %v1174, 2
          %v1182 = vmul.f32 %v1171, %v1176
          %v1183 = vmul.f32 %v1172, %v1177
          %v1184 = vmul.f32 %v1173, %v1178
          %1185 = vst [vmem:[%s369] sm:$0xff] %v1182
          %1186 = vst [vmem:[%s369 + $0x8] sm:$0xff] %v1183
          %1187 = vst [vmem:[%s369 + $0x10] sm:$0xff] %v1184
          %v1188 = vadd.f32 %v1182, %v1183
          %v1189 = vadd.f32 %v1188, %v1184
          %1190 = vadd.xlane.f32.xlu0 %v1189
          %v1191 = vpop.xlane.xlu0 %1190
          %v1192 = vmul.f32 %v1182, %v1182
          %v1193 = vmul.f32 %v1183, %v1183
          %v1194 = vmul.f32 %v1184, %v1184
          %v1195 = vadd.f32 %v1192, %v1193
          %v1196 = vadd.f32 %v1195, %v1194
          %1197 = vadd.xlane.f32.xlu0 %v1196
          %v1198 = vpop.xlane.xlu0 %1197
          %vm1199 = vcmask 7168
          %v1200 = vsel %vm1199, %v1191, %v1198
          %vm1201 = vcmask 15360
          %1202 = vst.msk [vmem:[%s373] sm:$0xff] %vm1201, %v1200
        $region86: #{forward.9} parent=73 // pred_fallthru
          _
        %p1203 = scmp.lt.s32.totalorder %s22, 1
        %s1204 = scalar_select %p1203, %s22, 1
        %s1205 = smul.addr %s1204, 21
        %s1206 = sadd.s32 9, %s1205
        %s1207 = smul.addr %s1206, 8
        %s1208 = scalar_lea.vmem %s5, %s1207
        %p1209 = scmp.lt.s32.totalorder %s22, 1
        %s1210 = scalar_select %p1209, %s22, 1
        %s1211 = smul.addr %s1210, 8
        %s1212 = scalar_lea.vmem %s6, %s1211
        // Predicated region
        $region87: #{forward.9} parent=73 // pred_check
          %p1213 = pneg %p170
        $region88: #{forward.9} parent=73 // pred_check_branch
          %1215 = sbr.rel (%p1213) target = $region90
        $region89: #{forward.9} parent=73 // pred_region
          _
        $region90: #{forward.9} parent=73 // pred_fallthru
          _
        // Predicated region
        $region91: #{forward.9} parent=73 // pred_check
          %p1216 = pneg %p196
        $region92: #{forward.9} parent=73 // pred_check_branch
          %1218 = sbr.rel (%p1216) target = $region94
        $region93: #{forward.9} parent=73 // pred_region
          _
        $region94: #{forward.9} parent=73 // pred_fallthru
          _
      $region74: #{forward.9} parent=5 // pred_fallthru
        _
      %p1219 = scmp.le.s32.totalorder 2, %s13
      // Predicated region
      $region95: #{forward.9} parent=5 // pred_check
        %p1220 = pneg %p1219
      $region96: #{forward.9} parent=5 // pred_check_branch
        %1222 = sbr.rel (%p1220) target = $region98
      $region97: #{forward.9} parent=5 // pred_region
        %s1223 = ssub.s32 %s13, 2
        // Predicated region
        $region99: #{forward.9} parent=97 // pred_check
          %p1224 = pneg %p176
        $region100: #{forward.9} parent=97 // pred_check_branch
          %1226 = sbr.rel (%p1224) target = $region102
        $region101: #{forward.9} parent=97 // pred_region
          %p1227 = scmp.lt.s32.totalorder %s24, 1
          %s1228 = scalar_select %p1227, %s24, 1
          %s1229 = smul.addr %s1228, 21
          %s1230 = sadd.s32 9, %s1229
          %s1231 = smul.addr %s1230, 8
          %s1232 = scalar_lea.vmem %s5, %s1231
        $region102: #{forward.9} parent=97 // pred_fallthru
          _
        // Predicated region
        $region103: #{forward.9} parent=97 // pred_check
          %p1233 = pneg %p202
        $region104: #{forward.9} parent=97 // pred_check_branch
          %1235 = sbr.rel (%p1233) target = $region106
        $region105: #{forward.9} parent=97 // pred_region
          %p1236 = scmp.lt.s32.totalorder %s24, 1
          %s1237 = scalar_select %p1236, %s24, 1
          %s1238 = smul.addr %s1237, 8
          %s1239 = scalar_lea.vmem %s6, %s1238
        $region106: #{forward.9} parent=97 // pred_fallthru
          _
      $region98: #{forward.9} parent=5 // pred_fallthru
        _
    $region6: #{forward.9} parent=1 // loop_footer
      %s17 = sadd.s32 1, %s13
    $region7: #{forward.9} parent=1 // loop_footer_branch
      %12 = sbr.rel target = $region3
    $region8: #{forward.9} parent=1 // loop_exit
      _

// kernel: forward.10
$region0: #{forward.10}
  #allocation0 [shape = 'u32[]', space=smem, size = 0x4, offset = 0x4, fixed_abs, tag = 'smem constant byte address 0x4 - core index']
  #allocation1 [shape = 'u32[72,128]{1,0:T(1,128)}', space=vmem, size = 0x9000, scoped, tag = 'internal scratch']
  #allocation2 [shape = 'f32[8,288]{1,0:T(8,128)}', space=vmem, size = 0x3000, scoped, tag = 'scratch operand']
  %s0 = inlined_call_operand.vmem [shape: f32[2,56,384], index: 0, kind: input, shape index: {}, may-alias: {0,5}]
  %s1 = inlined_call_operand.vmem [shape: f32[2,9,8,8], index: 1, kind: input, shape index: {}]
  %s2 = inlined_call_operand.vmem [shape: f32[3,56,1], index: 2, kind: input, shape index: {}]
  %s3 = inlined_call_operand.vmem [shape: f32[8,1], index: 3, kind: input, shape index: {}]
  %s4 = inlined_call_operand.vmem [shape: f32[1,384], index: 4, kind: input, shape index: {}]
  %s5 = inlined_call_operand.vmem [shape: f32[2,56,384], index: 5, kind: output, shape index: {0}, may-alias: {0,5}]
  %s6 = inlined_call_operand.vmem [shape: f32[2,8,2], index: 6, kind: output, shape index: {1}]
  %7 = xla_tuple %s5, %s6
  %s8 = sld [smem:[#allocation0]]
  $region107: #{forward.10} parent=0
    _
  %s10 = ssub.s32 1, %s8
  %s11 = scalar_select 0, %s10, %s8
  $region1: #{forward.10} parent=0
    #allocation3 [shape = 'u8[24576]{0}', space=vmem, size = 0x6000, scoped, tag = 'input window, operand 2']
    loop: start=0, step=1, limit=6
    $region2: #{forward.10} parent=1 // loop_pre_header
      _
    $region3: #{forward.10} parent=1 // loop_header
      %s13 = sphi 0, %s17
      %p14 = scmp.ge.s32.totalorder %s13, 6
      %s20 = sphi 0, %s32
      %s21 = sphi 0, %s28
      %s22 = sphi 0, %s20
      %s23 = sphi 0, %s21
      %s24 = sphi 0, %s22
      %s25 = sphi 0, %s23
      %s39 = sphi 0, %s41
      %s42 = sphi 0, %s39
      %s43 = sphi 0, %s42
      %s59 = sphi 0, %s43
      %s65 = sphi 0, %s67
      %s68 = sphi 0, %s65
      %s69 = sphi 0, %s68
      %s85 = sphi 0, %s69
      %s93 = sphi 0, %s95
      %s96 = sphi 0, %s93
      %s97 = sphi 0, %s96
      %s113 = sphi 0, %s97
      %s117 = sphi 0, %s117
      %s119 = sphi 0, %s117
      %s120 = sphi 0, %s119
      %s134 = sphi 0, %s120
      %s138 = sphi 0, %s138
      %s140 = sphi 0, %s138
      %s141 = sphi 0, %s140
      %s155 = sphi 0, %s141
      %s161 = sphi 0, %s163
      %s164 = sphi 0, %s161
      %s165 = sphi 0, %s164
      %s181 = sphi 0, %s165
      %s187 = sphi 0, %s189
      %s190 = sphi 0, %s187
      %s191 = sphi 0, %s190
      %s207 = sphi 0, %s191
    $region4: #{forward.10} parent=1 // loop_header_branch
      %16 = sbr.rel (%p14) target = $region8
    $region5: #{forward.10} parent=1 // loop_body
      %s18 = ssub.s32 %s13, 1
      %s19 = ssub.s32 %s13, 2
      %s26 = sadd.s32 1, %s21
      %p27 = scmp.ge.s32.totalorder %s26, 2
      %s28 = scalar_select %p27, 0, %s26
      %s29 = sadd.s32 1, %s20
      %s30 = scalar_select %p27, %s29, %s20
      %p31 = scmp.ge.s32.totalorder %s30, 2
      %s32 = scalar_select %p31, 0, %s30
      %s33 = sadd.s32 %s21, 2
      %s34 = sadd.s32 %s28, 2
      %s35 = ssub.s32 %s20, %s32
      %s36 = ssub.s32 %s33, %s34
      %s37 = sor.u32 %s35, %s36
      %p38 = scmp.eq.s32.totalorder %s37, 0
      %s40 = sadd.s32 %s39, 1
      %s41 = scalar_select %p38, %s39, %s40
      %p44 = pneg %p38
      %p45 = scmp.eq.s32.totalorder %s13, 3
      %p46 = por %p44, %p45
      %p47 = scmp.ne.s32.totalorder %s39, %s42
      %p48 = scmp.eq.s32.totalorder %s13, 0
      %p49 = por %p47, %p48
      %p50 = scmp.ne.s32.totalorder %s39, %s42
      %p51 = scmp.eq.s32.totalorder %s18, 3
      %p52 = por %p50, %p51
      %p53 = scmp.ne.s32.totalorder %s42, %s43
      %p54 = scmp.eq.s32.totalorder %s18, 0
      %p55 = por %p53, %p54
      %p56 = scmp.ne.s32.totalorder %s42, %s43
      %p57 = scmp.eq.s32.totalorder %s19, 3
      %p58 = por %p56, %p57
      %p60 = scmp.ne.s32.totalorder %s43, %s59
      %p61 = scmp.eq.s32.totalorder %s19, 0
      %p62 = por %p60, %p61
      %s63 = ssub.s32 %s21, %s28
      %p64 = scmp.eq.s32.totalorder %s63, 0
      %s66 = sadd.s32 %s65, 1
      %s67 = scalar_select %p64, %s65, %s66
      %p70 = pneg %p64
      %p71 = scmp.eq.s32.totalorder %s13, 3
      %p72 = por %p70, %p71
      %p73 = scmp.ne.s32.totalorder %s65, %s68
      %p74 = scmp.eq.s32.totalorder %s13, 0
      %p75 = por %p73, %p74
      %p76 = scmp.ne.s32.totalorder %s65, %s68
      %p77 = scmp.eq.s32.totalorder %s18, 3
      %p78 = por %p76, %p77
      %p79 = scmp.ne.s32.totalorder %s68, %s69
      %p80 = scmp.eq.s32.totalorder %s18, 0
      %p81 = por %p79, %p80
      %p82 = scmp.ne.s32.totalorder %s68, %s69
      %p83 = scmp.eq.s32.totalorder %s19, 3
      %p84 = por %p82, %p83
      %p86 = scmp.ne.s32.totalorder %s69, %s85
      %p87 = scmp.eq.s32.totalorder %s19, 0
      %p88 = por %p86, %p87
      %s89 = sadd.s32 %s21, 2
      %s90 = sadd.s32 %s28, 2
      %s91 = ssub.s32 %s89, %s90
      %p92 = scmp.eq.s32.totalorder %s91, 0
      %s94 = sadd.s32 %s93, 1
      %s95 = scalar_select %p92, %s93, %s94
      %p98 = pneg %p92
      %p99 = scmp.eq.s32.totalorder %s13, 3
      %p100 = por %p98, %p99
      %p101 = scmp.ne.s32.totalorder %s93, %s96
      %p102 = scmp.eq.s32.totalorder %s13, 0
      %p103 = por %p101, %p102
      %p104 = scmp.ne.s32.totalorder %s93, %s96
      %p105 = scmp.eq.s32.totalorder %s18, 3
      %p106 = por %p104, %p105
      %p107 = scmp.ne.s32.totalorder %s96, %s97
      %p108 = scmp.eq.s32.totalorder %s18, 0
      %p109 = por %p107, %p108
      %p110 = scmp.ne.s32.totalorder %s96, %s97
      %p111 = scmp.eq.s32.totalorder %s19, 3
      %p112 = por %p110, %p111
      %p114 = scmp.ne.s32.totalorder %s97, %s113
      %p115 = scmp.eq.s32.totalorder %s19, 0
      %p116 = por %p114, %p115
      %s118 = sadd.s32 %s117, 1
      %p121 = scmp.eq.s32.totalorder %s13, 3
      %p122 = scmp.ne.s32.totalorder %s117, %s119
      %p123 = scmp.eq.s32.totalorder %s13, 0
      %p124 = por %p122, %p123
      %p125 = scmp.ne.s32.totalorder %s117, %s119
      %p126 = scmp.eq.s32.totalorder %s18, 3
      %p127 = por %p125, %p126
      %p128 = scmp.ne.s32.totalorder %s119, %s120
      %p129 = scmp.eq.s32.totalorder %s18, 0
      %p130 = por %p128, %p129
      %p131 = scmp.ne.s32.totalorder %s119, %s120
      %p132 = scmp.eq.s32.totalorder %s19, 3
      %p133 = por %p131, %p132
      %p135 = scmp.ne.s32.totalorder %s120, %s134
      %p136 = scmp.eq.s32.totalorder %s19, 0
      %p137 = por %p135, %p136
      %s139 = sadd.s32 %s138, 1
      %p142 = scmp.eq.s32.totalorder %s13, 3
      %p143 = scmp.ne.s32.totalorder %s138, %s140
      %p144 = scmp.eq.s32.totalorder %s13, 0
      %p145 = por %p143, %p144
      %p146 = scmp.ne.s32.totalorder %s138, %s140
      %p147 = scmp.eq.s32.totalorder %s18, 3
      %p148 = por %p146, %p147
      %p149 = scmp.ne.s32.totalorder %s140, %s141
      %p150 = scmp.eq.s32.totalorder %s18, 0
      %p151 = por %p149, %p150
      %p152 = scmp.ne.s32.totalorder %s140, %s141
      %p153 = scmp.eq.s32.totalorder %s19, 3
      %p154 = por %p152, %p153
      %p156 = scmp.ne.s32.totalorder %s141, %s155
      %p157 = scmp.eq.s32.totalorder %s19, 0
      %p158 = por %p156, %p157
      %s159 = ssub.s32 %s20, %s32
      %p160 = scmp.eq.s32.totalorder %s159, 0
      %s162 = sadd.s32 %s161, 1
      %s163 = scalar_select %p160, %s161, %s162
      %p166 = pneg %p160
      %p167 = scmp.eq.s32.totalorder %s13, 3
      %p168 = por %p166, %p167
      %p169 = scmp.ne.s32.totalorder %s161, %s164
      %p170 = scmp.eq.s32.totalorder %s13, 0
      %p171 = por %p169, %p170
      %p172 = scmp.ne.s32.totalorder %s161, %s164
      %p173 = scmp.eq.s32.totalorder %s18, 3
      %p174 = por %p172, %p173
      %p175 = scmp.ne.s32.totalorder %s164, %s165
      %p176 = scmp.eq.s32.totalorder %s18, 0
      %p177 = por %p175, %p176
      %p178 = scmp.ne.s32.totalorder %s164, %s165
      %p179 = scmp.eq.s32.totalorder %s19, 3
      %p180 = por %p178, %p179
      %p182 = scmp.ne.s32.totalorder %s165, %s181
      %p183 = scmp.eq.s32.totalorder %s19, 0
      %p184 = por %p182, %p183
      %s185 = ssub.s32 %s20, %s32
      %p186 = scmp.eq.s32.totalorder %s185, 0
      %s188 = sadd.s32 %s187, 1
      %s189 = scalar_select %p186, %s187, %s188
      %p192 = pneg %p186
      %p193 = scmp.eq.s32.totalorder %s13, 3
      %p194 = por %p192, %p193
      %p195 = scmp.ne.s32.totalorder %s187, %s190
      %p196 = scmp.eq.s32.totalorder %s13, 0
      %p197 = por %p195, %p196
      %p198 = scmp.ne.s32.totalorder %s187, %s190
      %p199 = scmp.eq.s32.totalorder %s18, 3
      %p200 = por %p198, %p199
      %p201 = scmp.ne.s32.totalorder %s190, %s191
      %p202 = scmp.eq.s32.totalorder %s18, 0
      %p203 = por %p201, %p202
      %p204 = scmp.ne.s32.totalorder %s190, %s191
      %p205 = scmp.eq.s32.totalorder %s19, 3
      %p206 = por %p204, %p205
      %p208 = scmp.ne.s32.totalorder %s191, %s207
      %p209 = scmp.eq.s32.totalorder %s19, 0
      %p210 = por %p208, %p209
      %p211 = scmp.le.s32.totalorder 1, %s13
      %p212 = scmp.lt.s32.totalorder %s13, 5
      %p213 = pnand %p211, %p212
      %p214 = pneg %p213
      // Predicated region
      $region9: #{forward.10} parent=5 // pred_check
        _
      $region10: #{forward.10} parent=5 // pred_check_branch
        %216 = sbr.rel (%p213) target = $region12
      $region11: #{forward.10} parent=5 // pred_region
        %s217 = ssub.s32 %s13, 1
        // Predicated region
        $region13: #{forward.10} parent=11 // pred_check
          %p218 = pneg %p130
        $region14: #{forward.10} parent=11 // pred_check_branch
          %220 = sbr.rel (%p218) target = $region16
        $region15: #{forward.10} parent=11 // pred_region
          _
        $region16: #{forward.10} parent=11 // pred_fallthru
          _
        // Predicated region
        $region17: #{forward.10} parent=11 // pred_check
          %p221 = pneg %p151
        $region18: #{forward.10} parent=11 // pred_check_branch
          %223 = sbr.rel (%p221) target = $region20
        $region19: #{forward.10} parent=11 // pred_region
          _
        $region20: #{forward.10} parent=11 // pred_fallthru
          _
      $region12: #{forward.10} parent=5 // pred_fallthru
        _
      %p224 = scmp.lt.s32.totalorder %s13, 4
      // Predicated region
      $region21: #{forward.10} parent=5 // pred_check
        %p225 = pneg %p224
      $region22: #{forward.10} parent=5 // pred_check_branch
        %227 = sbr.rel (%p225) target = $region24
      $region23: #{forward.10} parent=5 // pred_region
        // Predicated region
        $region25: #{forward.10} parent=23 // pred_check
          %p228 = pneg %p49
        $region26: #{forward.10} parent=23 // pred_check_branch
          %230 = sbr.rel (%p228) target = $region28
        $region27: #{forward.10} parent=23 // pred_region
          %s231 = sadd.s32 %s21, 2
          %p232 = scmp.lt.s32.totalorder %s20, 1
          %s233 = scalar_select %p232, %s20, 1
          %p234 = scmp.lt.s32.totalorder %s231, 6
          %s235 = scalar_select %p234, %s231, 6
          %s236 = smul.addr %s235, 3
          %s237 = smul.addr %s233, 21
          %s238 = sadd.s32 %s236, %s237
          %s239 = smul.addr %s238, 8
          %s240 = scalar_lea.vmem %s0, %s239
          %s241 = sadd.s32 %s21, 2
        $region28: #{forward.10} parent=23 // pred_fallthru
          _
        // Predicated region
        $region29: #{forward.10} parent=23 // pred_check
          %p242 = pneg %p75
        $region30: #{forward.10} parent=23 // pred_check_branch
          %244 = sbr.rel (%p242) target = $region32
        $region31: #{forward.10} parent=23 // pred_region
          %p245 = scmp.lt.s32.totalorder %s21, 1
          %s246 = scalar_select %p245, %s21, 1
          %s247 = smul.addr %s246, 9
          %s248 = smul.addr %s247, 8
          %s249 = scalar_lea.vmem %s1, %s248
        $region32: #{forward.10} parent=23 // pred_fallthru
          _
        // Predicated region
        $region33: #{forward.10} parent=23 // pred_check
          %p250 = pneg %p103
        $region34: #{forward.10} parent=23 // pred_check_branch
          %252 = sbr.rel (%p250) target = $region36
        $region35: #{forward.10} parent=23 // pred_region
          %s253 = sand.u32 %s93, 1
          %s254 = sand.u32 %s93, 1
          %s255 = smul.addr %s254, 24
          %s256 = scalar_lea.vmem [#allocation3], %s255
          %s257 = sadd.s32 %s21, 2
          %s258 = smul.addr %s257, 8
          %s259 = scalar_lea.vmem %s2, %s258
          // Predicated region
          $region37: #{forward.10} parent=35 // pred_check
            _
          $region38: #{forward.10} parent=35 // pred_check_branch
            %261 = sbr.rel (0) target = $region40
          $region39: #{forward.10} parent=35 // pred_region
            // Predicated region
            $region41: #{forward.10} parent=39 // pred_check
              _
            $region42: #{forward.10} parent=39 // pred_check_branch
              %263 = sbr.rel (0) target = $region44
            $region43: #{forward.10} parent=39 // pred_region
              // Predicated region
              $region56: #{forward.10} parent=43 // pred_check
                _
              $region57: #{forward.10} parent=43 // pred_check_branch
                %283 = sbr.rel (0) target = $region59
              $region58: #{forward.10} parent=43 // pred_region
                loop: start=0, step=1, limit=1
                $region60: #{forward.10} parent=58 // loop_pre_header
                  _
                $region61: #{forward.10} parent=58 // loop_header
                  %s285 = sphi 0, %s289
                  %p286 = scmp.ge.s32.totalorder %s285, 1
                  %s290 = sphi %s259, %s259
                  %s291 = sphi %s256, %s256
                $region62: #{forward.10} parent=58 // loop_header_branch
                  %288 = sbr.rel (%p286) target = $region66
                $region63: #{forward.10} parent=58 // loop_body
                  %v292 = vld [vmem:[%s290] sm:$0xff]
                  %293 = vst [vmem:[%s291] sm:$0xff] %v292
                  %v294 = vld [vmem:[%s290 + $0x38] sm:$0xff]
                  %295 = vst [vmem:[%s291 + $0x8] sm:$0xff] %v294
                  %v296 = vld [vmem:[%s290 + $0x70] sm:$0xff]
                  %297 = vst [vmem:[%s291 + $0x10] sm:$0xff] %v296
                $region64: #{forward.10} parent=58 // loop_footer
                  %s289 = sadd.s32 1, %s285
                $region65: #{forward.10} parent=58 // loop_footer_branch
                  %284 = sbr.rel target = $region61
                $region66: #{forward.10} parent=58 // loop_exit
                  _
              $region59: #{forward.10} parent=43 // pred_fallthru
                _
              // Predicated region
              $region67: #{forward.10} parent=43 // pred_check
                _
              $region68: #{forward.10} parent=43 // pred_check_branch
                %299 = sbr.rel target = $region70
              $region69: #{forward.10} parent=43 // pred_region
                _
              $region70: #{forward.10} parent=43 // pred_fallthru
                _
            $region44: #{forward.10} parent=39 // pred_fallthru
              _
            // Predicated region
            $region45: #{forward.10} parent=39 // pred_check
              _
            $region46: #{forward.10} parent=39 // pred_check_branch
              %265 = sbr.rel target = $region48
            $region47: #{forward.10} parent=39 // pred_region
              %s267 = ssub.s32 256, 1
              loop: start=0, step=1, limit=1
              $region49: #{forward.10} parent=47 // loop_pre_header
                _
              $region50: #{forward.10} parent=47 // loop_header
                %s269 = sphi 0, %s273
                %p270 = scmp.ge.s32.totalorder %s269, 1
                %s274 = sphi %s259, %s259
                %s275 = sphi %s256, %s256
              $region51: #{forward.10} parent=47 // loop_header_branch
                %272 = sbr.rel (%p270) target = $region55
              $region52: #{forward.10} parent=47 // loop_body
                %v276 = vld [vmem:[%s274] sm:%s267]
                %277 = vst [vmem:[%s275] sm:%s267] %v276
                %v278 = vld [vmem:[%s274 + $0x38] sm:%s267]
                %279 = vst [vmem:[%s275 + $0x8] sm:%s267] %v278
                %v280 = vld [vmem:[%s274 + $0x70] sm:%s267]
                %281 = vst [vmem:[%s275 + $0x10] sm:%s267] %v280
              $region53: #{forward.10} parent=47 // loop_footer
                %s273 = sadd.s32 1, %s269
              $region54: #{forward.10} parent=47 // loop_footer_branch
                %268 = sbr.rel target = $region50
              $region55: #{forward.10} parent=47 // loop_exit
                _
            $region48: #{forward.10} parent=39 // pred_fallthru
              _
          $region40: #{forward.10} parent=35 // pred_fallthru
            _
          %300 = vnop
        $region36: #{forward.10} parent=23 // pred_fallthru
          _
      $region24: #{forward.10} parent=5 // pred_fallthru
        _
      %p301 = scmp.le.s32.totalorder 1, %s13
      %p302 = scmp.lt.s32.totalorder %s13, 5
      %p303 = pnand %p301, %p302
      %p304 = pneg %p303
      // Predicated region
      $region71: #{forward.10} parent=5 // pred_check
        _
      $region72: #{forward.10} parent=5 // pred_check_branch
        %306 = sbr.rel (%p303) target = $region74
      $region73: #{forward.10} parent=5 // pred_region
        %s307 = ssub.s32 %s13, 1
        %s308 = sand.u32 %s96, 1
        %s309 = sand.u32 %s96, 1
        %s310 = smul.addr %s309, 24
        %s311 = scalar_lea.vmem [#allocation3], %s310
        // Predicated region
        $region75: #{forward.10} parent=73 // pred_check
          %p312 = pneg %p109
        $region76: #{forward.10} parent=73 // pred_check_branch
          %314 = sbr.rel (%p312) target = $region78
        $region77: #{forward.10} parent=73 // pred_region
          _
        $region78: #{forward.10} parent=73 // pred_fallthru
          _
        %s315 = sadd.s32 %s23, 2
        %p316 = scmp.lt.s32.totalorder %s22, 1
        %s317 = scalar_select %p316, %s22, 1
        %p318 = scmp.lt.s32.totalorder %s315, 6
        %s319 = scalar_select %p318, %s315, 6
        %s320 = smul.addr %s319, 3
        %s321 = smul.addr %s317, 21
        %s322 = sadd.s32 %s320, %s321
        %s323 = smul.addr %s322, 8
        %s324 = scalar_lea.vmem %s0, %s323
        %p325 = pneg %p55
        %p326 = pneg %p52
        %p327 = scmp.lt.s32.totalorder %s23, 1
        %s328 = scalar_select %p327, %s23, 1
        %s329 = smul.addr %s328, 9
        %s330 = smul.addr %s329, 8
        %s331 = scalar_lea.vmem %s1, %s330
        %p332 = pneg %p81
        %p333 = pneg %p78
        %s334 = sand.u32 %s96, 1
        %s335 = sand.u32 %s96, 1
        %s336 = smul.addr %s335, 24
        %s337 = scalar_lea.vmem [#allocation3], %s336
        %p338 = pneg %p109
        %p339 = pneg %p106
        %p340 = pneg %p130
        %p341 = pneg %p127
        %p342 = pneg %p151
        %p343 = pneg %p148
        %p344 = pneg %p177
        %p345 = pneg %p174
        %p346 = scmp.lt.s32.totalorder %s22, 1
        %s347 = scalar_select %p346, %s22, 1
        %s348 = smul.addr %s347, 21
        %s349 = sadd.s32 12, %s348
        %s350 = smul.addr %s349, 8
        %s351 = scalar_lea.vmem %s5, %s350
        %p352 = pneg %p203
        %p353 = pneg %p200
        %p354 = scmp.lt.s32.totalorder %s22, 1
        %s355 = scalar_select %p354, %s22, 1
        %s356 = smul.addr %s355, 8
        %s357 = scalar_lea.vmem %s6, %s356
        %s358 = sadd.s32 %s23, 2
        %p359 = scmp.lt.s32.totalorder %s22, 1
        %s360 = scalar_select %p359, %s22, 1
        %p361 = scmp.lt.s32.totalorder %s358, 6
        %s362 = scalar_select %p361, %s358, 6
        %s363 = smul.addr %s362, 3
        %s364 = smul.addr %s360, 21
        %s365 = sadd.s32 %s363, %s364
        %s366 = smul.addr %s365, 8
        %s367 = scalar_lea.vmem %s0, %s366
        %s368 = sadd.s32 %s23, 2
        %p369 = scmp.lt.s32.totalorder %s23, 1
        %s370 = scalar_select %p369, %s23, 1
        %s371 = smul.addr %s370, 9
        %s372 = smul.addr %s371, 8
        %s373 = scalar_lea.vmem %s1, %s372
        %s374 = sadd.s32 %s23, 2
        %p375 = scmp.lt.s32.totalorder %s22, 1
        %s376 = scalar_select %p375, %s22, 1
        %s377 = smul.addr %s376, 21
        %s378 = sadd.s32 12, %s377
        %s379 = smul.addr %s378, 8
        %s380 = scalar_lea.vmem %s5, %s379
        %p381 = scmp.lt.s32.totalorder %s22, 1
        %s382 = scalar_select %p381, %s22, 1
        %s383 = smul.addr %s382, 8
        %s384 = scalar_lea.vmem %s6, %s383
        %p385 = scmp.eq.s32.totalorder %s23, 0
        // Predicated region
        $region79: #{forward.10} parent=73 // pred_check
          %p386 = pneg %p385
        $region80: #{forward.10} parent=73 // pred_check_branch
          %388 = sbr.rel (%p386) target = $region82
        $region81: #{forward.10} parent=73 // pred_region
          %389 = vst [vmem:[#allocation2] sm:$0xff] 0.0
          %390 = vst [vmem:[#allocation2 + $0x8] sm:$0xff] 0.0
          %vm391 = vcmask 261120
          %392 = vst.msk [vmem:[#allocation2 + $0x10] sm:$0xff] %vm391, 0.0
        $region82: #{forward.10} parent=73 // pred_fallthru
          _
        %v393 = vld [vmem:[%s367] sm:$0xff]
        %v394 = vld [vmem:[%s367 + $0x8] sm:$0xff]
        %v395 = vld [vmem:[%s367 + $0x10] sm:$0xff]
        %v396 = vld [vmem:[%s311] sm:$0xff]
        %398 = vset.pattern.permute.xlu0 0
        %399 = vperm.xlu0 %398, %v396
        %v400 = vpop.permute.xlu0 %399
        %v402 = vmul.f32 %v393, %v400
        %v403 = vmul.f32 %v394, %v400
        %v404 = vmul.f32 %v395, %v400
        %s405 = scalar_lea.vmem %s311, 8 [#allocation3]
        %v406 = vld [vmem:[%s405] sm:$0xff]
        %408 = vset.pattern.permute.xlu0 0
        %409 = vperm.xlu0 %408, %v406
        %v410 = vpop.permute.xlu0 %409
        %v412 = vadd.f32 %v402, %v410
        %v413 = vadd.f32 %v403, %v410
        %v414 = vadd.f32 %v404, %v410
        %s415 = scalar_lea.vmem %s311, 16 [#allocation3]
        %v416 = vld [vmem:[%s415] sm:$0xff]
        %418 = vset.pattern.permute.xlu0 0
        %419 = vperm.xlu0 %418, %v416
        %v420 = vpop.permute.xlu0 %419
        %v422 = vmax.f32 %v412, %v420
        %v423 = vmax.f32 %v413, %v420
        %v424 = vmax.f32 %v414, %v420
        %v425 = vld [vmem:[%s4] sm:$0x7]
        %v427 = vperm.slane %v425, 0
        %v428 = vperm.slane %v425, 1
        %v429 = vperm.slane %v425, 2
        %v433 = vmul.f32 %v422, %v427
        %v434 = vmul.f32 %v423, %v428
        %v435 = vmul.f32 %v424, %v429
        %v436 = vld [vmem:[%s373] sm:$0xff]
        %s437 = scalar_lea.vmem %s373, 8
        %v438 = vld [vmem:[%s437] sm:$0xff]
        %442 = vrot.lane.b32.xlu0 %v433, 127
        %v443 = vpop.permute.xlu0 %442
        %444 = vrot.lane.b32.xlu0 %v434, 127
        %v445 = vpop.permute.xlu0 %444
        %446 = vrot.lane.b32.xlu0 %v435, 127
        %v447 = vpop.permute.xlu0 %446
        %vm448 = vcmask 1039360
        %v449 = vsel %vm448, %v443, %v445
        %v450 = vsel %vm448, %v445, %v447
        %vm454 = vcmask 64512
        %v456 = vsel %vm454, %v438, 0
        %458 = vmatpush.msra.mxu0 0.0
        %459 = vmatpush.msra.mxu0 0.0
        %460 = vmatpush.msra.mxu0 0.0
        %461 = vmatpush.msra.mxu0 0.0
        %462 = vmatpush.msra.mxu0 0.0
        %463 = vmatpush.msra.mxu0 0.0
        %464 = vmatpush.msra.mxu0 0.0
        %465 = vmatpush.msra.mxu0 0.0
        %466 = vmatpush.msra.mxu0 0.0
        %467 = vmatpush.msra.mxu0 0.0
        %468 = vmatpush.msra.mxu0 0.0
        %469 = vmatpush.msra.mxu0 0.0
        %470 = vmatpush.msra.mxu0 0.0
        %471 = vmatpush.msra.mxu0 0.0
        %472 = vmatpush.msra.mxu0 0.0
        %473 = vmatpush.msra.mxu0 %v449
        %474 = vmatmul.f32.gmra.mxu0 %v456
        %v475 = vpop.f32.mrf.mxu0
        %v476 = vadd.f32 0.0, %v475
        %477 = vdwg.mxu0
        %478 = vmatpush.msra.mxu0 0.0
        %479 = vmatpush.msra.mxu0 0.0
        %480 = vmatpush.msra.mxu0 0.0
        %481 = vmatpush.msra.mxu0 0.0
        %482 = vmatpush.msra.mxu0 0.0
        %483 = vmatpush.msra.mxu0 0.0
        %484 = vmatpush.msra.mxu0 0.0
        %485 = vmatpush.msra.mxu0 0.0
        %486 = vmatpush.msra.mxu0 0.0
        %487 = vmatpush.msra.mxu0 0.0
        %488 = vmatpush.msra.mxu0 0.0
        %489 = vmatpush.msra.mxu0 0.0
        %490 = vmatpush.msra.mxu0 0.0
        %491 = vmatpush.msra.mxu0 0.0
        %492 = vmatpush.msra.mxu0 0.0
        %493 = vmatpush.msra.mxu0 %v450
        %494 = vmatmul.f32.gmra.mxu0 %v456
        %v495 = vpop.f32.mrf.mxu0
        %v496 = vadd.f32 0.0, %v495
        %497 = vdwg.mxu0
        %498 = vmatpush.msra.mxu0 0.0
        %499 = vmatpush.msra.mxu0 0.0
        %500 = vmatpush.msra.mxu0 0.0
        %501 = vmatpush.msra.mxu0 0.0
        %502 = vmatpush.msra.mxu0 0.0
        %503 = vmatpush.msra.mxu0 0.0
        %504 = vmatpush.msra.mxu0 0.0
        %505 = vmatpush.msra.mxu0 0.0
        %506 = vmatpush.msra.mxu0 0.0
        %507 = vmatpush.msra.mxu0 0.0
        %508 = vmatpush.msra.mxu0 0.0
        %509 = vmatpush.msra.mxu0 0.0
        %510 = vmatpush.msra.mxu0 0.0
        %511 = vmatpush.msra.mxu0 0.0
        %512 = vmatpush.msra.mxu0 0.0
        %513 = vmatpush.msra.mxu0 %v447
        %514 = vmatmul.f32.gmra.mxu0 %v456
        %v515 = vpop.f32.mrf.mxu0
        %v516 = vadd.f32 0.0, %v515
        %517 = vdwg.mxu0
        %v519 = vsel %vm454, %v436, 0
        %521 = vmatpush.msra.mxu0 0.0
        %522 = vmatpush.msra.mxu0 0.0
        %523 = vmatpush.msra.mxu0 0.0
        %524 = vmatpush.msra.mxu0 0.0
        %525 = vmatpush.msra.mxu0 0.0
        %526 = vmatpush.msra.mxu0 0.0
        %527 = vmatpush.msra.mxu0 0.0
        %528 = vmatpush.msra.mxu0 0.0
        %529 = vmatpush.msra.mxu0 0.0
        %530 = vmatpush.msra.mxu0 0.0
        %531 = vmatpush.msra.mxu0 0.0
        %532 = vmatpush.msra.mxu0 0.0
        %533 = vmatpush.msra.mxu0 0.0
        %534 = vmatpush.msra.mxu0 0.0
        %535 = vmatpush.msra.mxu0 0.0
        %536 = vmatpush.msra.mxu0 %v433
        %537 = vmatmul.f32.gmra.mxu0 %v519
        %v538 = vpop.f32.mrf.mxu0
        %v539 = vadd.f32 %v476, %v538
        %540 = vdwg.mxu0
        %541 = vmatpush.msra.mxu0 0.0
        %542 = vmatpush.msra.mxu0 0.0
        %543 = vmatpush.msra.mxu0 0.0
        %544 = vmatpush.msra.mxu0 0.0
        %545 = vmatpush.msra.mxu0 0.0
        %546 = vmatpush.msra.mxu0 0.0
        %547 = vmatpush.msra.mxu0 0.0
        %548 = vmatpush.msra.mxu0 0.0
        %549 = vmatpush.msra.mxu0 0.0
        %550 = vmatpush.msra.mxu0 0.0
        %551 = vmatpush.msra.mxu0 0.0
        %552 = vmatpush.msra.mxu0 0.0
        %553 = vmatpush.msra.mxu0 0.0
        %554 = vmatpush.msra.mxu0 0.0
        %555 = vmatpush.msra.mxu0 0.0
        %556 = vmatpush.msra.mxu0 %v434
        %557 = vmatmul.f32.gmra.mxu0 %v519
        %v558 = vpop.f32.mrf.mxu0
        %v559 = vadd.f32 %v496, %v558
        %560 = vdwg.mxu0
        %561 = vmatpush.msra.mxu0 0.0
        %562 = vmatpush.msra.mxu0 0.0
        %563 = vmatpush.msra.mxu0 0.0
        %564 = vmatpush.msra.mxu0 0.0
        %565 = vmatpush.msra.mxu0 0.0
        %566 = vmatpush.msra.mxu0 0.0
        %567 = vmatpush.msra.mxu0 0.0
        %568 = vmatpush.msra.mxu0 0.0
        %569 = vmatpush.msra.mxu0 0.0
        %570 = vmatpush.msra.mxu0 0.0
        %571 = vmatpush.msra.mxu0 0.0
        %572 = vmatpush.msra.mxu0 0.0
        %573 = vmatpush.msra.mxu0 0.0
        %574 = vmatpush.msra.mxu0 0.0
        %575 = vmatpush.msra.mxu0 0.0
        %576 = vmatpush.msra.mxu0 %v435
        %577 = vmatmul.f32.gmra.mxu0 %v519
        %v578 = vpop.f32.mrf.mxu0
        %v579 = vadd.f32 %v516, %v578
        %580 = vdwg.mxu0
        %s581 = scalar_lea.vmem %s373, 16
        %v582 = vld [vmem:[%s581] sm:$0xff]
        %583 = vrot.lane.b32.xlu0 %v433, 126
        %v584 = vpop.permute.xlu0 %583
        %585 = vrot.lane.b32.xlu0 %v434, 126
        %v586 = vpop.permute.xlu0 %585
        %587 = vrot.lane.b32.xlu0 %v435, 126
        %v588 = vpop.permute.xlu0 %587
        %vm589 = vcmask 1031168
        %v590 = vsel %vm589, %v584, %v586
        %v591 = vsel %vm589, %v586, %v588
        %v596 = vsel %vm454, %v582, 0
        %598 = vmatpush.msra.mxu0 0.0
        %599 = vmatpush.msra.mxu0 0.0
        %600 = vmatpush.msra.mxu0 0.0
        %601 = vmatpush.msra.mxu0 0.0
        %602 = vmatpush.msra.mxu0 0.0
        %603 = vmatpush.msra.mxu0 0.0
        %604 = vmatpush.msra.mxu0 0.0
        %605 = vmatpush.msra.mxu0 0.0
        %606 = vmatpush.msra.mxu0 0.0
        %607 = vmatpush.msra.mxu0 0.0
        %608 = vmatpush.msra.mxu0 0.0
        %609 = vmatpush.msra.mxu0 0.0
        %610 = vmatpush.msra.mxu0 0.0
        %611 = vmatpush.msra.mxu0 0.0
        %612 = vmatpush.msra.mxu0 0.0
        %613 = vmatpush.msra.mxu0 %v590
        %614 = vmatmul.f32.gmra.mxu0 %v596
        %v615 = vpop.f32.mrf.mxu0
        %v616 = vadd.f32 0.0, %v615
        %617 = vdwg.mxu0
        %618 = vmatpush.msra.mxu0 0.0
        %619 = vmatpush.msra.mxu0 0.0
        %620 = vmatpush.msra.mxu0 0.0
        %621 = vmatpush.msra.mxu0 0.0
        %622 = vmatpush.msra.mxu0 0.0
        %623 = vmatpush.msra.mxu0 0.0
        %624 = vmatpush.msra.mxu0 0.0
        %625 = vmatpush.msra.mxu0 0.0
        %626 = vmatpush.msra.mxu0 0.0
        %627 = vmatpush.msra.mxu0 0.0
        %628 = vmatpush.msra.mxu0 0.0
        %629 = vmatpush.msra.mxu0 0.0
        %630 = vmatpush.msra.mxu0 0.0
        %631 = vmatpush.msra.mxu0 0.0
        %632 = vmatpush.msra.mxu0 0.0
        %633 = vmatpush.msra.mxu0 %v591
        %634 = vmatmul.f32.gmra.mxu0 %v596
        %v635 = vpop.f32.mrf.mxu0
        %v636 = vadd.f32 0.0, %v635
        %637 = vdwg.mxu0
        %638 = vmatpush.msra.mxu0 0.0
        %639 = vmatpush.msra.mxu0 0.0
        %640 = vmatpush.msra.mxu0 0.0
        %641 = vmatpush.msra.mxu0 0.0
        %642 = vmatpush.msra.mxu0 0.0
        %643 = vmatpush.msra.mxu0 0.0
        %644 = vmatpush.msra.mxu0 0.0
        %645 = vmatpush.msra.mxu0 0.0
        %646 = vmatpush.msra.mxu0 0.0
        %647 = vmatpush.msra.mxu0 0.0
        %648 = vmatpush.msra.mxu0 0.0
        %649 = vmatpush.msra.mxu0 0.0
        %650 = vmatpush.msra.mxu0 0.0
        %651 = vmatpush.msra.mxu0 0.0
        %652 = vmatpush.msra.mxu0 0.0
        %653 = vmatpush.msra.mxu0 %v588
        %654 = vmatmul.f32.gmra.mxu0 %v596
        %v655 = vpop.f32.mrf.mxu0
        %v656 = vadd.f32 0.0, %v655
        %657 = vdwg.mxu0
        %v658 = vadd.f32 %v539, %v616
        %v659 = vadd.f32 %v559, %v636
        %v660 = vadd.f32 %v579, %v656
        %s661 = scalar_lea.vmem %s373, 24
        %v662 = vld [vmem:[%s661] sm:$0xff]
        %663 = vrot.lane.b32.xlu0 %v433, 110
        %v664 = vpop.permute.xlu0 %663
        %665 = vrot.lane.b32.xlu0 %v434, 110
        %v666 = vpop.permute.xlu0 %665
        %667 = vrot.lane.b32.xlu0 %v435, 110
        %v668 = vpop.permute.xlu0 %667
        %vm669 = vcmask 900096
        %v670 = vsel %vm669, %v664, %v666
        %v671 = vsel %vm669, %v666, %v668
        %v676 = vsel %vm454, %v662, 0
        %678 = vmatpush.msra.mxu0 0.0
        %679 = vmatpush.msra.mxu0 0.0
        %680 = vmatpush.msra.mxu0 0.0
        %681 = vmatpush.msra.mxu0 0.0
        %682 = vmatpush.msra.mxu0 0.0
        %683 = vmatpush.msra.mxu0 0.0
        %684 = vmatpush.msra.mxu0 0.0
        %685 = vmatpush.msra.mxu0 0.0
        %686 = vmatpush.msra.mxu0 0.0
        %687 = vmatpush.msra.mxu0 0.0
        %688 = vmatpush.msra.mxu0 0.0
        %689 = vmatpush.msra.mxu0 0.0
        %690 = vmatpush.msra.mxu0 0.0
        %691 = vmatpush.msra.mxu0 0.0
        %692 = vmatpush.msra.mxu0 0.0
        %693 = vmatpush.msra.mxu0 %v670
        %694 = vmatmul.f32.gmra.mxu0 %v676
        %v695 = vpop.f32.mrf.mxu0
        %v696 = vadd.f32 0.0, %v695
        %697 = vdwg.mxu0
        %698 = vmatpush.msra.mxu0 0.0
        %699 = vmatpush.msra.mxu0 0.0
        %700 = vmatpush.msra.mxu0 0.0
        %701 = vmatpush.msra.mxu0 0.0
        %702 = vmatpush.msra.mxu0 0.0
        %703 = vmatpush.msra.mxu0 0.0
        %704 = vmatpush.msra.mxu0 0.0
        %705 = vmatpush.msra.mxu0 0.0
        %706 = vmatpush.msra.mxu0 0.0
        %707 = vmatpush.msra.mxu0 0.0
        %708 = vmatpush.msra.mxu0 0.0
        %709 = vmatpush.msra.mxu0 0.0
        %710 = vmatpush.msra.mxu0 0.0
        %711 = vmatpush.msra.mxu0 0.0
        %712 = vmatpush.msra.mxu0 0.0
        %713 = vmatpush.msra.mxu0 %v671
        %714 = vmatmul.f32.gmra.mxu0 %v676
        %v715 = vpop.f32.mrf.mxu0
        %v716 = vadd.f32 0.0, %v715
        %717 = vdwg.mxu0
        %718 = vmatpush.msra.mxu0 0.0
        %719 = vmatpush.msra.mxu0 0.0
        %720 = vmatpush.msra.mxu0 0.0
        %721 = vmatpush.msra.mxu0 0.0
        %722 = vmatpush.msra.mxu0 0.0
        %723 = vmatpush.msra.mxu0 0.0
        %724 = vmatpush.msra.mxu0 0.0
        %725 = vmatpush.msra.mxu0 0.0
        %726 = vmatpush.msra.mxu0 0.0
        %727 = vmatpush.msra.mxu0 0.0
        %728 = vmatpush.msra.mxu0 0.0
        %729 = vmatpush.msra.mxu0 0.0
        %730 = vmatpush.msra.mxu0 0.0
        %731 = vmatpush.msra.mxu0 0.0
        %732 = vmatpush.msra.mxu0 0.0
        %733 = vmatpush.msra.mxu0 %v668
        %734 = vmatmul.f32.gmra.mxu0 %v676
        %v735 = vpop.f32.mrf.mxu0
        %v736 = vadd.f32 0.0, %v735
        %737 = vdwg.mxu0
        %v738 = vadd.f32 %v658, %v696
        %v739 = vadd.f32 %v659, %v716
        %v740 = vadd.f32 %v660, %v736
        %s741 = scalar_lea.vmem %s373, 32
        %v742 = vld [vmem:[%s741] sm:$0xff]
        %743 = vrot.lane.b32.xlu0 %v433, 109
        %v744 = vpop.permute.xlu0 %743
        %745 = vrot.lane.b32.xlu0 %v434, 109
        %v746 = vpop.permute.xlu0 %745
        %747 = vrot.lane.b32.xlu0 %v435, 109
        %v748 = vpop.permute.xlu0 %747
        %vm749 = vcmask 891904
        %v750 = vsel %vm749, %v744, %v746
        %v751 = vsel %vm749, %v746, %v748
        %v756 = vsel %vm454, %v742, 0
        %758 = vmatpush.msra.mxu0 0.0
        %759 = vmatpush.msra.mxu0 0.0
        %760 = vmatpush.msra.mxu0 0.0
        %761 = vmatpush.msra.mxu0 0.0
        %762 = vmatpush.msra.mxu0 0.0
        %763 = vmatpush.msra.mxu0 0.0
        %764 = vmatpush.msra.mxu0 0.0
        %765 = vmatpush.msra.mxu0 0.0
        %766 = vmatpush.msra.mxu0 0.0
        %767 = vmatpush.msra.mxu0 0.0
        %768 = vmatpush.msra.mxu0 0.0
        %769 = vmatpush.msra.mxu0 0.0
        %770 = vmatpush.msra.mxu0 0.0
        %771 = vmatpush.msra.mxu0 0.0
        %772 = vmatpush.msra.mxu0 0.0
        %773 = vmatpush.msra.mxu0 %v750
        %774 = vmatmul.f32.gmra.mxu0 %v756
        %v775 = vpop.f32.mrf.mxu0
        %v776 = vadd.f32 0.0, %v775
        %777 = vdwg.mxu0
        %778 = vmatpush.msra.mxu0 0.0
        %779 = vmatpush.msra.mxu0 0.0
        %780 = vmatpush.msra.mxu0 0.0
        %781 = vmatpush.msra.mxu0 0.0
        %782 = vmatpush.msra.mxu0 0.0
        %783 = vmatpush.msra.mxu0 0.0
        %784 = vmatpush.msra.mxu0 0.0
        %785 = vmatpush.msra.mxu0 0.0
        %786 = vmatpush.msra.mxu0 0.0
        %787 = vmatpush.msra.mxu0 0.0
        %788 = vmatpush.msra.mxu0 0.0
        %789 = vmatpush.msra.mxu0 0.0
        %790 = vmatpush.msra.mxu0 0.0
        %791 = vmatpush.msra.mxu0 0.0
        %792 = vmatpush.msra.mxu0 0.0
        %793 = vmatpush.msra.mxu0 %v751
        %794 = vmatmul.f32.gmra.mxu0 %v756
        %v795 = vpop.f32.mrf.mxu0
        %v796 = vadd.f32 0.0, %v795
        %797 = vdwg.mxu0
        %798 = vmatpush.msra.mxu0 0.0
        %799 = vmatpush.msra.mxu0 0.0
        %800 = vmatpush.msra.mxu0 0.0
        %801 = vmatpush.msra.mxu0 0.0
        %802 = vmatpush.msra.mxu0 0.0
        %803 = vmatpush.msra.mxu0 0.0
        %804 = vmatpush.msra.mxu0 0.0
        %805 = vmatpush.msra.mxu0 0.0
        %806 = vmatpush.msra.mxu0 0.0
        %807 = vmatpush.msra.mxu0 0.0
        %808 = vmatpush.msra.mxu0 0.0
        %809 = vmatpush.msra.mxu0 0.0
        %810 = vmatpush.msra.mxu0 0.0
        %811 = vmatpush.msra.mxu0 0.0
        %812 = vmatpush.msra.mxu0 0.0
        %813 = vmatpush.msra.mxu0 %v748
        %814 = vmatmul.f32.gmra.mxu0 %v756
        %v815 = vpop.f32.mrf.mxu0
        %v816 = vadd.f32 0.0, %v815
        %817 = vdwg.mxu0
        %v818 = vadd.f32 %v738, %v776
        %v819 = vadd.f32 %v739, %v796
        %v820 = vadd.f32 %v740, %v816
        %s821 = scalar_lea.vmem %s373, 40
        %v822 = vld [vmem:[%s821] sm:$0xff]
        %823 = vrot.lane.b32.xlu0 %v433, 108
        %v824 = vpop.permute.xlu0 %823
        %825 = vrot.lane.b32.xlu0 %v434, 108
        %v826 = vpop.permute.xlu0 %825
        %827 = vrot.lane.b32.xlu0 %v435, 108
        %v828 = vpop.permute.xlu0 %827
        %vm829 = vcmask 883712
        %v830 = vsel %vm829, %v824, %v826
        %v831 = vsel %vm829, %v826, %v828
        %v836 = vsel %vm454, %v822, 0
        %838 = vmatpush.msra.mxu0 0.0
        %839 = vmatpush.msra.mxu0 0.0
        %840 = vmatpush.msra.mxu0 0.0
        %841 = vmatpush.msra.mxu0 0.0
        %842 = vmatpush.msra.mxu0 0.0
        %843 = vmatpush.msra.mxu0 0.0
        %844 = vmatpush.msra.mxu0 0.0
        %845 = vmatpush.msra.mxu0 0.0
        %846 = vmatpush.msra.mxu0 0.0
        %847 = vmatpush.msra.mxu0 0.0
        %848 = vmatpush.msra.mxu0 0.0
        %849 = vmatpush.msra.mxu0 0.0
        %850 = vmatpush.msra.mxu0 0.0
        %851 = vmatpush.msra.mxu0 0.0
        %852 = vmatpush.msra.mxu0 0.0
        %853 = vmatpush.msra.mxu0 %v830
        %854 = vmatmul.f32.gmra.mxu0 %v836
        %v855 = vpop.f32.mrf.mxu0
        %v856 = vadd.f32 0.0, %v855
        %857 = vdwg.mxu0
        %858 = vmatpush.msra.mxu0 0.0
        %859 = vmatpush.msra.mxu0 0.0
        %860 = vmatpush.msra.mxu0 0.0
        %861 = vmatpush.msra.mxu0 0.0
        %862 = vmatpush.msra.mxu0 0.0
        %863 = vmatpush.msra.mxu0 0.0
        %864 = vmatpush.msra.mxu0 0.0
        %865 = vmatpush.msra.mxu0 0.0
        %866 = vmatpush.msra.mxu0 0.0
        %867 = vmatpush.msra.mxu0 0.0
        %868 = vmatpush.msra.mxu0 0.0
        %869 = vmatpush.msra.mxu0 0.0
        %870 = vmatpush.msra.mxu0 0.0
        %871 = vmatpush.msra.mxu0 0.0
        %872 = vmatpush.msra.mxu0 0.0
        %873 = vmatpush.msra.mxu0 %v831
        %874 = vmatmul.f32.gmra.mxu0 %v836
        %v875 = vpop.f32.mrf.mxu0
        %v876 = vadd.f32 0.0, %v875
        %877 = vdwg.mxu0
        %878 = vmatpush.msra.mxu0 0.0
        %879 = vmatpush.msra.mxu0 0.0
        %880 = vmatpush.msra.mxu0 0.0
        %881 = vmatpush.msra.mxu0 0.0
        %882 = vmatpush.msra.mxu0 0.0
        %883 = vmatpush.msra.mxu0 0.0
        %884 = vmatpush.msra.mxu0 0.0
        %885 = vmatpush.msra.mxu0 0.0
        %886 = vmatpush.msra.mxu0 0.0
        %887 = vmatpush.msra.mxu0 0.0
        %888 = vmatpush.msra.mxu0 0.0
        %889 = vmatpush.msra.mxu0 0.0
        %890 = vmatpush.msra.mxu0 0.0
        %891 = vmatpush.msra.mxu0 0.0
        %892 = vmatpush.msra.mxu0 0.0
        %893 = vmatpush.msra.mxu0 %v828
        %894 = vmatmul.f32.gmra.mxu0 %v836
        %v895 = vpop.f32.mrf.mxu0
        %v896 = vadd.f32 0.0, %v895
        %897 = vdwg.mxu0
        %v898 = vadd.f32 %v818, %v856
        %v899 = vadd.f32 %v819, %v876
        %v900 = vadd.f32 %v820, %v896
        %s901 = scalar_lea.vmem %s373, 48
        %v902 = vld [vmem:[%s901] sm:$0xff]
        %903 = vrot.lane.b32.xlu0 %v433, 92
        %v904 = vpop.permute.xlu0 %903
        %905 = vrot.lane.b32.xlu0 %v434, 92
        %v906 = vpop.permute.xlu0 %905
        %907 = vrot.lane.b32.xlu0 %v435, 92
        %v908 = vpop.permute.xlu0 %907
        %vm909 = vcmask 752640
        %v910 = vsel %vm909, %v904, %v906
        %v911 = vsel %vm909, %v906, %v908
        %v916 = vsel %vm454, %v902, 0
        %918 = vmatpush.msra.mxu0 0.0
        %919 = vmatpush.msra.mxu0 0.0
        %920 = vmatpush.msra.mxu0 0.0
        %921 = vmatpush.msra.mxu0 0.0
        %922 = vmatpush.msra.mxu0 0.0
        %923 = vmatpush.msra.mxu0 0.0
        %924 = vmatpush.msra.mxu0 0.0
        %925 = vmatpush.msra.mxu0 0.0
        %926 = vmatpush.msra.mxu0 0.0
        %927 = vmatpush.msra.mxu0 0.0
        %928 = vmatpush.msra.mxu0 0.0
        %929 = vmatpush.msra.mxu0 0.0
        %930 = vmatpush.msra.mxu0 0.0
        %931 = vmatpush.msra.mxu0 0.0
        %932 = vmatpush.msra.mxu0 0.0
        %933 = vmatpush.msra.mxu0 %v910
        %934 = vmatmul.f32.gmra.mxu0 %v916
        %v935 = vpop.f32.mrf.mxu0
        %v936 = vadd.f32 0.0, %v935
        %937 = vdwg.mxu0
        %938 = vmatpush.msra.mxu0 0.0
        %939 = vmatpush.msra.mxu0 0.0
        %940 = vmatpush.msra.mxu0 0.0
        %941 = vmatpush.msra.mxu0 0.0
        %942 = vmatpush.msra.mxu0 0.0
        %943 = vmatpush.msra.mxu0 0.0
        %944 = vmatpush.msra.mxu0 0.0
        %945 = vmatpush.msra.mxu0 0.0
        %946 = vmatpush.msra.mxu0 0.0
        %947 = vmatpush.msra.mxu0 0.0
        %948 = vmatpush.msra.mxu0 0.0
        %949 = vmatpush.msra.mxu0 0.0
        %950 = vmatpush.msra.mxu0 0.0
        %951 = vmatpush.msra.mxu0 0.0
        %952 = vmatpush.msra.mxu0 0.0
        %953 = vmatpush.msra.mxu0 %v911
        %954 = vmatmul.f32.gmra.mxu0 %v916
        %v955 = vpop.f32.mrf.mxu0
        %v956 = vadd.f32 0.0, %v955
        %957 = vdwg.mxu0
        %958 = vmatpush.msra.mxu0 0.0
        %959 = vmatpush.msra.mxu0 0.0
        %960 = vmatpush.msra.mxu0 0.0
        %961 = vmatpush.msra.mxu0 0.0
        %962 = vmatpush.msra.mxu0 0.0
        %963 = vmatpush.msra.mxu0 0.0
        %964 = vmatpush.msra.mxu0 0.0
        %965 = vmatpush.msra.mxu0 0.0
        %966 = vmatpush.msra.mxu0 0.0
        %967 = vmatpush.msra.mxu0 0.0
        %968 = vmatpush.msra.mxu0 0.0
        %969 = vmatpush.msra.mxu0 0.0
        %970 = vmatpush.msra.mxu0 0.0
        %971 = vmatpush.msra.mxu0 0.0
        %972 = vmatpush.msra.mxu0 0.0
        %973 = vmatpush.msra.mxu0 %v908
        %974 = vmatmul.f32.gmra.mxu0 %v916
        %v975 = vpop.f32.mrf.mxu0
        %v976 = vadd.f32 0.0, %v975
        %977 = vdwg.mxu0
        %v978 = vadd.f32 %v898, %v936
        %v979 = vadd.f32 %v899, %v956
        %v980 = vadd.f32 %v900, %v976
        %s981 = scalar_lea.vmem %s373, 56
        %v982 = vld [vmem:[%s981] sm:$0xff]
        %983 = vrot.lane.b32.xlu0 %v433, 91
        %v984 = vpop.permute.xlu0 %983
        %985 = vrot.lane.b32.xlu0 %v434, 91
        %v986 = vpop.permute.xlu0 %985
        %987 = vrot.lane.b32.xlu0 %v435, 91
        %v988 = vpop.permute.xlu0 %987
        %vm989 = vcmask 744448
        %v990 = vsel %vm989, %v984, %v986
        %v991 = vsel %vm989, %v986, %v988
        %v996 = vsel %vm454, %v982, 0
        %998 = vmatpush.msra.mxu0 0.0
        %999 = vmatpush.msra.mxu0 0.0
        %1000 = vmatpush.msra.mxu0 0.0
        %1001 = vmatpush.msra.mxu0 0.0
        %1002 = vmatpush.msra.mxu0 0.0
        %1003 = vmatpush.msra.mxu0 0.0
        %1004 = vmatpush.msra.mxu0 0.0
        %1005 = vmatpush.msra.mxu0 0.0
        %1006 = vmatpush.msra.mxu0 0.0
        %1007 = vmatpush.msra.mxu0 0.0
        %1008 = vmatpush.msra.mxu0 0.0
        %1009 = vmatpush.msra.mxu0 0.0
        %1010 = vmatpush.msra.mxu0 0.0
        %1011 = vmatpush.msra.mxu0 0.0
        %1012 = vmatpush.msra.mxu0 0.0
        %1013 = vmatpush.msra.mxu0 %v990
        %1014 = vmatmul.f32.gmra.mxu0 %v996
        %v1015 = vpop.f32.mrf.mxu0
        %v1016 = vadd.f32 0.0, %v1015
        %1017 = vdwg.mxu0
        %1018 = vmatpush.msra.mxu0 0.0
        %1019 = vmatpush.msra.mxu0 0.0
        %1020 = vmatpush.msra.mxu0 0.0
        %1021 = vmatpush.msra.mxu0 0.0
        %1022 = vmatpush.msra.mxu0 0.0
        %1023 = vmatpush.msra.mxu0 0.0
        %1024 = vmatpush.msra.mxu0 0.0
        %1025 = vmatpush.msra.mxu0 0.0
        %1026 = vmatpush.msra.mxu0 0.0
        %1027 = vmatpush.msra.mxu0 0.0
        %1028 = vmatpush.msra.mxu0 0.0
        %1029 = vmatpush.msra.mxu0 0.0
        %1030 = vmatpush.msra.mxu0 0.0
        %1031 = vmatpush.msra.mxu0 0.0
        %1032 = vmatpush.msra.mxu0 0.0
        %1033 = vmatpush.msra.mxu0 %v991
        %1034 = vmatmul.f32.gmra.mxu0 %v996
        %v1035 = vpop.f32.mrf.mxu0
        %v1036 = vadd.f32 0.0, %v1035
        %1037 = vdwg.mxu0
        %1038 = vmatpush.msra.mxu0 0.0
        %1039 = vmatpush.msra.mxu0 0.0
        %1040 = vmatpush.msra.mxu0 0.0
        %1041 = vmatpush.msra.mxu0 0.0
        %1042 = vmatpush.msra.mxu0 0.0
        %1043 = vmatpush.msra.mxu0 0.0
        %1044 = vmatpush.msra.mxu0 0.0
        %1045 = vmatpush.msra.mxu0 0.0
        %1046 = vmatpush.msra.mxu0 0.0
        %1047 = vmatpush.msra.mxu0 0.0
        %1048 = vmatpush.msra.mxu0 0.0
        %1049 = vmatpush.msra.mxu0 0.0
        %1050 = vmatpush.msra.mxu0 0.0
        %1051 = vmatpush.msra.mxu0 0.0
        %1052 = vmatpush.msra.mxu0 0.0
        %1053 = vmatpush.msra.mxu0 %v988
        %1054 = vmatmul.f32.gmra.mxu0 %v996
        %v1055 = vpop.f32.mrf.mxu0
        %v1056 = vadd.f32 0.0, %v1055
        %1057 = vdwg.mxu0
        %v1058 = vadd.f32 %v978, %v1016
        %v1059 = vadd.f32 %v979, %v1036
        %v1060 = vadd.f32 %v980, %v1056
        %s1061 = scalar_lea.vmem %s373, 64
        %v1062 = vld [vmem:[%s1061] sm:$0xff]
        %1063 = vrot.lane.b32.xlu0 %v433, 90
        %v1064 = vpop.permute.xlu0 %1063
        %1065 = vrot.lane.b32.xlu0 %v434, 90
        %v1066 = vpop.permute.xlu0 %1065
        %1067 = vrot.lane.b32.xlu0 %v435, 90
        %v1068 = vpop.permute.xlu0 %1067
        %vm1069 = vcmask 736256
        %v1070 = vsel %vm1069, %v1064, %v1066
        %v1071 = vsel %vm1069, %v1066, %v1068
        %v1076 = vsel %vm454, %v1062, 0
        %1078 = vmatpush.msra.mxu0 0.0
        %1079 = vmatpush.msra.mxu0 0.0
        %1080 = vmatpush.msra.mxu0 0.0
        %1081 = vmatpush.msra.mxu0 0.0
        %1082 = vmatpush.msra.mxu0 0.0
        %1083 = vmatpush.msra.mxu0 0.0
        %1084 = vmatpush.msra.mxu0 0.0
        %1085 = vmatpush.msra.mxu0 0.0
        %1086 = vmatpush.msra.mxu0 0.0
        %1087 = vmatpush.msra.mxu0 0.0
        %1088 = vmatpush.msra.mxu0 0.0
        %1089 = vmatpush.msra.mxu0 0.0
        %1090 = vmatpush.msra.mxu0 0.0
        %1091 = vmatpush.msra.mxu0 0.0
        %1092 = vmatpush.msra.mxu0 0.0
        %1093 = vmatpush.msra.mxu0 %v1070
        %1094 = vmatmul.f32.gmra.mxu0 %v1076
        %v1095 = vpop.f32.mrf.mxu0
        %v1096 = vadd.f32 0.0, %v1095
        %1097 = vdwg.mxu0
        %1098 = vmatpush.msra.mxu0 0.0
        %1099 = vmatpush.msra.mxu0 0.0
        %1100 = vmatpush.msra.mxu0 0.0
        %1101 = vmatpush.msra.mxu0 0.0
        %1102 = vmatpush.msra.mxu0 0.0
        %1103 = vmatpush.msra.mxu0 0.0
        %1104 = vmatpush.msra.mxu0 0.0
        %1105 = vmatpush.msra.mxu0 0.0
        %1106 = vmatpush.msra.mxu0 0.0
        %1107 = vmatpush.msra.mxu0 0.0
        %1108 = vmatpush.msra.mxu0 0.0
        %1109 = vmatpush.msra.mxu0 0.0
        %1110 = vmatpush.msra.mxu0 0.0
        %1111 = vmatpush.msra.mxu0 0.0
        %1112 = vmatpush.msra.mxu0 0.0
        %1113 = vmatpush.msra.mxu0 %v1071
        %1114 = vmatmul.f32.gmra.mxu0 %v1076
        %v1115 = vpop.f32.mrf.mxu0
        %v1116 = vadd.f32 0.0, %v1115
        %1117 = vdwg.mxu0
        %1118 = vmatpush.msra.mxu0 0.0
        %1119 = vmatpush.msra.mxu0 0.0
        %1120 = vmatpush.msra.mxu0 0.0
        %1121 = vmatpush.msra.mxu0 0.0
        %1122 = vmatpush.msra.mxu0 0.0
        %1123 = vmatpush.msra.mxu0 0.0
        %1124 = vmatpush.msra.mxu0 0.0
        %1125 = vmatpush.msra.mxu0 0.0
        %1126 = vmatpush.msra.mxu0 0.0
        %1127 = vmatpush.msra.mxu0 0.0
        %1128 = vmatpush.msra.mxu0 0.0
        %1129 = vmatpush.msra.mxu0 0.0
        %1130 = vmatpush.msra.mxu0 0.0
        %1131 = vmatpush.msra.mxu0 0.0
        %1132 = vmatpush.msra.mxu0 0.0
        %1133 = vmatpush.msra.mxu0 %v1068
        %1134 = vmatmul.f32.gmra.mxu0 %v1076
        %v1135 = vpop.f32.mrf.mxu0
        %v1136 = vadd.f32 0.0, %v1135
        %1137 = vdwg.mxu0
        %v1138 = vadd.f32 %v1058, %v1096
        %v1139 = vadd.f32 %v1059, %v1116
        %v1140 = vadd.f32 %v1060, %v1136
        %v1141 = vld [vmem:[#allocation2] sm:$0xff]
        %v1142 = vld [vmem:[#allocation2 + $0x8] sm:$0xff]
        %v1143 = vld [vmem:[#allocation2 + $0x10] sm:$0xff]
        %v1144 = vadd.f32 %v1141, %v1138
        %v1145 = vadd.f32 %v1142, %v1139
        %v1146 = vadd.f32 %v1143, %v1140
        %1147 = vst [vmem:[#allocation2] sm:$0xff] %v1144
        %1148 = vst [vmem:[#allocation2 + $0x8] sm:$0xff] %v1145
        %vm1149 = vcmask 261120
        %1150 = vst.msk [vmem:[#allocation2 + $0x10] sm:$0xff] %vm1149, %v1146
        %p1151 = scmp.eq.s32.totalorder %s23, 1
        // Predicated region
        $region83: #{forward.10} parent=73 // pred_check
          %p1152 = pneg %p1151
        $region84: #{forward.10} parent=73 // pred_check_branch
          %1154 = sbr.rel (%p1152) target = $region86
        $region85: #{forward.10} parent=73 // pred_region
          %v1155 = vld [vmem:[#allocation2] sm:$0xff]
          %v1156 = vld [vmem:[#allocation2 + $0x8] sm:$0xff]
          %v1157 = vld [vmem:[#allocation2 + $0x10] sm:$0xff]
          %1161 = vrot.lane.b32.xlu0 %v1155, 19
          %v1162 = vpop.permute.xlu0 %1161
          %1163 = vrot.lane.b32.xlu0 %v1156, 19
          %v1164 = vpop.permute.xlu0 %1163
          %1165 = vrot.lane.b32.xlu0 %v1157, 19
          %v1166 = vpop.permute.xlu0 %1165
          %vm1167 = vcmask 154624
          %v1168 = vsel %vm1167, %v1162, %v1164
          %v1169 = vsel %vm1167, %v1164, %v1166
          %v1173 = vsel %vm1167, 0.0, %v1162
          %vm1174 = vcmask 416768
          %v1175 = vsel %vm1174, %v1169, 0.0
          %v1176 = vld [vmem:[%s3] sm:$0xff]
          %1178 = vset.pattern.permute.xlu0 0
          %1179 = vperm.xlu0 %1178, %v1176
          %v1180 = vpop.permute.xlu0 %1179
          %v1182 = vadd.f32 %v1173, %v1180
          %v1183 = vadd.f32 %v1168, %v1180
          %v1184 = vadd.f32 %v1175, %v1180
          %v1185 = vld [vmem:[%s4] sm:$0x7]
          %v1187 = vperm.slane %v1185, 0
          %v1188 = vperm.slane %v1185, 1
          %v1189 = vperm.slane %v1185, 2
          %v1193 = vmul.f32 %v1182, %v1187
          %v1194 = vmul.f32 %v1183, %v1188
          %v1195 = vmul.f32 %v1184, %v1189
          %1196 = vst [vmem:[%s380] sm:$0xff] %v1193
          %1197 = vst [vmem:[%s380 + $0x8] sm:$0xff] %v1194
          %1198 = vst [vmem:[%s380 + $0x10] sm:$0xff] %v1195
          %v1199 = vadd.f32 %v1193, %v1194
          %v1200 = vadd.f32 %v1199, %v1195
          %1201 = vadd.xlane.f32.xlu0 %v1200
          %v1202 = vpop.xlane.xlu0 %1201
          %v1203 = vmul.f32 %v1193, %v1193
          %v1204 = vmul.f32 %v1194, %v1194
          %v1205 = vmul.f32 %v1195, %v1195
          %v1206 = vadd.f32 %v1203, %v1204
          %v1207 = vadd.f32 %v1206, %v1205
          %1208 = vadd.xlane.f32.xlu0 %v1207
          %v1209 = vpop.xlane.xlu0 %1208
          %vm1210 = vcmask 7168
          %v1211 = vsel %vm1210, %v1202, %v1209
          %vm1212 = vcmask 15360
          %1213 = vst.msk [vmem:[%s384] sm:$0xff] %vm1212, %v1211
        $region86: #{forward.10} parent=73 // pred_fallthru
          _
        %p1214 = scmp.lt.s32.totalorder %s22, 1
        %s1215 = scalar_select %p1214, %s22, 1
        %s1216 = smul.addr %s1215, 21
        %s1217 = sadd.s32 12, %s1216
        %s1218 = smul.addr %s1217, 8
        %s1219 = scalar_lea.vmem %s5, %s1218
        %p1220 = scmp.lt.s32.totalorder %s22, 1
        %s1221 = scalar_select %p1220, %s22, 1
        %s1222 = smul.addr %s1221, 8
        %s1223 = scalar_lea.vmem %s6, %s1222
        // Predicated region
        $region87: #{forward.10} parent=73 // pred_check
          %p1224 = pneg %p174
        $region88: #{forward.10} parent=73 // pred_check_branch
          %1226 = sbr.rel (%p1224) target = $region90
        $region89: #{forward.10} parent=73 // pred_region
          _
        $region90: #{forward.10} parent=73 // pred_fallthru
          _
        // Predicated region
        $region91: #{forward.10} parent=73 // pred_check
          %p1227 = pneg %p200
        $region92: #{forward.10} parent=73 // pred_check_branch
          %1229 = sbr.rel (%p1227) target = $region94
        $region93: #{forward.10} parent=73 // pred_region
          _
        $region94: #{forward.10} parent=73 // pred_fallthru
          _
      $region74: #{forward.10} parent=5 // pred_fallthru
        _
      %p1230 = scmp.le.s32.totalorder 2, %s13
      // Predicated region
      $region95: #{forward.10} parent=5 // pred_check
        %p1231 = pneg %p1230
      $region96: #{forward.10} parent=5 // pred_check_branch
        %1233 = sbr.rel (%p1231) target = $region98
      $region97: #{forward.10} parent=5 // pred_region
        %s1234 = ssub.s32 %s13, 2
        // Predicated region
        $region99: #{forward.10} parent=97 // pred_check
          %p1235 = pneg %p180
        $region100: #{forward.10} parent=97 // pred_check_branch
          %1237 = sbr.rel (%p1235) target = $region102
        $region101: #{forward.10} parent=97 // pred_region
          %p1238 = scmp.lt.s32.totalorder %s24, 1
          %s1239 = scalar_select %p1238, %s24, 1
          %s1240 = smul.addr %s1239, 21
          %s1241 = sadd.s32 12, %s1240
          %s1242 = smul.addr %s1241, 8
          %s1243 = scalar_lea.vmem %s5, %s1242
        $region102: #{forward.10} parent=97 // pred_fallthru
          _
        // Predicated region
        $region103: #{forward.10} parent=97 // pred_check
          %p1244 = pneg %p206
        $region104: #{forward.10} parent=97 // pred_check_branch
          %1246 = sbr.rel (%p1244) target = $region106
        $region105: #{forward.10} parent=97 // pred_region
          %p1247 = scmp.lt.s32.totalorder %s24, 1
          %s1248 = scalar_select %p1247, %s24, 1
          %s1249 = smul.addr %s1248, 8
          %s1250 = scalar_lea.vmem %s6, %s1249
        $region106: #{forward.10} parent=97 // pred_fallthru
          _
      $region98: #{forward.10} parent=5 // pred_fallthru
        _
    $region6: #{forward.10} parent=1 // loop_footer
      %s17 = sadd.s32 1, %s13
    $region7: #{forward.10} parent=1 // loop_footer_branch
      %12 = sbr.rel target = $region3
    $region8: #{forward.10} parent=1 // loop_exit
      _

// kernel: forward.13
$region0: #{forward.13}
  #allocation0 [shape = 'u32[]', space=smem, size = 0x4, offset = 0x4, fixed_abs, tag = 'smem constant byte address 0x4 - core index']
  #allocation1 [shape = 'u32[72,128]{1,0:T(1,128)}', space=vmem, size = 0x9000, scoped, tag = 'internal scratch']
  %s0 = inlined_call_operand.vmem [shape: f32[2,56,384], index: 0, kind: input, shape index: {}]
  %s1 = inlined_call_operand.vmem [shape: f32[3,56,1], index: 1, kind: input, shape index: {}]
  %s2 = inlined_call_operand.vmem [shape: f32[2,24,384], index: 2, kind: output, shape index: {}]
  %s3 = sld [smem:[#allocation0]]
  $region79: #{forward.13} parent=0
    _
  %s5 = ssub.s32 1, %s3
  %s6 = scalar_select 0, %s5, %s3
  $region1: #{forward.13} parent=0
    #allocation2 [shape = 'u8[24576]{0}', space=vmem, size = 0x6000, scoped, tag = 'input window, operand 1']
    loop: start=0, step=1, limit=8
    $region2: #{forward.13} parent=1 // loop_pre_header
      _
    $region3: #{forward.13} parent=1 // loop_header
      %s8 = sphi 0, %s12
      %p9 = scmp.ge.s32.totalorder %s8, 8
      %s15 = sphi 0, %s27
      %s16 = sphi 0, %s23
      %s17 = sphi 0, %s15
      %s18 = sphi 0, %s16
      %s19 = sphi 0, %s17
      %s20 = sphi 0, %s18
      %s34 = sphi 0, %s36
      %s37 = sphi 0, %s34
      %s38 = sphi 0, %s37
      %s54 = sphi 0, %s38
      %s62 = sphi 0, %s64
      %s65 = sphi 0, %s62
      %s66 = sphi 0, %s65
      %s82 = sphi 0, %s66
      %s90 = sphi 0, %s92
      %s93 = sphi 0, %s90
      %s94 = sphi 0, %s93
      %s110 = sphi 0, %s94
    $region4: #{forward.13} parent=1 // loop_header_branch
      %11 = sbr.rel (%p9) target = $region8
    $region5: #{forward.13} parent=1 // loop_body
      %s13 = ssub.s32 %s8, 1
      %s14 = ssub.s32 %s8, 2
      %s21 = sadd.s32 1, %s16
      %p22 = scmp.ge.s32.totalorder %s21, 3
      %s23 = scalar_select %p22, 0, %s21
      %s24 = sadd.s32 1, %s15
      %s25 = scalar_select %p22, %s24, %s15
      %p26 = scmp.ge.s32.totalorder %s25, 2
      %s27 = scalar_select %p26, 0, %s25
      %s28 = sadd.s32 %s16, 4
      %s29 = sadd.s32 %s23, 4
      %s30 = ssub.s32 %s15, %s27
      %s31 = ssub.s32 %s28, %s29
      %s32 = sor.u32 %s30, %s31
      %p33 = scmp.eq.s32.totalorder %s32, 0
      %s35 = sadd.s32 %s34, 1
      %s36 = scalar_select %p33, %s34, %s35
      %p39 = pneg %p33
      %p40 = scmp.eq.s32.totalorder %s8, 5
      %p41 = por %p39, %p40
      %p42 = scmp.ne.s32.totalorder %s34, %s37
      %p43 = scmp.eq.s32.totalorder %s8, 0
      %p44 = por %p42, %p43
      %p45 = scmp.ne.s32.totalorder %s34, %s37
      %p46 = scmp.eq.s32.totalorder %s13, 5
      %p47 = por %p45, %p46
      %p48 = scmp.ne.s32.totalorder %s37, %s38
      %p49 = scmp.eq.s32.totalorder %s13, 0
      %p50 = por %p48, %p49
      %p51 = scmp.ne.s32.totalorder %s37, %s38
      %p52 = scmp.eq.s32.totalorder %s14, 5
      %p53 = por %p51, %p52
      %p55 = scmp.ne.s32.totalorder %s38, %s54
      %p56 = scmp.eq.s32.totalorder %s14, 0
      %p57 = por %p55, %p56
      %s58 = sadd.s32 %s16, 4
      %s59 = sadd.s32 %s23, 4
      %s60 = ssub.s32 %s58, %s59
      %p61 = scmp.eq.s32.totalorder %s60, 0
      %s63 = sadd.s32 %s62, 1
      %s64 = scalar_select %p61, %s62, %s63
      %p67 = pneg %p61
      %p68 = scmp.eq.s32.totalorder %s8, 5
      %p69 = por %p67, %p68
      %p70 = scmp.ne.s32.totalorder %s62, %s65
      %p71 = scmp.eq.s32.totalorder %s8, 0
      %p72 = por %p70, %p71
      %p73 = scmp.ne.s32.totalorder %s62, %s65
      %p74 = scmp.eq.s32.totalorder %s13, 5
      %p75 = por %p73, %p74
      %p76 = scmp.ne.s32.totalorder %s65, %s66
      %p77 = scmp.eq.s32.totalorder %s13, 0
      %p78 = por %p76, %p77
      %p79 = scmp.ne.s32.totalorder %s65, %s66
      %p80 = scmp.eq.s32.totalorder %s14, 5
      %p81 = por %p79, %p80
      %p83 = scmp.ne.s32.totalorder %s66, %s82
      %p84 = scmp.eq.s32.totalorder %s14, 0
      %p85 = por %p83, %p84
      %s86 = ssub.s32 %s15, %s27
      %s87 = ssub.s32 %s16, %s23
      %s88 = sor.u32 %s86, %s87
      %p89 = scmp.eq.s32.totalorder %s88, 0
      %s91 = sadd.s32 %s90, 1
      %s92 = scalar_select %p89, %s90, %s91
      %p95 = pneg %p89
      %p96 = scmp.eq.s32.totalorder %s8, 5
      %p97 = por %p95, %p96
      %p98 = scmp.ne.s32.totalorder %s90, %s93
      %p99 = scmp.eq.s32.totalorder %s8, 0
      %p100 = por %p98, %p99
      %p101 = scmp.ne.s32.totalorder %s90, %s93
      %p102 = scmp.eq.s32.totalorder %s13, 5
      %p103 = por %p101, %p102
      %p104 = scmp.ne.s32.totalorder %s93, %s94
      %p105 = scmp.eq.s32.totalorder %s13, 0
      %p106 = por %p104, %p105
      %p107 = scmp.ne.s32.totalorder %s93, %s94
      %p108 = scmp.eq.s32.totalorder %s14, 5
      %p109 = por %p107, %p108
      %p111 = scmp.ne.s32.totalorder %s94, %s110
      %p112 = scmp.eq.s32.totalorder %s14, 0
      %p113 = por %p111, %p112
      %p114 = scmp.le.s32.totalorder 1, %s8
      %p115 = scmp.lt.s32.totalorder %s8, 7
      %p116 = pnand %p114, %p115
      %p117 = pneg %p116
      // Predicated region
      $region9: #{forward.13} parent=5 // pred_check
        _
      $region10: #{forward.13} parent=5 // pred_check_branch
        %119 = sbr.rel (%p116) target = $region12
      $region11: #{forward.13} parent=5 // pred_region
        %s120 = ssub.s32 %s8, 1
      $region12: #{forward.13} parent=5 // pred_fallthru
        _
      %p121 = scmp.lt.s32.totalorder %s8, 6
      // Predicated region
      $region13: #{forward.13} parent=5 // pred_check
        %p122 = pneg %p121
      $region14: #{forward.13} parent=5 // pred_check_branch
        %124 = sbr.rel (%p122) target = $region16
      $region15: #{forward.13} parent=5 // pred_region
        // Predicated region
        $region17: #{forward.13} parent=15 // pred_check
          %p125 = pneg %p44
        $region18: #{forward.13} parent=15 // pred_check_branch
          %127 = sbr.rel (%p125) target = $region20
        $region19: #{forward.13} parent=15 // pred_region
          %s128 = sadd.s32 %s16, 4
          %p129 = scmp.lt.s32.totalorder %s15, 1
          %s130 = scalar_select %p129, %s15, 1
          %p131 = scmp.lt.s32.totalorder %s128, 6
          %s132 = scalar_select %p131, %s128, 6
          %s133 = smul.addr %s132, 3
          %s134 = smul.addr %s130, 21
          %s135 = sadd.s32 %s133, %s134
          %s136 = smul.addr %s135, 8
          %s137 = scalar_lea.vmem %s0, %s136
          %s138 = sadd.s32 %s16, 4
        $region20: #{forward.13} parent=15 // pred_fallthru
          _
        // Predicated region
        $region21: #{forward.13} parent=15 // pred_check
          %p139 = pneg %p72
        $region22: #{forward.13} parent=15 // pred_check_branch
          %141 = sbr.rel (%p139) target = $region24
        $region23: #{forward.13} parent=15 // pred_region
          %s142 = sand.u32 %s62, 1
          %s143 = sand.u32 %s62, 1
          %s144 = smul.addr %s143, 24
          %s145 = scalar_lea.vmem [#allocation2], %s144
          %s146 = sadd.s32 %s16, 4
          %s147 = smul.addr %s146, 8
          %s148 = scalar_lea.vmem %s1, %s147
          // Predicated region
          $region25: #{forward.13} parent=23 // pred_check
            _
          $region26: #{forward.13} parent=23 // pred_check_branch
            %150 = sbr.rel (0) target = $region28
          $region27: #{forward.13} parent=23 // pred_region
            // Predicated region
            $region29: #{forward.13} parent=27 // pred_check
              _
            $region30: #{forward.13} parent=27 // pred_check_branch
              %152 = sbr.rel (0) target = $region32
            $region31: #{forward.13} parent=27 // pred_region
              // Predicated region
              $region44: #{forward.13} parent=31 // pred_check
                _
              $region45: #{forward.13} parent=31 // pred_check_branch
                %172 = sbr.rel (0) target = $region47
              $region46: #{forward.13} parent=31 // pred_region
                loop: start=0, step=1, limit=1
                $region48: #{forward.13} parent=46 // loop_pre_header
                  _
                $region49: #{forward.13} parent=46 // loop_header
                  %s174 = sphi 0, %s178
                  %p175 = scmp.ge.s32.totalorder %s174, 1
                  %s179 = sphi %s148, %s148
                  %s180 = sphi %s145, %s145
                $region50: #{forward.13} parent=46 // loop_header_branch
                  %177 = sbr.rel (%p175) target = $region54
                $region51: #{forward.13} parent=46 // loop_body
                  %v181 = vld [vmem:[%s179] sm:$0xff]
                  %182 = vst [vmem:[%s180] sm:$0xff] %v181
                  %v183 = vld [vmem:[%s179 + $0x38] sm:$0xff]
                  %184 = vst [vmem:[%s180 + $0x8] sm:$0xff] %v183
                  %v185 = vld [vmem:[%s179 + $0x70] sm:$0xff]
                  %186 = vst [vmem:[%s180 + $0x10] sm:$0xff] %v185
                $region52: #{forward.13} parent=46 // loop_footer
                  %s178 = sadd.s32 1, %s174
                $region53: #{forward.13} parent=46 // loop_footer_branch
                  %173 = sbr.rel target = $region49
                $region54: #{forward.13} parent=46 // loop_exit
                  _
              $region47: #{forward.13} parent=31 // pred_fallthru
                _
              // Predicated region
              $region55: #{forward.13} parent=31 // pred_check
                _
              $region56: #{forward.13} parent=31 // pred_check_branch
                %188 = sbr.rel target = $region58
              $region57: #{forward.13} parent=31 // pred_region
                _
              $region58: #{forward.13} parent=31 // pred_fallthru
                _
            $region32: #{forward.13} parent=27 // pred_fallthru
              _
            // Predicated region
            $region33: #{forward.13} parent=27 // pred_check
              _
            $region34: #{forward.13} parent=27 // pred_check_branch
              %154 = sbr.rel target = $region36
            $region35: #{forward.13} parent=27 // pred_region
              %s156 = ssub.s32 256, 1
              loop: start=0, step=1, limit=1
              $region37: #{forward.13} parent=35 // loop_pre_header
                _
              $region38: #{forward.13} parent=35 // loop_header
                %s158 = sphi 0, %s162
                %p159 = scmp.ge.s32.totalorder %s158, 1
                %s163 = sphi %s148, %s148
                %s164 = sphi %s145, %s145
              $region39: #{forward.13} parent=35 // loop_header_branch
                %161 = sbr.rel (%p159) target = $region43
              $region40: #{forward.13} parent=35 // loop_body
                %v165 = vld [vmem:[%s163] sm:%s156]
                %166 = vst [vmem:[%s164] sm:%s156] %v165
                %v167 = vld [vmem:[%s163 + $0x38] sm:%s156]
                %168 = vst [vmem:[%s164 + $0x8] sm:%s156] %v167
                %v169 = vld [vmem:[%s163 + $0x70] sm:%s156]
                %170 = vst [vmem:[%s164 + $0x10] sm:%s156] %v169
              $region41: #{forward.13} parent=35 // loop_footer
                %s162 = sadd.s32 1, %s158
              $region42: #{forward.13} parent=35 // loop_footer_branch
                %157 = sbr.rel target = $region38
              $region43: #{forward.13} parent=35 // loop_exit
                _
            $region36: #{forward.13} parent=27 // pred_fallthru
              _
          $region28: #{forward.13} parent=23 // pred_fallthru
            _
          %189 = vnop
        $region24: #{forward.13} parent=15 // pred_fallthru
          _
      $region16: #{forward.13} parent=5 // pred_fallthru
        _
      %p190 = scmp.le.s32.totalorder 1, %s8
      %p191 = scmp.lt.s32.totalorder %s8, 7
      %p192 = pnand %p190, %p191
      %p193 = pneg %p192
      // Predicated region
      $region59: #{forward.13} parent=5 // pred_check
        _
      $region60: #{forward.13} parent=5 // pred_check_branch
        %195 = sbr.rel (%p192) target = $region62
      $region61: #{forward.13} parent=5 // pred_region
        %s196 = ssub.s32 %s8, 1
        %s197 = sand.u32 %s65, 1
        %s198 = sand.u32 %s65, 1
        %s199 = smul.addr %s198, 24
        %s200 = scalar_lea.vmem [#allocation2], %s199
        // Predicated region
        $region63: #{forward.13} parent=61 // pred_check
          %p201 = pneg %p78
        $region64: #{forward.13} parent=61 // pred_check_branch
          %203 = sbr.rel (%p201) target = $region66
        $region65: #{forward.13} parent=61 // pred_region
          _
        $region66: #{forward.13} parent=61 // pred_fallthru
          _
        %s204 = sadd.s32 %s18, 4
        %p205 = scmp.lt.s32.totalorder %s17, 1
        %s206 = scalar_select %p205, %s17, 1
        %p207 = scmp.lt.s32.totalorder %s204, 6
        %s208 = scalar_select %p207, %s204, 6
        %s209 = smul.addr %s208, 3
        %s210 = smul.addr %s206, 21
        %s211 = sadd.s32 %s209, %s210
        %s212 = smul.addr %s211, 8
        %s213 = scalar_lea.vmem %s0, %s212
        %p214 = pneg %p50
        %p215 = pneg %p47
        %s216 = sand.u32 %s65, 1
        %s217 = sand.u32 %s65, 1
        %s218 = smul.addr %s217, 24
        %s219 = scalar_lea.vmem [#allocation2], %s218
        %p220 = pneg %p78
        %p221 = pneg %p75
        %p222 = pneg %p106
        %p223 = pneg %p103
        %p224 = scmp.lt.s32.totalorder %s17, 1
        %s225 = scalar_select %p224, %s17, 1
        %p226 = scmp.lt.s32.totalorder %s18, 2
        %s227 = scalar_select %p226, %s18, 2
        %s228 = smul.addr %s227, 3
        %s229 = smul.addr %s225, 9
        %s230 = sadd.s32 %s228, %s229
        %s231 = smul.addr %s230, 8
        %s232 = scalar_lea.vmem %s2, %s231
        %s233 = sadd.s32 %s18, 4
        %p234 = scmp.lt.s32.totalorder %s17, 1
        %s235 = scalar_select %p234, %s17, 1
        %p236 = scmp.lt.s32.totalorder %s233, 6
        %s237 = scalar_select %p236, %s233, 6
        %s238 = smul.addr %s237, 3
        %s239 = smul.addr %s235, 21
        %s240 = sadd.s32 %s238, %s239
        %s241 = smul.addr %s240, 8
        %s242 = scalar_lea.vmem %s0, %s241
        %s243 = sadd.s32 %s18, 4
        %s244 = sadd.s32 %s18, 4
        %p245 = scmp.lt.s32.totalorder %s17, 1
        %s246 = scalar_select %p245, %s17, 1
        %p247 = scmp.lt.s32.totalorder %s18, 2
        %s248 = scalar_select %p247, %s18, 2
        %s249 = smul.addr %s248, 3
        %s250 = smul.addr %s246, 9
        %s251 = sadd.s32 %s249, %s250
        %s252 = smul.addr %s251, 8
        %s253 = scalar_lea.vmem %s2, %s252
        %v254 = vld [vmem:[%s242] sm:$0xff]
        %v255 = vld [vmem:[%s242 + $0x8] sm:$0xff]
        %v256 = vld [vmem:[%s242 + $0x10] sm:$0xff]
        %v257 = vld [vmem:[%s200] sm:$0xff]
        %259 = vset.pattern.permute.xlu0 0
        %260 = vperm.xlu0 %259, %v257
        %v261 = vpop.permute.xlu0 %260
        %v263 = vmul.f32 %v254, %v261
        %v264 = vmul.f32 %v255, %v261
        %v265 = vmul.f32 %v256, %v261
        %s266 = scalar_lea.vmem %s200, 8 [#allocation2]
        %v267 = vld [vmem:[%s266] sm:$0xff]
        %269 = vset.pattern.permute.xlu0 0
        %270 = vperm.xlu0 %269, %v267
        %v271 = vpop.permute.xlu0 %270
        %v273 = vadd.f32 %v263, %v271
        %v274 = vadd.f32 %v264, %v271
        %v275 = vadd.f32 %v265, %v271
        %v276 = vmax.f32 %v273, 0.0
        %v277 = vmax.f32 %v274, 0.0
        %v278 = vmax.f32 %v275, 0.0
        %279 = vst [vmem:[%s253] sm:$0xff] %v276
        %280 = vst [vmem:[%s253 + $0x8] sm:$0xff] %v277
        %281 = vst [vmem:[%s253 + $0x10] sm:$0xff] %v278
        %p282 = scmp.lt.s32.totalorder %s17, 1
        %s283 = scalar_select %p282, %s17, 1
        %p284 = scmp.lt.s32.totalorder %s18, 2
        %s285 = scalar_select %p284, %s18, 2
        %s286 = smul.addr %s285, 3
        %s287 = smul.addr %s283, 9
        %s288 = sadd.s32 %s286, %s287
        %s289 = smul.addr %s288, 8
        %s290 = scalar_lea.vmem %s2, %s289
        // Predicated region
        $region67: #{forward.13} parent=61 // pred_check
          %p291 = pneg %p103
        $region68: #{forward.13} parent=61 // pred_check_branch
          %293 = sbr.rel (%p291) target = $region70
        $region69: #{forward.13} parent=61 // pred_region
          _
        $region70: #{forward.13} parent=61 // pred_fallthru
          _
      $region62: #{forward.13} parent=5 // pred_fallthru
        _
      %p294 = scmp.le.s32.totalorder 2, %s8
      // Predicated region
      $region71: #{forward.13} parent=5 // pred_check
        %p295 = pneg %p294
      $region72: #{forward.13} parent=5 // pred_check_branch
        %297 = sbr.rel (%p295) target = $region74
      $region73: #{forward.13} parent=5 // pred_region
        %s298 = ssub.s32 %s8, 2
        // Predicated region
        $region75: #{forward.13} parent=73 // pred_check
          %p299 = pneg %p109
        $region76: #{forward.13} parent=73 // pred_check_branch
          %301 = sbr.rel (%p299) target = $region78
        $region77: #{forward.13} parent=73 // pred_region
          %p302 = scmp.lt.s32.totalorder %s19, 1
          %s303 = scalar_select %p302, %s19, 1
          %p304 = scmp.lt.s32.totalorder %s20, 2
          %s305 = scalar_select %p304, %s20, 2
          %s306 = smul.addr %s305, 3
          %s307 = smul.addr %s303, 9
          %s308 = sadd.s32 %s306, %s307
          %s309 = smul.addr %s308, 8
          %s310 = scalar_lea.vmem %s2, %s309
        $region78: #{forward.13} parent=73 // pred_fallthru
          _
      $region74: #{forward.13} parent=5 // pred_fallthru
        _
    $region6: #{forward.13} parent=1 // loop_footer
      %s12 = sadd.s32 1, %s8
    $region7: #{forward.13} parent=1 // loop_footer_branch
      %7 = sbr.rel target = $region3
    $region8: #{forward.13} parent=1 // loop_exit
      _

// kernel: forward.11
$region0: #{forward.11}
  #allocation0 [shape = 'u32[]', space=smem, size = 0x4, offset = 0x4, fixed_abs, tag = 'smem constant byte address 0x4 - core index']
  #allocation1 [shape = 'u32[72,128]{1,0:T(1,128)}', space=vmem, size = 0x9000, scoped, tag = 'internal scratch']
  #allocation2 [shape = 'f32[8,288]{1,0:T(8,128)}', space=vmem, size = 0x3000, scoped, tag = 'scratch operand']
  %s0 = inlined_call_operand.vmem [shape: f32[2,56,384], index: 0, kind: input, shape index: {}, may-alias: {0,5}]
  %s1 = inlined_call_operand.vmem [shape: f32[2,9,8,8], index: 1, kind: input, shape index: {}]
  %s2 = inlined_call_operand.vmem [shape: f32[3,56,1], index: 2, kind: input, shape index: {}]
  %s3 = inlined_call_operand.vmem [shape: f32[8,1], index: 3, kind: input, shape index: {}]
  %s4 = inlined_call_operand.vmem [shape: f32[1,384], index: 4, kind: input, shape index: {}]
  %s5 = inlined_call_operand.vmem [shape: f32[2,56,384], index: 5, kind: output, shape index: {0}, may-alias: {0,5}]
  %s6 = inlined_call_operand.vmem [shape: f32[2,8,2], index: 6, kind: output, shape index: {1}]
  %7 = xla_tuple %s5, %s6
  %s8 = sld [smem:[#allocation0]]
  $region107: #{forward.11} parent=0
    _
  %s10 = ssub.s32 1, %s8
  %s11 = scalar_select 0, %s10, %s8
  $region1: #{forward.11} parent=0
    #allocation3 [shape = 'u8[24576]{0}', space=vmem, size = 0x6000, scoped, tag = 'input window, operand 2']
    loop: start=0, step=1, limit=6
    $region2: #{forward.11} parent=1 // loop_pre_header
      _
    $region3: #{forward.11} parent=1 // loop_header
      %s13 = sphi 0, %s17
      %p14 = scmp.ge.s32.totalorder %s13, 6
      %s20 = sphi 0, %s32
      %s21 = sphi 0, %s28
      %s22 = sphi 0, %s20
      %s23 = sphi 0, %s21
      %s24 = sphi 0, %s22
      %s25 = sphi 0, %s23
      %s39 = sphi 0, %s41
      %s42 = sphi 0, %s39
      %s43 = sphi 0, %s42
      %s59 = sphi 0, %s43
      %s65 = sphi 0, %s67
      %s68 = sphi 0, %s65
      %s69 = sphi 0, %s68
      %s85 = sphi 0, %s69
      %s93 = sphi 0, %s95
      %s96 = sphi 0, %s93
      %s97 = sphi 0, %s96
      %s113 = sphi 0, %s97
      %s117 = sphi 0, %s117
      %s119 = sphi 0, %s117
      %s120 = sphi 0, %s119
      %s134 = sphi 0, %s120
      %s138 = sphi 0, %s138
      %s140 = sphi 0, %s138
      %s141 = sphi 0, %s140
      %s155 = sphi 0, %s141
      %s161 = sphi 0, %s163
      %s164 = sphi 0, %s161
      %s165 = sphi 0, %s164
      %s181 = sphi 0, %s165
      %s187 = sphi 0, %s189
      %s190 = sphi 0, %s187
      %s191 = sphi 0, %s190
      %s207 = sphi 0, %s191
    $region4: #{forward.11} parent=1 // loop_header_branch
      %16 = sbr.rel (%p14) target = $region8
    $region5: #{forward.11} parent=1 // loop_body
      %s18 = ssub.s32 %s13, 1
      %s19 = ssub.s32 %s13, 2
      %s26 = sadd.s32 1, %s21
      %p27 = scmp.ge.s32.totalorder %s26, 2
      %s28 = scalar_select %p27, 0, %s26
      %s29 = sadd.s32 1, %s20
      %s30 = scalar_select %p27, %s29, %s20
      %p31 = scmp.ge.s32.totalorder %s30, 2
      %s32 = scalar_select %p31, 0, %s30
      %s33 = sadd.s32 %s21, 3
      %s34 = sadd.s32 %s28, 3
      %s35 = ssub.s32 %s20, %s32
      %s36 = ssub.s32 %s33, %s34
      %s37 = sor.u32 %s35, %s36
      %p38 = scmp.eq.s32.totalorder %s37, 0
      %s40 = sadd.s32 %s39, 1
      %s41 = scalar_select %p38, %s39, %s40
      %p44 = pneg %p38
      %p45 = scmp.eq.s32.totalorder %s13, 3
      %p46 = por %p44, %p45
      %p47 = scmp.ne.s32.totalorder %s39, %s42
      %p48 = scmp.eq.s32.totalorder %s13, 0
      %p49 = por %p47, %p48
      %p50 = scmp.ne.s32.totalorder %s39, %s42
      %p51 = scmp.eq.s32.totalorder %s18, 3
      %p52 = por %p50, %p51
      %p53 = scmp.ne.s32.totalorder %s42, %s43
      %p54 = scmp.eq.s32.totalorder %s18, 0
      %p55 = por %p53, %p54
      %p56 = scmp.ne.s32.totalorder %s42, %s43
      %p57 = scmp.eq.s32.totalorder %s19, 3
      %p58 = por %p56, %p57
      %p60 = scmp.ne.s32.totalorder %s43, %s59
      %p61 = scmp.eq.s32.totalorder %s19, 0
      %p62 = por %p60, %p61
      %s63 = ssub.s32 %s21, %s28
      %p64 = scmp.eq.s32.totalorder %s63, 0
      %s66 = sadd.s32 %s65, 1
      %s67 = scalar_select %p64, %s65, %s66
      %p70 = pneg %p64
      %p71 = scmp.eq.s32.totalorder %s13, 3
      %p72 = por %p70, %p71
      %p73 = scmp.ne.s32.totalorder %s65, %s68
      %p74 = scmp.eq.s32.totalorder %s13, 0
      %p75 = por %p73, %p74
      %p76 = scmp.ne.s32.totalorder %s65, %s68
      %p77 = scmp.eq.s32.totalorder %s18, 3
      %p78 = por %p76, %p77
      %p79 = scmp.ne.s32.totalorder %s68, %s69
      %p80 = scmp.eq.s32.totalorder %s18, 0
      %p81 = por %p79, %p80
      %p82 = scmp.ne.s32.totalorder %s68, %s69
      %p83 = scmp.eq.s32.totalorder %s19, 3
      %p84 = por %p82, %p83
      %p86 = scmp.ne.s32.totalorder %s69, %s85
      %p87 = scmp.eq.s32.totalorder %s19, 0
      %p88 = por %p86, %p87
      %s89 = sadd.s32 %s21, 3
      %s90 = sadd.s32 %s28, 3
      %s91 = ssub.s32 %s89, %s90
      %p92 = scmp.eq.s32.totalorder %s91, 0
      %s94 = sadd.s32 %s93, 1
      %s95 = scalar_select %p92, %s93, %s94
      %p98 = pneg %p92
      %p99 = scmp.eq.s32.totalorder %s13, 3
      %p100 = por %p98, %p99
      %p101 = scmp.ne.s32.totalorder %s93, %s96
      %p102 = scmp.eq.s32.totalorder %s13, 0
      %p103 = por %p101, %p102
      %p104 = scmp.ne.s32.totalorder %s93, %s96
      %p105 = scmp.eq.s32.totalorder %s18, 3
      %p106 = por %p104, %p105
      %p107 = scmp.ne.s32.totalorder %s96, %s97
      %p108 = scmp.eq.s32.totalorder %s18, 0
      %p109 = por %p107, %p108
      %p110 = scmp.ne.s32.totalorder %s96, %s97
      %p111 = scmp.eq.s32.totalorder %s19, 3
      %p112 = por %p110, %p111
      %p114 = scmp.ne.s32.totalorder %s97, %s113
      %p115 = scmp.eq.s32.totalorder %s19, 0
      %p116 = por %p114, %p115
      %s118 = sadd.s32 %s117, 1
      %p121 = scmp.eq.s32.totalorder %s13, 3
      %p122 = scmp.ne.s32.totalorder %s117, %s119
      %p123 = scmp.eq.s32.totalorder %s13, 0
      %p124 = por %p122, %p123
      %p125 = scmp.ne.s32.totalorder %s117, %s119
      %p126 = scmp.eq.s32.totalorder %s18, 3
      %p127 = por %p125, %p126
      %p128 = scmp.ne.s32.totalorder %s119, %s120
      %p129 = scmp.eq.s32.totalorder %s18, 0
      %p130 = por %p128, %p129
      %p131 = scmp.ne.s32.totalorder %s119, %s120
      %p132 = scmp.eq.s32.totalorder %s19, 3
      %p133 = por %p131, %p132
      %p135 = scmp.ne.s32.totalorder %s120, %s134
      %p136 = scmp.eq.s32.totalorder %s19, 0
      %p137 = por %p135, %p136
      %s139 = sadd.s32 %s138, 1
      %p142 = scmp.eq.s32.totalorder %s13, 3
      %p143 = scmp.ne.s32.totalorder %s138, %s140
      %p144 = scmp.eq.s32.totalorder %s13, 0
      %p145 = por %p143, %p144
      %p146 = scmp.ne.s32.totalorder %s138, %s140
      %p147 = scmp.eq.s32.totalorder %s18, 3
      %p148 = por %p146, %p147
      %p149 = scmp.ne.s32.totalorder %s140, %s141
      %p150 = scmp.eq.s32.totalorder %s18, 0
      %p151 = por %p149, %p150
      %p152 = scmp.ne.s32.totalorder %s140, %s141
      %p153 = scmp.eq.s32.totalorder %s19, 3
      %p154 = por %p152, %p153
      %p156 = scmp.ne.s32.totalorder %s141, %s155
      %p157 = scmp.eq.s32.totalorder %s19, 0
      %p158 = por %p156, %p157
      %s159 = ssub.s32 %s20, %s32
      %p160 = scmp.eq.s32.totalorder %s159, 0
      %s162 = sadd.s32 %s161, 1
      %s163 = scalar_select %p160, %s161, %s162
      %p166 = pneg %p160
      %p167 = scmp.eq.s32.totalorder %s13, 3
      %p168 = por %p166, %p167
      %p169 = scmp.ne.s32.totalorder %s161, %s164
      %p170 = scmp.eq.s32.totalorder %s13, 0
      %p171 = por %p169, %p170
      %p172 = scmp.ne.s32.totalorder %s161, %s164
      %p173 = scmp.eq.s32.totalorder %s18, 3
      %p174 = por %p172, %p173
      %p175 = scmp.ne.s32.totalorder %s164, %s165
      %p176 = scmp.eq.s32.totalorder %s18, 0
      %p177 = por %p175, %p176
      %p178 = scmp.ne.s32.totalorder %s164, %s165
      %p179 = scmp.eq.s32.totalorder %s19, 3
      %p180 = por %p178, %p179
      %p182 = scmp.ne.s32.totalorder %s165, %s181
      %p183 = scmp.eq.s32.totalorder %s19, 0
      %p184 = por %p182, %p183
      %s185 = ssub.s32 %s20, %s32
      %p186 = scmp.eq.s32.totalorder %s185, 0
      %s188 = sadd.s32 %s187, 1
      %s189 = scalar_select %p186, %s187, %s188
      %p192 = pneg %p186
      %p193 = scmp.eq.s32.totalorder %s13, 3
      %p194 = por %p192, %p193
      %p195 = scmp.ne.s32.totalorder %s187, %s190
      %p196 = scmp.eq.s32.totalorder %s13, 0
      %p197 = por %p195, %p196
      %p198 = scmp.ne.s32.totalorder %s187, %s190
      %p199 = scmp.eq.s32.totalorder %s18, 3
      %p200 = por %p198, %p199
      %p201 = scmp.ne.s32.totalorder %s190, %s191
      %p202 = scmp.eq.s32.totalorder %s18, 0
      %p203 = por %p201, %p202
      %p204 = scmp.ne.s32.totalorder %s190, %s191
      %p205 = scmp.eq.s32.totalorder %s19, 3
      %p206 = por %p204, %p205
      %p208 = scmp.ne.s32.totalorder %s191, %s207
      %p209 = scmp.eq.s32.totalorder %s19, 0
      %p210 = por %p208, %p209
      %p211 = scmp.le.s32.totalorder 1, %s13
      %p212 = scmp.lt.s32.totalorder %s13, 5
      %p213 = pnand %p211, %p212
      %p214 = pneg %p213
      // Predicated region
      $region9: #{forward.11} parent=5 // pred_check
        _
      $region10: #{forward.11} parent=5 // pred_check_branch
        %216 = sbr.rel (%p213) target = $region12
      $region11: #{forward.11} parent=5 // pred_region
        %s217 = ssub.s32 %s13, 1
        // Predicated region
        $region13: #{forward.11} parent=11 // pred_check
          %p218 = pneg %p130
        $region14: #{forward.11} parent=11 // pred_check_branch
          %220 = sbr.rel (%p218) target = $region16
        $region15: #{forward.11} parent=11 // pred_region
          _
        $region16: #{forward.11} parent=11 // pred_fallthru
          _
        // Predicated region
        $region17: #{forward.11} parent=11 // pred_check
          %p221 = pneg %p151
        $region18: #{forward.11} parent=11 // pred_check_branch
          %223 = sbr.rel (%p221) target = $region20
        $region19: #{forward.11} parent=11 // pred_region
          _
        $region20: #{forward.11} parent=11 // pred_fallthru
          _
      $region12: #{forward.11} parent=5 // pred_fallthru
        _
      %p224 = scmp.lt.s32.totalorder %s13, 4
      // Predicated region
      $region21: #{forward.11} parent=5 // pred_check
        %p225 = pneg %p224
      $region22: #{forward.11} parent=5 // pred_check_branch
        %227 = sbr.rel (%p225) target = $region24
      $region23: #{forward.11} parent=5 // pred_region
        // Predicated region
        $region25: #{forward.11} parent=23 // pred_check
          %p228 = pneg %p49
        $region26: #{forward.11} parent=23 // pred_check_branch
          %230 = sbr.rel (%p228) target = $region28
        $region27: #{forward.11} parent=23 // pred_region
          %s231 = sadd.s32 %s21, 3
          %p232 = scmp.lt.s32.totalorder %s20, 1
          %s233 = scalar_select %p232, %s20, 1
          %p234 = scmp.lt.s32.totalorder %s231, 6
          %s235 = scalar_select %p234, %s231, 6
          %s236 = smul.addr %s235, 3
          %s237 = smul.addr %s233, 21
          %s238 = sadd.s32 %s236, %s237
          %s239 = smul.addr %s238, 8
          %s240 = scalar_lea.vmem %s0, %s239
          %s241 = sadd.s32 %s21, 3
        $region28: #{forward.11} parent=23 // pred_fallthru
          _
        // Predicated region
        $region29: #{forward.11} parent=23 // pred_check
          %p242 = pneg %p75
        $region30: #{forward.11} parent=23 // pred_check_branch
          %244 = sbr.rel (%p242) target = $region32
        $region31: #{forward.11} parent=23 // pred_region
          %p245 = scmp.lt.s32.totalorder %s21, 1
          %s246 = scalar_select %p245, %s21, 1
          %s247 = smul.addr %s246, 9
          %s248 = smul.addr %s247, 8
          %s249 = scalar_lea.vmem %s1, %s248
        $region32: #{forward.11} parent=23 // pred_fallthru
          _
        // Predicated region
        $region33: #{forward.11} parent=23 // pred_check
          %p250 = pneg %p103
        $region34: #{forward.11} parent=23 // pred_check_branch
          %252 = sbr.rel (%p250) target = $region36
        $region35: #{forward.11} parent=23 // pred_region
          %s253 = sand.u32 %s93, 1
          %s254 = sand.u32 %s93, 1
          %s255 = smul.addr %s254, 24
          %s256 = scalar_lea.vmem [#allocation3], %s255
          %s257 = sadd.s32 %s21, 3
          %s258 = smul.addr %s257, 8
          %s259 = scalar_lea.vmem %s2, %s258
          // Predicated region
          $region37: #{forward.11} parent=35 // pred_check
            _
          $region38: #{forward.11} parent=35 // pred_check_branch
            %261 = sbr.rel (0) target = $region40
          $region39: #{forward.11} parent=35 // pred_region
            // Predicated region
            $region41: #{forward.11} parent=39 // pred_check
              _
            $region42: #{forward.11} parent=39 // pred_check_branch
              %263 = sbr.rel (0) target = $region44
            $region43: #{forward.11} parent=39 // pred_region
              // Predicated region
              $region56: #{forward.11} parent=43 // pred_check
                _
              $region57: #{forward.11} parent=43 // pred_check_branch
                %283 = sbr.rel (0) target = $region59
              $region58: #{forward.11} parent=43 // pred_region
                loop: start=0, step=1, limit=1
                $region60: #{forward.11} parent=58 // loop_pre_header
                  _
                $region61: #{forward.11} parent=58 // loop_header
                  %s285 = sphi 0, %s289
                  %p286 = scmp.ge.s32.totalorder %s285, 1
                  %s290 = sphi %s259, %s259
                  %s291 = sphi %s256, %s256
                $region62: #{forward.11} parent=58 // loop_header_branch
                  %288 = sbr.rel (%p286) target = $region66
                $region63: #{forward.11} parent=58 // loop_body
                  %v292 = vld [vmem:[%s290] sm:$0xff]
                  %293 = vst [vmem:[%s291] sm:$0xff] %v292
                  %v294 = vld [vmem:[%s290 + $0x38] sm:$0xff]
                  %295 = vst [vmem:[%s291 + $0x8] sm:$0xff] %v294
                  %v296 = vld [vmem:[%s290 + $0x70] sm:$0xff]
                  %297 = vst [vmem:[%s291 + $0x10] sm:$0xff] %v296
                $region64: #{forward.11} parent=58 // loop_footer
                  %s289 = sadd.s32 1, %s285
                $region65: #{forward.11} parent=58 // loop_footer_branch
                  %284 = sbr.rel target = $region61
                $region66: #{forward.11} parent=58 // loop_exit
                  _
              $region59: #{forward.11} parent=43 // pred_fallthru
                _
              // Predicated region
              $region67: #{forward.11} parent=43 // pred_check
                _
              $region68: #{forward.11} parent=43 // pred_check_branch
                %299 = sbr.rel target = $region70
              $region69: #{forward.11} parent=43 // pred_region
                _
              $region70: #{forward.11} parent=43 // pred_fallthru
                _
            $region44: #{forward.11} parent=39 // pred_fallthru
              _
            // Predicated region
            $region45: #{forward.11} parent=39 // pred_check
              _
            $region46: #{forward.11} parent=39 // pred_check_branch
              %265 = sbr.rel target = $region48
            $region47: #{forward.11} parent=39 // pred_region
              %s267 = ssub.s32 256, 1
              loop: start=0, step=1, limit=1
              $region49: #{forward.11} parent=47 // loop_pre_header
                _
              $region50: #{forward.11} parent=47 // loop_header
                %s269 = sphi 0, %s273
                %p270 = scmp.ge.s32.totalorder %s269, 1
                %s274 = sphi %s259, %s259
                %s275 = sphi %s256, %s256
              $region51: #{forward.11} parent=47 // loop_header_branch
                %272 = sbr.rel (%p270) target = $region55
              $region52: #{forward.11} parent=47 // loop_body
                %v276 = vld [vmem:[%s274] sm:%s267]
                %277 = vst [vmem:[%s275] sm:%s267] %v276
                %v278 = vld [vmem:[%s274 + $0x38] sm:%s267]
                %279 = vst [vmem:[%s275 + $0x8] sm:%s267] %v278
                %v280 = vld [vmem:[%s274 + $0x70] sm:%s267]
                %281 = vst [vmem:[%s275 + $0x10] sm:%s267] %v280
              $region53: #{forward.11} parent=47 // loop_footer
                %s273 = sadd.s32 1, %s269
              $region54: #{forward.11} parent=47 // loop_footer_branch
                %268 = sbr.rel target = $region50
              $region55: #{forward.11} parent=47 // loop_exit
                _
            $region48: #{forward.11} parent=39 // pred_fallthru
              _
          $region40: #{forward.11} parent=35 // pred_fallthru
            _
          %300 = vnop
        $region36: #{forward.11} parent=23 // pred_fallthru
          _
      $region24: #{forward.11} parent=5 // pred_fallthru
        _
      %p301 = scmp.le.s32.totalorder 1, %s13
      %p302 = scmp.lt.s32.totalorder %s13, 5
      %p303 = pnand %p301, %p302
      %p304 = pneg %p303
      // Predicated region
      $region71: #{forward.11} parent=5 // pred_check
        _
      $region72: #{forward.11} parent=5 // pred_check_branch
        %306 = sbr.rel (%p303) target = $region74
      $region73: #{forward.11} parent=5 // pred_region
        %s307 = ssub.s32 %s13, 1
        %s308 = sand.u32 %s96, 1
        %s309 = sand.u32 %s96, 1
        %s310 = smul.addr %s309, 24
        %s311 = scalar_lea.vmem [#allocation3], %s310
        // Predicated region
        $region75: #{forward.11} parent=73 // pred_check
          %p312 = pneg %p109
        $region76: #{forward.11} parent=73 // pred_check_branch
          %314 = sbr.rel (%p312) target = $region78
        $region77: #{forward.11} parent=73 // pred_region
          _
        $region78: #{forward.11} parent=73 // pred_fallthru
          _
        %s315 = sadd.s32 %s23, 3
        %p316 = scmp.lt.s32.totalorder %s22, 1
        %s317 = scalar_select %p316, %s22, 1
        %p318 = scmp.lt.s32.totalorder %s315, 6
        %s319 = scalar_select %p318, %s315, 6
        %s320 = smul.addr %s319, 3
        %s321 = smul.addr %s317, 21
        %s322 = sadd.s32 %s320, %s321
        %s323 = smul.addr %s322, 8
        %s324 = scalar_lea.vmem %s0, %s323
        %p325 = pneg %p55
        %p326 = pneg %p52
        %p327 = scmp.lt.s32.totalorder %s23, 1
        %s328 = scalar_select %p327, %s23, 1
        %s329 = smul.addr %s328, 9
        %s330 = smul.addr %s329, 8
        %s331 = scalar_lea.vmem %s1, %s330
        %p332 = pneg %p81
        %p333 = pneg %p78
        %s334 = sand.u32 %s96, 1
        %s335 = sand.u32 %s96, 1
        %s336 = smul.addr %s335, 24
        %s337 = scalar_lea.vmem [#allocation3], %s336
        %p338 = pneg %p109
        %p339 = pneg %p106
        %p340 = pneg %p130
        %p341 = pneg %p127
        %p342 = pneg %p151
        %p343 = pneg %p148
        %p344 = pneg %p177
        %p345 = pneg %p174
        %p346 = scmp.lt.s32.totalorder %s22, 1
        %s347 = scalar_select %p346, %s22, 1
        %s348 = smul.addr %s347, 21
        %s349 = sadd.s32 15, %s348
        %s350 = smul.addr %s349, 8
        %s351 = scalar_lea.vmem %s5, %s350
        %p352 = pneg %p203
        %p353 = pneg %p200
        %p354 = scmp.lt.s32.totalorder %s22, 1
        %s355 = scalar_select %p354, %s22, 1
        %s356 = smul.addr %s355, 8
        %s357 = scalar_lea.vmem %s6, %s356
        %s358 = sadd.s32 %s23, 3
        %p359 = scmp.lt.s32.totalorder %s22, 1
        %s360 = scalar_select %p359, %s22, 1
        %p361 = scmp.lt.s32.totalorder %s358, 6
        %s362 = scalar_select %p361, %s358, 6
        %s363 = smul.addr %s362, 3
        %s364 = smul.addr %s360, 21
        %s365 = sadd.s32 %s363, %s364
        %s366 = smul.addr %s365, 8
        %s367 = scalar_lea.vmem %s0, %s366
        %s368 = sadd.s32 %s23, 3
        %p369 = scmp.lt.s32.totalorder %s23, 1
        %s370 = scalar_select %p369, %s23, 1
        %s371 = smul.addr %s370, 9
        %s372 = smul.addr %s371, 8
        %s373 = scalar_lea.vmem %s1, %s372
        %s374 = sadd.s32 %s23, 3
        %p375 = scmp.lt.s32.totalorder %s22, 1
        %s376 = scalar_select %p375, %s22, 1
        %s377 = smul.addr %s376, 21
        %s378 = sadd.s32 15, %s377
        %s379 = smul.addr %s378, 8
        %s380 = scalar_lea.vmem %s5, %s379
        %p381 = scmp.lt.s32.totalorder %s22, 1
        %s382 = scalar_select %p381, %s22, 1
        %s383 = smul.addr %s382, 8
        %s384 = scalar_lea.vmem %s6, %s383
        %p385 = scmp.eq.s32.totalorder %s23, 0
        // Predicated region
        $region79: #{forward.11} parent=73 // pred_check
          %p386 = pneg %p385
        $region80: #{forward.11} parent=73 // pred_check_branch
          %388 = sbr.rel (%p386) target = $region82
        $region81: #{forward.11} parent=73 // pred_region
          %389 = vst [vmem:[#allocation2] sm:$0xff] 0.0
          %390 = vst [vmem:[#allocation2 + $0x8] sm:$0xff] 0.0
          %vm391 = vcmask 261120
          %392 = vst.msk [vmem:[#allocation2 + $0x10] sm:$0xff] %vm391, 0.0
        $region82: #{forward.11} parent=73 // pred_fallthru
          _
        %v393 = vld [vmem:[%s367] sm:$0xff]
        %v394 = vld [vmem:[%s367 + $0x8] sm:$0xff]
        %v395 = vld [vmem:[%s367 + $0x10] sm:$0xff]
        %v396 = vld [vmem:[%s311] sm:$0xff]
        %398 = vset.pattern.permute.xlu0 0
        %399 = vperm.xlu0 %398, %v396
        %v400 = vpop.permute.xlu0 %399
        %v402 = vmul.f32 %v393, %v400
        %v403 = vmul.f32 %v394, %v400
        %v404 = vmul.f32 %v395, %v400
        %s405 = scalar_lea.vmem %s311, 8 [#allocation3]
        %v406 = vld [vmem:[%s405] sm:$0xff]
        %408 = vset.pattern.permute.xlu0 0
        %409 = vperm.xlu0 %408, %v406
        %v410 = vpop.permute.xlu0 %409
        %v412 = vadd.f32 %v402, %v410
        %v413 = vadd.f32 %v403, %v410
        %v414 = vadd.f32 %v404, %v410
        %s415 = scalar_lea.vmem %s311, 16 [#allocation3]
        %v416 = vld [vmem:[%s415] sm:$0xff]
        %418 = vset.pattern.permute.xlu0 0
        %419 = vperm.xlu0 %418, %v416
        %v420 = vpop.permute.xlu0 %419
        %v422 = vmax.f32 %v412, %v420
        %v423 = vmax.f32 %v413, %v420
        %v424 = vmax.f32 %v414, %v420
        %v425 = vld [vmem:[%s4] sm:$0x7]
        %v427 = vperm.slane %v425, 0
        %v428 = vperm.slane %v425, 1
        %v429 = vperm.slane %v425, 2
        %v433 = vmul.f32 %v422, %v427
        %v434 = vmul.f32 %v423, %v428
        %v435 = vmul.f32 %v424, %v429
        %v436 = vld [vmem:[%s373] sm:$0xff]
        %s437 = scalar_lea.vmem %s373, 8
        %v438 = vld [vmem:[%s437] sm:$0xff]
        %442 = vrot.lane.b32.xlu0 %v433, 127
        %v443 = vpop.permute.xlu0 %442
        %444 = vrot.lane.b32.xlu0 %v434, 127
        %v445 = vpop.permute.xlu0 %444
        %446 = vrot.lane.b32.xlu0 %v435, 127
        %v447 = vpop.permute.xlu0 %446
        %vm448 = vcmask 1039360
        %v449 = vsel %vm448, %v443, %v445
        %v450 = vsel %vm448, %v445, %v447
        %vm454 = vcmask 64512
        %v456 = vsel %vm454, %v438, 0
        %458 = vmatpush.msra.mxu0 0.0
        %459 = vmatpush.msra.mxu0 0.0
        %460 = vmatpush.msra.mxu0 0.0
        %461 = vmatpush.msra.mxu0 0.0
        %462 = vmatpush.msra.mxu0 0.0
        %463 = vmatpush.msra.mxu0 0.0
        %464 = vmatpush.msra.mxu0 0.0
        %465 = vmatpush.msra.mxu0 0.0
        %466 = vmatpush.msra.mxu0 0.0
        %467 = vmatpush.msra.mxu0 0.0
        %468 = vmatpush.msra.mxu0 0.0
        %469 = vmatpush.msra.mxu0 0.0
        %470 = vmatpush.msra.mxu0 0.0
        %471 = vmatpush.msra.mxu0 0.0
        %472 = vmatpush.msra.mxu0 0.0
        %473 = vmatpush.msra.mxu0 %v449
        %474 = vmatmul.f32.gmra.mxu0 %v456
        %v475 = vpop.f32.mrf.mxu0
        %v476 = vadd.f32 0.0, %v475
        %477 = vdwg.mxu0
        %478 = vmatpush.msra.mxu0 0.0
        %479 = vmatpush.msra.mxu0 0.0
        %480 = vmatpush.msra.mxu0 0.0
        %481 = vmatpush.msra.mxu0 0.0
        %482 = vmatpush.msra.mxu0 0.0
        %483 = vmatpush.msra.mxu0 0.0
        %484 = vmatpush.msra.mxu0 0.0
        %485 = vmatpush.msra.mxu0 0.0
        %486 = vmatpush.msra.mxu0 0.0
        %487 = vmatpush.msra.mxu0 0.0
        %488 = vmatpush.msra.mxu0 0.0
        %489 = vmatpush.msra.mxu0 0.0
        %490 = vmatpush.msra.mxu0 0.0
        %491 = vmatpush.msra.mxu0 0.0
        %492 = vmatpush.msra.mxu0 0.0
        %493 = vmatpush.msra.mxu0 %v450
        %494 = vmatmul.f32.gmra.mxu0 %v456
        %v495 = vpop.f32.mrf.mxu0
        %v496 = vadd.f32 0.0, %v495
        %497 = vdwg.mxu0
        %498 = vmatpush.msra.mxu0 0.0
        %499 = vmatpush.msra.mxu0 0.0
        %500 = vmatpush.msra.mxu0 0.0
        %501 = vmatpush.msra.mxu0 0.0
        %502 = vmatpush.msra.mxu0 0.0
        %503 = vmatpush.msra.mxu0 0.0
        %504 = vmatpush.msra.mxu0 0.0
        %505 = vmatpush.msra.mxu0 0.0
        %506 = vmatpush.msra.mxu0 0.0
        %507 = vmatpush.msra.mxu0 0.0
        %508 = vmatpush.msra.mxu0 0.0
        %509 = vmatpush.msra.mxu0 0.0
        %510 = vmatpush.msra.mxu0 0.0
        %511 = vmatpush.msra.mxu0 0.0
        %512 = vmatpush.msra.mxu0 0.0
        %513 = vmatpush.msra.mxu0 %v447
        %514 = vmatmul.f32.gmra.mxu0 %v456
        %v515 = vpop.f32.mrf.mxu0
        %v516 = vadd.f32 0.0, %v515
        %517 = vdwg.mxu0
        %v519 = vsel %vm454, %v436, 0
        %521 = vmatpush.msra.mxu0 0.0
        %522 = vmatpush.msra.mxu0 0.0
        %523 = vmatpush.msra.mxu0 0.0
        %524 = vmatpush.msra.mxu0 0.0
        %525 = vmatpush.msra.mxu0 0.0
        %526 = vmatpush.msra.mxu0 0.0
        %527 = vmatpush.msra.mxu0 0.0
        %528 = vmatpush.msra.mxu0 0.0
        %529 = vmatpush.msra.mxu0 0.0
        %530 = vmatpush.msra.mxu0 0.0
        %531 = vmatpush.msra.mxu0 0.0
        %532 = vmatpush.msra.mxu0 0.0
        %533 = vmatpush.msra.mxu0 0.0
        %534 = vmatpush.msra.mxu0 0.0
        %535 = vmatpush.msra.mxu0 0.0
        %536 = vmatpush.msra.mxu0 %v433
        %537 = vmatmul.f32.gmra.mxu0 %v519
        %v538 = vpop.f32.mrf.mxu0
        %v539 = vadd.f32 %v476, %v538
        %540 = vdwg.mxu0
        %541 = vmatpush.msra.mxu0 0.0
        %542 = vmatpush.msra.mxu0 0.0
        %543 = vmatpush.msra.mxu0 0.0
        %544 = vmatpush.msra.mxu0 0.0
        %545 = vmatpush.msra.mxu0 0.0
        %546 = vmatpush.msra.mxu0 0.0
        %547 = vmatpush.msra.mxu0 0.0
        %548 = vmatpush.msra.mxu0 0.0
        %549 = vmatpush.msra.mxu0 0.0
        %550 = vmatpush.msra.mxu0 0.0
        %551 = vmatpush.msra.mxu0 0.0
        %552 = vmatpush.msra.mxu0 0.0
        %553 = vmatpush.msra.mxu0 0.0
        %554 = vmatpush.msra.mxu0 0.0
        %555 = vmatpush.msra.mxu0 0.0
        %556 = vmatpush.msra.mxu0 %v434
        %557 = vmatmul.f32.gmra.mxu0 %v519
        %v558 = vpop.f32.mrf.mxu0
        %v559 = vadd.f32 %v496, %v558
        %560 = vdwg.mxu0
        %561 = vmatpush.msra.mxu0 0.0
        %562 = vmatpush.msra.mxu0 0.0
        %563 = vmatpush.msra.mxu0 0.0
        %564 = vmatpush.msra.mxu0 0.0
        %565 = vmatpush.msra.mxu0 0.0
        %566 = vmatpush.msra.mxu0 0.0
        %567 = vmatpush.msra.mxu0 0.0
        %568 = vmatpush.msra.mxu0 0.0
        %569 = vmatpush.msra.mxu0 0.0
        %570 = vmatpush.msra.mxu0 0.0
        %571 = vmatpush.msra.mxu0 0.0
        %572 = vmatpush.msra.mxu0 0.0
        %573 = vmatpush.msra.mxu0 0.0
        %574 = vmatpush.msra.mxu0 0.0
        %575 = vmatpush.msra.mxu0 0.0
        %576 = vmatpush.msra.mxu0 %v435
        %577 = vmatmul.f32.gmra.mxu0 %v519
        %v578 = vpop.f32.mrf.mxu0
        %v579 = vadd.f32 %v516, %v578
        %580 = vdwg.mxu0
        %s581 = scalar_lea.vmem %s373, 16
        %v582 = vld [vmem:[%s581] sm:$0xff]
        %583 = vrot.lane.b32.xlu0 %v433, 126
        %v584 = vpop.permute.xlu0 %583
        %585 = vrot.lane.b32.xlu0 %v434, 126
        %v586 = vpop.permute.xlu0 %585
        %587 = vrot.lane.b32.xlu0 %v435, 126
        %v588 = vpop.permute.xlu0 %587
        %vm589 = vcmask 1031168
        %v590 = vsel %vm589, %v584, %v586
        %v591 = vsel %vm589, %v586, %v588
        %v596 = vsel %vm454, %v582, 0
        %598 = vmatpush.msra.mxu0 0.0
        %599 = vmatpush.msra.mxu0 0.0
        %600 = vmatpush.msra.mxu0 0.0
        %601 = vmatpush.msra.mxu0 0.0
        %602 = vmatpush.msra.mxu0 0.0
        %603 = vmatpush.msra.mxu0 0.0
        %604 = vmatpush.msra.mxu0 0.0
        %605 = vmatpush.msra.mxu0 0.0
        %606 = vmatpush.msra.mxu0 0.0
        %607 = vmatpush.msra.mxu0 0.0
        %608 = vmatpush.msra.mxu0 0.0
        %609 = vmatpush.msra.mxu0 0.0
        %610 = vmatpush.msra.mxu0 0.0
        %611 = vmatpush.msra.mxu0 0.0
        %612 = vmatpush.msra.mxu0 0.0
        %613 = vmatpush.msra.mxu0 %v590
        %614 = vmatmul.f32.gmra.mxu0 %v596
        %v615 = vpop.f32.mrf.mxu0
        %v616 = vadd.f32 0.0, %v615
        %617 = vdwg.mxu0
        %618 = vmatpush.msra.mxu0 0.0
        %619 = vmatpush.msra.mxu0 0.0
        %620 = vmatpush.msra.mxu0 0.0
        %621 = vmatpush.msra.mxu0 0.0
        %622 = vmatpush.msra.mxu0 0.0
        %623 = vmatpush.msra.mxu0 0.0
        %624 = vmatpush.msra.mxu0 0.0
        %625 = vmatpush.msra.mxu0 0.0
        %626 = vmatpush.msra.mxu0 0.0
        %627 = vmatpush.msra.mxu0 0.0
        %628 = vmatpush.msra.mxu0 0.0
        %629 = vmatpush.msra.mxu0 0.0
        %630 = vmatpush.msra.mxu0 0.0
        %631 = vmatpush.msra.mxu0 0.0
        %632 = vmatpush.msra.mxu0 0.0
        %633 = vmatpush.msra.mxu0 %v591
        %634 = vmatmul.f32.gmra.mxu0 %v596
        %v635 = vpop.f32.mrf.mxu0
        %v636 = vadd.f32 0.0, %v635
        %637 = vdwg.mxu0
        %638 = vmatpush.msra.mxu0 0.0
        %639 = vmatpush.msra.mxu0 0.0
        %640 = vmatpush.msra.mxu0 0.0
        %641 = vmatpush.msra.mxu0 0.0
        %642 = vmatpush.msra.mxu0 0.0
        %643 = vmatpush.msra.mxu0 0.0
        %644 = vmatpush.msra.mxu0 0.0
        %645 = vmatpush.msra.mxu0 0.0
        %646 = vmatpush.msra.mxu0 0.0
        %647 = vmatpush.msra.mxu0 0.0
        %648 = vmatpush.msra.mxu0 0.0
        %649 = vmatpush.msra.mxu0 0.0
        %650 = vmatpush.msra.mxu0 0.0
        %651 = vmatpush.msra.mxu0 0.0
        %652 = vmatpush.msra.mxu0 0.0
        %653 = vmatpush.msra.mxu0 %v588
        %654 = vmatmul.f32.gmra.mxu0 %v596
        %v655 = vpop.f32.mrf.mxu0
        %v656 = vadd.f32 0.0, %v655
        %657 = vdwg.mxu0
        %v658 = vadd.f32 %v539, %v616
        %v659 = vadd.f32 %v559, %v636
        %v660 = vadd.f32 %v579, %v656
        %s661 = scalar_lea.vmem %s373, 24
        %v662 = vld [vmem:[%s661] sm:$0xff]
        %663 = vrot.lane.b32.xlu0 %v433, 110
        %v664 = vpop.permute.xlu0 %663
        %665 = vrot.lane.b32.xlu0 %v434, 110
        %v666 = vpop.permute.xlu0 %665
        %667 = vrot.lane.b32.xlu0 %v435, 110
        %v668 = vpop.permute.xlu0 %667
        %vm669 = vcmask 900096
        %v670 = vsel %vm669, %v664, %v666
        %v671 = vsel %vm669, %v666, %v668
        %v676 = vsel %vm454, %v662, 0
        %678 = vmatpush.msra.mxu0 0.0
        %679 = vmatpush.msra.mxu0 0.0
        %680 = vmatpush.msra.mxu0 0.0
        %681 = vmatpush.msra.mxu0 0.0
        %682 = vmatpush.msra.mxu0 0.0
        %683 = vmatpush.msra.mxu0 0.0
        %684 = vmatpush.msra.mxu0 0.0
        %685 = vmatpush.msra.mxu0 0.0
        %686 = vmatpush.msra.mxu0 0.0
        %687 = vmatpush.msra.mxu0 0.0
        %688 = vmatpush.msra.mxu0 0.0
        %689 = vmatpush.msra.mxu0 0.0
        %690 = vmatpush.msra.mxu0 0.0
        %691 = vmatpush.msra.mxu0 0.0
        %692 = vmatpush.msra.mxu0 0.0
        %693 = vmatpush.msra.mxu0 %v670
        %694 = vmatmul.f32.gmra.mxu0 %v676
        %v695 = vpop.f32.mrf.mxu0
        %v696 = vadd.f32 0.0, %v695
        %697 = vdwg.mxu0
        %698 = vmatpush.msra.mxu0 0.0
        %699 = vmatpush.msra.mxu0 0.0
        %700 = vmatpush.msra.mxu0 0.0
        %701 = vmatpush.msra.mxu0 0.0
        %702 = vmatpush.msra.mxu0 0.0
        %703 = vmatpush.msra.mxu0 0.0
        %704 = vmatpush.msra.mxu0 0.0
        %705 = vmatpush.msra.mxu0 0.0
        %706 = vmatpush.msra.mxu0 0.0
        %707 = vmatpush.msra.mxu0 0.0
        %708 = vmatpush.msra.mxu0 0.0
        %709 = vmatpush.msra.mxu0 0.0
        %710 = vmatpush.msra.mxu0 0.0
        %711 = vmatpush.msra.mxu0 0.0
        %712 = vmatpush.msra.mxu0 0.0
        %713 = vmatpush.msra.mxu0 %v671
        %714 = vmatmul.f32.gmra.mxu0 %v676
        %v715 = vpop.f32.mrf.mxu0
        %v716 = vadd.f32 0.0, %v715
        %717 = vdwg.mxu0
        %718 = vmatpush.msra.mxu0 0.0
        %719 = vmatpush.msra.mxu0 0.0
        %720 = vmatpush.msra.mxu0 0.0
        %721 = vmatpush.msra.mxu0 0.0
        %722 = vmatpush.msra.mxu0 0.0
        %723 = vmatpush.msra.mxu0 0.0
        %724 = vmatpush.msra.mxu0 0.0
        %725 = vmatpush.msra.mxu0 0.0
        %726 = vmatpush.msra.mxu0 0.0
        %727 = vmatpush.msra.mxu0 0.0
        %728 = vmatpush.msra.mxu0 0.0
        %729 = vmatpush.msra.mxu0 0.0
        %730 = vmatpush.msra.mxu0 0.0
        %731 = vmatpush.msra.mxu0 0.0
        %732 = vmatpush.msra.mxu0 0.0
        %733 = vmatpush.msra.mxu0 %v668
        %734 = vmatmul.f32.gmra.mxu0 %v676
        %v735 = vpop.f32.mrf.mxu0
        %v736 = vadd.f32 0.0, %v735
        %737 = vdwg.mxu0
        %v738 = vadd.f32 %v658, %v696
        %v739 = vadd.f32 %v659, %v716
        %v740 = vadd.f32 %v660, %v736
        %s741 = scalar_lea.vmem %s373, 32
        %v742 = vld [vmem:[%s741] sm:$0xff]
        %743 = vrot.lane.b32.xlu0 %v433, 109
        %v744 = vpop.permute.xlu0 %743
        %745 = vrot.lane.b32.xlu0 %v434, 109
        %v746 = vpop.permute.xlu0 %745
        %747 = vrot.lane.b32.xlu0 %v435, 109
        %v748 = vpop.permute.xlu0 %747
        %vm749 = vcmask 891904
        %v750 = vsel %vm749, %v744, %v746
        %v751 = vsel %vm749, %v746, %v748
        %v756 = vsel %vm454, %v742, 0
        %758 = vmatpush.msra.mxu0 0.0
        %759 = vmatpush.msra.mxu0 0.0
        %760 = vmatpush.msra.mxu0 0.0
        %761 = vmatpush.msra.mxu0 0.0
        %762 = vmatpush.msra.mxu0 0.0
        %763 = vmatpush.msra.mxu0 0.0
        %764 = vmatpush.msra.mxu0 0.0
        %765 = vmatpush.msra.mxu0 0.0
        %766 = vmatpush.msra.mxu0 0.0
        %767 = vmatpush.msra.mxu0 0.0
        %768 = vmatpush.msra.mxu0 0.0
        %769 = vmatpush.msra.mxu0 0.0
        %770 = vmatpush.msra.mxu0 0.0
        %771 = vmatpush.msra.mxu0 0.0
        %772 = vmatpush.msra.mxu0 0.0
        %773 = vmatpush.msra.mxu0 %v750
        %774 = vmatmul.f32.gmra.mxu0 %v756
        %v775 = vpop.f32.mrf.mxu0
        %v776 = vadd.f32 0.0, %v775
        %777 = vdwg.mxu0
        %778 = vmatpush.msra.mxu0 0.0
        %779 = vmatpush.msra.mxu0 0.0
        %780 = vmatpush.msra.mxu0 0.0
        %781 = vmatpush.msra.mxu0 0.0
        %782 = vmatpush.msra.mxu0 0.0
        %783 = vmatpush.msra.mxu0 0.0
        %784 = vmatpush.msra.mxu0 0.0
        %785 = vmatpush.msra.mxu0 0.0
        %786 = vmatpush.msra.mxu0 0.0
        %787 = vmatpush.msra.mxu0 0.0
        %788 = vmatpush.msra.mxu0 0.0
        %789 = vmatpush.msra.mxu0 0.0
        %790 = vmatpush.msra.mxu0 0.0
        %791 = vmatpush.msra.mxu0 0.0
        %792 = vmatpush.msra.mxu0 0.0
        %793 = vmatpush.msra.mxu0 %v751
        %794 = vmatmul.f32.gmra.mxu0 %v756
        %v795 = vpop.f32.mrf.mxu0
        %v796 = vadd.f32 0.0, %v795
        %797 = vdwg.mxu0
        %798 = vmatpush.msra.mxu0 0.0
        %799 = vmatpush.msra.mxu0 0.0
        %800 = vmatpush.msra.mxu0 0.0
        %801 = vmatpush.msra.mxu0 0.0
        %802 = vmatpush.msra.mxu0 0.0
        %803 = vmatpush.msra.mxu0 0.0
        %804 = vmatpush.msra.mxu0 0.0
        %805 = vmatpush.msra.mxu0 0.0
        %806 = vmatpush.msra.mxu0 0.0
        %807 = vmatpush.msra.mxu0 0.0
        %808 = vmatpush.msra.mxu0 0.0
        %809 = vmatpush.msra.mxu0 0.0
        %810 = vmatpush.msra.mxu0 0.0
        %811 = vmatpush.msra.mxu0 0.0
        %812 = vmatpush.msra.mxu0 0.0
        %813 = vmatpush.msra.mxu0 %v748
        %814 = vmatmul.f32.gmra.mxu0 %v756
        %v815 = vpop.f32.mrf.mxu0
        %v816 = vadd.f32 0.0, %v815
        %817 = vdwg.mxu0
        %v818 = vadd.f32 %v738, %v776
        %v819 = vadd.f32 %v739, %v796
        %v820 = vadd.f32 %v740, %v816
        %s821 = scalar_lea.vmem %s373, 40
        %v822 = vld [vmem:[%s821] sm:$0xff]
        %823 = vrot.lane.b32.xlu0 %v433, 108
        %v824 = vpop.permute.xlu0 %823
        %825 = vrot.lane.b32.xlu0 %v434, 108
        %v826 = vpop.permute.xlu0 %825
        %827 = vrot.lane.b32.xlu0 %v435, 108
        %v828 = vpop.permute.xlu0 %827
        %vm829 = vcmask 883712
        %v830 = vsel %vm829, %v824, %v826
        %v831 = vsel %vm829, %v826, %v828
        %v836 = vsel %vm454, %v822, 0
        %838 = vmatpush.msra.mxu0 0.0
        %839 = vmatpush.msra.mxu0 0.0
        %840 = vmatpush.msra.mxu0 0.0
        %841 = vmatpush.msra.mxu0 0.0
        %842 = vmatpush.msra.mxu0 0.0
        %843 = vmatpush.msra.mxu0 0.0
        %844 = vmatpush.msra.mxu0 0.0
        %845 = vmatpush.msra.mxu0 0.0
        %846 = vmatpush.msra.mxu0 0.0
        %847 = vmatpush.msra.mxu0 0.0
        %848 = vmatpush.msra.mxu0 0.0
        %849 = vmatpush.msra.mxu0 0.0
        %850 = vmatpush.msra.mxu0 0.0
        %851 = vmatpush.msra.mxu0 0.0
        %852 = vmatpush.msra.mxu0 0.0
        %853 = vmatpush.msra.mxu0 %v830
        %854 = vmatmul.f32.gmra.mxu0 %v836
        %v855 = vpop.f32.mrf.mxu0
        %v856 = vadd.f32 0.0, %v855
        %857 = vdwg.mxu0
        %858 = vmatpush.msra.mxu0 0.0
        %859 = vmatpush.msra.mxu0 0.0
        %860 = vmatpush.msra.mxu0 0.0
        %861 = vmatpush.msra.mxu0 0.0
        %862 = vmatpush.msra.mxu0 0.0
        %863 = vmatpush.msra.mxu0 0.0
        %864 = vmatpush.msra.mxu0 0.0
        %865 = vmatpush.msra.mxu0 0.0
        %866 = vmatpush.msra.mxu0 0.0
        %867 = vmatpush.msra.mxu0 0.0
        %868 = vmatpush.msra.mxu0 0.0
        %869 = vmatpush.msra.mxu0 0.0
        %870 = vmatpush.msra.mxu0 0.0
        %871 = vmatpush.msra.mxu0 0.0
        %872 = vmatpush.msra.mxu0 0.0
        %873 = vmatpush.msra.mxu0 %v831
        %874 = vmatmul.f32.gmra.mxu0 %v836
        %v875 = vpop.f32.mrf.mxu0
        %v876 = vadd.f32 0.0, %v875
        %877 = vdwg.mxu0
        %878 = vmatpush.msra.mxu0 0.0
        %879 = vmatpush.msra.mxu0 0.0
        %880 = vmatpush.msra.mxu0 0.0
        %881 = vmatpush.msra.mxu0 0.0
        %882 = vmatpush.msra.mxu0 0.0
        %883 = vmatpush.msra.mxu0 0.0
        %884 = vmatpush.msra.mxu0 0.0
        %885 = vmatpush.msra.mxu0 0.0
        %886 = vmatpush.msra.mxu0 0.0
        %887 = vmatpush.msra.mxu0 0.0
        %888 = vmatpush.msra.mxu0 0.0
        %889 = vmatpush.msra.mxu0 0.0
        %890 = vmatpush.msra.mxu0 0.0
        %891 = vmatpush.msra.mxu0 0.0
        %892 = vmatpush.msra.mxu0 0.0
        %893 = vmatpush.msra.mxu0 %v828
        %894 = vmatmul.f32.gmra.mxu0 %v836
        %v895 = vpop.f32.mrf.mxu0
        %v896 = vadd.f32 0.0, %v895
        %897 = vdwg.mxu0
        %v898 = vadd.f32 %v818, %v856
        %v899 = vadd.f32 %v819, %v876
        %v900 = vadd.f32 %v820, %v896
        %s901 = scalar_lea.vmem %s373, 48
        %v902 = vld [vmem:[%s901] sm:$0xff]
        %903 = vrot.lane.b32.xlu0 %v433, 92
        %v904 = vpop.permute.xlu0 %903
        %905 = vrot.lane.b32.xlu0 %v434, 92
        %v906 = vpop.permute.xlu0 %905
        %907 = vrot.lane.b32.xlu0 %v435, 92
        %v908 = vpop.permute.xlu0 %907
        %vm909 = vcmask 752640
        %v910 = vsel %vm909, %v904, %v906
        %v911 = vsel %vm909, %v906, %v908
        %v916 = vsel %vm454, %v902, 0
        %918 = vmatpush.msra.mxu0 0.0
        %919 = vmatpush.msra.mxu0 0.0
        %920 = vmatpush.msra.mxu0 0.0
        %921 = vmatpush.msra.mxu0 0.0
        %922 = vmatpush.msra.mxu0 0.0
        %923 = vmatpush.msra.mxu0 0.0
        %924 = vmatpush.msra.mxu0 0.0
        %925 = vmatpush.msra.mxu0 0.0
        %926 = vmatpush.msra.mxu0 0.0
        %927 = vmatpush.msra.mxu0 0.0
        %928 = vmatpush.msra.mxu0 0.0
        %929 = vmatpush.msra.mxu0 0.0
        %930 = vmatpush.msra.mxu0 0.0
        %931 = vmatpush.msra.mxu0 0.0
        %932 = vmatpush.msra.mxu0 0.0
        %933 = vmatpush.msra.mxu0 %v910
        %934 = vmatmul.f32.gmra.mxu0 %v916
        %v935 = vpop.f32.mrf.mxu0
        %v936 = vadd.f32 0.0, %v935
        %937 = vdwg.mxu0
        %938 = vmatpush.msra.mxu0 0.0
        %939 = vmatpush.msra.mxu0 0.0
        %940 = vmatpush.msra.mxu0 0.0
        %941 = vmatpush.msra.mxu0 0.0
        %942 = vmatpush.msra.mxu0 0.0
        %943 = vmatpush.msra.mxu0 0.0
        %944 = vmatpush.msra.mxu0 0.0
        %945 = vmatpush.msra.mxu0 0.0
        %946 = vmatpush.msra.mxu0 0.0
        %947 = vmatpush.msra.mxu0 0.0
        %948 = vmatpush.msra.mxu0 0.0
        %949 = vmatpush.msra.mxu0 0.0
        %950 = vmatpush.msra.mxu0 0.0
        %951 = vmatpush.msra.mxu0 0.0
        %952 = vmatpush.msra.mxu0 0.0
        %953 = vmatpush.msra.mxu0 %v911
        %954 = vmatmul.f32.gmra.mxu0 %v916
        %v955 = vpop.f32.mrf.mxu0
        %v956 = vadd.f32 0.0, %v955
        %957 = vdwg.mxu0
        %958 = vmatpush.msra.mxu0 0.0
        %959 = vmatpush.msra.mxu0 0.0
        %960 = vmatpush.msra.mxu0 0.0
        %961 = vmatpush.msra.mxu0 0.0
        %962 = vmatpush.msra.mxu0 0.0
        %963 = vmatpush.msra.mxu0 0.0
        %964 = vmatpush.msra.mxu0 0.0
        %965 = vmatpush.msra.mxu0 0.0
        %966 = vmatpush.msra.mxu0 0.0
        %967 = vmatpush.msra.mxu0 0.0
        %968 = vmatpush.msra.mxu0 0.0
        %969 = vmatpush.msra.mxu0 0.0
        %970 = vmatpush.msra.mxu0 0.0
        %971 = vmatpush.msra.mxu0 0.0
        %972 = vmatpush.msra.mxu0 0.0
        %973 = vmatpush.msra.mxu0 %v908
        %974 = vmatmul.f32.gmra.mxu0 %v916
        %v975 = vpop.f32.mrf.mxu0
        %v976 = vadd.f32 0.0, %v975
        %977 = vdwg.mxu0
        %v978 = vadd.f32 %v898, %v936
        %v979 = vadd.f32 %v899, %v956
        %v980 = vadd.f32 %v900, %v976
        %s981 = scalar_lea.vmem %s373, 56
        %v982 = vld [vmem:[%s981] sm:$0xff]
        %983 = vrot.lane.b32.xlu0 %v433, 91
        %v984 = vpop.permute.xlu0 %983
        %985 = vrot.lane.b32.xlu0 %v434, 91
        %v986 = vpop.permute.xlu0 %985
        %987 = vrot.lane.b32.xlu0 %v435, 91
        %v988 = vpop.permute.xlu0 %987
        %vm989 = vcmask 744448
        %v990 = vsel %vm989, %v984, %v986
        %v991 = vsel %vm989, %v986, %v988
        %v996 = vsel %vm454, %v982, 0
        %998 = vmatpush.msra.mxu0 0.0
        %999 = vmatpush.msra.mxu0 0.0
        %1000 = vmatpush.msra.mxu0 0.0
        %1001 = vmatpush.msra.mxu0 0.0
        %1002 = vmatpush.msra.mxu0 0.0
        %1003 = vmatpush.msra.mxu0 0.0
        %1004 = vmatpush.msra.mxu0 0.0
        %1005 = vmatpush.msra.mxu0 0.0
        %1006 = vmatpush.msra.mxu0 0.0
        %1007 = vmatpush.msra.mxu0 0.0
        %1008 = vmatpush.msra.mxu0 0.0
        %1009 = vmatpush.msra.mxu0 0.0
        %1010 = vmatpush.msra.mxu0 0.0
        %1011 = vmatpush.msra.mxu0 0.0
        %1012 = vmatpush.msra.mxu0 0.0
        %1013 = vmatpush.msra.mxu0 %v990
        %1014 = vmatmul.f32.gmra.mxu0 %v996
        %v1015 = vpop.f32.mrf.mxu0
        %v1016 = vadd.f32 0.0, %v1015
        %1017 = vdwg.mxu0
        %1018 = vmatpush.msra.mxu0 0.0
        %1019 = vmatpush.msra.mxu0 0.0
        %1020 = vmatpush.msra.mxu0 0.0
        %1021 = vmatpush.msra.mxu0 0.0
        %1022 = vmatpush.msra.mxu0 0.0
        %1023 = vmatpush.msra.mxu0 0.0
        %1024 = vmatpush.msra.mxu0 0.0
        %1025 = vmatpush.msra.mxu0 0.0
        %1026 = vmatpush.msra.mxu0 0.0
        %1027 = vmatpush.msra.mxu0 0.0
        %1028 = vmatpush.msra.mxu0 0.0
        %1029 = vmatpush.msra.mxu0 0.0
        %1030 = vmatpush.msra.mxu0 0.0
        %1031 = vmatpush.msra.mxu0 0.0
        %1032 = vmatpush.msra.mxu0 0.0
        %1033 = vmatpush.msra.mxu0 %v991
        %1034 = vmatmul.f32.gmra.mxu0 %v996
        %v1035 = vpop.f32.mrf.mxu0
        %v1036 = vadd.f32 0.0, %v1035
        %1037 = vdwg.mxu0
        %1038 = vmatpush.msra.mxu0 0.0
        %1039 = vmatpush.msra.mxu0 0.0
        %1040 = vmatpush.msra.mxu0 0.0
        %1041 = vmatpush.msra.mxu0 0.0
        %1042 = vmatpush.msra.mxu0 0.0
        %1043 = vmatpush.msra.mxu0 0.0
        %1044 = vmatpush.msra.mxu0 0.0
        %1045 = vmatpush.msra.mxu0 0.0
        %1046 = vmatpush.msra.mxu0 0.0
        %1047 = vmatpush.msra.mxu0 0.0
        %1048 = vmatpush.msra.mxu0 0.0
        %1049 = vmatpush.msra.mxu0 0.0
        %1050 = vmatpush.msra.mxu0 0.0
        %1051 = vmatpush.msra.mxu0 0.0
        %1052 = vmatpush.msra.mxu0 0.0
        %1053 = vmatpush.msra.mxu0 %v988
        %1054 = vmatmul.f32.gmra.mxu0 %v996
        %v1055 = vpop.f32.mrf.mxu0
        %v1056 = vadd.f32 0.0, %v1055
        %1057 = vdwg.mxu0
        %v1058 = vadd.f32 %v978, %v1016
        %v1059 = vadd.f32 %v979, %v1036
        %v1060 = vadd.f32 %v980, %v1056
        %s1061 = scalar_lea.vmem %s373, 64
        %v1062 = vld [vmem:[%s1061] sm:$0xff]
        %1063 = vrot.lane.b32.xlu0 %v433, 90
        %v1064 = vpop.permute.xlu0 %1063
        %1065 = vrot.lane.b32.xlu0 %v434, 90
        %v1066 = vpop.permute.xlu0 %1065
        %1067 = vrot.lane.b32.xlu0 %v435, 90
        %v1068 = vpop.permute.xlu0 %1067
        %vm1069 = vcmask 736256
        %v1070 = vsel %vm1069, %v1064, %v1066
        %v1071 = vsel %vm1069, %v1066, %v1068
        %v1076 = vsel %vm454, %v1062, 0
        %1078 = vmatpush.msra.mxu0 0.0
        %1079 = vmatpush.msra.mxu0 0.0
        %1080 = vmatpush.msra.mxu0 0.0
        %1081 = vmatpush.msra.mxu0 0.0
        %1082 = vmatpush.msra.mxu0 0.0
        %1083 = vmatpush.msra.mxu0 0.0
        %1084 = vmatpush.msra.mxu0 0.0
        %1085 = vmatpush.msra.mxu0 0.0
        %1086 = vmatpush.msra.mxu0 0.0
        %1087 = vmatpush.msra.mxu0 0.0
        %1088 = vmatpush.msra.mxu0 0.0
        %1089 = vmatpush.msra.mxu0 0.0
        %1090 = vmatpush.msra.mxu0 0.0
        %1091 = vmatpush.msra.mxu0 0.0
        %1092 = vmatpush.msra.mxu0 0.0
        %1093 = vmatpush.msra.mxu0 %v1070
        %1094 = vmatmul.f32.gmra.mxu0 %v1076
        %v1095 = vpop.f32.mrf.mxu0
        %v1096 = vadd.f32 0.0, %v1095
        %1097 = vdwg.mxu0
        %1098 = vmatpush.msra.mxu0 0.0
        %1099 = vmatpush.msra.mxu0 0.0
        %1100 = vmatpush.msra.mxu0 0.0
        %1101 = vmatpush.msra.mxu0 0.0
        %1102 = vmatpush.msra.mxu0 0.0
        %1103 = vmatpush.msra.mxu0 0.0
        %1104 = vmatpush.msra.mxu0 0.0
        %1105 = vmatpush.msra.mxu0 0.0
        %1106 = vmatpush.msra.mxu0 0.0
        %1107 = vmatpush.msra.mxu0 0.0
        %1108 = vmatpush.msra.mxu0 0.0
        %1109 = vmatpush.msra.mxu0 0.0
        %1110 = vmatpush.msra.mxu0 0.0
        %1111 = vmatpush.msra.mxu0 0.0
        %1112 = vmatpush.msra.mxu0 0.0
        %1113 = vmatpush.msra.mxu0 %v1071
        %1114 = vmatmul.f32.gmra.mxu0 %v1076
        %v1115 = vpop.f32.mrf.mxu0
        %v1116 = vadd.f32 0.0, %v1115
        %1117 = vdwg.mxu0
        %1118 = vmatpush.msra.mxu0 0.0
        %1119 = vmatpush.msra.mxu0 0.0
        %1120 = vmatpush.msra.mxu0 0.0
        %1121 = vmatpush.msra.mxu0 0.0
        %1122 = vmatpush.msra.mxu0 0.0
        %1123 = vmatpush.msra.mxu0 0.0
        %1124 = vmatpush.msra.mxu0 0.0
        %1125 = vmatpush.msra.mxu0 0.0
        %1126 = vmatpush.msra.mxu0 0.0
        %1127 = vmatpush.msra.mxu0 0.0
        %1128 = vmatpush.msra.mxu0 0.0
        %1129 = vmatpush.msra.mxu0 0.0
        %1130 = vmatpush.msra.mxu0 0.0
        %1131 = vmatpush.msra.mxu0 0.0
        %1132 = vmatpush.msra.mxu0 0.0
        %1133 = vmatpush.msra.mxu0 %v1068
        %1134 = vmatmul.f32.gmra.mxu0 %v1076
        %v1135 = vpop.f32.mrf.mxu0
        %v1136 = vadd.f32 0.0, %v1135
        %1137 = vdwg.mxu0
        %v1138 = vadd.f32 %v1058, %v1096
        %v1139 = vadd.f32 %v1059, %v1116
        %v1140 = vadd.f32 %v1060, %v1136
        %v1141 = vld [vmem:[#allocation2] sm:$0xff]
        %v1142 = vld [vmem:[#allocation2 + $0x8] sm:$0xff]
        %v1143 = vld [vmem:[#allocation2 + $0x10] sm:$0xff]
        %v1144 = vadd.f32 %v1141, %v1138
        %v1145 = vadd.f32 %v1142, %v1139
        %v1146 = vadd.f32 %v1143, %v1140
        %1147 = vst [vmem:[#allocation2] sm:$0xff] %v1144
        %1148 = vst [vmem:[#allocation2 + $0x8] sm:$0xff] %v1145
        %vm1149 = vcmask 261120
        %1150 = vst.msk [vmem:[#allocation2 + $0x10] sm:$0xff] %vm1149, %v1146
        %p1151 = scmp.eq.s32.totalorder %s23, 1
        // Predicated region
        $region83: #{forward.11} parent=73 // pred_check
          %p1152 = pneg %p1151
        $region84: #{forward.11} parent=73 // pred_check_branch
          %1154 = sbr.rel (%p1152) target = $region86
        $region85: #{forward.11} parent=73 // pred_region
          %v1155 = vld [vmem:[#allocation2] sm:$0xff]
          %v1156 = vld [vmem:[#allocation2 + $0x8] sm:$0xff]
          %v1157 = vld [vmem:[#allocation2 + $0x10] sm:$0xff]
          %1161 = vrot.lane.b32.xlu0 %v1155, 19
          %v1162 = vpop.permute.xlu0 %1161
          %1163 = vrot.lane.b32.xlu0 %v1156, 19
          %v1164 = vpop.permute.xlu0 %1163
          %1165 = vrot.lane.b32.xlu0 %v1157, 19
          %v1166 = vpop.permute.xlu0 %1165
          %vm1167 = vcmask 154624
          %v1168 = vsel %vm1167, %v1162, %v1164
          %v1169 = vsel %vm1167, %v1164, %v1166
          %v1173 = vsel %vm1167, 0.0, %v1162
          %vm1174 = vcmask 416768
          %v1175 = vsel %vm1174, %v1169, 0.0
          %v1176 = vld [vmem:[%s3] sm:$0xff]
          %1178 = vset.pattern.permute.xlu0 0
          %1179 = vperm.xlu0 %1178, %v1176
          %v1180 = vpop.permute.xlu0 %1179
          %v1182 = vadd.f32 %v1173, %v1180
          %v1183 = vadd.f32 %v1168, %v1180
          %v1184 = vadd.f32 %v1175, %v1180
          %v1185 = vld [vmem:[%s4] sm:$0x7]
          %v1187 = vperm.slane %v1185, 0
          %v1188 = vperm.slane %v1185, 1
          %v1189 = vperm.slane %v1185, 2
          %v1193 = vmul.f32 %v1182, %v1187
          %v1194 = vmul.f32 %v1183, %v1188
          %v1195 = vmul.f32 %v1184, %v1189
          %1196 = vst [vmem:[%s380] sm:$0xff] %v1193
          %1197 = vst [vmem:[%s380 + $0x8] sm:$0xff] %v1194
          %1198 = vst [vmem:[%s380 + $0x10] sm:$0xff] %v1195
          %v1199 = vadd.f32 %v1193, %v1194
          %v1200 = vadd.f32 %v1199, %v1195
          %1201 = vadd.xlane.f32.xlu0 %v1200
          %v1202 = vpop.xlane.xlu0 %1201
          %v1203 = vmul.f32 %v1193, %v1193
          %v1204 = vmul.f32 %v1194, %v1194
          %v1205 = vmul.f32 %v1195, %v1195
          %v1206 = vadd.f32 %v1203, %v1204
          %v1207 = vadd.f32 %v1206, %v1205
          %1208 = vadd.xlane.f32.xlu0 %v1207
          %v1209 = vpop.xlane.xlu0 %1208
          %vm1210 = vcmask 7168
          %v1211 = vsel %vm1210, %v1202, %v1209
          %vm1212 = vcmask 15360
          %1213 = vst.msk [vmem:[%s384] sm:$0xff] %vm1212, %v1211
        $region86: #{forward.11} parent=73 // pred_fallthru
          _
        %p1214 = scmp.lt.s32.totalorder %s22, 1
        %s1215 = scalar_select %p1214, %s22, 1
        %s1216 = smul.addr %s1215, 21
        %s1217 = sadd.s32 15, %s1216
        %s1218 = smul.addr %s1217, 8
        %s1219 = scalar_lea.vmem %s5, %s1218
        %p1220 = scmp.lt.s32.totalorder %s22, 1
        %s1221 = scalar_select %p1220, %s22, 1
        %s1222 = smul.addr %s1221, 8
        %s1223 = scalar_lea.vmem %s6, %s1222
        // Predicated region
        $region87: #{forward.11} parent=73 // pred_check
          %p1224 = pneg %p174
        $region88: #{forward.11} parent=73 // pred_check_branch
          %1226 = sbr.rel (%p1224) target = $region90
        $region89: #{forward.11} parent=73 // pred_region
          _
        $region90: #{forward.11} parent=73 // pred_fallthru
          _
        // Predicated region
        $region91: #{forward.11} parent=73 // pred_check
          %p1227 = pneg %p200
        $region92: #{forward.11} parent=73 // pred_check_branch
          %1229 = sbr.rel (%p1227) target = $region94
        $region93: #{forward.11} parent=73 // pred_region
          _
        $region94: #{forward.11} parent=73 // pred_fallthru
          _
      $region74: #{forward.11} parent=5 // pred_fallthru
        _
      %p1230 = scmp.le.s32.totalorder 2, %s13
      // Predicated region
      $region95: #{forward.11} parent=5 // pred_check
        %p1231 = pneg %p1230
      $region96: #{forward.11} parent=5 // pred_check_branch
        %1233 = sbr.rel (%p1231) target = $region98
      $region97: #{forward.11} parent=5 // pred_region
        %s1234 = ssub.s32 %s13, 2
        // Predicated region
        $region99: #{forward.11} parent=97 // pred_check
          %p1235 = pneg %p180
        $region100: #{forward.11} parent=97 // pred_check_branch
          %1237 = sbr.rel (%p1235) target = $region102
        $region101: #{forward.11} parent=97 // pred_region
          %p1238 = scmp.lt.s32.totalorder %s24, 1
          %s1239 = scalar_select %p1238, %s24, 1
          %s1240 = smul.addr %s1239, 21
          %s1241 = sadd.s32 15, %s1240
          %s1242 = smul.addr %s1241, 8
          %s1243 = scalar_lea.vmem %s5, %s1242
        $region102: #{forward.11} parent=97 // pred_fallthru
          _
        // Predicated region
        $region103: #{forward.11} parent=97 // pred_check
          %p1244 = pneg %p206
        $region104: #{forward.11} parent=97 // pred_check_branch
          %1246 = sbr.rel (%p1244) target = $region106
        $region105: #{forward.11} parent=97 // pred_region
          %p1247 = scmp.lt.s32.totalorder %s24, 1
          %s1248 = scalar_select %p1247, %s24, 1
          %s1249 = smul.addr %s1248, 8
          %s1250 = scalar_lea.vmem %s6, %s1249
        $region106: #{forward.11} parent=97 // pred_fallthru
          _
      $region98: #{forward.11} parent=5 // pred_fallthru
        _
    $region6: #{forward.11} parent=1 // loop_footer
      %s17 = sadd.s32 1, %s13
    $region7: #{forward.11} parent=1 // loop_footer_branch
      %12 = sbr.rel target = $region3
    $region8: #{forward.11} parent=1 // loop_exit
      _

// kernel: forward.12
$region0: #{forward.12}
  #allocation0 [shape = 'u32[]', space=smem, size = 0x4, offset = 0x4, fixed_abs, tag = 'smem constant byte address 0x4 - core index']
  #allocation1 [shape = 'u32[72,128]{1,0:T(1,128)}', space=vmem, size = 0x9000, scoped, tag = 'internal scratch']
  #allocation2 [shape = 'f32[8,288]{1,0:T(8,128)}', space=vmem, size = 0x3000, scoped, tag = 'scratch operand']
  %s0 = inlined_call_operand.vmem [shape: f32[2,56,384], index: 0, kind: input, shape index: {}, may-alias: {0,5}]
  %s1 = inlined_call_operand.vmem [shape: f32[2,9,8,8], index: 1, kind: input, shape index: {}]
  %s2 = inlined_call_operand.vmem [shape: f32[3,56,1], index: 2, kind: input, shape index: {}]
  %s3 = inlined_call_operand.vmem [shape: f32[8,1], index: 3, kind: input, shape index: {}]
  %s4 = inlined_call_operand.vmem [shape: f32[1,384], index: 4, kind: input, shape index: {}]
  %s5 = inlined_call_operand.vmem [shape: f32[2,56,384], index: 5, kind: output, shape index: {0}, may-alias: {0,5}]
  %s6 = inlined_call_operand.vmem [shape: f32[2,8,2], index: 6, kind: output, shape index: {1}]
  %7 = xla_tuple %s5, %s6
  %s8 = sld [smem:[#allocation0]]
  $region107: #{forward.12} parent=0
    _
  %s10 = ssub.s32 1, %s8
  %s11 = scalar_select 0, %s10, %s8
  $region1: #{forward.12} parent=0
    #allocation3 [shape = 'u8[24576]{0}', space=vmem, size = 0x6000, scoped, tag = 'input window, operand 2']
    loop: start=0, step=1, limit=6
    $region2: #{forward.12} parent=1 // loop_pre_header
      _
    $region3: #{forward.12} parent=1 // loop_header
      %s13 = sphi 0, %s17
      %p14 = scmp.ge.s32.totalorder %s13, 6
      %s20 = sphi 0, %s32
      %s21 = sphi 0, %s28
      %s22 = sphi 0, %s20
      %s23 = sphi 0, %s21
      %s24 = sphi 0, %s22
      %s25 = sphi 0, %s23
      %s39 = sphi 0, %s41
      %s42 = sphi 0, %s39
      %s43 = sphi 0, %s42
      %s59 = sphi 0, %s43
      %s65 = sphi 0, %s67
      %s68 = sphi 0, %s65
      %s69 = sphi 0, %s68
      %s85 = sphi 0, %s69
      %s93 = sphi 0, %s95
      %s96 = sphi 0, %s93
      %s97 = sphi 0, %s96
      %s113 = sphi 0, %s97
      %s117 = sphi 0, %s117
      %s119 = sphi 0, %s117
      %s120 = sphi 0, %s119
      %s134 = sphi 0, %s120
      %s138 = sphi 0, %s138
      %s140 = sphi 0, %s138
      %s141 = sphi 0, %s140
      %s155 = sphi 0, %s141
      %s161 = sphi 0, %s163
      %s164 = sphi 0, %s161
      %s165 = sphi 0, %s164
      %s181 = sphi 0, %s165
      %s187 = sphi 0, %s189
      %s190 = sphi 0, %s187
      %s191 = sphi 0, %s190
      %s207 = sphi 0, %s191
    $region4: #{forward.12} parent=1 // loop_header_branch
      %16 = sbr.rel (%p14) target = $region8
    $region5: #{forward.12} parent=1 // loop_body
      %s18 = ssub.s32 %s13, 1
      %s19 = ssub.s32 %s13, 2
      %s26 = sadd.s32 1, %s21
      %p27 = scmp.ge.s32.totalorder %s26, 2
      %s28 = scalar_select %p27, 0, %s26
      %s29 = sadd.s32 1, %s20
      %s30 = scalar_select %p27, %s29, %s20
      %p31 = scmp.ge.s32.totalorder %s30, 2
      %s32 = scalar_select %p31, 0, %s30
      %s33 = sadd.s32 %s21, 4
      %s34 = sadd.s32 %s28, 4
      %s35 = ssub.s32 %s20, %s32
      %s36 = ssub.s32 %s33, %s34
      %s37 = sor.u32 %s35, %s36
      %p38 = scmp.eq.s32.totalorder %s37, 0
      %s40 = sadd.s32 %s39, 1
      %s41 = scalar_select %p38, %s39, %s40
      %p44 = pneg %p38
      %p45 = scmp.eq.s32.totalorder %s13, 3
      %p46 = por %p44, %p45
      %p47 = scmp.ne.s32.totalorder %s39, %s42
      %p48 = scmp.eq.s32.totalorder %s13, 0
      %p49 = por %p47, %p48
      %p50 = scmp.ne.s32.totalorder %s39, %s42
      %p51 = scmp.eq.s32.totalorder %s18, 3
      %p52 = por %p50, %p51
      %p53 = scmp.ne.s32.totalorder %s42, %s43
      %p54 = scmp.eq.s32.totalorder %s18, 0
      %p55 = por %p53, %p54
      %p56 = scmp.ne.s32.totalorder %s42, %s43
      %p57 = scmp.eq.s32.totalorder %s19, 3
      %p58 = por %p56, %p57
      %p60 = scmp.ne.s32.totalorder %s43, %s59
      %p61 = scmp.eq.s32.totalorder %s19, 0
      %p62 = por %p60, %p61
      %s63 = ssub.s32 %s21, %s28
      %p64 = scmp.eq.s32.totalorder %s63, 0
      %s66 = sadd.s32 %s65, 1
      %s67 = scalar_select %p64, %s65, %s66
      %p70 = pneg %p64
      %p71 = scmp.eq.s32.totalorder %s13, 3
      %p72 = por %p70, %p71
      %p73 = scmp.ne.s32.totalorder %s65, %s68
      %p74 = scmp.eq.s32.totalorder %s13, 0
      %p75 = por %p73, %p74
      %p76 = scmp.ne.s32.totalorder %s65, %s68
      %p77 = scmp.eq.s32.totalorder %s18, 3
      %p78 = por %p76, %p77
      %p79 = scmp.ne.s32.totalorder %s68, %s69
      %p80 = scmp.eq.s32.totalorder %s18, 0
      %p81 = por %p79, %p80
      %p82 = scmp.ne.s32.totalorder %s68, %s69
      %p83 = scmp.eq.s32.totalorder %s19, 3
      %p84 = por %p82, %p83
      %p86 = scmp.ne.s32.totalorder %s69, %s85
      %p87 = scmp.eq.s32.totalorder %s19, 0
      %p88 = por %p86, %p87
      %s89 = sadd.s32 %s21, 4
      %s90 = sadd.s32 %s28, 4
      %s91 = ssub.s32 %s89, %s90
      %p92 = scmp.eq.s32.totalorder %s91, 0
      %s94 = sadd.s32 %s93, 1
      %s95 = scalar_select %p92, %s93, %s94
      %p98 = pneg %p92
      %p99 = scmp.eq.s32.totalorder %s13, 3
      %p100 = por %p98, %p99
      %p101 = scmp.ne.s32.totalorder %s93, %s96
      %p102 = scmp.eq.s32.totalorder %s13, 0
      %p103 = por %p101, %p102
      %p104 = scmp.ne.s32.totalorder %s93, %s96
      %p105 = scmp.eq.s32.totalorder %s18, 3
      %p106 = por %p104, %p105
      %p107 = scmp.ne.s32.totalorder %s96, %s97
      %p108 = scmp.eq.s32.totalorder %s18, 0
      %p109 = por %p107, %p108
      %p110 = scmp.ne.s32.totalorder %s96, %s97
      %p111 = scmp.eq.s32.totalorder %s19, 3
      %p112 = por %p110, %p111
      %p114 = scmp.ne.s32.totalorder %s97, %s113
      %p115 = scmp.eq.s32.totalorder %s19, 0
      %p116 = por %p114, %p115
      %s118 = sadd.s32 %s117, 1
      %p121 = scmp.eq.s32.totalorder %s13, 3
      %p122 = scmp.ne.s32.totalorder %s117, %s119
      %p123 = scmp.eq.s32.totalorder %s13, 0
      %p124 = por %p122, %p123
      %p125 = scmp.ne.s32.totalorder %s117, %s119
      %p126 = scmp.eq.s32.totalorder %s18, 3
      %p127 = por %p125, %p126
      %p128 = scmp.ne.s32.totalorder %s119, %s120
      %p129 = scmp.eq.s32.totalorder %s18, 0
      %p130 = por %p128, %p129
      %p131 = scmp.ne.s32.totalorder %s119, %s120
      %p132 = scmp.eq.s32.totalorder %s19, 3
      %p133 = por %p131, %p132
      %p135 = scmp.ne.s32.totalorder %s120, %s134
      %p136 = scmp.eq.s32.totalorder %s19, 0
      %p137 = por %p135, %p136
      %s139 = sadd.s32 %s138, 1
      %p142 = scmp.eq.s32.totalorder %s13, 3
      %p143 = scmp.ne.s32.totalorder %s138, %s140
      %p144 = scmp.eq.s32.totalorder %s13, 0
      %p145 = por %p143, %p144
      %p146 = scmp.ne.s32.totalorder %s138, %s140
      %p147 = scmp.eq.s32.totalorder %s18, 3
      %p148 = por %p146, %p147
      %p149 = scmp.ne.s32.totalorder %s140, %s141
      %p150 = scmp.eq.s32.totalorder %s18, 0
      %p151 = por %p149, %p150
      %p152 = scmp.ne.s32.totalorder %s140, %s141
      %p153 = scmp.eq.s32.totalorder %s19, 3
      %p154 = por %p152, %p153
      %p156 = scmp.ne.s32.totalorder %s141, %s155
      %p157 = scmp.eq.s32.totalorder %s19, 0
      %p158 = por %p156, %p157
      %s159 = ssub.s32 %s20, %s32
      %p160 = scmp.eq.s32.totalorder %s159, 0
      %s162 = sadd.s32 %s161, 1
      %s163 = scalar_select %p160, %s161, %s162
      %p166 = pneg %p160
      %p167 = scmp.eq.s32.totalorder %s13, 3
      %p168 = por %p166, %p167
      %p169 = scmp.ne.s32.totalorder %s161, %s164
      %p170 = scmp.eq.s32.totalorder %s13, 0
      %p171 = por %p169, %p170
      %p172 = scmp.ne.s32.totalorder %s161, %s164
      %p173 = scmp.eq.s32.totalorder %s18, 3
      %p174 = por %p172, %p173
      %p175 = scmp.ne.s32.totalorder %s164, %s165
      %p176 = scmp.eq.s32.totalorder %s18, 0
      %p177 = por %p175, %p176
      %p178 = scmp.ne.s32.totalorder %s164, %s165
      %p179 = scmp.eq.s32.totalorder %s19, 3
      %p180 = por %p178, %p179
      %p182 = scmp.ne.s32.totalorder %s165, %s181
      %p183 = scmp.eq.s32.totalorder %s19, 0
      %p184 = por %p182, %p183
      %s185 = ssub.s32 %s20, %s32
      %p186 = scmp.eq.s32.totalorder %s185, 0
      %s188 = sadd.s32 %s187, 1
      %s189 = scalar_select %p186, %s187, %s188
      %p192 = pneg %p186
      %p193 = scmp.eq.s32.totalorder %s13, 3
      %p194 = por %p192, %p193
      %p195 = scmp.ne.s32.totalorder %s187, %s190
      %p196 = scmp.eq.s32.totalorder %s13, 0
      %p197 = por %p195, %p196
      %p198 = scmp.ne.s32.totalorder %s187, %s190
      %p199 = scmp.eq.s32.totalorder %s18, 3
      %p200 = por %p198, %p199
      %p201 = scmp.ne.s32.totalorder %s190, %s191
      %p202 = scmp.eq.s32.totalorder %s18, 0
      %p203 = por %p201, %p202
      %p204 = scmp.ne.s32.totalorder %s190, %s191
      %p205 = scmp.eq.s32.totalorder %s19, 3
      %p206 = por %p204, %p205
      %p208 = scmp.ne.s32.totalorder %s191, %s207
      %p209 = scmp.eq.s32.totalorder %s19, 0
      %p210 = por %p208, %p209
      %p211 = scmp.le.s32.totalorder 1, %s13
      %p212 = scmp.lt.s32.totalorder %s13, 5
      %p213 = pnand %p211, %p212
      %p214 = pneg %p213
      // Predicated region
      $region9: #{forward.12} parent=5 // pred_check
        _
      $region10: #{forward.12} parent=5 // pred_check_branch
        %216 = sbr.rel (%p213) target = $region12
      $region11: #{forward.12} parent=5 // pred_region
        %s217 = ssub.s32 %s13, 1
        // Predicated region
        $region13: #{forward.12} parent=11 // pred_check
          %p218 = pneg %p130
        $region14: #{forward.12} parent=11 // pred_check_branch
          %220 = sbr.rel (%p218) target = $region16
        $region15: #{forward.12} parent=11 // pred_region
          _
        $region16: #{forward.12} parent=11 // pred_fallthru
          _
        // Predicated region
        $region17: #{forward.12} parent=11 // pred_check
          %p221 = pneg %p151
        $region18: #{forward.12} parent=11 // pred_check_branch
          %223 = sbr.rel (%p221) target = $region20
        $region19: #{forward.12} parent=11 // pred_region
          _
        $region20: #{forward.12} parent=11 // pred_fallthru
          _
      $region12: #{forward.12} parent=5 // pred_fallthru
        _
      %p224 = scmp.lt.s32.totalorder %s13, 4
      // Predicated region
      $region21: #{forward.12} parent=5 // pred_check
        %p225 = pneg %p224
      $region22: #{forward.12} parent=5 // pred_check_branch
        %227 = sbr.rel (%p225) target = $region24
      $region23: #{forward.12} parent=5 // pred_region
        // Predicated region
        $region25: #{forward.12} parent=23 // pred_check
          %p228 = pneg %p49
        $region26: #{forward.12} parent=23 // pred_check_branch
          %230 = sbr.rel (%p228) target = $region28
        $region27: #{forward.12} parent=23 // pred_region
          %s231 = sadd.s32 %s21, 4
          %p232 = scmp.lt.s32.totalorder %s20, 1
          %s233 = scalar_select %p232, %s20, 1
          %p234 = scmp.lt.s32.totalorder %s231, 6
          %s235 = scalar_select %p234, %s231, 6
          %s236 = smul.addr %s235, 3
          %s237 = smul.addr %s233, 21
          %s238 = sadd.s32 %s236, %s237
          %s239 = smul.addr %s238, 8
          %s240 = scalar_lea.vmem %s0, %s239
          %s241 = sadd.s32 %s21, 4
        $region28: #{forward.12} parent=23 // pred_fallthru
          _
        // Predicated region
        $region29: #{forward.12} parent=23 // pred_check
          %p242 = pneg %p75
        $region30: #{forward.12} parent=23 // pred_check_branch
          %244 = sbr.rel (%p242) target = $region32
        $region31: #{forward.12} parent=23 // pred_region
          %p245 = scmp.lt.s32.totalorder %s21, 1
          %s246 = scalar_select %p245, %s21, 1
          %s247 = smul.addr %s246, 9
          %s248 = smul.addr %s247, 8
          %s249 = scalar_lea.vmem %s1, %s248
        $region32: #{forward.12} parent=23 // pred_fallthru
          _
        // Predicated region
        $region33: #{forward.12} parent=23 // pred_check
          %p250 = pneg %p103
        $region34: #{forward.12} parent=23 // pred_check_branch
          %252 = sbr.rel (%p250) target = $region36
        $region35: #{forward.12} parent=23 // pred_region
          %s253 = sand.u32 %s93, 1
          %s254 = sand.u32 %s93, 1
          %s255 = smul.addr %s254, 24
          %s256 = scalar_lea.vmem [#allocation3], %s255
          %s257 = sadd.s32 %s21, 4
          %s258 = smul.addr %s257, 8
          %s259 = scalar_lea.vmem %s2, %s258
          // Predicated region
          $region37: #{forward.12} parent=35 // pred_check
            _
          $region38: #{forward.12} parent=35 // pred_check_branch
            %261 = sbr.rel (0) target = $region40
          $region39: #{forward.12} parent=35 // pred_region
            // Predicated region
            $region41: #{forward.12} parent=39 // pred_check
              _
            $region42: #{forward.12} parent=39 // pred_check_branch
              %263 = sbr.rel (0) target = $region44
            $region43: #{forward.12} parent=39 // pred_region
              // Predicated region
              $region56: #{forward.12} parent=43 // pred_check
                _
              $region57: #{forward.12} parent=43 // pred_check_branch
                %283 = sbr.rel (0) target = $region59
              $region58: #{forward.12} parent=43 // pred_region
                loop: start=0, step=1, limit=1
                $region60: #{forward.12} parent=58 // loop_pre_header
                  _
                $region61: #{forward.12} parent=58 // loop_header
                  %s285 = sphi 0, %s289
                  %p286 = scmp.ge.s32.totalorder %s285, 1
                  %s290 = sphi %s259, %s259
                  %s291 = sphi %s256, %s256
                $region62: #{forward.12} parent=58 // loop_header_branch
                  %288 = sbr.rel (%p286) target = $region66
                $region63: #{forward.12} parent=58 // loop_body
                  %v292 = vld [vmem:[%s290] sm:$0xff]
                  %293 = vst [vmem:[%s291] sm:$0xff] %v292
                  %v294 = vld [vmem:[%s290 + $0x38] sm:$0xff]
                  %295 = vst [vmem:[%s291 + $0x8] sm:$0xff] %v294
                  %v296 = vld [vmem:[%s290 + $0x70] sm:$0xff]
                  %297 = vst [vmem:[%s291 + $0x10] sm:$0xff] %v296
                $region64: #{forward.12} parent=58 // loop_footer
                  %s289 = sadd.s32 1, %s285
                $region65: #{forward.12} parent=58 // loop_footer_branch
                  %284 = sbr.rel target = $region61
                $region66: #{forward.12} parent=58 // loop_exit
                  _
              $region59: #{forward.12} parent=43 // pred_fallthru
                _
              // Predicated region
              $region67: #{forward.12} parent=43 // pred_check
                _
              $region68: #{forward.12} parent=43 // pred_check_branch
                %299 = sbr.rel target = $region70
              $region69: #{forward.12} parent=43 // pred_region
                _
              $region70: #{forward.12} parent=43 // pred_fallthru
                _
            $region44: #{forward.12} parent=39 // pred_fallthru
              _
            // Predicated region
            $region45: #{forward.12} parent=39 // pred_check
              _
            $region46: #{forward.12} parent=39 // pred_check_branch
              %265 = sbr.rel target = $region48
            $region47: #{forward.12} parent=39 // pred_region
              %s267 = ssub.s32 256, 1
              loop: start=0, step=1, limit=1
              $region49: #{forward.12} parent=47 // loop_pre_header
                _
              $region50: #{forward.12} parent=47 // loop_header
                %s269 = sphi 0, %s273
                %p270 = scmp.ge.s32.totalorder %s269, 1
                %s274 = sphi %s259, %s259
                %s275 = sphi %s256, %s256
              $region51: #{forward.12} parent=47 // loop_header_branch
                %272 = sbr.rel (%p270) target = $region55
              $region52: #{forward.12} parent=47 // loop_body
                %v276 = vld [vmem:[%s274] sm:%s267]
                %277 = vst [vmem:[%s275] sm:%s267] %v276
                %v278 = vld [vmem:[%s274 + $0x38] sm:%s267]
                %279 = vst [vmem:[%s275 + $0x8] sm:%s267] %v278
                %v280 = vld [vmem:[%s274 + $0x70] sm:%s267]
                %281 = vst [vmem:[%s275 + $0x10] sm:%s267] %v280
              $region53: #{forward.12} parent=47 // loop_footer
                %s273 = sadd.s32 1, %s269
              $region54: #{forward.12} parent=47 // loop_footer_branch
                %268 = sbr.rel target = $region50
              $region55: #{forward.12} parent=47 // loop_exit
                _
            $region48: #{forward.12} parent=39 // pred_fallthru
              _
          $region40: #{forward.12} parent=35 // pred_fallthru
            _
          %300 = vnop
        $region36: #{forward.12} parent=23 // pred_fallthru
          _
      $region24: #{forward.12} parent=5 // pred_fallthru
        _
      %p301 = scmp.le.s32.totalorder 1, %s13
      %p302 = scmp.lt.s32.totalorder %s13, 5
      %p303 = pnand %p301, %p302
      %p304 = pneg %p303
      // Predicated region
      $region71: #{forward.12} parent=5 // pred_check
        _
      $region72: #{forward.12} parent=5 // pred_check_branch
        %306 = sbr.rel (%p303) target = $region74
      $region73: #{forward.12} parent=5 // pred_region
        %s307 = ssub.s32 %s13, 1
        %s308 = sand.u32 %s96, 1
        %s309 = sand.u32 %s96, 1
        %s310 = smul.addr %s309, 24
        %s311 = scalar_lea.vmem [#allocation3], %s310
        // Predicated region
        $region75: #{forward.12} parent=73 // pred_check
          %p312 = pneg %p109
        $region76: #{forward.12} parent=73 // pred_check_branch
          %314 = sbr.rel (%p312) target = $region78
        $region77: #{forward.12} parent=73 // pred_region
          _
        $region78: #{forward.12} parent=73 // pred_fallthru
          _
        %s315 = sadd.s32 %s23, 4
        %p316 = scmp.lt.s32.totalorder %s22, 1
        %s317 = scalar_select %p316, %s22, 1
        %p318 = scmp.lt.s32.totalorder %s315, 6
        %s319 = scalar_select %p318, %s315, 6
        %s320 = smul.addr %s319, 3
        %s321 = smul.addr %s317, 21
        %s322 = sadd.s32 %s320, %s321
        %s323 = smul.addr %s322, 8
        %s324 = scalar_lea.vmem %s0, %s323
        %p325 = pneg %p55
        %p326 = pneg %p52
        %p327 = scmp.lt.s32.totalorder %s23, 1
        %s328 = scalar_select %p327, %s23, 1
        %s329 = smul.addr %s328, 9
        %s330 = smul.addr %s329, 8
        %s331 = scalar_lea.vmem %s1, %s330
        %p332 = pneg %p81
        %p333 = pneg %p78
        %s334 = sand.u32 %s96, 1
        %s335 = sand.u32 %s96, 1
        %s336 = smul.addr %s335, 24
        %s337 = scalar_lea.vmem [#allocation3], %s336
        %p338 = pneg %p109
        %p339 = pneg %p106
        %p340 = pneg %p130
        %p341 = pneg %p127
        %p342 = pneg %p151
        %p343 = pneg %p148
        %p344 = pneg %p177
        %p345 = pneg %p174
        %p346 = scmp.lt.s32.totalorder %s22, 1
        %s347 = scalar_select %p346, %s22, 1
        %s348 = smul.addr %s347, 21
        %s349 = sadd.s32 18, %s348
        %s350 = smul.addr %s349, 8
        %s351 = scalar_lea.vmem %s5, %s350
        %p352 = pneg %p203
        %p353 = pneg %p200
        %p354 = scmp.lt.s32.totalorder %s22, 1
        %s355 = scalar_select %p354, %s22, 1
        %s356 = smul.addr %s355, 8
        %s357 = scalar_lea.vmem %s6, %s356
        %s358 = sadd.s32 %s23, 4
        %p359 = scmp.lt.s32.totalorder %s22, 1
        %s360 = scalar_select %p359, %s22, 1
        %p361 = scmp.lt.s32.totalorder %s358, 6
        %s362 = scalar_select %p361, %s358, 6
        %s363 = smul.addr %s362, 3
        %s364 = smul.addr %s360, 21
        %s365 = sadd.s32 %s363, %s364
        %s366 = smul.addr %s365, 8
        %s367 = scalar_lea.vmem %s0, %s366
        %s368 = sadd.s32 %s23, 4
        %p369 = scmp.lt.s32.totalorder %s23, 1
        %s370 = scalar_select %p369, %s23, 1
        %s371 = smul.addr %s370, 9
        %s372 = smul.addr %s371, 8
        %s373 = scalar_lea.vmem %s1, %s372
        %s374 = sadd.s32 %s23, 4
        %p375 = scmp.lt.s32.totalorder %s22, 1
        %s376 = scalar_select %p375, %s22, 1
        %s377 = smul.addr %s376, 21
        %s378 = sadd.s32 18, %s377
        %s379 = smul.addr %s378, 8
        %s380 = scalar_lea.vmem %s5, %s379
        %p381 = scmp.lt.s32.totalorder %s22, 1
        %s382 = scalar_select %p381, %s22, 1
        %s383 = smul.addr %s382, 8
        %s384 = scalar_lea.vmem %s6, %s383
        %p385 = scmp.eq.s32.totalorder %s23, 0
        // Predicated region
        $region79: #{forward.12} parent=73 // pred_check
          %p386 = pneg %p385
        $region80: #{forward.12} parent=73 // pred_check_branch
          %388 = sbr.rel (%p386) target = $region82
        $region81: #{forward.12} parent=73 // pred_region
          %389 = vst [vmem:[#allocation2] sm:$0xff] 0.0
          %390 = vst [vmem:[#allocation2 + $0x8] sm:$0xff] 0.0
          %vm391 = vcmask 261120
          %392 = vst.msk [vmem:[#allocation2 + $0x10] sm:$0xff] %vm391, 0.0
        $region82: #{forward.12} parent=73 // pred_fallthru
          _
        %v393 = vld [vmem:[%s367] sm:$0xff]
        %v394 = vld [vmem:[%s367 + $0x8] sm:$0xff]
        %v395 = vld [vmem:[%s367 + $0x10] sm:$0xff]
        %v396 = vld [vmem:[%s311] sm:$0xff]
        %398 = vset.pattern.permute.xlu0 0
        %399 = vperm.xlu0 %398, %v396
        %v400 = vpop.permute.xlu0 %399
        %v402 = vmul.f32 %v393, %v400
        %v403 = vmul.f32 %v394, %v400
        %v404 = vmul.f32 %v395, %v400
        %s405 = scalar_lea.vmem %s311, 8 [#allocation3]
        %v406 = vld [vmem:[%s405] sm:$0xff]
        %408 = vset.pattern.permute.xlu0 0
        %409 = vperm.xlu0 %408, %v406
        %v410 = vpop.permute.xlu0 %409
        %v412 = vadd.f32 %v402, %v410
        %v413 = vadd.f32 %v403, %v410
        %v414 = vadd.f32 %v404, %v410
        %s415 = scalar_lea.vmem %s311, 16 [#allocation3]
        %v416 = vld [vmem:[%s415] sm:$0xff]
        %418 = vset.pattern.permute.xlu0 0
        %419 = vperm.xlu0 %418, %v416
        %v420 = vpop.permute.xlu0 %419
        %v422 = vmax.f32 %v412, %v420
        %v423 = vmax.f32 %v413, %v420
        %v424 = vmax.f32 %v414, %v420
        %v425 = vld [vmem:[%s4] sm:$0x7]
        %v427 = vperm.slane %v425, 0
        %v428 = vperm.slane %v425, 1
        %v429 = vperm.slane %v425, 2
        %v433 = vmul.f32 %v422, %v427
        %v434 = vmul.f32 %v423, %v428
        %v435 = vmul.f32 %v424, %v429
        %v436 = vld [vmem:[%s373] sm:$0xff]
        %s437 = scalar_lea.vmem %s373, 8
        %v438 = vld [vmem:[%s437] sm:$0xff]
        %442 = vrot.lane.b32.xlu0 %v433, 127
        %v443 = vpop.permute.xlu0 %442
        %444 = vrot.lane.b32.xlu0 %v434, 127
        %v445 = vpop.permute.xlu0 %444
        %446 = vrot.lane.b32.xlu0 %v435, 127
        %v447 = vpop.permute.xlu0 %446
        %vm448 = vcmask 1039360
        %v449 = vsel %vm448, %v443, %v445
        %v450 = vsel %vm448, %v445, %v447
        %vm454 = vcmask 64512
        %v456 = vsel %vm454, %v438, 0
        %458 = vmatpush.msra.mxu0 0.0
        %459 = vmatpush.msra.mxu0 0.0
        %460 = vmatpush.msra.mxu0 0.0
        %461 = vmatpush.msra.mxu0 0.0
        %462 = vmatpush.msra.mxu0 0.0
        %463 = vmatpush.msra.mxu0 0.0
        %464 = vmatpush.msra.mxu0 0.0
        %465 = vmatpush.msra.mxu0 0.0
        %466 = vmatpush.msra.mxu0 0.0
        %467 = vmatpush.msra.mxu0 0.0
        %468 = vmatpush.msra.mxu0 0.0
        %469 = vmatpush.msra.mxu0 0.0
        %470 = vmatpush.msra.mxu0 0.0
        %471 = vmatpush.msra.mxu0 0.0
        %472 = vmatpush.msra.mxu0 0.0
        %473 = vmatpush.msra.mxu0 %v449
        %474 = vmatmul.f32.gmra.mxu0 %v456
        %v475 = vpop.f32.mrf.mxu0
        %v476 = vadd.f32 0.0, %v475
        %477 = vdwg.mxu0
        %478 = vmatpush.msra.mxu0 0.0
        %479 = vmatpush.msra.mxu0 0.0
        %480 = vmatpush.msra.mxu0 0.0
        %481 = vmatpush.msra.mxu0 0.0
        %482 = vmatpush.msra.mxu0 0.0
        %483 = vmatpush.msra.mxu0 0.0
        %484 = vmatpush.msra.mxu0 0.0
        %485 = vmatpush.msra.mxu0 0.0
        %486 = vmatpush.msra.mxu0 0.0
        %487 = vmatpush.msra.mxu0 0.0
        %488 = vmatpush.msra.mxu0 0.0
        %489 = vmatpush.msra.mxu0 0.0
        %490 = vmatpush.msra.mxu0 0.0
        %491 = vmatpush.msra.mxu0 0.0
        %492 = vmatpush.msra.mxu0 0.0
        %493 = vmatpush.msra.mxu0 %v450
        %494 = vmatmul.f32.gmra.mxu0 %v456
        %v495 = vpop.f32.mrf.mxu0
        %v496 = vadd.f32 0.0, %v495
        %497 = vdwg.mxu0
        %498 = vmatpush.msra.mxu0 0.0
        %499 = vmatpush.msra.mxu0 0.0
        %500 = vmatpush.msra.mxu0 0.0
        %501 = vmatpush.msra.mxu0 0.0
        %502 = vmatpush.msra.mxu0 0.0
        %503 = vmatpush.msra.mxu0 0.0
        %504 = vmatpush.msra.mxu0 0.0
        %505 = vmatpush.msra.mxu0 0.0
        %506 = vmatpush.msra.mxu0 0.0
        %507 = vmatpush.msra.mxu0 0.0
        %508 = vmatpush.msra.mxu0 0.0
        %509 = vmatpush.msra.mxu0 0.0
        %510 = vmatpush.msra.mxu0 0.0
        %511 = vmatpush.msra.mxu0 0.0
        %512 = vmatpush.msra.mxu0 0.0
        %513 = vmatpush.msra.mxu0 %v447
        %514 = vmatmul.f32.gmra.mxu0 %v456
        %v515 = vpop.f32.mrf.mxu0
        %v516 = vadd.f32 0.0, %v515
        %517 = vdwg.mxu0
        %v519 = vsel %vm454, %v436, 0
        %521 = vmatpush.msra.mxu0 0.0
        %522 = vmatpush.msra.mxu0 0.0
        %523 = vmatpush.msra.mxu0 0.0
        %524 = vmatpush.msra.mxu0 0.0
        %525 = vmatpush.msra.mxu0 0.0
        %526 = vmatpush.msra.mxu0 0.0
        %527 = vmatpush.msra.mxu0 0.0
        %528 = vmatpush.msra.mxu0 0.0
        %529 = vmatpush.msra.mxu0 0.0
        %530 = vmatpush.msra.mxu0 0.0
        %531 = vmatpush.msra.mxu0 0.0
        %532 = vmatpush.msra.mxu0 0.0
        %533 = vmatpush.msra.mxu0 0.0
        %534 = vmatpush.msra.mxu0 0.0
        %535 = vmatpush.msra.mxu0 0.0
        %536 = vmatpush.msra.mxu0 %v433
        %537 = vmatmul.f32.gmra.mxu0 %v519
        %v538 = vpop.f32.mrf.mxu0
        %v539 = vadd.f32 %v476, %v538
        %540 = vdwg.mxu0
        %541 = vmatpush.msra.mxu0 0.0
        %542 = vmatpush.msra.mxu0 0.0
        %543 = vmatpush.msra.mxu0 0.0
        %544 = vmatpush.msra.mxu0 0.0
        %545 = vmatpush.msra.mxu0 0.0
        %546 = vmatpush.msra.mxu0 0.0
        %547 = vmatpush.msra.mxu0 0.0
        %548 = vmatpush.msra.mxu0 0.0
        %549 = vmatpush.msra.mxu0 0.0
        %550 = vmatpush.msra.mxu0 0.0
        %551 = vmatpush.msra.mxu0 0.0
        %552 = vmatpush.msra.mxu0 0.0
        %553 = vmatpush.msra.mxu0 0.0
        %554 = vmatpush.msra.mxu0 0.0
        %555 = vmatpush.msra.mxu0 0.0
        %556 = vmatpush.msra.mxu0 %v434
        %557 = vmatmul.f32.gmra.mxu0 %v519
        %v558 = vpop.f32.mrf.mxu0
        %v559 = vadd.f32 %v496, %v558
        %560 = vdwg.mxu0
        %561 = vmatpush.msra.mxu0 0.0
        %562 = vmatpush.msra.mxu0 0.0
        %563 = vmatpush.msra.mxu0 0.0
        %564 = vmatpush.msra.mxu0 0.0
        %565 = vmatpush.msra.mxu0 0.0
        %566 = vmatpush.msra.mxu0 0.0
        %567 = vmatpush.msra.mxu0 0.0
        %568 = vmatpush.msra.mxu0 0.0
        %569 = vmatpush.msra.mxu0 0.0
        %570 = vmatpush.msra.mxu0 0.0
        %571 = vmatpush.msra.mxu0 0.0
        %572 = vmatpush.msra.mxu0 0.0
        %573 = vmatpush.msra.mxu0 0.0
        %574 = vmatpush.msra.mxu0 0.0
        %575 = vmatpush.msra.mxu0 0.0
        %576 = vmatpush.msra.mxu0 %v435
        %577 = vmatmul.f32.gmra.mxu0 %v519
        %v578 = vpop.f32.mrf.mxu0
        %v579 = vadd.f32 %v516, %v578
        %580 = vdwg.mxu0
        %s581 = scalar_lea.vmem %s373, 16
        %v582 = vld [vmem:[%s581] sm:$0xff]
        %583 = vrot.lane.b32.xlu0 %v433, 126
        %v584 = vpop.permute.xlu0 %583
        %585 = vrot.lane.b32.xlu0 %v434, 126
        %v586 = vpop.permute.xlu0 %585
        %587 = vrot.lane.b32.xlu0 %v435, 126
        %v588 = vpop.permute.xlu0 %587
        %vm589 = vcmask 1031168
        %v590 = vsel %vm589, %v584, %v586
        %v591 = vsel %vm589, %v586, %v588
        %v596 = vsel %vm454, %v582, 0
        %598 = vmatpush.msra.mxu0 0.0
        %599 = vmatpush.msra.mxu0 0.0
        %600 = vmatpush.msra.mxu0 0.0
        %601 = vmatpush.msra.mxu0 0.0
        %602 = vmatpush.msra.mxu0 0.0
        %603 = vmatpush.msra.mxu0 0.0
        %604 = vmatpush.msra.mxu0 0.0
        %605 = vmatpush.msra.mxu0 0.0
        %606 = vmatpush.msra.mxu0 0.0
        %607 = vmatpush.msra.mxu0 0.0
        %608 = vmatpush.msra.mxu0 0.0
        %609 = vmatpush.msra.mxu0 0.0
        %610 = vmatpush.msra.mxu0 0.0
        %611 = vmatpush.msra.mxu0 0.0
        %612 = vmatpush.msra.mxu0 0.0
        %613 = vmatpush.msra.mxu0 %v590
        %614 = vmatmul.f32.gmra.mxu0 %v596
        %v615 = vpop.f32.mrf.mxu0
        %v616 = vadd.f32 0.0, %v615
        %617 = vdwg.mxu0
        %618 = vmatpush.msra.mxu0 0.0
        %619 = vmatpush.msra.mxu0 0.0
        %620 = vmatpush.msra.mxu0 0.0
        %621 = vmatpush.msra.mxu0 0.0
        %622 = vmatpush.msra.mxu0 0.0
        %623 = vmatpush.msra.mxu0 0.0
        %624 = vmatpush.msra.mxu0 0.0
        %625 = vmatpush.msra.mxu0 0.0
        %626 = vmatpush.msra.mxu0 0.0
        %627 = vmatpush.msra.mxu0 0.0
        %628 = vmatpush.msra.mxu0 0.0
        %629 = vmatpush.msra.mxu0 0.0
        %630 = vmatpush.msra.mxu0 0.0
        %631 = vmatpush.msra.mxu0 0.0
        %632 = vmatpush.msra.mxu0 0.0
        %633 = vmatpush.msra.mxu0 %v591
        %634 = vmatmul.f32.gmra.mxu0 %v596
        %v635 = vpop.f32.mrf.mxu0
        %v636 = vadd.f32 0.0, %v635
        %637 = vdwg.mxu0
        %638 = vmatpush.msra.mxu0 0.0
        %639 = vmatpush.msra.mxu0 0.0
        %640 = vmatpush.msra.mxu0 0.0
        %641 = vmatpush.msra.mxu0 0.0
        %642 = vmatpush.msra.mxu0 0.0
        %643 = vmatpush.msra.mxu0 0.0
        %644 = vmatpush.msra.mxu0 0.0
        %645 = vmatpush.msra.mxu0 0.0
        %646 = vmatpush.msra.mxu0 0.0
        %647 = vmatpush.msra.mxu0 0.0
        %648 = vmatpush.msra.mxu0 0.0
        %649 = vmatpush.msra.mxu0 0.0
        %650 = vmatpush.msra.mxu0 0.0
        %651 = vmatpush.msra.mxu0 0.0
        %652 = vmatpush.msra.mxu0 0.0
        %653 = vmatpush.msra.mxu0 %v588
        %654 = vmatmul.f32.gmra.mxu0 %v596
        %v655 = vpop.f32.mrf.mxu0
        %v656 = vadd.f32 0.0, %v655
        %657 = vdwg.mxu0
        %v658 = vadd.f32 %v539, %v616
        %v659 = vadd.f32 %v559, %v636
        %v660 = vadd.f32 %v579, %v656
        %s661 = scalar_lea.vmem %s373, 24
        %v662 = vld [vmem:[%s661] sm:$0xff]
        %663 = vrot.lane.b32.xlu0 %v433, 110
        %v664 = vpop.permute.xlu0 %663
        %665 = vrot.lane.b32.xlu0 %v434, 110
        %v666 = vpop.permute.xlu0 %665
        %667 = vrot.lane.b32.xlu0 %v435, 110
        %v668 = vpop.permute.xlu0 %667
        %vm669 = vcmask 900096
        %v670 = vsel %vm669, %v664, %v666
        %v671 = vsel %vm669, %v666, %v668
        %v676 = vsel %vm454, %v662, 0
        %678 = vmatpush.msra.mxu0 0.0
        %679 = vmatpush.msra.mxu0 0.0
        %680 = vmatpush.msra.mxu0 0.0
        %681 = vmatpush.msra.mxu0 0.0
        %682 = vmatpush.msra.mxu0 0.0
        %683 = vmatpush.msra.mxu0 0.0
        %684 = vmatpush.msra.mxu0 0.0
        %685 = vmatpush.msra.mxu0 0.0
        %686 = vmatpush.msra.mxu0 0.0
        %687 = vmatpush.msra.mxu0 0.0
        %688 = vmatpush.msra.mxu0 0.0
        %689 = vmatpush.msra.mxu0 0.0
        %690 = vmatpush.msra.mxu0 0.0
        %691 = vmatpush.msra.mxu0 0.0
        %692 = vmatpush.msra.mxu0 0.0
        %693 = vmatpush.msra.mxu0 %v670
        %694 = vmatmul.f32.gmra.mxu0 %v676
        %v695 = vpop.f32.mrf.mxu0
        %v696 = vadd.f32 0.0, %v695
        %697 = vdwg.mxu0
        %698 = vmatpush.msra.mxu0 0.0
        %699 = vmatpush.msra.mxu0 0.0
        %700 = vmatpush.msra.mxu0 0.0
        %701 = vmatpush.msra.mxu0 0.0
        %702 = vmatpush.msra.mxu0 0.0
        %703 = vmatpush.msra.mxu0 0.0
        %704 = vmatpush.msra.mxu0 0.0
        %705 = vmatpush.msra.mxu0 0.0
        %706 = vmatpush.msra.mxu0 0.0
        %707 = vmatpush.msra.mxu0 0.0
        %708 = vmatpush.msra.mxu0 0.0
        %709 = vmatpush.msra.mxu0 0.0
        %710 = vmatpush.msra.mxu0 0.0
        %711 = vmatpush.msra.mxu0 0.0
        %712 = vmatpush.msra.mxu0 0.0
        %713 = vmatpush.msra.mxu0 %v671
        %714 = vmatmul.f32.gmra.mxu0 %v676
        %v715 = vpop.f32.mrf.mxu0
        %v716 = vadd.f32 0.0, %v715
        %717 = vdwg.mxu0
        %718 = vmatpush.msra.mxu0 0.0
        %719 = vmatpush.msra.mxu0 0.0
        %720 = vmatpush.msra.mxu0 0.0
        %721 = vmatpush.msra.mxu0 0.0
        %722 = vmatpush.msra.mxu0 0.0
        %723 = vmatpush.msra.mxu0 0.0
        %724 = vmatpush.msra.mxu0 0.0
        %725 = vmatpush.msra.mxu0 0.0
        %726 = vmatpush.msra.mxu0 0.0
        %727 = vmatpush.msra.mxu0 0.0
        %728 = vmatpush.msra.mxu0 0.0
        %729 = vmatpush.msra.mxu0 0.0
        %730 = vmatpush.msra.mxu0 0.0
        %731 = vmatpush.msra.mxu0 0.0
        %732 = vmatpush.msra.mxu0 0.0
        %733 = vmatpush.msra.mxu0 %v668
        %734 = vmatmul.f32.gmra.mxu0 %v676
        %v735 = vpop.f32.mrf.mxu0
        %v736 = vadd.f32 0.0, %v735
        %737 = vdwg.mxu0
        %v738 = vadd.f32 %v658, %v696
        %v739 = vadd.f32 %v659, %v716
        %v740 = vadd.f32 %v660, %v736
        %s741 = scalar_lea.vmem %s373, 32
        %v742 = vld [vmem:[%s741] sm:$0xff]
        %743 = vrot.lane.b32.xlu0 %v433, 109
        %v744 = vpop.permute.xlu0 %743
        %745 = vrot.lane.b32.xlu0 %v434, 109
        %v746 = vpop.permute.xlu0 %745
        %747 = vrot.lane.b32.xlu0 %v435, 109
        %v748 = vpop.permute.xlu0 %747
        %vm749 = vcmask 891904
        %v750 = vsel %vm749, %v744, %v746
        %v751 = vsel %vm749, %v746, %v748
        %v756 = vsel %vm454, %v742, 0
        %758 = vmatpush.msra.mxu0 0.0
        %759 = vmatpush.msra.mxu0 0.0
        %760 = vmatpush.msra.mxu0 0.0
        %761 = vmatpush.msra.mxu0 0.0
        %762 = vmatpush.msra.mxu0 0.0
        %763 = vmatpush.msra.mxu0 0.0
        %764 = vmatpush.msra.mxu0 0.0
        %765 = vmatpush.msra.mxu0 0.0
        %766 = vmatpush.msra.mxu0 0.0
        %767 = vmatpush.msra.mxu0 0.0
        %768 = vmatpush.msra.mxu0 0.0
        %769 = vmatpush.msra.mxu0 0.0
        %770 = vmatpush.msra.mxu0 0.0
        %771 = vmatpush.msra.mxu0 0.0
        %772 = vmatpush.msra.mxu0 0.0
        %773 = vmatpush.msra.mxu0 %v750
        %774 = vmatmul.f32.gmra.mxu0 %v756
        %v775 = vpop.f32.mrf.mxu0
        %v776 = vadd.f32 0.0, %v775
        %777 = vdwg.mxu0
        %778 = vmatpush.msra.mxu0 0.0
        %779 = vmatpush.msra.mxu0 0.0
        %780 = vmatpush.msra.mxu0 0.0
        %781 = vmatpush.msra.mxu0 0.0
        %782 = vmatpush.msra.mxu0 0.0
        %783 = vmatpush.msra.mxu0 0.0
        %784 = vmatpush.msra.mxu0 0.0
        %785 = vmatpush.msra.mxu0 0.0
        %786 = vmatpush.msra.mxu0 0.0
        %787 = vmatpush.msra.mxu0 0.0
        %788 = vmatpush.msra.mxu0 0.0
        %789 = vmatpush.msra.mxu0 0.0
        %790 = vmatpush.msra.mxu0 0.0
        %791 = vmatpush.msra.mxu0 0.0
        %792 = vmatpush.msra.mxu0 0.0
        %793 = vmatpush.msra.mxu0 %v751
        %794 = vmatmul.f32.gmra.mxu0 %v756
        %v795 = vpop.f32.mrf.mxu0
        %v796 = vadd.f32 0.0, %v795
        %797 = vdwg.mxu0
        %798 = vmatpush.msra.mxu0 0.0
        %799 = vmatpush.msra.mxu0 0.0
        %800 = vmatpush.msra.mxu0 0.0
        %801 = vmatpush.msra.mxu0 0.0
        %802 = vmatpush.msra.mxu0 0.0
        %803 = vmatpush.msra.mxu0 0.0
        %804 = vmatpush.msra.mxu0 0.0
        %805 = vmatpush.msra.mxu0 0.0
        %806 = vmatpush.msra.mxu0 0.0
        %807 = vmatpush.msra.mxu0 0.0
        %808 = vmatpush.msra.mxu0 0.0
        %809 = vmatpush.msra.mxu0 0.0
        %810 = vmatpush.msra.mxu0 0.0
        %811 = vmatpush.msra.mxu0 0.0
        %812 = vmatpush.msra.mxu0 0.0
        %813 = vmatpush.msra.mxu0 %v748
        %814 = vmatmul.f32.gmra.mxu0 %v756
        %v815 = vpop.f32.mrf.mxu0
        %v816 = vadd.f32 0.0, %v815
        %817 = vdwg.mxu0
        %v818 = vadd.f32 %v738, %v776
        %v819 = vadd.f32 %v739, %v796
        %v820 = vadd.f32 %v740, %v816
        %s821 = scalar_lea.vmem %s373, 40
        %v822 = vld [vmem:[%s821] sm:$0xff]
        %823 = vrot.lane.b32.xlu0 %v433, 108
        %v824 = vpop.permute.xlu0 %823
        %825 = vrot.lane.b32.xlu0 %v434, 108
        %v826 = vpop.permute.xlu0 %825
        %827 = vrot.lane.b32.xlu0 %v435, 108
        %v828 = vpop.permute.xlu0 %827
        %vm829 = vcmask 883712
        %v830 = vsel %vm829, %v824, %v826
        %v831 = vsel %vm829, %v826, %v828
        %v836 = vsel %vm454, %v822, 0
        %838 = vmatpush.msra.mxu0 0.0
        %839 = vmatpush.msra.mxu0 0.0
        %840 = vmatpush.msra.mxu0 0.0
        %841 = vmatpush.msra.mxu0 0.0
        %842 = vmatpush.msra.mxu0 0.0
        %843 = vmatpush.msra.mxu0 0.0
        %844 = vmatpush.msra.mxu0 0.0
        %845 = vmatpush.msra.mxu0 0.0
        %846 = vmatpush.msra.mxu0 0.0
        %847 = vmatpush.msra.mxu0 0.0
        %848 = vmatpush.msra.mxu0 0.0
        %849 = vmatpush.msra.mxu0 0.0
        %850 = vmatpush.msra.mxu0 0.0
        %851 = vmatpush.msra.mxu0 0.0
        %852 = vmatpush.msra.mxu0 0.0
        %853 = vmatpush.msra.mxu0 %v830
        %854 = vmatmul.f32.gmra.mxu0 %v836
        %v855 = vpop.f32.mrf.mxu0
        %v856 = vadd.f32 0.0, %v855
        %857 = vdwg.mxu0
        %858 = vmatpush.msra.mxu0 0.0
        %859 = vmatpush.msra.mxu0 0.0
        %860 = vmatpush.msra.mxu0 0.0
        %861 = vmatpush.msra.mxu0 0.0
        %862 = vmatpush.msra.mxu0 0.0
        %863 = vmatpush.msra.mxu0 0.0
        %864 = vmatpush.msra.mxu0 0.0
        %865 = vmatpush.msra.mxu0 0.0
        %866 = vmatpush.msra.mxu0 0.0
        %867 = vmatpush.msra.mxu0 0.0
        %868 = vmatpush.msra.mxu0 0.0
        %869 = vmatpush.msra.mxu0 0.0
        %870 = vmatpush.msra.mxu0 0.0
        %871 = vmatpush.msra.mxu0 0.0
        %872 = vmatpush.msra.mxu0 0.0
        %873 = vmatpush.msra.mxu0 %v831
        %874 = vmatmul.f32.gmra.mxu0 %v836
        %v875 = vpop.f32.mrf.mxu0
        %v876 = vadd.f32 0.0, %v875
        %877 = vdwg.mxu0
        %878 = vmatpush.msra.mxu0 0.0
        %879 = vmatpush.msra.mxu0 0.0
        %880 = vmatpush.msra.mxu0 0.0
        %881 = vmatpush.msra.mxu0 0.0
        %882 = vmatpush.msra.mxu0 0.0
        %883 = vmatpush.msra.mxu0 0.0
        %884 = vmatpush.msra.mxu0 0.0
        %885 = vmatpush.msra.mxu0 0.0
        %886 = vmatpush.msra.mxu0 0.0
        %887 = vmatpush.msra.mxu0 0.0
        %888 = vmatpush.msra.mxu0 0.0
        %889 = vmatpush.msra.mxu0 0.0
        %890 = vmatpush.msra.mxu0 0.0
        %891 = vmatpush.msra.mxu0 0.0
        %892 = vmatpush.msra.mxu0 0.0
        %893 = vmatpush.msra.mxu0 %v828
        %894 = vmatmul.f32.gmra.mxu0 %v836
        %v895 = vpop.f32.mrf.mxu0
        %v896 = vadd.f32 0.0, %v895
        %897 = vdwg.mxu0
        %v898 = vadd.f32 %v818, %v856
        %v899 = vadd.f32 %v819, %v876
        %v900 = vadd.f32 %v820, %v896
        %s901 = scalar_lea.vmem %s373, 48
        %v902 = vld [vmem:[%s901] sm:$0xff]
        %903 = vrot.lane.b32.xlu0 %v433, 92
        %v904 = vpop.permute.xlu0 %903
        %905 = vrot.lane.b32.xlu0 %v434, 92
        %v906 = vpop.permute.xlu0 %905
        %907 = vrot.lane.b32.xlu0 %v435, 92
        %v908 = vpop.permute.xlu0 %907
        %vm909 = vcmask 752640
        %v910 = vsel %vm909, %v904, %v906
        %v911 = vsel %vm909, %v906, %v908
        %v916 = vsel %vm454, %v902, 0
        %918 = vmatpush.msra.mxu0 0.0
        %919 = vmatpush.msra.mxu0 0.0
        %920 = vmatpush.msra.mxu0 0.0
        %921 = vmatpush.msra.mxu0 0.0
        %922 = vmatpush.msra.mxu0 0.0
        %923 = vmatpush.msra.mxu0 0.0
        %924 = vmatpush.msra.mxu0 0.0
        %925 = vmatpush.msra.mxu0 0.0
        %926 = vmatpush.msra.mxu0 0.0
        %927 = vmatpush.msra.mxu0 0.0
        %928 = vmatpush.msra.mxu0 0.0
        %929 = vmatpush.msra.mxu0 0.0
        %930 = vmatpush.msra.mxu0 0.0
        %931 = vmatpush.msra.mxu0 0.0
        %932 = vmatpush.msra.mxu0 0.0
        %933 = vmatpush.msra.mxu0 %v910
        %934 = vmatmul.f32.gmra.mxu0 %v916
        %v935 = vpop.f32.mrf.mxu0
        %v936 = vadd.f32 0.0, %v935
        %937 = vdwg.mxu0
        %938 = vmatpush.msra.mxu0 0.0
        %939 = vmatpush.msra.mxu0 0.0
        %940 = vmatpush.msra.mxu0 0.0
        %941 = vmatpush.msra.mxu0 0.0
        %942 = vmatpush.msra.mxu0 0.0
        %943 = vmatpush.msra.mxu0 0.0
        %944 = vmatpush.msra.mxu0 0.0
        %945 = vmatpush.msra.mxu0 0.0
        %946 = vmatpush.msra.mxu0 0.0
        %947 = vmatpush.msra.mxu0 0.0
        %948 = vmatpush.msra.mxu0 0.0
        %949 = vmatpush.msra.mxu0 0.0
        %950 = vmatpush.msra.mxu0 0.0
        %951 = vmatpush.msra.mxu0 0.0
        %952 = vmatpush.msra.mxu0 0.0
        %953 = vmatpush.msra.mxu0 %v911
        %954 = vmatmul.f32.gmra.mxu0 %v916
        %v955 = vpop.f32.mrf.mxu0
        %v956 = vadd.f32 0.0, %v955
        %957 = vdwg.mxu0
        %958 = vmatpush.msra.mxu0 0.0
        %959 = vmatpush.msra.mxu0 0.0
        %960 = vmatpush.msra.mxu0 0.0
        %961 = vmatpush.msra.mxu0 0.0
        %962 = vmatpush.msra.mxu0 0.0
        %963 = vmatpush.msra.mxu0 0.0
        %964 = vmatpush.msra.mxu0 0.0
        %965 = vmatpush.msra.mxu0 0.0
        %966 = vmatpush.msra.mxu0 0.0
        %967 = vmatpush.msra.mxu0 0.0
        %968 = vmatpush.msra.mxu0 0.0
        %969 = vmatpush.msra.mxu0 0.0
        %970 = vmatpush.msra.mxu0 0.0
        %971 = vmatpush.msra.mxu0 0.0
        %972 = vmatpush.msra.mxu0 0.0
        %973 = vmatpush.msra.mxu0 %v908
        %974 = vmatmul.f32.gmra.mxu0 %v916
        %v975 = vpop.f32.mrf.mxu0
        %v976 = vadd.f32 0.0, %v975
        %977 = vdwg.mxu0
        %v978 = vadd.f32 %v898, %v936
        %v979 = vadd.f32 %v899, %v956
        %v980 = vadd.f32 %v900, %v976
        %s981 = scalar_lea.vmem %s373, 56
        %v982 = vld [vmem:[%s981] sm:$0xff]
        %983 = vrot.lane.b32.xlu0 %v433, 91
        %v984 = vpop.permute.xlu0 %983
        %985 = vrot.lane.b32.xlu0 %v434, 91
        %v986 = vpop.permute.xlu0 %985
        %987 = vrot.lane.b32.xlu0 %v435, 91
        %v988 = vpop.permute.xlu0 %987
        %vm989 = vcmask 744448
        %v990 = vsel %vm989, %v984, %v986
        %v991 = vsel %vm989, %v986, %v988
        %v996 = vsel %vm454, %v982, 0
        %998 = vmatpush.msra.mxu0 0.0
        %999 = vmatpush.msra.mxu0 0.0
        %1000 = vmatpush.msra.mxu0 0.0
        %1001 = vmatpush.msra.mxu0 0.0
        %1002 = vmatpush.msra.mxu0 0.0
        %1003 = vmatpush.msra.mxu0 0.0
        %1004 = vmatpush.msra.mxu0 0.0
        %1005 = vmatpush.msra.mxu0 0.0
        %1006 = vmatpush.msra.mxu0 0.0
        %1007 = vmatpush.msra.mxu0 0.0
        %1008 = vmatpush.msra.mxu0 0.0
        %1009 = vmatpush.msra.mxu0 0.0
        %1010 = vmatpush.msra.mxu0 0.0
        %1011 = vmatpush.msra.mxu0 0.0
        %1012 = vmatpush.msra.mxu0 0.0
        %1013 = vmatpush.msra.mxu0 %v990
        %1014 = vmatmul.f32.gmra.mxu0 %v996
        %v1015 = vpop.f32.mrf.mxu0
        %v1016 = vadd.f32 0.0, %v1015
        %1017 = vdwg.mxu0
        %1018 = vmatpush.msra.mxu0 0.0
        %1019 = vmatpush.msra.mxu0 0.0
        %1020 = vmatpush.msra.mxu0 0.0
        %1021 = vmatpush.msra.mxu0 0.0
        %1022 = vmatpush.msra.mxu0 0.0
        %1023 = vmatpush.msra.mxu0 0.0
        %1024 = vmatpush.msra.mxu0 0.0
        %1025 = vmatpush.msra.mxu0 0.0
        %1026 = vmatpush.msra.mxu0 0.0
        %1027 = vmatpush.msra.mxu0 0.0
        %1028 = vmatpush.msra.mxu0 0.0
        %1029 = vmatpush.msra.mxu0 0.0
        %1030 = vmatpush.msra.mxu0 0.0
        %1031 = vmatpush.msra.mxu0 0.0
        %1032 = vmatpush.msra.mxu0 0.0
        %1033 = vmatpush.msra.mxu0 %v991
        %1034 = vmatmul.f32.gmra.mxu0 %v996
        %v1035 = vpop.f32.mrf.mxu0
        %v1036 = vadd.f32 0.0, %v1035
        %1037 = vdwg.mxu0
        %1038 = vmatpush.msra.mxu0 0.0
        %1039 = vmatpush.msra.mxu0 0.0
        %1040 = vmatpush.msra.mxu0 0.0
        %1041 = vmatpush.msra.mxu0 0.0
        %1042 = vmatpush.msra.mxu0 0.0
        %1043 = vmatpush.msra.mxu0 0.0
        %1044 = vmatpush.msra.mxu0 0.0
        %1045 = vmatpush.msra.mxu0 0.0
        %1046 = vmatpush.msra.mxu0 0.0
        %1047 = vmatpush.msra.mxu0 0.0
        %1048 = vmatpush.msra.mxu0 0.0
        %1049 = vmatpush.msra.mxu0 0.0
        %1050 = vmatpush.msra.mxu0 0.0
        %1051 = vmatpush.msra.mxu0 0.0
        %1052 = vmatpush.msra.mxu0 0.0
        %1053 = vmatpush.msra.mxu0 %v988
        %1054 = vmatmul.f32.gmra.mxu0 %v996
        %v1055 = vpop.f32.mrf.mxu0
        %v1056 = vadd.f32 0.0, %v1055
        %1057 = vdwg.mxu0
        %v1058 = vadd.f32 %v978, %v1016
        %v1059 = vadd.f32 %v979, %v1036
        %v1060 = vadd.f32 %v980, %v1056
        %s1061 = scalar_lea.vmem %s373, 64
        %v1062 = vld [vmem:[%s1061] sm:$0xff]
        %1063 = vrot.lane.b32.xlu0 %v433, 90
        %v1064 = vpop.permute.xlu0 %1063
        %1065 = vrot.lane.b32.xlu0 %v434, 90
        %v1066 = vpop.permute.xlu0 %1065
        %1067 = vrot.lane.b32.xlu0 %v435, 90
        %v1068 = vpop.permute.xlu0 %1067
        %vm1069 = vcmask 736256
        %v1070 = vsel %vm1069, %v1064, %v1066
        %v1071 = vsel %vm1069, %v1066, %v1068
        %v1076 = vsel %vm454, %v1062, 0
        %1078 = vmatpush.msra.mxu0 0.0
        %1079 = vmatpush.msra.mxu0 0.0
        %1080 = vmatpush.msra.mxu0 0.0
        %1081 = vmatpush.msra.mxu0 0.0
        %1082 = vmatpush.msra.mxu0 0.0
        %1083 = vmatpush.msra.mxu0 0.0
        %1084 = vmatpush.msra.mxu0 0.0
        %1085 = vmatpush.msra.mxu0 0.0
        %1086 = vmatpush.msra.mxu0 0.0
        %1087 = vmatpush.msra.mxu0 0.0
        %1088 = vmatpush.msra.mxu0 0.0
        %1089 = vmatpush.msra.mxu0 0.0
        %1090 = vmatpush.msra.mxu0 0.0
        %1091 = vmatpush.msra.mxu0 0.0
        %1092 = vmatpush.msra.mxu0 0.0
        %1093 = vmatpush.msra.mxu0 %v1070
        %1094 = vmatmul.f32.gmra.mxu0 %v1076
        %v1095 = vpop.f32.mrf.mxu0
        %v1096 = vadd.f32 0.0, %v1095
        %1097 = vdwg.mxu0
        %1098 = vmatpush.msra.mxu0 0.0
        %1099 = vmatpush.msra.mxu0 0.0
        %1100 = vmatpush.msra.mxu0 0.0
        %1101 = vmatpush.msra.mxu0 0.0
        %1102 = vmatpush.msra.mxu0 0.0
        %1103 = vmatpush.msra.mxu0 0.0
        %1104 = vmatpush.msra.mxu0 0.0
        %1105 = vmatpush.msra.mxu0 0.0
        %1106 = vmatpush.msra.mxu0 0.0
        %1107 = vmatpush.msra.mxu0 0.0
        %1108 = vmatpush.msra.mxu0 0.0
        %1109 = vmatpush.msra.mxu0 0.0
        %1110 = vmatpush.msra.mxu0 0.0
        %1111 = vmatpush.msra.mxu0 0.0
        %1112 = vmatpush.msra.mxu0 0.0
        %1113 = vmatpush.msra.mxu0 %v1071
        %1114 = vmatmul.f32.gmra.mxu0 %v1076
        %v1115 = vpop.f32.mrf.mxu0
        %v1116 = vadd.f32 0.0, %v1115
        %1117 = vdwg.mxu0
        %1118 = vmatpush.msra.mxu0 0.0
        %1119 = vmatpush.msra.mxu0 0.0
        %1120 = vmatpush.msra.mxu0 0.0
        %1121 = vmatpush.msra.mxu0 0.0
        %1122 = vmatpush.msra.mxu0 0.0
        %1123 = vmatpush.msra.mxu0 0.0
        %1124 = vmatpush.msra.mxu0 0.0
        %1125 = vmatpush.msra.mxu0 0.0
        %1126 = vmatpush.msra.mxu0 0.0
        %1127 = vmatpush.msra.mxu0 0.0
        %1128 = vmatpush.msra.mxu0 0.0
        %1129 = vmatpush.msra.mxu0 0.0
        %1130 = vmatpush.msra.mxu0 0.0
        %1131 = vmatpush.msra.mxu0 0.0
        %1132 = vmatpush.msra.mxu0 0.0
        %1133 = vmatpush.msra.mxu0 %v1068
        %1134 = vmatmul.f32.gmra.mxu0 %v1076
        %v1135 = vpop.f32.mrf.mxu0
        %v1136 = vadd.f32 0.0, %v1135
        %1137 = vdwg.mxu0
        %v1138 = vadd.f32 %v1058, %v1096
        %v1139 = vadd.f32 %v1059, %v1116
        %v1140 = vadd.f32 %v1060, %v1136
        %v1141 = vld [vmem:[#allocation2] sm:$0xff]
        %v1142 = vld [vmem:[#allocation2 + $0x8] sm:$0xff]
        %v1143 = vld [vmem:[#allocation2 + $0x10] sm:$0xff]
        %v1144 = vadd.f32 %v1141, %v1138
        %v1145 = vadd.f32 %v1142, %v1139
        %v1146 = vadd.f32 %v1143, %v1140
        %1147 = vst [vmem:[#allocation2] sm:$0xff] %v1144
        %1148 = vst [vmem:[#allocation2 + $0x8] sm:$0xff] %v1145
        %vm1149 = vcmask 261120
        %1150 = vst.msk [vmem:[#allocation2 + $0x10] sm:$0xff] %vm1149, %v1146
        %p1151 = scmp.eq.s32.totalorder %s23, 1
        // Predicated region
        $region83: #{forward.12} parent=73 // pred_check
          %p1152 = pneg %p1151
        $region84: #{forward.12} parent=73 // pred_check_branch
          %1154 = sbr.rel (%p1152) target = $region86
        $region85: #{forward.12} parent=73 // pred_region
          %v1155 = vld [vmem:[#allocation2] sm:$0xff]
          %v1156 = vld [vmem:[#allocation2 + $0x8] sm:$0xff]
          %v1157 = vld [vmem:[#allocation2 + $0x10] sm:$0xff]
          %1161 = vrot.lane.b32.xlu0 %v1155, 19
          %v1162 = vpop.permute.xlu0 %1161
          %1163 = vrot.lane.b32.xlu0 %v1156, 19
          %v1164 = vpop.permute.xlu0 %1163
          %1165 = vrot.lane.b32.xlu0 %v1157, 19
          %v1166 = vpop.permute.xlu0 %1165
          %vm1167 = vcmask 154624
          %v1168 = vsel %vm1167, %v1162, %v1164
          %v1169 = vsel %vm1167, %v1164, %v1166
          %v1173 = vsel %vm1167, 0.0, %v1162
          %vm1174 = vcmask 416768
          %v1175 = vsel %vm1174, %v1169, 0.0
          %v1176 = vld [vmem:[%s3] sm:$0xff]
          %1178 = vset.pattern.permute.xlu0 0
          %1179 = vperm.xlu0 %1178, %v1176
          %v1180 = vpop.permute.xlu0 %1179
          %v1182 = vadd.f32 %v1173, %v1180
          %v1183 = vadd.f32 %v1168, %v1180
          %v1184 = vadd.f32 %v1175, %v1180
          %v1185 = vld [vmem:[%s4] sm:$0x7]
          %v1187 = vperm.slane %v1185, 0
          %v1188 = vperm.slane %v1185, 1
          %v1189 = vperm.slane %v1185, 2
          %v1193 = vmul.f32 %v1182, %v1187
          %v1194 = vmul.f32 %v1183, %v1188
          %v1195 = vmul.f32 %v1184, %v1189
          %1196 = vst [vmem:[%s380] sm:$0xff] %v1193
          %1197 = vst [vmem:[%s380 + $0x8] sm:$0xff] %v1194
          %1198 = vst [vmem:[%s380 + $0x10] sm:$0xff] %v1195
          %v1199 = vadd.f32 %v1193, %v1194
          %v1200 = vadd.f32 %v1199, %v1195
          %1201 = vadd.xlane.f32.xlu0 %v1200
          %v1202 = vpop.xlane.xlu0 %1201
          %v1203 = vmul.f32 %v1193, %v1193
          %v1204 = vmul.f32 %v1194, %v1194
          %v1205 = vmul.f32 %v1195, %v1195
          %v1206 = vadd.f32 %v1203, %v1204
          %v1207 = vadd.f32 %v1206, %v1205
          %1208 = vadd.xlane.f32.xlu0 %v1207
          %v1209 = vpop.xlane.xlu0 %1208
          %vm1210 = vcmask 7168
          %v1211 = vsel %vm1210, %v1202, %v1209
          %vm1212 = vcmask 15360
          %1213 = vst.msk [vmem:[%s384] sm:$0xff] %vm1212, %v1211
        $region86: #{forward.12} parent=73 // pred_fallthru
          _
        %p1214 = scmp.lt.s32.totalorder %s22, 1
        %s1215 = scalar_select %p1214, %s22, 1
        %s1216 = smul.addr %s1215, 21
        %s1217 = sadd.s32 18, %s1216
        %s1218 = smul.addr %s1217, 8
        %s1219 = scalar_lea.vmem %s5, %s1218
        %p1220 = scmp.lt.s32.totalorder %s22, 1
        %s1221 = scalar_select %p1220, %s22, 1
        %s1222 = smul.addr %s1221, 8
        %s1223 = scalar_lea.vmem %s6, %s1222
        // Predicated region
        $region87: #{forward.12} parent=73 // pred_check
          %p1224 = pneg %p174
        $region88: #{forward.12} parent=73 // pred_check_branch
          %1226 = sbr.rel (%p1224) target = $region90
        $region89: #{forward.12} parent=73 // pred_region
          _
        $region90: #{forward.12} parent=73 // pred_fallthru
          _
        // Predicated region
        $region91: #{forward.12} parent=73 // pred_check
          %p1227 = pneg %p200
        $region92: #{forward.12} parent=73 // pred_check_branch
          %1229 = sbr.rel (%p1227) target = $region94
        $region93: #{forward.12} parent=73 // pred_region
          _
        $region94: #{forward.12} parent=73 // pred_fallthru
          _
      $region74: #{forward.12} parent=5 // pred_fallthru
        _
      %p1230 = scmp.le.s32.totalorder 2, %s13
      // Predicated region
      $region95: #{forward.12} parent=5 // pred_check
        %p1231 = pneg %p1230
      $region96: #{forward.12} parent=5 // pred_check_branch
        %1233 = sbr.rel (%p1231) target = $region98
      $region97: #{forward.12} parent=5 // pred_region
        %s1234 = ssub.s32 %s13, 2
        // Predicated region
        $region99: #{forward.12} parent=97 // pred_check
          %p1235 = pneg %p180
        $region100: #{forward.12} parent=97 // pred_check_branch
          %1237 = sbr.rel (%p1235) target = $region102
        $region101: #{forward.12} parent=97 // pred_region
          %p1238 = scmp.lt.s32.totalorder %s24, 1
          %s1239 = scalar_select %p1238, %s24, 1
          %s1240 = smul.addr %s1239, 21
          %s1241 = sadd.s32 18, %s1240
          %s1242 = smul.addr %s1241, 8
          %s1243 = scalar_lea.vmem %s5, %s1242
        $region102: #{forward.12} parent=97 // pred_fallthru
          _
        // Predicated region
        $region103: #{forward.12} parent=97 // pred_check
          %p1244 = pneg %p206
        $region104: #{forward.12} parent=97 // pred_check_branch
          %1246 = sbr.rel (%p1244) target = $region106
        $region105: #{forward.12} parent=97 // pred_region
          %p1247 = scmp.lt.s32.totalorder %s24, 1
          %s1248 = scalar_select %p1247, %s24, 1
          %s1249 = smul.addr %s1248, 8
          %s1250 = scalar_lea.vmem %s6, %s1249
        $region106: #{forward.12} parent=97 // pred_fallthru
          _
      $region98: #{forward.12} parent=5 // pred_fallthru
        _
    $region6: #{forward.12} parent=1 // loop_footer
      %s17 = sadd.s32 1, %s13
    $region7: #{forward.12} parent=1 // loop_footer_branch
      %12 = sbr.rel target = $region3
    $region8: #{forward.12} parent=1 // loop_exit
      _

</llo_original>
